<compile_context>
chip_gen: v7x
topology: tpu7x:2x2x1
jax: 0.10.0
libtpu: 0.0.40
codegen_flags: <defaults>
</compile_context>

<pallas_src>
import math
import functools

import jax
import jax.numpy as jnp
from jax.experimental import pallas as pl
from jax.experimental.pallas import tpu as pltpu


# ----------------------------- Pallas kernels -----------------------------

def _decoder_layer_kernel(
        x_ref, mem_ref,
        sa_qkv_w, sa_qkv_b, sa_out_w, sa_out_b, ln1_g, ln1_b,
        ca_q_w, ca_q_b, ca_kv_w, ca_kv_b, ca_out_w, ca_out_b, ln2_g, ln2_b,
        ff_w1, ff_b1, ff_w2, ff_b2, ln3_g, ln3_b,
        o_ref, *, n_heads, head_dim, bt, seq_q, seq_kv, causal):
    """One full nn.TransformerDecoderLayer (post-norm, relu, dropout=identity)
    for `bt` batch elements (grid axis = batch tiles)."""
    D = n_heads * head_dim
    S, T = seq_q, seq_kv
    scale = 1.0 / math.sqrt(head_dim)

    x = x_ref[...].reshape(bt * S, D)        # (Bt*S, D) f32 activations
    mem = mem_ref[...].reshape(bt * T, D)    # (Bt*T, D)

    def bdot(a, w_ref_):
        # bf16 operands on the MXU, f32 accumulation.
        return jnp.dot(a.astype(jnp.bfloat16), w_ref_[...],
                       preferred_element_type=jnp.float32)

    def layer_norm(y, g, b):
        # single-pass: mean and E[x^2] together, var = E[x^2] - mean^2
        mean = jnp.mean(y, axis=-1, keepdims=True)
        var = jnp.mean(y * y, axis=-1, keepdims=True) - mean * mean
        inv = jax.lax.rsqrt(var + 1e-5)
        return (y - mean) * (inv * g[...]) + b[...]

    def softmax_rows(s):
        s = s - jnp.max(s, axis=-1, keepdims=True)
        p = jnp.exp(s)
        # approx reciprocal -> EUP slot (VALU freed); inference-grade accuracy.
        return p * pl.reciprocal(jnp.sum(p, axis=-1, keepdims=True), approx=True)

    if causal:
        r = jax.lax.broadcasted_iota(jnp.int32, (S, S), 0)
        c = jax.lax.broadcasted_iota(jnp.int32, (S, S), 1)
        causal_bias = jnp.where(c > r, -1e9, 0.0)          # additive f32 mask
    else:
        causal_bias = None

    def mha(q_all, k_all, v_all, kv_rows, bias):
        """Per-(batch, head) scores/softmax/PV; head outputs are lane-concatenated
        so the output projection is a single K=D matmul."""
        # TODO(synk): for head_dim < 128 at large D, use a head-major (H, S, Dh)
        # layout or pad head_dim to 128 to avoid lane-unaligned per-head slices.
        outs = []
        for b in range(bt):                                  # static unrolled
            qb = q_all[b * S:(b + 1) * S].astype(jnp.bfloat16)
            kb = k_all[b * kv_rows:(b + 1) * kv_rows].astype(jnp.bfloat16)
            vb = v_all[b * kv_rows:(b + 1) * kv_rows].astype(jnp.bfloat16)
            heads = []
            for h in range(n_heads):                         # static unrolled
                lo, hi = h * head_dim, (h + 1) * head_dim
                # contract last dims -> no explicit k transpose materialized
                s = jax.lax.dot_general(qb[:, lo:hi], kb[:, lo:hi],
                                        (((1,), (1,)), ((), ())),
                                        preferred_element_type=jnp.float32) * scale
                if bias is not None:
                    s = s + bias
                p = softmax_rows(s)
                heads.append(jnp.dot(p.astype(jnp.bfloat16), vb[:, lo:hi],
                                     preferred_element_type=jnp.float32))
            outs.append(jnp.concatenate(heads, axis=-1))     # (S, D)
        return jnp.concatenate(outs, axis=0)                 # (Bt*S, D)

    # ---- self-attention (fused QKV matmul, in-kernel causal bias) ----
    qkv = bdot(x, sa_qkv_w) + sa_qkv_b[...]
    heads_sa = mha(qkv[:, :D], qkv[:, D:2 * D], qkv[:, 2 * D:], S, causal_bias)
    sa = bdot(heads_sa, sa_out_w) + sa_out_b[...]
    x = layer_norm(x + sa, ln1_g, ln1_b)

    # ---- cross-attention (fused K/V matmul, no memory mask) ----
    q = bdot(x, ca_q_w) + ca_q_b[...]
    kv = bdot(mem, ca_kv_w) + ca_kv_b[...]
    heads_ca = mha(q, kv[:, :D], kv[:, D:], T, None)
    ca = bdot(heads_ca, ca_out_w) + ca_out_b[...]
    x = layer_norm(x + ca, ln2_g, ln2_b)

    # ---- feed-forward (relu; dropout == identity at inference) ----
    hdn = jnp.maximum(bdot(x, ff_w1) + ff_b1[...], 0.0)
    ff = bdot(hdn, ff_w2) + ff_b2[...]
    x = layer_norm(x + ff, ln3_g, ln3_b)

    o_ref[...] = x.reshape(bt, S, D).astype(o_ref.dtype)


def _linear_kernel(x_ref, w_ref, b_ref, o_ref):
    o_ref[...] = (jnp.dot(x_ref[...].astype(jnp.bfloat16), w_ref[...],
                          preferred_element_type=jnp.float32) + b_ref[...])


# ----------------------------- helpers -----------------------------

def _pick_bt(B, S, row_cap=512):
    """Largest divisor of B such that Bt*S rows stay MXU/VMEM friendly."""
    bt = 1
    for cand in range(1, B + 1):
        if B % cand == 0 and cand * S <= row_cap:
            bt = cand
    return bt


def _aligned_tile(dim, cap, align):
    """Largest divisor of dim that is <= cap and a multiple of align, else dim."""
    if dim <= cap:
        return dim
    t = (cap // align) * align
    while t >= align:
        if dim % t == 0:
            return t
        t -= align
    return dim


def _vmem_limit(block_bytes):
    # double-buffered blocks + compiler scratch headroom, kept under v7x physical.
    return int(min(max(2 * block_bytes + (8 << 20), 16 << 20), 60 << 20))


# ----------------------------- Pallas wrappers -----------------------------

def pallas_decoder_layer(x, memory, p, n_heads, *, causal=True):
    """x: (B, S, D) f32, memory: (B, T, D) f32.  Whole decoder layer fused."""
    B, S, D = x.shape
    T = memory.shape[1]
    head_dim = D // n_heads
    bt = _pick_bt(B, S)

    weights = (
        p["sa_qkv_w"], p["sa_qkv_b"], p["sa_out_w"], p["sa_out_b"], p["ln1_g"], p["ln1_b"],
        p["ca_q_w"], p["ca_q_b"], p["ca_kv_w"], p["ca_kv_b"], p["ca_out_w"], p["ca_out_b"],
        p["ln2_g"], p["ln2_b"],
        p["ff_w1"], p["ff_b1"], p["ff_w2"], p["ff_b2"], p["ln3_g"], p["ln3_b"],
    )
    # Weight blocks are full arrays, resident across the batch grid (index (0,0)).
    # TODO(synk): on v7x with large D, add pipeline_mode=pl.Buffered(1) to these
    # constant-index blocks (or memory_space=pl.ANY + one manual copy) so they are
    # not double-buffered; bf16 storage already halves their VMEM/DMA footprint.
    w_specs = [pl.BlockSpec(w.shape, lambda b: (0, 0)) for w in weights]

    F = p["ff_w1"].shape[1]
    block_bytes = ((2 * bt * S * D + bt * T * D) * 4
                   + sum(int(w.size) * w.dtype.itemsize for w in weights)
                   + bt * S * (3 * D + F) * 4)

    kern = functools.partial(_decoder_layer_kernel, n_heads=n_heads, head_dim=head_dim,
                             bt=bt, seq_q=S, seq_kv=T, causal=causal)
    # TODO(synk): on v7x with B<=2 add a second "parallel" axis (S-tiles) so both
    # TensorCores are used even at tiny batch.
    return pl.pallas_call(
        kern,
        out_shape=jax.ShapeDtypeStruct((B, S, D), jnp.float32),
        grid=(B // bt,),
        in_specs=[pl.BlockSpec((bt, S, D), lambda b: (b, 0, 0)),   # x (batch tile)
                  pl.BlockSpec((bt, T, D), lambda b: (b, 0, 0))]   # memory (batch tile)
                 + w_specs,
        out_specs=pl.BlockSpec((bt, S, D), lambda b: (b, 0, 0)),
        input_output_aliases={0: 0},    # reuse the layer-input buffer for the output
        compiler_params=pltpu.CompilerParams(
            dimension_semantics=("parallel",),
            vmem_limit_bytes=_vmem_limit(block_bytes)),
    )(x, memory, *weights)


def pallas_linear(x2d, w, b2d):
    """x2d: (M, K) f32, w: (K, N) bf16 pre-transposed, b2d: (1, N) f32 -> (M, N) f32.
    Tiled over M and lane-aligned N blocks so realistic vocab sizes fit VMEM."""
    M, K = x2d.shape
    N = w.shape[1]
    block_m = _aligned_tile(M, 512, 8)
    block_n = _aligned_tile(N, 1024, 128)
    # TODO(synk): add K-tiling with an f32 VMEM accumulator if D grows beyond VMEM.
    block_bytes = (block_m * K * 4 + K * block_n * w.dtype.itemsize
                   + block_n * 4 + block_m * block_n * 4)
    return pl.pallas_call(
        _linear_kernel,
        out_shape=jax.ShapeDtypeStruct((M, N), jnp.float32),
        grid=(M // block_m, N // block_n),
        in_specs=[pl.BlockSpec((block_m, K), lambda i, j: (i, 0)),
                  pl.BlockSpec((K, block_n), lambda i, j: (0, j)),
                  pl.BlockSpec((1, block_n), lambda i, j: (0, j))],
        out_specs=pl.BlockSpec((block_m, block_n), lambda i, j: (i, j)),
        compiler_params=pltpu.CompilerParams(
            dimension_semantics=("parallel", "parallel"),
            vmem_limit_bytes=_vmem_limit(block_bytes)),
    )(x2d, w, b2d)


# ----------------------------- model pieces -----------------------------

def positional_encoding_table(max_len, model_dim):
    position = jnp.arange(max_len, dtype=jnp.float32)[:, None]
    div_term = jnp.exp(jnp.arange(0, model_dim, 2, dtype=jnp.float32)
                       * (-math.log(10000.0) / model_dim))
    pe = jnp.zeros((max_len, model_dim), dtype=jnp.float32)
    pe = pe.at[:, 0::2].set(jnp.sin(position * div_term))
    pe = pe.at[:, 1::2].set(jnp.cos(position * div_term))
    return pe  # (max_len, model_dim)


def unit_decoder_second_pass(params, t2u_output, target_units, hp, causal=True):
    """t2u_output: (T, B, D), target_units: (B, S) int32 -> logits (B, S, vocab).
    The standard square-subsequent tgt_mask is generated inside the kernel
    (causal=True).  causal=False corresponds to tgt_mask=None.
    TODO(synk): an arbitrary additive tgt_mask would be passed as a resident
    (S, S) block as in the previous revision."""
    D, H, V = hp["model_dim"], hp["n_heads"], hp["unit_vocab_size"]
    B, S = target_units.shape

    # embedding lookup + positional encoding (plain-JAX glue; gather)
    tgt = jnp.take(params["embedding"], target_units, axis=0)      # (B, S, D)
    tgt = tgt + params["pe"][None, :S, :]                          # (B, S, D)
    memory = jnp.transpose(t2u_output, (1, 0, 2))                  # (B, T, D) once

    for lp in params["layers"]:
        tgt = pallas_decoder_layer(tgt, memory, lp, H, causal=causal)

    logits = pallas_linear(tgt.reshape(B * S, D),
                           params["out_proj_w"], params["out_proj_b"])
    return logits.reshape(B, S, V)


# ----------------------------- pure-JAX reference -----------------------------

def reference_forward(params, t2u_output, target_units, hp):
    D, H = hp["model_dim"], hp["n_heads"]
    Dh = D // H
    B, S = target_units.shape
    x = jnp.take(params["embedding"], target_units, axis=0) + params["pe"][None, :S, :]
    mem = jnp.transpose(t2u_output, (1, 0, 2))

    row = jnp.arange(S)[:, None]
    col = jnp.arange(S)[None, :]
    tgt_mask = jnp.where(col > row, -1e9, 0.0).astype(jnp.float32)

    def ln(y, g, b):
        mu = y.mean(-1, keepdims=True)
        var = ((y - mu) ** 2).mean(-1, keepdims=True)
        return (y - mu) / jnp.sqrt(var + 1e-5) * g[0] + b[0]

    def attn(q, k, v, wo, bo, mask):
        Bq, Sq, _ = q.shape
        Sk = k.shape[1]
        qh = q.reshape(Bq, Sq, H, Dh).transpose(0, 2, 1, 3)
        kh = k.reshape(Bq, Sk, H, Dh).transpose(0, 2, 1, 3)
        vh = v.reshape(Bq, Sk, H, Dh).transpose(0, 2, 1, 3)
        s = jnp.einsum('bhqd,bhkd->bhqk', qh, kh) / math.sqrt(Dh)
        if mask is not None:
            s = s + mask
        p = jax.nn.softmax(s, axis=-1)
        o = jnp.einsum('bhqk,bhkd->bhqd', p, vh)
        o = o.transpose(0, 2, 1, 3).reshape(Bq, Sq, D)
        return o @ wo + bo[0]

    for p_ in params["layers"]:
        qkv = x @ p_["sa_qkv_w"] + p_["sa_qkv_b"][0]
        sa = attn(qkv[..., :D], qkv[..., D:2 * D], qkv[..., 2 * D:],
                  p_["sa_out_w"], p_["sa_out_b"], tgt_mask)
        x = ln(x + sa, p_["ln1_g"], p_["ln1_b"])
        q = x @ p_["ca_q_w"] + p_["ca_q_b"][0]
        kv = mem @ p_["ca_kv_w"] + p_["ca_kv_b"][0]
        ca = attn(q, kv[..., :D], kv[..., D:], p_["ca_out_w"], p_["ca_out_b"], None)
        x = ln(x + ca, p_["ln2_g"], p_["ln2_b"])
        h = jax.nn.relu(x @ p_["ff_w1"] + p_["ff_b1"][0])
        ff = h @ p_["ff_w2"] + p_["ff_b2"][0]
        x = ln(x + ff, p_["ln3_g"], p_["ln3_b"])
    return x @ params["out_proj_w"] + params["out_proj_b"][0]


# ----------------------------- deterministic init -----------------------------

def init_params(key, hp):
    """Matmul weights pre-transposed to (in, out) layout and stored bf16 (MXU-native,
    half the DMA/VMEM); biases / LayerNorm params / embedding stay f32."""
    D, F, V, L = (hp["model_dim"], hp["ff_dim"],
                  hp["unit_vocab_size"], hp["n_layers_unit_decoder"])

    def w_init(k, shape, scale=0.02):
        return (scale * jax.random.normal(k, shape, dtype=jnp.float32)).astype(jnp.bfloat16)

    keys = jax.random.split(key, 2 + L)
    params = {
        "embedding": jax.random.normal(keys[0], (V, D), dtype=jnp.float32),
        "out_proj_w": w_init(keys[1], (D, V)),
        "out_proj_b": jnp.zeros((1, V), jnp.float32),
        "pe": positional_encoding_table(5000, D),
        "layers": [],
    }
    ones_d = jnp.ones((1, D), jnp.float32)
    zeros_d = jnp.zeros((1, D), jnp.float32)
    for l in range(L):
        ks = jax.random.split(keys[2 + l], 7)
        params["layers"].append({
            "sa_qkv_w": w_init(ks[0], (D, 3 * D)), "sa_qkv_b": jnp.zeros((1, 3 * D), jnp.float32),
            "sa_out_w": w_init(ks[1], (D, D)), "sa_out_b": zeros_d,
            "ca_q_w": w_init(ks[2], (D, D)), "ca_q_b": zeros_d,
            "ca_kv_w": w_init(ks[3], (D, 2 * D)), "ca_kv_b": jnp.zeros((1, 2 * D), jnp.float32),
            "ca_out_w": w_init(ks[4], (D, D)), "ca_out_b": zeros_d,
            "ff_w1": w_init(ks[5], (D, F)), "ff_b1": jnp.zeros((1, F), jnp.float32),
            "ff_w2": w_init(ks[6], (F, D)), "ff_b2": zeros_d,
            "ln1_g": ones_d, "ln1_b": zeros_d,
            "ln2_g": ones_d, "ln2_b": zeros_d,
            "ln3_g": ones_d, "ln3_b": zeros_d,
        })
    return params


# ----------------------------- main -----------------------------

if __name__ == "__main__":
    hp = dict(model_dim=32, n_heads=4, ff_dim=64, dropout=0.0,
              n_layers_unit_decoder=2, unit_vocab_size=16)
    B, S, T = 2, 8, 8

    key = jax.random.PRNGKey(0)
    k_par, k_mem, k_tok = jax.random.split(key, 3)

    params = init_params(k_par, hp)
    t2u_output = jax.random.normal(k_mem, (T, B, hp["model_dim"]), dtype=jnp.float32)
    target_units = jax.random.randint(k_tok, (B, S), 0, hp["unit_vocab_size"], dtype=jnp.int32)

    fwd = jax.jit(lambda p, mem, tok: unit_decoder_second_pass(p, mem, tok, hp))
    logits = jax.block_until_ready(fwd(params, t2u_output, target_units))

    assert logits.shape == (B, S, hp["unit_vocab_size"])
    assert bool(jnp.all(jnp.isfinite(logits)))

    ref = reference_forward(params, t2u_output, target_units, hp)
    max_err = float(jnp.max(jnp.abs(logits - ref)))
    assert max_err < 3e-2, f"mismatch vs reference: {max_err}"

    print("KERNEL_OK")
</pallas_src>

<mosaic_0001>
module attributes {stable_mosaic.version = 11 : i64} {
  func.func @_linear_kernel(%arg0: i32, %arg1: i32, %arg2: memref<16x32xf32, #tpu.memory_space<vmem>>, %arg3: memref<32x16xbf16, #tpu.memory_space<vmem>>, %arg4: memref<1x16xf32, #tpu.memory_space<vmem>>, %arg5: memref<16x16xf32, #tpu.memory_space<vmem>>) attributes {dimension_semantics = [#tpu.dimension_semantics<parallel>, #tpu.dimension_semantics<parallel>], iteration_bounds = array<i64: 1, 1>, scalar_prefetch = 0 : i64, scratch_operands = 0 : i64, tpu.core_type = #tpu.core_type<tc>, window_params = [{transform_indices = @transform_0, window_bounds = array<i64: 16, 32>}, {transform_indices = @transform_1, window_bounds = array<i64: 32, 16>}, {transform_indices = @transform_2, window_bounds = array<i64: 1, 16>}, {transform_indices = @transform_3, window_bounds = array<i64: 16, 16>}]} {
    %c0 = arith.constant 0 : index
    %c0_0 = arith.constant 0 : index
    %0 = vector.load %arg2[%c0, %c0_0] : memref<16x32xf32, #tpu.memory_space<vmem>>, vector<16x32xf32>
    %1 = arith.truncf %0 : vector<16x32xf32> to vector<16x32xbf16>
    %c0_1 = arith.constant 0 : index
    %c0_2 = arith.constant 0 : index
    %2 = vector.load %arg3[%c0_1, %c0_2] : memref<32x16xbf16, #tpu.memory_space<vmem>>, vector<32x16xbf16>
    %cst = arith.constant dense<0.000000e+00> : vector<16x16xf32>
    %3 = tpu.matmul %1, %2, %cst {dimension_numbers = #tpu.dot_dimension_numbers<[1], [0], [0], [1], [0, 0, 1, 1], [], []>} : vector<16x32xbf16>, vector<32x16xbf16>, vector<16x16xf32> -> vector<16x16xf32>
    %c0_3 = arith.constant 0 : index
    %c0_4 = arith.constant 0 : index
    %4 = vector.load %arg4[%c0_3, %c0_4] : memref<1x16xf32, #tpu.memory_space<vmem>>, vector<1x16xf32>
    %5 = vector.broadcast %4 : vector<1x16xf32> to vector<16x16xf32>
    %6 = arith.addf %3, %5 : vector<16x16xf32>
    %c0_5 = arith.constant 0 : index
    %c0_6 = arith.constant 0 : index
    %7 = vector.load %arg5[%c0_5, %c0_6] : memref<16x16xf32, #tpu.memory_space<vmem>>, vector<16x16xf32>
    tpu.vector_store %arg5[%c0_5, %c0_6], %6 {strides = array<i32>} : memref<16x16xf32, #tpu.memory_space<vmem>>, vector<16x16xf32>,
    return
  }
  func.func @transform_0(%arg0: i32, %arg1: i32) -> (i32, i32) {
    %c0_i32 = arith.constant 0 : i32
    %c0_i32_0 = arith.constant 0 : i32
    return %arg0, %c0_i32 : i32, i32
  }
  func.func @transform_1(%arg0: i32, %arg1: i32) -> (i32, i32) {
    %c0_i32 = arith.constant 0 : i32
    %c0_i32_0 = arith.constant 0 : i32
    return %c0_i32, %arg1 : i32, i32
  }
  func.func @transform_2(%arg0: i32, %arg1: i32) -> (i32, i32) {
    %c0_i32 = arith.constant 0 : i32
    %c0_i32_0 = arith.constant 0 : i32
    return %c0_i32, %arg1 : i32, i32
  }
  func.func @transform_3(%arg0: i32, %arg1: i32) -> (i32, i32) {
    %c0_i32 = arith.constant 0 : i32
    return %arg0, %arg1 : i32, i32
  }
}

module attributes {stable_mosaic.version = 11 : i64} {
  func.func @_decoder_layer_kernel(%arg0: i32, %arg1: memref<2x8x32xf32, #tpu.memory_space<vmem>>, %arg2: memref<2x8x32xf32, #tpu.memory_space<vmem>>, %arg3: memref<32x96xbf16, #tpu.memory_space<vmem>>, %arg4: memref<1x96xf32, #tpu.memory_space<vmem>>, %arg5: memref<32x32xbf16, #tpu.memory_space<vmem>>, %arg6: memref<1x32xf32, #tpu.memory_space<vmem>>, %arg7: memref<1x32xf32, #tpu.memory_space<vmem>>, %arg8: memref<1x32xf32, #tpu.memory_space<vmem>>, %arg9: memref<32x32xbf16, #tpu.memory_space<vmem>>, %arg10: memref<1x32xf32, #tpu.memory_space<vmem>>, %arg11: memref<32x64xbf16, #tpu.memory_space<vmem>>, %arg12: memref<1x64xf32, #tpu.memory_space<vmem>>, %arg13: memref<32x32xbf16, #tpu.memory_space<vmem>>, %arg14: memref<1x32xf32, #tpu.memory_space<vmem>>, %arg15: memref<1x32xf32, #tpu.memory_space<vmem>>, %arg16: memref<1x32xf32, #tpu.memory_space<vmem>>, %arg17: memref<32x64xbf16, #tpu.memory_space<vmem>>, %arg18: memref<1x64xf32, #tpu.memory_space<vmem>>, %arg19: memref<64x32xbf16, #tpu.memory_space<vmem>>, %arg20: memref<1x32xf32, #tpu.memory_space<vmem>>, %arg21: memref<1x32xf32, #tpu.memory_space<vmem>>, %arg22: memref<1x32xf32, #tpu.memory_space<vmem>>, %arg23: memref<2x8x32xf32, #tpu.memory_space<vmem>>) attributes {dimension_semantics = [#tpu.dimension_semantics<parallel>], iteration_bounds = array<i64: 1>, scalar_prefetch = 0 : i64, scratch_operands = 0 : i64, tpu.core_type = #tpu.core_type<tc>, window_params = [{transform_indices = @transform_0, window_bounds = array<i64: 2, 8, 32>}, {transform_indices = @transform_1, window_bounds = array<i64: 2, 8, 32>}, {pipeline_mode = #tpu.pipeline_mode<synchronous>, transform_indices = @transform_2, window_bounds = array<i64: 32, 96>}, {pipeline_mode = #tpu.pipeline_mode<synchronous>, transform_indices = @transform_3, window_bounds = array<i64: 1, 96>}, {pipeline_mode = #tpu.pipeline_mode<synchronous>, transform_indices = @transform_4, window_bounds = array<i64: 32, 32>}, {pipeline_mode = #tpu.pipeline_mode<synchronous>, transform_indices = @transform_5, window_bounds = array<i64: 1, 32>}, {pipeline_mode = #tpu.pipeline_mode<synchronous>, transform_indices = @transform_6, window_bounds = array<i64: 1, 32>}, {pipeline_mode = #tpu.pipeline_mode<synchronous>, transform_indices = @transform_7, window_bounds = array<i64: 1, 32>}, {pipeline_mode = #tpu.pipeline_mode<synchronous>, transform_indices = @transform_8, window_bounds = array<i64: 32, 32>}, {pipeline_mode = #tpu.pipeline_mode<synchronous>, transform_indices = @transform_9, window_bounds = array<i64: 1, 32>}, {pipeline_mode = #tpu.pipeline_mode<synchronous>, transform_indices = @transform_10, window_bounds = array<i64: 32, 64>}, {pipeline_mode = #tpu.pipeline_mode<synchronous>, transform_indices = @transform_11, window_bounds = array<i64: 1, 64>}, {pipeline_mode = #tpu.pipeline_mode<synchronous>, transform_indices = @transform_12, window_bounds = array<i64: 32, 32>}, {pipeline_mode = #tpu.pipeline_mode<synchronous>, transform_indices = @transform_13, window_bounds = array<i64: 1, 32>}, {pipeline_mode = #tpu.pipeline_mode<synchronous>, transform_indices = @transform_14, window_bounds = array<i64: 1, 32>}, {pipeline_mode = #tpu.pipeline_mode<synchronous>, transform_indices = @transform_15, window_bounds = array<i64: 1, 32>}, {pipeline_mode = #tpu.pipeline_mode<synchronous>, transform_indices = @transform_16, window_bounds = array<i64: 32, 64>}, {pipeline_mode = #tpu.pipeline_mode<synchronous>, transform_indices = @transform_17, window_bounds = array<i64: 1, 64>}, {pipeline_mode = #tpu.pipeline_mode<synchronous>, transform_indices = @transform_18, window_bounds = array<i64: 64, 32>}, {pipeline_mode = #tpu.pipeline_mode<synchronous>, transform_indices = @transform_19, window_bounds = array<i64: 1, 32>}, {pipeline_mode = #tpu.pipeline_mode<synchronous>, transform_indices = @transform_20, window_bounds = array<i64: 1, 32>}, {pipeline_mode = #tpu.pipeline_mode<synchronous>, transform_indices = @transform_21, window_bounds = array<i64: 1, 32>}, {transform_indices = @transform_22, window_bounds = array<i64: 2, 8, 32>}]} {
    %c0 = arith.constant 0 : index
    %c0_0 = arith.constant 0 : index
    %c0_1 = arith.constant 0 : index
    %0 = vector.load %arg1[%c0, %c0_0, %c0_1] : memref<2x8x32xf32, #tpu.memory_space<vmem>>, vector<2x8x32xf32>
    %1 = vector.shape_cast %0 : vector<2x8x32xf32> to vector<16x32xf32>
    %c0_2 = arith.constant 0 : index
    %c0_3 = arith.constant 0 : index
    %c0_4 = arith.constant 0 : index
    %2 = vector.load %arg2[%c0_2, %c0_3, %c0_4] : memref<2x8x32xf32, #tpu.memory_space<vmem>>, vector<2x8x32xf32>
    %3 = vector.shape_cast %2 : vector<2x8x32xf32> to vector<16x32xf32>
    %4 = tpu.iota {dimensions = array<i32: 0>} : vector<8x8xi32>
    %5 = tpu.iota {dimensions = array<i32: 1>} : vector<8x8xi32>
    %6 = arith.cmpi sgt, %5, %4 : vector<8x8xi32>
    %cst = arith.constant -1.000000e+09 : f32
    %cst_5 = arith.constant 0.000000e+00 : f32
    %7 = vector.broadcast %cst : f32 to vector<8x8xf32>
    %8 = vector.broadcast %cst_5 : f32 to vector<8x8xf32>
    %9 = arith.select %6, %7, %8 : vector<8x8xi1>, vector<8x8xf32>
    %10 = arith.truncf %1 : vector<16x32xf32> to vector<16x32xbf16>
    %c0_6 = arith.constant 0 : index
    %c0_7 = arith.constant 0 : index
    %11 = vector.load %arg3[%c0_6, %c0_7] : memref<32x96xbf16, #tpu.memory_space<vmem>>, vector<32x96xbf16>
    %cst_8 = arith.constant dense<0.000000e+00> : vector<16x96xf32>
    %12 = tpu.matmul %10, %11, %cst_8 {dimension_numbers = #tpu.dot_dimension_numbers<[1], [0], [0], [1], [0, 0, 1, 1], [], []>} : vector<16x32xbf16>, vector<32x96xbf16>, vector<16x96xf32> -> vector<16x96xf32>
    %c0_9 = arith.constant 0 : index
    %c0_10 = arith.constant 0 : index
    %13 = vector.load %arg4[%c0_9, %c0_10] : memref<1x96xf32, #tpu.memory_space<vmem>>, vector<1x96xf32>
    %14 = vector.broadcast %13 : vector<1x96xf32> to vector<16x96xf32>
    %15 = arith.addf %12, %14 : vector<16x96xf32>
    %16 = vector.extract_strided_slice %15 {offsets = [0, 0], sizes = [16, 32], strides = [1, 1]} : vector<16x96xf32> to vector<16x32xf32>
    %17 = vector.extract_strided_slice %15 {offsets = [0, 32], sizes = [16, 32], strides = [1, 1]} : vector<16x96xf32> to vector<16x32xf32>
    %18 = vector.extract_strided_slice %15 {offsets = [0, 64], sizes = [16, 32], strides = [1, 1]} : vector<16x96xf32> to vector<16x32xf32>
    %19 = vector.extract_strided_slice %16 {offsets = [0, 0], sizes = [8, 32], strides = [1, 1]} : vector<16x32xf32> to vector<8x32xf32>
    %20 = arith.truncf %19 : vector<8x32xf32> to vector<8x32xbf16>
    %21 = vector.extract_strided_slice %17 {offsets = [0, 0], sizes = [8, 32], strides = [1, 1]} : vector<16x32xf32> to vector<8x32xf32>
    %22 = arith.truncf %21 : vector<8x32xf32> to vector<8x32xbf16>
    %23 = vector.extract_strided_slice %18 {offsets = [0, 0], sizes = [8, 32], strides = [1, 1]} : vector<16x32xf32> to vector<8x32xf32>
    %24 = arith.truncf %23 : vector<8x32xf32> to vector<8x32xbf16>
    %25 = vector.extract_strided_slice %20 {offsets = [0, 0], sizes = [8, 8], strides = [1, 1]} : vector<8x32xbf16> to vector<8x8xbf16>
    %26 = vector.extract_strided_slice %22 {offsets = [0, 0], sizes = [8, 8], strides = [1, 1]} : vector<8x32xbf16> to vector<8x8xbf16>
    %cst_11 = arith.constant dense<0.000000e+00> : vector<8x8xf32>
    %27 = tpu.matmul %25, %26, %cst_11 {dimension_numbers = #tpu.dot_dimension_numbers<[1], [1], [0], [0], [0, 0, 1, 0], [], []>} : vector<8x8xbf16>, vector<8x8xbf16>, vector<8x8xf32> -> vector<8x8xf32>
    %cst_12 = arith.constant 0.353553385 : f32
    %28 = vector.broadcast %cst_12 : f32 to vector<8x8xf32>
    %29 = arith.mulf %27, %28 : vector<8x8xf32>
    %30 = arith.addf %29, %9 : vector<8x8xf32>
    %cst_13 = arith.constant dense<0xFF800000> : vector<8xf32>
    %31 = vector.multi_reduction <maximumf>, %30, %cst_13 [1] : vector<8x8xf32> to vector<8xf32>
    %32 = vector.shape_cast %31 : vector<8xf32> to vector<8x1xf32>
    %33 = vector.broadcast %32 : vector<8x1xf32> to vector<8x8xf32>
    %34 = arith.subf %30, %33 : vector<8x8xf32>
    %35 = math.exp %34 : vector<8x8xf32>
    %cst_14 = arith.constant dense<0.000000e+00> : vector<8xf32>
    %36 = vector.multi_reduction <add>, %35, %cst_14 [1] : vector<8x8xf32> to vector<8xf32>
    %37 = vector.shape_cast %36 : vector<8xf32> to vector<8x1xf32>
    %38 = tpu.reciprocal %37 {approx = true} : vector<8x1xf32> -> vector<8x1xf32>
    %39 = vector.broadcast %38 : vector<8x1xf32> to vector<8x8xf32>
    %40 = arith.mulf %35, %39 : vector<8x8xf32>
    %41 = arith.truncf %40 : vector<8x8xf32> to vector<8x8xbf16>
    %42 = vector.extract_strided_slice %24 {offsets = [0, 0], sizes = [8, 8], strides = [1, 1]} : vector<8x32xbf16> to vector<8x8xbf16>
    %cst_15 = arith.constant dense<0.000000e+00> : vector<8x8xf32>
    %43 = tpu.matmul %41, %42, %cst_15 {dimension_numbers = #tpu.dot_dimension_numbers<[1], [0], [0], [1], [0, 0, 1, 1], [], []>} : vector<8x8xbf16>, vector<8x8xbf16>, vector<8x8xf32> -> vector<8x8xf32>
    %44 = vector.extract_strided_slice %20 {offsets = [0, 8], sizes = [8, 8], strides = [1, 1]} : vector<8x32xbf16> to vector<8x8xbf16>
    %45 = vector.extract_strided_slice %22 {offsets = [0, 8], sizes = [8, 8], strides = [1, 1]} : vector<8x32xbf16> to vector<8x8xbf16>
    %cst_16 = arith.constant dense<0.000000e+00> : vector<8x8xf32>
    %46 = tpu.matmul %44, %45, %cst_16 {dimension_numbers = #tpu.dot_dimension_numbers<[1], [1], [0], [0], [0, 0, 1, 0], [], []>} : vector<8x8xbf16>, vector<8x8xbf16>, vector<8x8xf32> -> vector<8x8xf32>
    %cst_17 = arith.constant 0.353553385 : f32
    %47 = vector.broadcast %cst_17 : f32 to vector<8x8xf32>
    %48 = arith.mulf %46, %47 : vector<8x8xf32>
    %49 = arith.addf %48, %9 : vector<8x8xf32>
    %cst_18 = arith.constant dense<0xFF800000> : vector<8xf32>
    %50 = vector.multi_reduction <maximumf>, %49, %cst_18 [1] : vector<8x8xf32> to vector<8xf32>
    %51 = vector.shape_cast %50 : vector<8xf32> to vector<8x1xf32>
    %52 = vector.broadcast %51 : vector<8x1xf32> to vector<8x8xf32>
    %53 = arith.subf %49, %52 : vector<8x8xf32>
    %54 = math.exp %53 : vector<8x8xf32>
    %cst_19 = arith.constant dense<0.000000e+00> : vector<8xf32>
    %55 = vector.multi_reduction <add>, %54, %cst_19 [1] : vector<8x8xf32> to vector<8xf32>
    %56 = vector.shape_cast %55 : vector<8xf32> to vector<8x1xf32>
    %57 = tpu.reciprocal %56 {approx = true} : vector<8x1xf32> -> vector<8x1xf32>
    %58 = vector.broadcast %57 : vector<8x1xf32> to vector<8x8xf32>
    %59 = arith.mulf %54, %58 : vector<8x8xf32>
    %60 = arith.truncf %59 : vector<8x8xf32> to vector<8x8xbf16>
    %61 = vector.extract_strided_slice %24 {offsets = [0, 8], sizes = [8, 8], strides = [1, 1]} : vector<8x32xbf16> to vector<8x8xbf16>
    %cst_20 = arith.constant dense<0.000000e+00> : vector<8x8xf32>
    %62 = tpu.matmul %60, %61, %cst_20 {dimension_numbers = #tpu.dot_dimension_numbers<[1], [0], [0], [1], [0, 0, 1, 1], [], []>} : vector<8x8xbf16>, vector<8x8xbf16>, vector<8x8xf32> -> vector<8x8xf32>
    %63 = vector.extract_strided_slice %20 {offsets = [0, 16], sizes = [8, 8], strides = [1, 1]} : vector<8x32xbf16> to vector<8x8xbf16>
    %64 = vector.extract_strided_slice %22 {offsets = [0, 16], sizes = [8, 8], strides = [1, 1]} : vector<8x32xbf16> to vector<8x8xbf16>
    %cst_21 = arith.constant dense<0.000000e+00> : vector<8x8xf32>
    %65 = tpu.matmul %63, %64, %cst_21 {dimension_numbers = #tpu.dot_dimension_numbers<[1], [1], [0], [0], [0, 0, 1, 0], [], []>} : vector<8x8xbf16>, vector<8x8xbf16>, vector<8x8xf32> -> vector<8x8xf32>
    %cst_22 = arith.constant 0.353553385 : f32
    %66 = vector.broadcast %cst_22 : f32 to vector<8x8xf32>
    %67 = arith.mulf %65, %66 : vector<8x8xf32>
    %68 = arith.addf %67, %9 : vector<8x8xf32>
    %cst_23 = arith.constant dense<0xFF800000> : vector<8xf32>
    %69 = vector.multi_reduction <maximumf>, %68, %cst_23 [1] : vector<8x8xf32> to vector<8xf32>
    %70 = vector.shape_cast %69 : vector<8xf32> to vector<8x1xf32>
    %71 = vector.broadcast %70 : vector<8x1xf32> to vector<8x8xf32>
    %72 = arith.subf %68, %71 : vector<8x8xf32>
    %73 = math.exp %72 : vector<8x8xf32>
    %cst_24 = arith.constant dense<0.000000e+00> : vector<8xf32>
    %74 = vector.multi_reduction <add>, %73, %cst_24 [1] : vector<8x8xf32> to vector<8xf32>
    %75 = vector.shape_cast %74 : vector<8xf32> to vector<8x1xf32>
    %76 = tpu.reciprocal %75 {approx = true} : vector<8x1xf32> -> vector<8x1xf32>
    %77 = vector.broadcast %76 : vector<8x1xf32> to vector<8x8xf32>
    %78 = arith.mulf %73, %77 : vector<8x8xf32>
    %79 = arith.truncf %78 : vector<8x8xf32> to vector<8x8xbf16>
    %80 = vector.extract_strided_slice %24 {offsets = [0, 16], sizes = [8, 8], strides = [1, 1]} : vector<8x32xbf16> to vector<8x8xbf16>
    %cst_25 = arith.constant dense<0.000000e+00> : vector<8x8xf32>
    %81 = tpu.matmul %79, %80, %cst_25 {dimension_numbers = #tpu.dot_dimension_numbers<[1], [0], [0], [1], [0, 0, 1, 1], [], []>} : vector<8x8xbf16>, vector<8x8xbf16>, vector<8x8xf32> -> vector<8x8xf32>
    %82 = vector.extract_strided_slice %20 {offsets = [0, 24], sizes = [8, 8], strides = [1, 1]} : vector<8x32xbf16> to vector<8x8xbf16>
    %83 = vector.extract_strided_slice %22 {offsets = [0, 24], sizes = [8, 8], strides = [1, 1]} : vector<8x32xbf16> to vector<8x8xbf16>
    %cst_26 = arith.constant dense<0.000000e+00> : vector<8x8xf32>
    %84 = tpu.matmul %82, %83, %cst_26 {dimension_numbers = #tpu.dot_dimension_numbers<[1], [1], [0], [0], [0, 0, 1, 0], [], []>} : vector<8x8xbf16>, vector<8x8xbf16>, vector<8x8xf32> -> vector<8x8xf32>
    %cst_27 = arith.constant 0.353553385 : f32
    %85 = vector.broadcast %cst_27 : f32 to vector<8x8xf32>
    %86 = arith.mulf %84, %85 : vector<8x8xf32>
    %87 = arith.addf %86, %9 : vector<8x8xf32>
    %cst_28 = arith.constant dense<0xFF800000> : vector<8xf32>
    %88 = vector.multi_reduction <maximumf>, %87, %cst_28 [1] : vector<8x8xf32> to vector<8xf32>
    %89 = vector.shape_cast %88 : vector<8xf32> to vector<8x1xf32>
    %90 = vector.broadcast %89 : vector<8x1xf32> to vector<8x8xf32>
    %91 = arith.subf %87, %90 : vector<8x8xf32>
    %92 = math.exp %91 : vector<8x8xf32>
    %cst_29 = arith.constant dense<0.000000e+00> : vector<8xf32>
    %93 = vector.multi_reduction <add>, %92, %cst_29 [1] : vector<8x8xf32> to vector<8xf32>
    %94 = vector.shape_cast %93 : vector<8xf32> to vector<8x1xf32>
    %95 = tpu.reciprocal %94 {approx = true} : vector<8x1xf32> -> vector<8x1xf32>
    %96 = vector.broadcast %95 : vector<8x1xf32> to vector<8x8xf32>
    %97 = arith.mulf %92, %96 : vector<8x8xf32>
    %98 = arith.truncf %97 : vector<8x8xf32> to vector<8x8xbf16>
    %99 = vector.extract_strided_slice %24 {offsets = [0, 24], sizes = [8, 8], strides = [1, 1]} : vector<8x32xbf16> to vector<8x8xbf16>
    %cst_30 = arith.constant dense<0.000000e+00> : vector<8x8xf32>
    %100 = tpu.matmul %98, %99, %cst_30 {dimension_numbers = #tpu.dot_dimension_numbers<[1], [0], [0], [1], [0, 0, 1, 1], [], []>} : vector<8x8xbf16>, vector<8x8xbf16>, vector<8x8xf32> -> vector<8x8xf32>
    %101 = tpu.concatenate %43, %62, %81, %100 in 1 : vector<8x8xf32>, vector<8x8xf32>, vector<8x8xf32>, vector<8x8xf32> -> vector<8x32xf32>
    %102 = vector.extract_strided_slice %16 {offsets = [8, 0], sizes = [8, 32], strides = [1, 1]} : vector<16x32xf32> to vector<8x32xf32>
    %103 = arith.truncf %102 : vector<8x32xf32> to vector<8x32xbf16>
    %104 = vector.extract_strided_slice %17 {offsets = [8, 0], sizes = [8, 32], strides = [1, 1]} : vector<16x32xf32> to vector<8x32xf32>
    %105 = arith.truncf %104 : vector<8x32xf32> to vector<8x32xbf16>
    %106 = vector.extract_strided_slice %18 {offsets = [8, 0], sizes = [8, 32], strides = [1, 1]} : vector<16x32xf32> to vector<8x32xf32>
    %107 = arith.truncf %106 : vector<8x32xf32> to vector<8x32xbf16>
    %108 = vector.extract_strided_slice %103 {offsets = [0, 0], sizes = [8, 8], strides = [1, 1]} : vector<8x32xbf16> to vector<8x8xbf16>
    %109 = vector.extract_strided_slice %105 {offsets = [0, 0], sizes = [8, 8], strides = [1, 1]} : vector<8x32xbf16> to vector<8x8xbf16>
    %cst_31 = arith.constant dense<0.000000e+00> : vector<8x8xf32>
    %110 = tpu.matmul %108, %109, %cst_31 {dimension_numbers = #tpu.dot_dimension_numbers<[1], [1], [0], [0], [0, 0, 1, 0], [], []>} : vector<8x8xbf16>, vector<8x8xbf16>, vector<8x8xf32> -> vector<8x8xf32>
    %cst_32 = arith.constant 0.353553385 : f32
    %111 = vector.broadcast %cst_32 : f32 to vector<8x8xf32>
    %112 = arith.mulf %110, %111 : vector<8x8xf32>
    %113 = arith.addf %112, %9 : vector<8x8xf32>
    %cst_33 = arith.constant dense<0xFF800000> : vector<8xf32>
    %114 = vector.multi_reduction <maximumf>, %113, %cst_33 [1] : vector<8x8xf32> to vector<8xf32>
    %115 = vector.shape_cast %114 : vector<8xf32> to vector<8x1xf32>
    %116 = vector.broadcast %115 : vector<8x1xf32> to vector<8x8xf32>
    %117 = arith.subf %113, %116 : vector<8x8xf32>
    %118 = math.exp %117 : vector<8x8xf32>
    %cst_34 = arith.constant dense<0.000000e+00> : vector<8xf32>
    %119 = vector.multi_reduction <add>, %118, %cst_34 [1] : vector<8x8xf32> to vector<8xf32>
    %120 = vector.shape_cast %119 : vector<8xf32> to vector<8x1xf32>
    %121 = tpu.reciprocal %120 {approx = true} : vector<8x1xf32> -> vector<8x1xf32>
    %122 = vector.broadcast %121 : vector<8x1xf32> to vector<8x8xf32>
    %123 = arith.mulf %118, %122 : vector<8x8xf32>
    %124 = arith.truncf %123 : vector<8x8xf32> to vector<8x8xbf16>
    %125 = vector.extract_strided_slice %107 {offsets = [0, 0], sizes = [8, 8], strides = [1, 1]} : vector<8x32xbf16> to vector<8x8xbf16>
    %cst_35 = arith.constant dense<0.000000e+00> : vector<8x8xf32>
    %126 = tpu.matmul %124, %125, %cst_35 {dimension_numbers = #tpu.dot_dimension_numbers<[1], [0], [0], [1], [0, 0, 1, 1], [], []>} : vector<8x8xbf16>, vector<8x8xbf16>, vector<8x8xf32> -> vector<8x8xf32>
    %127 = vector.extract_strided_slice %103 {offsets = [0, 8], sizes = [8, 8], strides = [1, 1]} : vector<8x32xbf16> to vector<8x8xbf16>
    %128 = vector.extract_strided_slice %105 {offsets = [0, 8], sizes = [8, 8], strides = [1, 1]} : vector<8x32xbf16> to vector<8x8xbf16>
    %cst_36 = arith.constant dense<0.000000e+00> : vector<8x8xf32>
    %129 = tpu.matmul %127, %128, %cst_36 {dimension_numbers = #tpu.dot_dimension_numbers<[1], [1], [0], [0], [0, 0, 1, 0], [], []>} : vector<8x8xbf16>, vector<8x8xbf16>, vector<8x8xf32> -> vector<8x8xf32>
    %cst_37 = arith.constant 0.353553385 : f32
    %130 = vector.broadcast %cst_37 : f32 to vector<8x8xf32>
    %131 = arith.mulf %129, %130 : vector<8x8xf32>
    %132 = arith.addf %131, %9 : vector<8x8xf32>
    %cst_38 = arith.constant dense<0xFF800000> : vector<8xf32>
    %133 = vector.multi_reduction <maximumf>, %132, %cst_38 [1] : vector<8x8xf32> to vector<8xf32>
    %134 = vector.shape_cast %133 : vector<8xf32> to vector<8x1xf32>
    %135 = vector.broadcast %134 : vector<8x1xf32> to vector<8x8xf32>
    %136 = arith.subf %132, %135 : vector<8x8xf32>
    %137 = math.exp %136 : vector<8x8xf32>
    %cst_39 = arith.constant dense<0.000000e+00> : vector<8xf32>
    %138 = vector.multi_reduction <add>, %137, %cst_39 [1] : vector<8x8xf32> to vector<8xf32>
    %139 = vector.shape_cast %138 : vector<8xf32> to vector<8x1xf32>
    %140 = tpu.reciprocal %139 {approx = true} : vector<8x1xf32> -> vector<8x1xf32>
    %141 = vector.broadcast %140 : vector<8x1xf32> to vector<8x8xf32>
    %142 = arith.mulf %137, %141 : vector<8x8xf32>
    %143 = arith.truncf %142 : vector<8x8xf32> to vector<8x8xbf16>
    %144 = vector.extract_strided_slice %107 {offsets = [0, 8], sizes = [8, 8], strides = [1, 1]} : vector<8x32xbf16> to vector<8x8xbf16>
    %cst_40 = arith.constant dense<0.000000e+00> : vector<8x8xf32>
    %145 = tpu.matmul %143, %144, %cst_40 {dimension_numbers = #tpu.dot_dimension_numbers<[1], [0], [0], [1], [0, 0, 1, 1], [], []>} : vector<8x8xbf16>, vector<8x8xbf16>, vector<8x8xf32> -> vector<8x8xf32>
    %146 = vector.extract_strided_slice %103 {offsets = [0, 16], sizes = [8, 8], strides = [1, 1]} : vector<8x32xbf16> to vector<8x8xbf16>
    %147 = vector.extract_strided_slice %105 {offsets = [0, 16], sizes = [8, 8], strides = [1, 1]} : vector<8x32xbf16> to vector<8x8xbf16>
    %cst_41 = arith.constant dense<0.000000e+00> : vector<8x8xf32>
    %148 = tpu.matmul %146, %147, %cst_41 {dimension_numbers = #tpu.dot_dimension_numbers<[1], [1], [0], [0], [0, 0, 1, 0], [], []>} : vector<8x8xbf16>, vector<8x8xbf16>, vector<8x8xf32> -> vector<8x8xf32>
    %cst_42 = arith.constant 0.353553385 : f32
    %149 = vector.broadcast %cst_42 : f32 to vector<8x8xf32>
    %150 = arith.mulf %148, %149 : vector<8x8xf32>
    %151 = arith.addf %150, %9 : vector<8x8xf32>
    %cst_43 = arith.constant dense<0xFF800000> : vector<8xf32>
    %152 = vector.multi_reduction <maximumf>, %151, %cst_43 [1] : vector<8x8xf32> to vector<8xf32>
    %153 = vector.shape_cast %152 : vector<8xf32> to vector<8x1xf32>
    %154 = vector.broadcast %153 : vector<8x1xf32> to vector<8x8xf32>
    %155 = arith.subf %151, %154 : vector<8x8xf32>
    %156 = math.exp %155 : vector<8x8xf32>
    %cst_44 = arith.constant dense<0.000000e+00> : vector<8xf32>
    %157 = vector.multi_reduction <add>, %156, %cst_44 [1] : vector<8x8xf32> to vector<8xf32>
    %158 = vector.shape_cast %157 : vector<8xf32> to vector<8x1xf32>
    %159 = tpu.reciprocal %158 {approx = true} : vector<8x1xf32> -> vector<8x1xf32>
    %160 = vector.broadcast %159 : vector<8x1xf32> to vector<8x8xf32>
    %161 = arith.mulf %156, %160 : vector<8x8xf32>
    %162 = arith.truncf %161 : vector<8x8xf32> to vector<8x8xbf16>
    %163 = vector.extract_strided_slice %107 {offsets = [0, 16], sizes = [8, 8], strides = [1, 1]} : vector<8x32xbf16> to vector<8x8xbf16>
    %cst_45 = arith.constant dense<0.000000e+00> : vector<8x8xf32>
    %164 = tpu.matmul %162, %163, %cst_45 {dimension_numbers = #tpu.dot_dimension_numbers<[1], [0], [0], [1], [0, 0, 1, 1], [], []>} : vector<8x8xbf16>, vector<8x8xbf16>, vector<8x8xf32> -> vector<8x8xf32>
    %165 = vector.extract_strided_slice %103 {offsets = [0, 24], sizes = [8, 8], strides = [1, 1]} : vector<8x32xbf16> to vector<8x8xbf16>
    %166 = vector.extract_strided_slice %105 {offsets = [0, 24], sizes = [8, 8], strides = [1, 1]} : vector<8x32xbf16> to vector<8x8xbf16>
    %cst_46 = arith.constant dense<0.000000e+00> : vector<8x8xf32>
    %167 = tpu.matmul %165, %166, %cst_46 {dimension_numbers = #tpu.dot_dimension_numbers<[1], [1], [0], [0], [0, 0, 1, 0], [], []>} : vector<8x8xbf16>, vector<8x8xbf16>, vector<8x8xf32> -> vector<8x8xf32>
    %cst_47 = arith.constant 0.353553385 : f32
    %168 = vector.broadcast %cst_47 : f32 to vector<8x8xf32>
    %169 = arith.mulf %167, %168 : vector<8x8xf32>
    %170 = arith.addf %169, %9 : vector<8x8xf32>
    %cst_48 = arith.constant dense<0xFF800000> : vector<8xf32>
    %171 = vector.multi_reduction <maximumf>, %170, %cst_48 [1] : vector<8x8xf32> to vector<8xf32>
    %172 = vector.shape_cast %171 : vector<8xf32> to vector<8x1xf32>
    %173 = vector.broadcast %172 : vector<8x1xf32> to vector<8x8xf32>
    %174 = arith.subf %170, %173 : vector<8x8xf32>
    %175 = math.exp %174 : vector<8x8xf32>
    %cst_49 = arith.constant dense<0.000000e+00> : vector<8xf32>
    %176 = vector.multi_reduction <add>, %175, %cst_49 [1] : vector<8x8xf32> to vector<8xf32>
    %177 = vector.shape_cast %176 : vector<8xf32> to vector<8x1xf32>
    %178 = tpu.reciprocal %177 {approx = true} : vector<8x1xf32> -> vector<8x1xf32>
    %179 = vector.broadcast %178 : vector<8x1xf32> to vector<8x8xf32>
    %180 = arith.mulf %175, %179 : vector<8x8xf32>
    %181 = arith.truncf %180 : vector<8x8xf32> to vector<8x8xbf16>
    %182 = vector.extract_strided_slice %107 {offsets = [0, 24], sizes = [8, 8], strides = [1, 1]} : vector<8x32xbf16> to vector<8x8xbf16>
    %cst_50 = arith.constant dense<0.000000e+00> : vector<8x8xf32>
    %183 = tpu.matmul %181, %182, %cst_50 {dimension_numbers = #tpu.dot_dimension_numbers<[1], [0], [0], [1], [0, 0, 1, 1], [], []>} : vector<8x8xbf16>, vector<8x8xbf16>, vector<8x8xf32> -> vector<8x8xf32>
    %184 = tpu.concatenate %126, %145, %164, %183 in 1 : vector<8x8xf32>, vector<8x8xf32>, vector<8x8xf32>, vector<8x8xf32> -> vector<8x32xf32>
    %185 = tpu.concatenate %101, %184 in 0 : vector<8x32xf32>, vector<8x32xf32> -> vector<16x32xf32>
    %186 = arith.truncf %185 : vector<16x32xf32> to vector<16x32xbf16>
    %c0_51 = arith.constant 0 : index
    %c0_52 = arith.constant 0 : index
    %187 = vector.load %arg5[%c0_51, %c0_52] : memref<32x32xbf16, #tpu.memory_space<vmem>>, vector<32x32xbf16>
    %cst_53 = arith.constant dense<0.000000e+00> : vector<16x32xf32>
    %188 = tpu.matmul %186, %187, %cst_53 {dimension_numbers = #tpu.dot_dimension_numbers<[1], [0], [0], [1], [0, 0, 1, 1], [], []>} : vector<16x32xbf16>, vector<32x32xbf16>, vector<16x32xf32> -> vector<16x32xf32>
    %c0_54 = arith.constant 0 : index
    %c0_55 = arith.constant 0 : index
    %189 = vector.load %arg6[%c0_54, %c0_55] : memref<1x32xf32, #tpu.memory_space<vmem>>, vector<1x32xf32>
    %190 = vector.broadcast %189 : vector<1x32xf32> to vector<16x32xf32>
    %191 = arith.addf %188, %190 : vector<16x32xf32>
    %192 = arith.addf %1, %191 : vector<16x32xf32>
    %cst_56 = arith.constant dense<0.000000e+00> : vector<16xf32>
    %193 = vector.multi_reduction <add>, %192, %cst_56 [1] : vector<16x32xf32> to vector<16xf32>
    %194 = vector.shape_cast %193 : vector<16xf32> to vector<16x1xf32>
    %cst_57 = arith.constant 3.200000e+01 : f32
    %195 = vector.broadcast %cst_57 : f32 to vector<16x1xf32>
    %196 = arith.divf %194, %195 : vector<16x1xf32>
    %197 = arith.mulf %192, %192 : vector<16x32xf32>
    %cst_58 = arith.constant dense<0.000000e+00> : vector<16xf32>
    %198 = vector.multi_reduction <add>, %197, %cst_58 [1] : vector<16x32xf32> to vector<16xf32>
    %199 = vector.shape_cast %198 : vector<16xf32> to vector<16x1xf32>
    %cst_59 = arith.constant 3.200000e+01 : f32
    %200 = vector.broadcast %cst_59 : f32 to vector<16x1xf32>
    %201 = arith.divf %199, %200 : vector<16x1xf32>
    %202 = arith.mulf %196, %196 : vector<16x1xf32>
    %203 = arith.subf %201, %202 : vector<16x1xf32>
    %cst_60 = arith.constant 9.99999974E-6 : f32
    %204 = vector.broadcast %cst_60 : f32 to vector<16x1xf32>
    %205 = arith.addf %203, %204 : vector<16x1xf32>
    %206 = math.rsqrt %205 : vector<16x1xf32>
    %207 = vector.broadcast %196 : vector<16x1xf32> to vector<16x32xf32>
    %208 = arith.subf %192, %207 : vector<16x32xf32>
    %c0_61 = arith.constant 0 : index
    %c0_62 = arith.constant 0 : index
    %209 = vector.load %arg7[%c0_61, %c0_62] : memref<1x32xf32, #tpu.memory_space<vmem>>, vector<1x32xf32>
    %210 = vector.broadcast %206 : vector<16x1xf32> to vector<16x32xf32>
    %211 = vector.broadcast %209 : vector<1x32xf32> to vector<16x32xf32>
    %212 = arith.mulf %210, %211 : vector<16x32xf32>
    %213 = arith.mulf %208, %212 : vector<16x32xf32>
    %c0_63 = arith.constant 0 : index
    %c0_64 = arith.constant 0 : index
    %214 = vector.load %arg8[%c0_63, %c0_64] : memref<1x32xf32, #tpu.memory_space<vmem>>, vector<1x32xf32>
    %215 = vector.broadcast %214 : vector<1x32xf32> to vector<16x32xf32>
    %216 = arith.addf %213, %215 : vector<16x32xf32>
    %217 = arith.truncf %216 : vector<16x32xf32> to vector<16x32xbf16>
    %c0_65 = arith.constant 0 : index
    %c0_66 = arith.constant 0 : index
    %218 = vector.load %arg9[%c0_65, %c0_66] : memref<32x32xbf16, #tpu.memory_space<vmem>>, vector<32x32xbf16>
    %cst_67 = arith.constant dense<0.000000e+00> : vector<16x32xf32>
    %219 = tpu.matmul %217, %218, %cst_67 {dimension_numbers = #tpu.dot_dimension_numbers<[1], [0], [0], [1], [0, 0, 1, 1], [], []>} : vector<16x32xbf16>, vector<32x32xbf16>, vector<16x32xf32> -> vector<16x32xf32>
    %c0_68 = arith.constant 0 : index
    %c0_69 = arith.constant 0 : index
    %220 = vector.load %arg10[%c0_68, %c0_69] : memref<1x32xf32, #tpu.memory_space<vmem>>, vector<1x32xf32>
    %221 = vector.broadcast %220 : vector<1x32xf32> to vector<16x32xf32>
    %222 = arith.addf %219, %221 : vector<16x32xf32>
    %223 = arith.truncf %3 : vector<16x32xf32> to vector<16x32xbf16>
    %c0_70 = arith.constant 0 : index
    %c0_71 = arith.constant 0 : index
    %224 = vector.load %arg11[%c0_70, %c0_71] : memref<32x64xbf16, #tpu.memory_space<vmem>>, vector<32x64xbf16>
    %cst_72 = arith.constant dense<0.000000e+00> : vector<16x64xf32>
    %225 = tpu.matmul %223, %224, %cst_72 {dimension_numbers = #tpu.dot_dimension_numbers<[1], [0], [0], [1], [0, 0, 1, 1], [], []>} : vector<16x32xbf16>, vector<32x64xbf16>, vector<16x64xf32> -> vector<16x64xf32>
    %c0_73 = arith.constant 0 : index
    %c0_74 = arith.constant 0 : index
    %226 = vector.load %arg12[%c0_73, %c0_74] : memref<1x64xf32, #tpu.memory_space<vmem>>, vector<1x64xf32>
    %227 = vector.broadcast %226 : vector<1x64xf32> to vector<16x64xf32>
    %228 = arith.addf %225, %227 : vector<16x64xf32>
    %229 = vector.extract_strided_slice %228 {offsets = [0, 0], sizes = [16, 32], strides = [1, 1]} : vector<16x64xf32> to vector<16x32xf32>
    %230 = vector.extract_strided_slice %228 {offsets = [0, 32], sizes = [16, 32], strides = [1, 1]} : vector<16x64xf32> to vector<16x32xf32>
    %231 = vector.extract_strided_slice %222 {offsets = [0, 0], sizes = [8, 32], strides = [1, 1]} : vector<16x32xf32> to vector<8x32xf32>
    %232 = arith.truncf %231 : vector<8x32xf32> to vector<8x32xbf16>
    %233 = vector.extract_strided_slice %229 {offsets = [0, 0], sizes = [8, 32], strides = [1, 1]} : vector<16x32xf32> to vector<8x32xf32>
    %234 = arith.truncf %233 : vector<8x32xf32> to vector<8x32xbf16>
    %235 = vector.extract_strided_slice %230 {offsets = [0, 0], sizes = [8, 32], strides = [1, 1]} : vector<16x32xf32> to vector<8x32xf32>
    %236 = arith.truncf %235 : vector<8x32xf32> to vector<8x32xbf16>
    %237 = vector.extract_strided_slice %232 {offsets = [0, 0], sizes = [8, 8], strides = [1, 1]} : vector<8x32xbf16> to vector<8x8xbf16>
    %238 = vector.extract_strided_slice %234 {offsets = [0, 0], sizes = [8, 8], strides = [1, 1]} : vector<8x32xbf16> to vector<8x8xbf16>
    %cst_75 = arith.constant dense<0.000000e+00> : vector<8x8xf32>
    %239 = tpu.matmul %237, %238, %cst_75 {dimension_numbers = #tpu.dot_dimension_numbers<[1], [1], [0], [0], [0, 0, 1, 0], [], []>} : vector<8x8xbf16>, vector<8x8xbf16>, vector<8x8xf32> -> vector<8x8xf32>
    %cst_76 = arith.constant 0.353553385 : f32
    %240 = vector.broadcast %cst_76 : f32 to vector<8x8xf32>
    %241 = arith.mulf %239, %240 : vector<8x8xf32>
    %cst_77 = arith.constant dense<0xFF800000> : vector<8xf32>
    %242 = vector.multi_reduction <maximumf>, %241, %cst_77 [1] : vector<8x8xf32> to vector<8xf32>
    %243 = vector.shape_cast %242 : vector<8xf32> to vector<8x1xf32>
    %244 = vector.broadcast %243 : vector<8x1xf32> to vector<8x8xf32>
    %245 = arith.subf %241, %244 : vector<8x8xf32>
    %246 = math.exp %245 : vector<8x8xf32>
    %cst_78 = arith.constant dense<0.000000e+00> : vector<8xf32>
    %247 = vector.multi_reduction <add>, %246, %cst_78 [1] : vector<8x8xf32> to vector<8xf32>
    %248 = vector.shape_cast %247 : vector<8xf32> to vector<8x1xf32>
    %249 = tpu.reciprocal %248 {approx = true} : vector<8x1xf32> -> vector<8x1xf32>
    %250 = vector.broadcast %249 : vector<8x1xf32> to vector<8x8xf32>
    %251 = arith.mulf %246, %250 : vector<8x8xf32>
    %252 = arith.truncf %251 : vector<8x8xf32> to vector<8x8xbf16>
    %253 = vector.extract_strided_slice %236 {offsets = [0, 0], sizes = [8, 8], strides = [1, 1]} : vector<8x32xbf16> to vector<8x8xbf16>
    %cst_79 = arith.constant dense<0.000000e+00> : vector<8x8xf32>
    %254 = tpu.matmul %252, %253, %cst_79 {dimension_numbers = #tpu.dot_dimension_numbers<[1], [0], [0], [1], [0, 0, 1, 1], [], []>} : vector<8x8xbf16>, vector<8x8xbf16>, vector<8x8xf32> -> vector<8x8xf32>
    %255 = vector.extract_strided_slice %232 {offsets = [0, 8], sizes = [8, 8], strides = [1, 1]} : vector<8x32xbf16> to vector<8x8xbf16>
    %256 = vector.extract_strided_slice %234 {offsets = [0, 8], sizes = [8, 8], strides = [1, 1]} : vector<8x32xbf16> to vector<8x8xbf16>
    %cst_80 = arith.constant dense<0.000000e+00> : vector<8x8xf32>
    %257 = tpu.matmul %255, %256, %cst_80 {dimension_numbers = #tpu.dot_dimension_numbers<[1], [1], [0], [0], [0, 0, 1, 0], [], []>} : vector<8x8xbf16>, vector<8x8xbf16>, vector<8x8xf32> -> vector<8x8xf32>
    %cst_81 = arith.constant 0.353553385 : f32
    %258 = vector.broadcast %cst_81 : f32 to vector<8x8xf32>
    %259 = arith.mulf %257, %258 : vector<8x8xf32>
    %cst_82 = arith.constant dense<0xFF800000> : vector<8xf32>
    %260 = vector.multi_reduction <maximumf>, %259, %cst_82 [1] : vector<8x8xf32> to vector<8xf32>
    %261 = vector.shape_cast %260 : vector<8xf32> to vector<8x1xf32>
    %262 = vector.broadcast %261 : vector<8x1xf32> to vector<8x8xf32>
    %263 = arith.subf %259, %262 : vector<8x8xf32>
    %264 = math.exp %263 : vector<8x8xf32>
    %cst_83 = arith.constant dense<0.000000e+00> : vector<8xf32>
    %265 = vector.multi_reduction <add>, %264, %cst_83 [1] : vector<8x8xf32> to vector<8xf32>
    %266 = vector.shape_cast %265 : vector<8xf32> to vector<8x1xf32>
    %267 = tpu.reciprocal %266 {approx = true} : vector<8x1xf32> -> vector<8x1xf32>
    %268 = vector.broadcast %267 : vector<8x1xf32> to vector<8x8xf32>
    %269 = arith.mulf %264, %268 : vector<8x8xf32>
    %270 = arith.truncf %269 : vector<8x8xf32> to vector<8x8xbf16>
    %271 = vector.extract_strided_slice %236 {offsets = [0, 8], sizes = [8, 8], strides = [1, 1]} : vector<8x32xbf16> to vector<8x8xbf16>
    %cst_84 = arith.constant dense<0.000000e+00> : vector<8x8xf32>
    %272 = tpu.matmul %270, %271, %cst_84 {dimension_numbers = #tpu.dot_dimension_numbers<[1], [0], [0], [1], [0, 0, 1, 1], [], []>} : vector<8x8xbf16>, vector<8x8xbf16>, vector<8x8xf32> -> vector<8x8xf32>
    %273 = vector.extract_strided_slice %232 {offsets = [0, 16], sizes = [8, 8], strides = [1, 1]} : vector<8x32xbf16> to vector<8x8xbf16>
    %274 = vector.extract_strided_slice %234 {offsets = [0, 16], sizes = [8, 8], strides = [1, 1]} : vector<8x32xbf16> to vector<8x8xbf16>
    %cst_85 = arith.constant dense<0.000000e+00> : vector<8x8xf32>
    %275 = tpu.matmul %273, %274, %cst_85 {dimension_numbers = #tpu.dot_dimension_numbers<[1], [1], [0], [0], [0, 0, 1, 0], [], []>} : vector<8x8xbf16>, vector<8x8xbf16>, vector<8x8xf32> -> vector<8x8xf32>
    %cst_86 = arith.constant 0.353553385 : f32
    %276 = vector.broadcast %cst_86 : f32 to vector<8x8xf32>
    %277 = arith.mulf %275, %276 : vector<8x8xf32>
    %cst_87 = arith.constant dense<0xFF800000> : vector<8xf32>
    %278 = vector.multi_reduction <maximumf>, %277, %cst_87 [1] : vector<8x8xf32> to vector<8xf32>
    %279 = vector.shape_cast %278 : vector<8xf32> to vector<8x1xf32>
    %280 = vector.broadcast %279 : vector<8x1xf32> to vector<8x8xf32>
    %281 = arith.subf %277, %280 : vector<8x8xf32>
    %282 = math.exp %281 : vector<8x8xf32>
    %cst_88 = arith.constant dense<0.000000e+00> : vector<8xf32>
    %283 = vector.multi_reduction <add>, %282, %cst_88 [1] : vector<8x8xf32> to vector<8xf32>
    %284 = vector.shape_cast %283 : vector<8xf32> to vector<8x1xf32>
    %285 = tpu.reciprocal %284 {approx = true} : vector<8x1xf32> -> vector<8x1xf32>
    %286 = vector.broadcast %285 : vector<8x1xf32> to vector<8x8xf32>
    %287 = arith.mulf %282, %286 : vector<8x8xf32>
    %288 = arith.truncf %287 : vector<8x8xf32> to vector<8x8xbf16>
    %289 = vector.extract_strided_slice %236 {offsets = [0, 16], sizes = [8, 8], strides = [1, 1]} : vector<8x32xbf16> to vector<8x8xbf16>
    %cst_89 = arith.constant dense<0.000000e+00> : vector<8x8xf32>
    %290 = tpu.matmul %288, %289, %cst_89 {dimension_numbers = #tpu.dot_dimension_numbers<[1], [0], [0], [1], [0, 0, 1, 1], [], []>} : vector<8x8xbf16>, vector<8x8xbf16>, vector<8x8xf32> -> vector<8x8xf32>
    %291 = vector.extract_strided_slice %232 {offsets = [0, 24], sizes = [8, 8], strides = [1, 1]} : vector<8x32xbf16> to vector<8x8xbf16>
    %292 = vector.extract_strided_slice %234 {offsets = [0, 24], sizes = [8, 8], strides = [1, 1]} : vector<8x32xbf16> to vector<8x8xbf16>
    %cst_90 = arith.constant dense<0.000000e+00> : vector<8x8xf32>
    %293 = tpu.matmul %291, %292, %cst_90 {dimension_numbers = #tpu.dot_dimension_numbers<[1], [1], [0], [0], [0, 0, 1, 0], [], []>} : vector<8x8xbf16>, vector<8x8xbf16>, vector<8x8xf32> -> vector<8x8xf32>
    %cst_91 = arith.constant 0.353553385 : f32
    %294 = vector.broadcast %cst_91 : f32 to vector<8x8xf32>
    %295 = arith.mulf %293, %294 : vector<8x8xf32>
    %cst_92 = arith.constant dense<0xFF800000> : vector<8xf32>
    %296 = vector.multi_reduction <maximumf>, %295, %cst_92 [1] : vector<8x8xf32> to vector<8xf32>
    %297 = vector.shape_cast %296 : vector<8xf32> to vector<8x1xf32>
    %298 = vector.broadcast %297 : vector<8x1xf32> to vector<8x8xf32>
    %299 = arith.subf %295, %298 : vector<8x8xf32>
    %300 = math.exp %299 : vector<8x8xf32>
    %cst_93 = arith.constant dense<0.000000e+00> : vector<8xf32>
    %301 = vector.multi_reduction <add>, %300, %cst_93 [1] : vector<8x8xf32> to vector<8xf32>
    %302 = vector.shape_cast %301 : vector<8xf32> to vector<8x1xf32>
    %303 = tpu.reciprocal %302 {approx = true} : vector<8x1xf32> -> vector<8x1xf32>
    %304 = vector.broadcast %303 : vector<8x1xf32> to vector<8x8xf32>
    %305 = arith.mulf %300, %304 : vector<8x8xf32>
    %306 = arith.truncf %305 : vector<8x8xf32> to vector<8x8xbf16>
    %307 = vector.extract_strided_slice %236 {offsets = [0, 24], sizes = [8, 8], strides = [1, 1]} : vector<8x32xbf16> to vector<8x8xbf16>
    %cst_94 = arith.constant dense<0.000000e+00> : vector<8x8xf32>
    %308 = tpu.matmul %306, %307, %cst_94 {dimension_numbers = #tpu.dot_dimension_numbers<[1], [0], [0], [1], [0, 0, 1, 1], [], []>} : vector<8x8xbf16>, vector<8x8xbf16>, vector<8x8xf32> -> vector<8x8xf32>
    %309 = tpu.concatenate %254, %272, %290, %308 in 1 : vector<8x8xf32>, vector<8x8xf32>, vector<8x8xf32>, vector<8x8xf32> -> vector<8x32xf32>
    %310 = vector.extract_strided_slice %222 {offsets = [8, 0], sizes = [8, 32], strides = [1, 1]} : vector<16x32xf32> to vector<8x32xf32>
    %311 = arith.truncf %310 : vector<8x32xf32> to vector<8x32xbf16>
    %312 = vector.extract_strided_slice %229 {offsets = [8, 0], sizes = [8, 32], strides = [1, 1]} : vector<16x32xf32> to vector<8x32xf32>
    %313 = arith.truncf %312 : vector<8x32xf32> to vector<8x32xbf16>
    %314 = vector.extract_strided_slice %230 {offsets = [8, 0], sizes = [8, 32], strides = [1, 1]} : vector<16x32xf32> to vector<8x32xf32>
    %315 = arith.truncf %314 : vector<8x32xf32> to vector<8x32xbf16>
    %316 = vector.extract_strided_slice %311 {offsets = [0, 0], sizes = [8, 8], strides = [1, 1]} : vector<8x32xbf16> to vector<8x8xbf16>
    %317 = vector.extract_strided_slice %313 {offsets = [0, 0], sizes = [8, 8], strides = [1, 1]} : vector<8x32xbf16> to vector<8x8xbf16>
    %cst_95 = arith.constant dense<0.000000e+00> : vector<8x8xf32>
    %318 = tpu.matmul %316, %317, %cst_95 {dimension_numbers = #tpu.dot_dimension_numbers<[1], [1], [0], [0], [0, 0, 1, 0], [], []>} : vector<8x8xbf16>, vector<8x8xbf16>, vector<8x8xf32> -> vector<8x8xf32>
    %cst_96 = arith.constant 0.353553385 : f32
    %319 = vector.broadcast %cst_96 : f32 to vector<8x8xf32>
    %320 = arith.mulf %318, %319 : vector<8x8xf32>
    %cst_97 = arith.constant dense<0xFF800000> : vector<8xf32>
    %321 = vector.multi_reduction <maximumf>, %320, %cst_97 [1] : vector<8x8xf32> to vector<8xf32>
    %322 = vector.shape_cast %321 : vector<8xf32> to vector<8x1xf32>
    %323 = vector.broadcast %322 : vector<8x1xf32> to vector<8x8xf32>
    %324 = arith.subf %320, %323 : vector<8x8xf32>
    %325 = math.exp %324 : vector<8x8xf32>
    %cst_98 = arith.constant dense<0.000000e+00> : vector<8xf32>
    %326 = vector.multi_reduction <add>, %325, %cst_98 [1] : vector<8x8xf32> to vector<8xf32>
    %327 = vector.shape_cast %326 : vector<8xf32> to vector<8x1xf32>
    %328 = tpu.reciprocal %327 {approx = true} : vector<8x1xf32> -> vector<8x1xf32>
    %329 = vector.broadcast %328 : vector<8x1xf32> to vector<8x8xf32>
    %330 = arith.mulf %325, %329 : vector<8x8xf32>
    %331 = arith.truncf %330 : vector<8x8xf32> to vector<8x8xbf16>
    %332 = vector.extract_strided_slice %315 {offsets = [0, 0], sizes = [8, 8], strides = [1, 1]} : vector<8x32xbf16> to vector<8x8xbf16>
    %cst_99 = arith.constant dense<0.000000e+00> : vector<8x8xf32>
    %333 = tpu.matmul %331, %332, %cst_99 {dimension_numbers = #tpu.dot_dimension_numbers<[1], [0], [0], [1], [0, 0, 1, 1], [], []>} : vector<8x8xbf16>, vector<8x8xbf16>, vector<8x8xf32> -> vector<8x8xf32>
    %334 = vector.extract_strided_slice %311 {offsets = [0, 8], sizes = [8, 8], strides = [1, 1]} : vector<8x32xbf16> to vector<8x8xbf16>
    %335 = vector.extract_strided_slice %313 {offsets = [0, 8], sizes = [8, 8], strides = [1, 1]} : vector<8x32xbf16> to vector<8x8xbf16>
    %cst_100 = arith.constant dense<0.000000e+00> : vector<8x8xf32>
    %336 = tpu.matmul %334, %335, %cst_100 {dimension_numbers = #tpu.dot_dimension_numbers<[1], [1], [0], [0], [0, 0, 1, 0], [], []>} : vector<8x8xbf16>, vector<8x8xbf16>, vector<8x8xf32> -> vector<8x8xf32>
    %cst_101 = arith.constant 0.353553385 : f32
    %337 = vector.broadcast %cst_101 : f32 to vector<8x8xf32>
    %338 = arith.mulf %336, %337 : vector<8x8xf32>
    %cst_102 = arith.constant dense<0xFF800000> : vector<8xf32>
    %339 = vector.multi_reduction <maximumf>, %338, %cst_102 [1] : vector<8x8xf32> to vector<8xf32>
    %340 = vector.shape_cast %339 : vector<8xf32> to vector<8x1xf32>
    %341 = vector.broadcast %340 : vector<8x1xf32> to vector<8x8xf32>
    %342 = arith.subf %338, %341 : vector<8x8xf32>
    %343 = math.exp %342 : vector<8x8xf32>
    %cst_103 = arith.constant dense<0.000000e+00> : vector<8xf32>
    %344 = vector.multi_reduction <add>, %343, %cst_103 [1] : vector<8x8xf32> to vector<8xf32>
    %345 = vector.shape_cast %344 : vector<8xf32> to vector<8x1xf32>
    %346 = tpu.reciprocal %345 {approx = true} : vector<8x1xf32> -> vector<8x1xf32>
    %347 = vector.broadcast %346 : vector<8x1xf32> to vector<8x8xf32>
    %348 = arith.mulf %343, %347 : vector<8x8xf32>
    %349 = arith.truncf %348 : vector<8x8xf32> to vector<8x8xbf16>
    %350 = vector.extract_strided_slice %315 {offsets = [0, 8], sizes = [8, 8], strides = [1, 1]} : vector<8x32xbf16> to vector<8x8xbf16>
    %cst_104 = arith.constant dense<0.000000e+00> : vector<8x8xf32>
    %351 = tpu.matmul %349, %350, %cst_104 {dimension_numbers = #tpu.dot_dimension_numbers<[1], [0], [0], [1], [0, 0, 1, 1], [], []>} : vector<8x8xbf16>, vector<8x8xbf16>, vector<8x8xf32> -> vector<8x8xf32>
    %352 = vector.extract_strided_slice %311 {offsets = [0, 16], sizes = [8, 8], strides = [1, 1]} : vector<8x32xbf16> to vector<8x8xbf16>
    %353 = vector.extract_strided_slice %313 {offsets = [0, 16], sizes = [8, 8], strides = [1, 1]} : vector<8x32xbf16> to vector<8x8xbf16>
    %cst_105 = arith.constant dense<0.000000e+00> : vector<8x8xf32>
    %354 = tpu.matmul %352, %353, %cst_105 {dimension_numbers = #tpu.dot_dimension_numbers<[1], [1], [0], [0], [0, 0, 1, 0], [], []>} : vector<8x8xbf16>, vector<8x8xbf16>, vector<8x8xf32> -> vector<8x8xf32>
    %cst_106 = arith.constant 0.353553385 : f32
    %355 = vector.broadcast %cst_106 : f32 to vector<8x8xf32>
    %356 = arith.mulf %354, %355 : vector<8x8xf32>
    %cst_107 = arith.constant dense<0xFF800000> : vector<8xf32>
    %357 = vector.multi_reduction <maximumf>, %356, %cst_107 [1] : vector<8x8xf32> to vector<8xf32>
    %358 = vector.shape_cast %357 : vector<8xf32> to vector<8x1xf32>
    %359 = vector.broadcast %358 : vector<8x1xf32> to vector<8x8xf32>
    %360 = arith.subf %356, %359 : vector<8x8xf32>
    %361 = math.exp %360 : vector<8x8xf32>
    %cst_108 = arith.constant dense<0.000000e+00> : vector<8xf32>
    %362 = vector.multi_reduction <add>, %361, %cst_108 [1] : vector<8x8xf32> to vector<8xf32>
    %363 = vector.shape_cast %362 : vector<8xf32> to vector<8x1xf32>
    %364 = tpu.reciprocal %363 {approx = true} : vector<8x1xf32> -> vector<8x1xf32>
    %365 = vector.broadcast %364 : vector<8x1xf32> to vector<8x8xf32>
    %366 = arith.mulf %361, %365 : vector<8x8xf32>
    %367 = arith.truncf %366 : vector<8x8xf32> to vector<8x8xbf16>
    %368 = vector.extract_strided_slice %315 {offsets = [0, 16], sizes = [8, 8], strides = [1, 1]} : vector<8x32xbf16> to vector<8x8xbf16>
    %cst_109 = arith.constant dense<0.000000e+00> : vector<8x8xf32>
    %369 = tpu.matmul %367, %368, %cst_109 {dimension_numbers = #tpu.dot_dimension_numbers<[1], [0], [0], [1], [0, 0, 1, 1], [], []>} : vector<8x8xbf16>, vector<8x8xbf16>, vector<8x8xf32> -> vector<8x8xf32>
    %370 = vector.extract_strided_slice %311 {offsets = [0, 24], sizes = [8, 8], strides = [1, 1]} : vector<8x32xbf16> to vector<8x8xbf16>
    %371 = vector.extract_strided_slice %313 {offsets = [0, 24], sizes = [8, 8], strides = [1, 1]} : vector<8x32xbf16> to vector<8x8xbf16>
    %cst_110 = arith.constant dense<0.000000e+00> : vector<8x8xf32>
    %372 = tpu.matmul %370, %371, %cst_110 {dimension_numbers = #tpu.dot_dimension_numbers<[1], [1], [0], [0], [0, 0, 1, 0], [], []>} : vector<8x8xbf16>, vector<8x8xbf16>, vector<8x8xf32> -> vector<8x8xf32>
    %cst_111 = arith.constant 0.353553385 : f32
    %373 = vector.broadcast %cst_111 : f32 to vector<8x8xf32>
    %374 = arith.mulf %372, %373 : vector<8x8xf32>
    %cst_112 = arith.constant dense<0xFF800000> : vector<8xf32>
    %375 = vector.multi_reduction <maximumf>, %374, %cst_112 [1] : vector<8x8xf32> to vector<8xf32>
    %376 = vector.shape_cast %375 : vector<8xf32> to vector<8x1xf32>
    %377 = vector.broadcast %376 : vector<8x1xf32> to vector<8x8xf32>
    %378 = arith.subf %374, %377 : vector<8x8xf32>
    %379 = math.exp %378 : vector<8x8xf32>
    %cst_113 = arith.constant dense<0.000000e+00> : vector<8xf32>
    %380 = vector.multi_reduction <add>, %379, %cst_113 [1] : vector<8x8xf32> to vector<8xf32>
    %381 = vector.shape_cast %380 : vector<8xf32> to vector<8x1xf32>
    %382 = tpu.reciprocal %381 {approx = true} : vector<8x1xf32> -> vector<8x1xf32>
    %383 = vector.broadcast %382 : vector<8x1xf32> to vector<8x8xf32>
    %384 = arith.mulf %379, %383 : vector<8x8xf32>
    %385 = arith.truncf %384 : vector<8x8xf32> to vector<8x8xbf16>
    %386 = vector.extract_strided_slice %315 {offsets = [0, 24], sizes = [8, 8], strides = [1, 1]} : vector<8x32xbf16> to vector<8x8xbf16>
    %cst_114 = arith.constant dense<0.000000e+00> : vector<8x8xf32>
    %387 = tpu.matmul %385, %386, %cst_114 {dimension_numbers = #tpu.dot_dimension_numbers<[1], [0], [0], [1], [0, 0, 1, 1], [], []>} : vector<8x8xbf16>, vector<8x8xbf16>, vector<8x8xf32> -> vector<8x8xf32>
    %388 = tpu.concatenate %333, %351, %369, %387 in 1 : vector<8x8xf32>, vector<8x8xf32>, vector<8x8xf32>, vector<8x8xf32> -> vector<8x32xf32>
    %389 = tpu.concatenate %309, %388 in 0 : vector<8x32xf32>, vector<8x32xf32> -> vector<16x32xf32>
    %390 = arith.truncf %389 : vector<16x32xf32> to vector<16x32xbf16>
    %c0_115 = arith.constant 0 : index
    %c0_116 = arith.constant 0 : index
    %391 = vector.load %arg13[%c0_115, %c0_116] : memref<32x32xbf16, #tpu.memory_space<vmem>>, vector<32x32xbf16>
    %cst_117 = arith.constant dense<0.000000e+00> : vector<16x32xf32>
    %392 = tpu.matmul %390, %391, %cst_117 {dimension_numbers = #tpu.dot_dimension_numbers<[1], [0], [0], [1], [0, 0, 1, 1], [], []>} : vector<16x32xbf16>, vector<32x32xbf16>, vector<16x32xf32> -> vector<16x32xf32>
    %c0_118 = arith.constant 0 : index
    %c0_119 = arith.constant 0 : index
    %393 = vector.load %arg14[%c0_118, %c0_119] : memref<1x32xf32, #tpu.memory_space<vmem>>, vector<1x32xf32>
    %394 = vector.broadcast %393 : vector<1x32xf32> to vector<16x32xf32>
    %395 = arith.addf %392, %394 : vector<16x32xf32>
    %396 = arith.addf %216, %395 : vector<16x32xf32>
    %cst_120 = arith.constant dense<0.000000e+00> : vector<16xf32>
    %397 = vector.multi_reduction <add>, %396, %cst_120 [1] : vector<16x32xf32> to vector<16xf32>
    %398 = vector.shape_cast %397 : vector<16xf32> to vector<16x1xf32>
    %cst_121 = arith.constant 3.200000e+01 : f32
    %399 = vector.broadcast %cst_121 : f32 to vector<16x1xf32>
    %400 = arith.divf %398, %399 : vector<16x1xf32>
    %401 = arith.mulf %396, %396 : vector<16x32xf32>
    %cst_122 = arith.constant dense<0.000000e+00> : vector<16xf32>
    %402 = vector.multi_reduction <add>, %401, %cst_122 [1] : vector<16x32xf32> to vector<16xf32>
    %403 = vector.shape_cast %402 : vector<16xf32> to vector<16x1xf32>
    %cst_123 = arith.constant 3.200000e+01 : f32
    %404 = vector.broadcast %cst_123 : f32 to vector<16x1xf32>
    %405 = arith.divf %403, %404 : vector<16x1xf32>
    %406 = arith.mulf %400, %400 : vector<16x1xf32>
    %407 = arith.subf %405, %406 : vector<16x1xf32>
    %cst_124 = arith.constant 9.99999974E-6 : f32
    %408 = vector.broadcast %cst_124 : f32 to vector<16x1xf32>
    %409 = arith.addf %407, %408 : vector<16x1xf32>
    %410 = math.rsqrt %409 : vector<16x1xf32>
    %411 = vector.broadcast %400 : vector<16x1xf32> to vector<16x32xf32>
    %412 = arith.subf %396, %411 : vector<16x32xf32>
    %c0_125 = arith.constant 0 : index
    %c0_126 = arith.constant 0 : index
    %413 = vector.load %arg15[%c0_125, %c0_126] : memref<1x32xf32, #tpu.memory_space<vmem>>, vector<1x32xf32>
    %414 = vector.broadcast %410 : vector<16x1xf32> to vector<16x32xf32>
    %415 = vector.broadcast %413 : vector<1x32xf32> to vector<16x32xf32>
    %416 = arith.mulf %414, %415 : vector<16x32xf32>
    %417 = arith.mulf %412, %416 : vector<16x32xf32>
    %c0_127 = arith.constant 0 : index
    %c0_128 = arith.constant 0 : index
    %418 = vector.load %arg16[%c0_127, %c0_128] : memref<1x32xf32, #tpu.memory_space<vmem>>, vector<1x32xf32>
    %419 = vector.broadcast %418 : vector<1x32xf32> to vector<16x32xf32>
    %420 = arith.addf %417, %419 : vector<16x32xf32>
    %421 = arith.truncf %420 : vector<16x32xf32> to vector<16x32xbf16>
    %c0_129 = arith.constant 0 : index
    %c0_130 = arith.constant 0 : index
    %422 = vector.load %arg17[%c0_129, %c0_130] : memref<32x64xbf16, #tpu.memory_space<vmem>>, vector<32x64xbf16>
    %cst_131 = arith.constant dense<0.000000e+00> : vector<16x64xf32>
    %423 = tpu.matmul %421, %422, %cst_131 {dimension_numbers = #tpu.dot_dimension_numbers<[1], [0], [0], [1], [0, 0, 1, 1], [], []>} : vector<16x32xbf16>, vector<32x64xbf16>, vector<16x64xf32> -> vector<16x64xf32>
    %c0_132 = arith.constant 0 : index
    %c0_133 = arith.constant 0 : index
    %424 = vector.load %arg18[%c0_132, %c0_133] : memref<1x64xf32, #tpu.memory_space<vmem>>, vector<1x64xf32>
    %425 = vector.broadcast %424 : vector<1x64xf32> to vector<16x64xf32>
    %426 = arith.addf %423, %425 : vector<16x64xf32>
    %cst_134 = arith.constant 0.000000e+00 : f32
    %427 = vector.broadcast %cst_134 : f32 to vector<16x64xf32>
    %428 = arith.maximumf %426, %427 : vector<16x64xf32>
    %429 = arith.truncf %428 : vector<16x64xf32> to vector<16x64xbf16>
    %c0_135 = arith.constant 0 : index
    %c0_136 = arith.constant 0 : index
    %430 = vector.load %arg19[%c0_135, %c0_136] : memref<64x32xbf16, #tpu.memory_space<vmem>>, vector<64x32xbf16>
    %cst_137 = arith.constant dense<0.000000e+00> : vector<16x32xf32>
    %431 = tpu.matmul %429, %430, %cst_137 {dimension_numbers = #tpu.dot_dimension_numbers<[1], [0], [0], [1], [0, 0, 1, 1], [], []>} : vector<16x64xbf16>, vector<64x32xbf16>, vector<16x32xf32> -> vector<16x32xf32>
    %c0_138 = arith.constant 0 : index
    %c0_139 = arith.constant 0 : index
    %432 = vector.load %arg20[%c0_138, %c0_139] : memref<1x32xf32, #tpu.memory_space<vmem>>, vector<1x32xf32>
    %433 = vector.broadcast %432 : vector<1x32xf32> to vector<16x32xf32>
    %434 = arith.addf %431, %433 : vector<16x32xf32>
    %435 = arith.addf %420, %434 : vector<16x32xf32>
    %cst_140 = arith.constant dense<0.000000e+00> : vector<16xf32>
    %436 = vector.multi_reduction <add>, %435, %cst_140 [1] : vector<16x32xf32> to vector<16xf32>
    %437 = vector.shape_cast %436 : vector<16xf32> to vector<16x1xf32>
    %cst_141 = arith.constant 3.200000e+01 : f32
    %438 = vector.broadcast %cst_141 : f32 to vector<16x1xf32>
    %439 = arith.divf %437, %438 : vector<16x1xf32>
    %440 = arith.mulf %435, %435 : vector<16x32xf32>
    %cst_142 = arith.constant dense<0.000000e+00> : vector<16xf32>
    %441 = vector.multi_reduction <add>, %440, %cst_142 [1] : vector<16x32xf32> to vector<16xf32>
    %442 = vector.shape_cast %441 : vector<16xf32> to vector<16x1xf32>
    %cst_143 = arith.constant 3.200000e+01 : f32
    %443 = vector.broadcast %cst_143 : f32 to vector<16x1xf32>
    %444 = arith.divf %442, %443 : vector<16x1xf32>
    %445 = arith.mulf %439, %439 : vector<16x1xf32>
    %446 = arith.subf %444, %445 : vector<16x1xf32>
    %cst_144 = arith.constant 9.99999974E-6 : f32
    %447 = vector.broadcast %cst_144 : f32 to vector<16x1xf32>
    %448 = arith.addf %446, %447 : vector<16x1xf32>
    %449 = math.rsqrt %448 : vector<16x1xf32>
    %450 = vector.broadcast %439 : vector<16x1xf32> to vector<16x32xf32>
    %451 = arith.subf %435, %450 : vector<16x32xf32>
    %c0_145 = arith.constant 0 : index
    %c0_146 = arith.constant 0 : index
    %452 = vector.load %arg21[%c0_145, %c0_146] : memref<1x32xf32, #tpu.memory_space<vmem>>, vector<1x32xf32>
    %453 = vector.broadcast %449 : vector<16x1xf32> to vector<16x32xf32>
    %454 = vector.broadcast %452 : vector<1x32xf32> to vector<16x32xf32>
    %455 = arith.mulf %453, %454 : vector<16x32xf32>
    %456 = arith.mulf %451, %455 : vector<16x32xf32>
    %c0_147 = arith.constant 0 : index
    %c0_148 = arith.constant 0 : index
    %457 = vector.load %arg22[%c0_147, %c0_148] : memref<1x32xf32, #tpu.memory_space<vmem>>, vector<1x32xf32>
    %458 = vector.broadcast %457 : vector<1x32xf32> to vector<16x32xf32>
    %459 = arith.addf %456, %458 : vector<16x32xf32>
    %460 = vector.shape_cast %459 : vector<16x32xf32> to vector<2x8x32xf32>
    %c0_149 = arith.constant 0 : index
    %c0_150 = arith.constant 0 : index
    %c0_151 = arith.constant 0 : index
    %461 = vector.load %arg23[%c0_149, %c0_150, %c0_151] : memref<2x8x32xf32, #tpu.memory_space<vmem>>, vector<2x8x32xf32>
    tpu.vector_store %arg23[%c0_149, %c0_150, %c0_151], %460 {strides = array<i32>} : memref<2x8x32xf32, #tpu.memory_space<vmem>>, vector<2x8x32xf32>,
    return
  }
  func.func @transform_0(%arg0: i32) -> (i32, i32, i32) {
    %c0_i32 = arith.constant 0 : i32
    %c0_i32_0 = arith.constant 0 : i32
    %c0_i32_1 = arith.constant 0 : i32
    return %arg0, %c0_i32, %c0_i32_0 : i32, i32, i32
  }
  func.func @transform_1(%arg0: i32) -> (i32, i32, i32) {
    %c0_i32 = arith.constant 0 : i32
    %c0_i32_0 = arith.constant 0 : i32
    %c0_i32_1 = arith.constant 0 : i32
    return %arg0, %c0_i32, %c0_i32_0 : i32, i32, i32
  }
  func.func @transform_2(%arg0: i32) -> (i32, i32) {
    %c0_i32 = arith.constant 0 : i32
    %c0_i32_0 = arith.constant 0 : i32
    %c0_i32_1 = arith.constant 0 : i32
    return %c0_i32, %c0_i32_0 : i32, i32
  }
  func.func @transform_3(%arg0: i32) -> (i32, i32) {
    %c0_i32 = arith.constant 0 : i32
    %c0_i32_0 = arith.constant 0 : i32
    %c0_i32_1 = arith.constant 0 : i32
    return %c0_i32, %c0_i32_0 : i32, i32
  }
  func.func @transform_4(%arg0: i32) -> (i32, i32) {
    %c0_i32 = arith.constant 0 : i32
    %c0_i32_0 = arith.constant 0 : i32
    %c0_i32_1 = arith.constant 0 : i32
    return %c0_i32, %c0_i32_0 : i32, i32
  }
  func.func @transform_5(%arg0: i32) -> (i32, i32) {
    %c0_i32 = arith.constant 0 : i32
    %c0_i32_0 = arith.constant 0 : i32
    %c0_i32_1 = arith.constant 0 : i32
    return %c0_i32, %c0_i32_0 : i32, i32
  }
  func.func @transform_6(%arg0: i32) -> (i32, i32) {
    %c0_i32 = arith.constant 0 : i32
    %c0_i32_0 = arith.constant 0 : i32
    %c0_i32_1 = arith.constant 0 : i32
    return %c0_i32, %c0_i32_0 : i32, i32
  }
  func.func @transform_7(%arg0: i32) -> (i32, i32) {
    %c0_i32 = arith.constant 0 : i32
    %c0_i32_0 = arith.constant 0 : i32
    %c0_i32_1 = arith.constant 0 : i32
    return %c0_i32, %c0_i32_0 : i32, i32
  }
  func.func @transform_8(%arg0: i32) -> (i32, i32) {
    %c0_i32 = arith.constant 0 : i32
    %c0_i32_0 = arith.constant 0 : i32
    %c0_i32_1 = arith.constant 0 : i32
    return %c0_i32, %c0_i32_0 : i32, i32
  }
  func.func @transform_9(%arg0: i32) -> (i32, i32) {
    %c0_i32 = arith.constant 0 : i32
    %c0_i32_0 = arith.constant 0 : i32
    %c0_i32_1 = arith.constant 0 : i32
    return %c0_i32, %c0_i32_0 : i32, i32
  }
  func.func @transform_10(%arg0: i32) -> (i32, i32) {
    %c0_i32 = arith.constant 0 : i32
    %c0_i32_0 = arith.constant 0 : i32
    %c0_i32_1 = arith.constant 0 : i32
    return %c0_i32, %c0_i32_0 : i32, i32
  }
  func.func @transform_11(%arg0: i32) -> (i32, i32) {
    %c0_i32 = arith.constant 0 : i32
    %c0_i32_0 = arith.constant 0 : i32
    %c0_i32_1 = arith.constant 0 : i32
    return %c0_i32, %c0_i32_0 : i32, i32
  }
  func.func @transform_12(%arg0: i32) -> (i32, i32) {
    %c0_i32 = arith.constant 0 : i32
    %c0_i32_0 = arith.constant 0 : i32
    %c0_i32_1 = arith.constant 0 : i32
    return %c0_i32, %c0_i32_0 : i32, i32
  }
  func.func @transform_13(%arg0: i32) -> (i32, i32) {
    %c0_i32 = arith.constant 0 : i32
    %c0_i32_0 = arith.constant 0 : i32
    %c0_i32_1 = arith.constant 0 : i32
    return %c0_i32, %c0_i32_0 : i32, i32
  }
  func.func @transform_14(%arg0: i32) -> (i32, i32) {
    %c0_i32 = arith.constant 0 : i32
    %c0_i32_0 = arith.constant 0 : i32
    %c0_i32_1 = arith.constant 0 : i32
    return %c0_i32, %c0_i32_0 : i32, i32
  }
  func.func @transform_15(%arg0: i32) -> (i32, i32) {
    %c0_i32 = arith.constant 0 : i32
    %c0_i32_0 = arith.constant 0 : i32
    %c0_i32_1 = arith.constant 0 : i32
    return %c0_i32, %c0_i32_0 : i32, i32
  }
  func.func @transform_16(%arg0: i32) -> (i32, i32) {
    %c0_i32 = arith.constant 0 : i32
    %c0_i32_0 = arith.constant 0 : i32
    %c0_i32_1 = arith.constant 0 : i32
    return %c0_i32, %c0_i32_0 : i32, i32
  }
  func.func @transform_17(%arg0: i32) -> (i32, i32) {
    %c0_i32 = arith.constant 0 : i32
    %c0_i32_0 = arith.constant 0 : i32
    %c0_i32_1 = arith.constant 0 : i32
    return %c0_i32, %c0_i32_0 : i32, i32
  }
  func.func @transform_18(%arg0: i32) -> (i32, i32) {
    %c0_i32 = arith.constant 0 : i32
    %c0_i32_0 = arith.constant 0 : i32
    %c0_i32_1 = arith.constant 0 : i32
    return %c0_i32, %c0_i32_0 : i32, i32
  }
  func.func @transform_19(%arg0: i32) -> (i32, i32) {
    %c0_i32 = arith.constant 0 : i32
    %c0_i32_0 = arith.constant 0 : i32
    %c0_i32_1 = arith.constant 0 : i32
    return %c0_i32, %c0_i32_0 : i32, i32
  }
  func.func @transform_20(%arg0: i32) -> (i32, i32) {
    %c0_i32 = arith.constant 0 : i32
    %c0_i32_0 = arith.constant 0 : i32
    %c0_i32_1 = arith.constant 0 : i32
    return %c0_i32, %c0_i32_0 : i32, i32
  }
  func.func @transform_21(%arg0: i32) -> (i32, i32) {
    %c0_i32 = arith.constant 0 : i32
    %c0_i32_0 = arith.constant 0 : i32
    %c0_i32_1 = arith.constant 0 : i32
    return %c0_i32, %c0_i32_0 : i32, i32
  }
  func.func @transform_22(%arg0: i32) -> (i32, i32, i32) {
    %c0_i32 = arith.constant 0 : i32
    %c0_i32_0 = arith.constant 0 : i32
    %c0_i32_1 = arith.constant 0 : i32
    return %arg0, %c0_i32, %c0_i32_0 : i32, i32, i32
  }
}

module attributes {stable_mosaic.version = 11 : i64} {
  func.func @_decoder_layer_kernel(%arg0: i32, %arg1: memref<2x8x32xf32, #tpu.memory_space<vmem>>, %arg2: memref<2x8x32xf32, #tpu.memory_space<vmem>>, %arg3: memref<32x96xbf16, #tpu.memory_space<vmem>>, %arg4: memref<1x96xf32, #tpu.memory_space<vmem>>, %arg5: memref<32x32xbf16, #tpu.memory_space<vmem>>, %arg6: memref<1x32xf32, #tpu.memory_space<vmem>>, %arg7: memref<1x32xf32, #tpu.memory_space<vmem>>, %arg8: memref<1x32xf32, #tpu.memory_space<vmem>>, %arg9: memref<32x32xbf16, #tpu.memory_space<vmem>>, %arg10: memref<1x32xf32, #tpu.memory_space<vmem>>, %arg11: memref<32x64xbf16, #tpu.memory_space<vmem>>, %arg12: memref<1x64xf32, #tpu.memory_space<vmem>>, %arg13: memref<32x32xbf16, #tpu.memory_space<vmem>>, %arg14: memref<1x32xf32, #tpu.memory_space<vmem>>, %arg15: memref<1x32xf32, #tpu.memory_space<vmem>>, %arg16: memref<1x32xf32, #tpu.memory_space<vmem>>, %arg17: memref<32x64xbf16, #tpu.memory_space<vmem>>, %arg18: memref<1x64xf32, #tpu.memory_space<vmem>>, %arg19: memref<64x32xbf16, #tpu.memory_space<vmem>>, %arg20: memref<1x32xf32, #tpu.memory_space<vmem>>, %arg21: memref<1x32xf32, #tpu.memory_space<vmem>>, %arg22: memref<1x32xf32, #tpu.memory_space<vmem>>, %arg23: memref<2x8x32xf32, #tpu.memory_space<vmem>>) attributes {dimension_semantics = [#tpu.dimension_semantics<parallel>], iteration_bounds = array<i64: 1>, scalar_prefetch = 0 : i64, scratch_operands = 0 : i64, tpu.core_type = #tpu.core_type<tc>, window_params = [{transform_indices = @transform_0, window_bounds = array<i64: 2, 8, 32>}, {transform_indices = @transform_1, window_bounds = array<i64: 2, 8, 32>}, {pipeline_mode = #tpu.pipeline_mode<synchronous>, transform_indices = @transform_2, window_bounds = array<i64: 32, 96>}, {pipeline_mode = #tpu.pipeline_mode<synchronous>, transform_indices = @transform_3, window_bounds = array<i64: 1, 96>}, {pipeline_mode = #tpu.pipeline_mode<synchronous>, transform_indices = @transform_4, window_bounds = array<i64: 32, 32>}, {pipeline_mode = #tpu.pipeline_mode<synchronous>, transform_indices = @transform_5, window_bounds = array<i64: 1, 32>}, {pipeline_mode = #tpu.pipeline_mode<synchronous>, transform_indices = @transform_6, window_bounds = array<i64: 1, 32>}, {pipeline_mode = #tpu.pipeline_mode<synchronous>, transform_indices = @transform_7, window_bounds = array<i64: 1, 32>}, {pipeline_mode = #tpu.pipeline_mode<synchronous>, transform_indices = @transform_8, window_bounds = array<i64: 32, 32>}, {pipeline_mode = #tpu.pipeline_mode<synchronous>, transform_indices = @transform_9, window_bounds = array<i64: 1, 32>}, {pipeline_mode = #tpu.pipeline_mode<synchronous>, transform_indices = @transform_10, window_bounds = array<i64: 32, 64>}, {pipeline_mode = #tpu.pipeline_mode<synchronous>, transform_indices = @transform_11, window_bounds = array<i64: 1, 64>}, {pipeline_mode = #tpu.pipeline_mode<synchronous>, transform_indices = @transform_12, window_bounds = array<i64: 32, 32>}, {pipeline_mode = #tpu.pipeline_mode<synchronous>, transform_indices = @transform_13, window_bounds = array<i64: 1, 32>}, {pipeline_mode = #tpu.pipeline_mode<synchronous>, transform_indices = @transform_14, window_bounds = array<i64: 1, 32>}, {pipeline_mode = #tpu.pipeline_mode<synchronous>, transform_indices = @transform_15, window_bounds = array<i64: 1, 32>}, {pipeline_mode = #tpu.pipeline_mode<synchronous>, transform_indices = @transform_16, window_bounds = array<i64: 32, 64>}, {pipeline_mode = #tpu.pipeline_mode<synchronous>, transform_indices = @transform_17, window_bounds = array<i64: 1, 64>}, {pipeline_mode = #tpu.pipeline_mode<synchronous>, transform_indices = @transform_18, window_bounds = array<i64: 64, 32>}, {pipeline_mode = #tpu.pipeline_mode<synchronous>, transform_indices = @transform_19, window_bounds = array<i64: 1, 32>}, {pipeline_mode = #tpu.pipeline_mode<synchronous>, transform_indices = @transform_20, window_bounds = array<i64: 1, 32>}, {pipeline_mode = #tpu.pipeline_mode<synchronous>, transform_indices = @transform_21, window_bounds = array<i64: 1, 32>}, {transform_indices = @transform_22, window_bounds = array<i64: 2, 8, 32>}]} {
    %c0 = arith.constant 0 : index
    %c0_0 = arith.constant 0 : index
    %c0_1 = arith.constant 0 : index
    %0 = vector.load %arg1[%c0, %c0_0, %c0_1] : memref<2x8x32xf32, #tpu.memory_space<vmem>>, vector<2x8x32xf32>
    %1 = vector.shape_cast %0 : vector<2x8x32xf32> to vector<16x32xf32>
    %c0_2 = arith.constant 0 : index
    %c0_3 = arith.constant 0 : index
    %c0_4 = arith.constant 0 : index
    %2 = vector.load %arg2[%c0_2, %c0_3, %c0_4] : memref<2x8x32xf32, #tpu.memory_space<vmem>>, vector<2x8x32xf32>
    %3 = vector.shape_cast %2 : vector<2x8x32xf32> to vector<16x32xf32>
    %4 = tpu.iota {dimensions = array<i32: 0>} : vector<8x8xi32>
    %5 = tpu.iota {dimensions = array<i32: 1>} : vector<8x8xi32>
    %6 = arith.cmpi sgt, %5, %4 : vector<8x8xi32>
    %cst = arith.constant -1.000000e+09 : f32
    %cst_5 = arith.constant 0.000000e+00 : f32
    %7 = vector.broadcast %cst : f32 to vector<8x8xf32>
    %8 = vector.broadcast %cst_5 : f32 to vector<8x8xf32>
    %9 = arith.select %6, %7, %8 : vector<8x8xi1>, vector<8x8xf32>
    %10 = arith.truncf %1 : vector<16x32xf32> to vector<16x32xbf16>
    %c0_6 = arith.constant 0 : index
    %c0_7 = arith.constant 0 : index
    %11 = vector.load %arg3[%c0_6, %c0_7] : memref<32x96xbf16, #tpu.memory_space<vmem>>, vector<32x96xbf16>
    %cst_8 = arith.constant dense<0.000000e+00> : vector<16x96xf32>
    %12 = tpu.matmul %10, %11, %cst_8 {dimension_numbers = #tpu.dot_dimension_numbers<[1], [0], [0], [1], [0, 0, 1, 1], [], []>} : vector<16x32xbf16>, vector<32x96xbf16>, vector<16x96xf32> -> vector<16x96xf32>
    %c0_9 = arith.constant 0 : index
    %c0_10 = arith.constant 0 : index
    %13 = vector.load %arg4[%c0_9, %c0_10] : memref<1x96xf32, #tpu.memory_space<vmem>>, vector<1x96xf32>
    %14 = vector.broadcast %13 : vector<1x96xf32> to vector<16x96xf32>
    %15 = arith.addf %12, %14 : vector<16x96xf32>
    %16 = vector.extract_strided_slice %15 {offsets = [0, 0], sizes = [16, 32], strides = [1, 1]} : vector<16x96xf32> to vector<16x32xf32>
    %17 = vector.extract_strided_slice %15 {offsets = [0, 32], sizes = [16, 32], strides = [1, 1]} : vector<16x96xf32> to vector<16x32xf32>
    %18 = vector.extract_strided_slice %15 {offsets = [0, 64], sizes = [16, 32], strides = [1, 1]} : vector<16x96xf32> to vector<16x32xf32>
    %19 = vector.extract_strided_slice %16 {offsets = [0, 0], sizes = [8, 32], strides = [1, 1]} : vector<16x32xf32> to vector<8x32xf32>
    %20 = arith.truncf %19 : vector<8x32xf32> to vector<8x32xbf16>
    %21 = vector.extract_strided_slice %17 {offsets = [0, 0], sizes = [8, 32], strides = [1, 1]} : vector<16x32xf32> to vector<8x32xf32>
    %22 = arith.truncf %21 : vector<8x32xf32> to vector<8x32xbf16>
    %23 = vector.extract_strided_slice %18 {offsets = [0, 0], sizes = [8, 32], strides = [1, 1]} : vector<16x32xf32> to vector<8x32xf32>
    %24 = arith.truncf %23 : vector<8x32xf32> to vector<8x32xbf16>
    %25 = vector.extract_strided_slice %20 {offsets = [0, 0], sizes = [8, 8], strides = [1, 1]} : vector<8x32xbf16> to vector<8x8xbf16>
    %26 = vector.extract_strided_slice %22 {offsets = [0, 0], sizes = [8, 8], strides = [1, 1]} : vector<8x32xbf16> to vector<8x8xbf16>
    %cst_11 = arith.constant dense<0.000000e+00> : vector<8x8xf32>
    %27 = tpu.matmul %25, %26, %cst_11 {dimension_numbers = #tpu.dot_dimension_numbers<[1], [1], [0], [0], [0, 0, 1, 0], [], []>} : vector<8x8xbf16>, vector<8x8xbf16>, vector<8x8xf32> -> vector<8x8xf32>
    %cst_12 = arith.constant 0.353553385 : f32
    %28 = vector.broadcast %cst_12 : f32 to vector<8x8xf32>
    %29 = arith.mulf %27, %28 : vector<8x8xf32>
    %30 = arith.addf %29, %9 : vector<8x8xf32>
    %cst_13 = arith.constant dense<0xFF800000> : vector<8xf32>
    %31 = vector.multi_reduction <maximumf>, %30, %cst_13 [1] : vector<8x8xf32> to vector<8xf32>
    %32 = vector.shape_cast %31 : vector<8xf32> to vector<8x1xf32>
    %33 = vector.broadcast %32 : vector<8x1xf32> to vector<8x8xf32>
    %34 = arith.subf %30, %33 : vector<8x8xf32>
    %35 = math.exp %34 : vector<8x8xf32>
    %cst_14 = arith.constant dense<0.000000e+00> : vector<8xf32>
    %36 = vector.multi_reduction <add>, %35, %cst_14 [1] : vector<8x8xf32> to vector<8xf32>
    %37 = vector.shape_cast %36 : vector<8xf32> to vector<8x1xf32>
    %38 = tpu.reciprocal %37 {approx = true} : vector<8x1xf32> -> vector<8x1xf32>
    %39 = vector.broadcast %38 : vector<8x1xf32> to vector<8x8xf32>
    %40 = arith.mulf %35, %39 : vector<8x8xf32>
    %41 = arith.truncf %40 : vector<8x8xf32> to vector<8x8xbf16>
    %42 = vector.extract_strided_slice %24 {offsets = [0, 0], sizes = [8, 8], strides = [1, 1]} : vector<8x32xbf16> to vector<8x8xbf16>
    %cst_15 = arith.constant dense<0.000000e+00> : vector<8x8xf32>
    %43 = tpu.matmul %41, %42, %cst_15 {dimension_numbers = #tpu.dot_dimension_numbers<[1], [0], [0], [1], [0, 0, 1, 1], [], []>} : vector<8x8xbf16>, vector<8x8xbf16>, vector<8x8xf32> -> vector<8x8xf32>
    %44 = vector.extract_strided_slice %20 {offsets = [0, 8], sizes = [8, 8], strides = [1, 1]} : vector<8x32xbf16> to vector<8x8xbf16>
    %45 = vector.extract_strided_slice %22 {offsets = [0, 8], sizes = [8, 8], strides = [1, 1]} : vector<8x32xbf16> to vector<8x8xbf16>
    %cst_16 = arith.constant dense<0.000000e+00> : vector<8x8xf32>
    %46 = tpu.matmul %44, %45, %cst_16 {dimension_numbers = #tpu.dot_dimension_numbers<[1], [1], [0], [0], [0, 0, 1, 0], [], []>} : vector<8x8xbf16>, vector<8x8xbf16>, vector<8x8xf32> -> vector<8x8xf32>
    %cst_17 = arith.constant 0.353553385 : f32
    %47 = vector.broadcast %cst_17 : f32 to vector<8x8xf32>
    %48 = arith.mulf %46, %47 : vector<8x8xf32>
    %49 = arith.addf %48, %9 : vector<8x8xf32>
    %cst_18 = arith.constant dense<0xFF800000> : vector<8xf32>
    %50 = vector.multi_reduction <maximumf>, %49, %cst_18 [1] : vector<8x8xf32> to vector<8xf32>
    %51 = vector.shape_cast %50 : vector<8xf32> to vector<8x1xf32>
    %52 = vector.broadcast %51 : vector<8x1xf32> to vector<8x8xf32>
    %53 = arith.subf %49, %52 : vector<8x8xf32>
    %54 = math.exp %53 : vector<8x8xf32>
    %cst_19 = arith.constant dense<0.000000e+00> : vector<8xf32>
    %55 = vector.multi_reduction <add>, %54, %cst_19 [1] : vector<8x8xf32> to vector<8xf32>
    %56 = vector.shape_cast %55 : vector<8xf32> to vector<8x1xf32>
    %57 = tpu.reciprocal %56 {approx = true} : vector<8x1xf32> -> vector<8x1xf32>
    %58 = vector.broadcast %57 : vector<8x1xf32> to vector<8x8xf32>
    %59 = arith.mulf %54, %58 : vector<8x8xf32>
    %60 = arith.truncf %59 : vector<8x8xf32> to vector<8x8xbf16>
    %61 = vector.extract_strided_slice %24 {offsets = [0, 8], sizes = [8, 8], strides = [1, 1]} : vector<8x32xbf16> to vector<8x8xbf16>
    %cst_20 = arith.constant dense<0.000000e+00> : vector<8x8xf32>
    %62 = tpu.matmul %60, %61, %cst_20 {dimension_numbers = #tpu.dot_dimension_numbers<[1], [0], [0], [1], [0, 0, 1, 1], [], []>} : vector<8x8xbf16>, vector<8x8xbf16>, vector<8x8xf32> -> vector<8x8xf32>
    %63 = vector.extract_strided_slice %20 {offsets = [0, 16], sizes = [8, 8], strides = [1, 1]} : vector<8x32xbf16> to vector<8x8xbf16>
    %64 = vector.extract_strided_slice %22 {offsets = [0, 16], sizes = [8, 8], strides = [1, 1]} : vector<8x32xbf16> to vector<8x8xbf16>
    %cst_21 = arith.constant dense<0.000000e+00> : vector<8x8xf32>
    %65 = tpu.matmul %63, %64, %cst_21 {dimension_numbers = #tpu.dot_dimension_numbers<[1], [1], [0], [0], [0, 0, 1, 0], [], []>} : vector<8x8xbf16>, vector<8x8xbf16>, vector<8x8xf32> -> vector<8x8xf32>
    %cst_22 = arith.constant 0.353553385 : f32
    %66 = vector.broadcast %cst_22 : f32 to vector<8x8xf32>
    %67 = arith.mulf %65, %66 : vector<8x8xf32>
    %68 = arith.addf %67, %9 : vector<8x8xf32>
    %cst_23 = arith.constant dense<0xFF800000> : vector<8xf32>
    %69 = vector.multi_reduction <maximumf>, %68, %cst_23 [1] : vector<8x8xf32> to vector<8xf32>
    %70 = vector.shape_cast %69 : vector<8xf32> to vector<8x1xf32>
    %71 = vector.broadcast %70 : vector<8x1xf32> to vector<8x8xf32>
    %72 = arith.subf %68, %71 : vector<8x8xf32>
    %73 = math.exp %72 : vector<8x8xf32>
    %cst_24 = arith.constant dense<0.000000e+00> : vector<8xf32>
    %74 = vector.multi_reduction <add>, %73, %cst_24 [1] : vector<8x8xf32> to vector<8xf32>
    %75 = vector.shape_cast %74 : vector<8xf32> to vector<8x1xf32>
    %76 = tpu.reciprocal %75 {approx = true} : vector<8x1xf32> -> vector<8x1xf32>
    %77 = vector.broadcast %76 : vector<8x1xf32> to vector<8x8xf32>
    %78 = arith.mulf %73, %77 : vector<8x8xf32>
    %79 = arith.truncf %78 : vector<8x8xf32> to vector<8x8xbf16>
    %80 = vector.extract_strided_slice %24 {offsets = [0, 16], sizes = [8, 8], strides = [1, 1]} : vector<8x32xbf16> to vector<8x8xbf16>
    %cst_25 = arith.constant dense<0.000000e+00> : vector<8x8xf32>
    %81 = tpu.matmul %79, %80, %cst_25 {dimension_numbers = #tpu.dot_dimension_numbers<[1], [0], [0], [1], [0, 0, 1, 1], [], []>} : vector<8x8xbf16>, vector<8x8xbf16>, vector<8x8xf32> -> vector<8x8xf32>
    %82 = vector.extract_strided_slice %20 {offsets = [0, 24], sizes = [8, 8], strides = [1, 1]} : vector<8x32xbf16> to vector<8x8xbf16>
    %83 = vector.extract_strided_slice %22 {offsets = [0, 24], sizes = [8, 8], strides = [1, 1]} : vector<8x32xbf16> to vector<8x8xbf16>
    %cst_26 = arith.constant dense<0.000000e+00> : vector<8x8xf32>
    %84 = tpu.matmul %82, %83, %cst_26 {dimension_numbers = #tpu.dot_dimension_numbers<[1], [1], [0], [0], [0, 0, 1, 0], [], []>} : vector<8x8xbf16>, vector<8x8xbf16>, vector<8x8xf32> -> vector<8x8xf32>
    %cst_27 = arith.constant 0.353553385 : f32
    %85 = vector.broadcast %cst_27 : f32 to vector<8x8xf32>
    %86 = arith.mulf %84, %85 : vector<8x8xf32>
    %87 = arith.addf %86, %9 : vector<8x8xf32>
    %cst_28 = arith.constant dense<0xFF800000> : vector<8xf32>
    %88 = vector.multi_reduction <maximumf>, %87, %cst_28 [1] : vector<8x8xf32> to vector<8xf32>
    %89 = vector.shape_cast %88 : vector<8xf32> to vector<8x1xf32>
    %90 = vector.broadcast %89 : vector<8x1xf32> to vector<8x8xf32>
    %91 = arith.subf %87, %90 : vector<8x8xf32>
    %92 = math.exp %91 : vector<8x8xf32>
    %cst_29 = arith.constant dense<0.000000e+00> : vector<8xf32>
    %93 = vector.multi_reduction <add>, %92, %cst_29 [1] : vector<8x8xf32> to vector<8xf32>
    %94 = vector.shape_cast %93 : vector<8xf32> to vector<8x1xf32>
    %95 = tpu.reciprocal %94 {approx = true} : vector<8x1xf32> -> vector<8x1xf32>
    %96 = vector.broadcast %95 : vector<8x1xf32> to vector<8x8xf32>
    %97 = arith.mulf %92, %96 : vector<8x8xf32>
    %98 = arith.truncf %97 : vector<8x8xf32> to vector<8x8xbf16>
    %99 = vector.extract_strided_slice %24 {offsets = [0, 24], sizes = [8, 8], strides = [1, 1]} : vector<8x32xbf16> to vector<8x8xbf16>
    %cst_30 = arith.constant dense<0.000000e+00> : vector<8x8xf32>
    %100 = tpu.matmul %98, %99, %cst_30 {dimension_numbers = #tpu.dot_dimension_numbers<[1], [0], [0], [1], [0, 0, 1, 1], [], []>} : vector<8x8xbf16>, vector<8x8xbf16>, vector<8x8xf32> -> vector<8x8xf32>
    %101 = tpu.concatenate %43, %62, %81, %100 in 1 : vector<8x8xf32>, vector<8x8xf32>, vector<8x8xf32>, vector<8x8xf32> -> vector<8x32xf32>
    %102 = vector.extract_strided_slice %16 {offsets = [8, 0], sizes = [8, 32], strides = [1, 1]} : vector<16x32xf32> to vector<8x32xf32>
    %103 = arith.truncf %102 : vector<8x32xf32> to vector<8x32xbf16>
    %104 = vector.extract_strided_slice %17 {offsets = [8, 0], sizes = [8, 32], strides = [1, 1]} : vector<16x32xf32> to vector<8x32xf32>
    %105 = arith.truncf %104 : vector<8x32xf32> to vector<8x32xbf16>
    %106 = vector.extract_strided_slice %18 {offsets = [8, 0], sizes = [8, 32], strides = [1, 1]} : vector<16x32xf32> to vector<8x32xf32>
    %107 = arith.truncf %106 : vector<8x32xf32> to vector<8x32xbf16>
    %108 = vector.extract_strided_slice %103 {offsets = [0, 0], sizes = [8, 8], strides = [1, 1]} : vector<8x32xbf16> to vector<8x8xbf16>
    %109 = vector.extract_strided_slice %105 {offsets = [0, 0], sizes = [8, 8], strides = [1, 1]} : vector<8x32xbf16> to vector<8x8xbf16>
    %cst_31 = arith.constant dense<0.000000e+00> : vector<8x8xf32>
    %110 = tpu.matmul %108, %109, %cst_31 {dimension_numbers = #tpu.dot_dimension_numbers<[1], [1], [0], [0], [0, 0, 1, 0], [], []>} : vector<8x8xbf16>, vector<8x8xbf16>, vector<8x8xf32> -> vector<8x8xf32>
    %cst_32 = arith.constant 0.353553385 : f32
    %111 = vector.broadcast %cst_32 : f32 to vector<8x8xf32>
    %112 = arith.mulf %110, %111 : vector<8x8xf32>
    %113 = arith.addf %112, %9 : vector<8x8xf32>
    %cst_33 = arith.constant dense<0xFF800000> : vector<8xf32>
    %114 = vector.multi_reduction <maximumf>, %113, %cst_33 [1] : vector<8x8xf32> to vector<8xf32>
    %115 = vector.shape_cast %114 : vector<8xf32> to vector<8x1xf32>
    %116 = vector.broadcast %115 : vector<8x1xf32> to vector<8x8xf32>
    %117 = arith.subf %113, %116 : vector<8x8xf32>
    %118 = math.exp %117 : vector<8x8xf32>
    %cst_34 = arith.constant dense<0.000000e+00> : vector<8xf32>
    %119 = vector.multi_reduction <add>, %118, %cst_34 [1] : vector<8x8xf32> to vector<8xf32>
    %120 = vector.shape_cast %119 : vector<8xf32> to vector<8x1xf32>
    %121 = tpu.reciprocal %120 {approx = true} : vector<8x1xf32> -> vector<8x1xf32>
    %122 = vector.broadcast %121 : vector<8x1xf32> to vector<8x8xf32>
    %123 = arith.mulf %118, %122 : vector<8x8xf32>
    %124 = arith.truncf %123 : vector<8x8xf32> to vector<8x8xbf16>
    %125 = vector.extract_strided_slice %107 {offsets = [0, 0], sizes = [8, 8], strides = [1, 1]} : vector<8x32xbf16> to vector<8x8xbf16>
    %cst_35 = arith.constant dense<0.000000e+00> : vector<8x8xf32>
    %126 = tpu.matmul %124, %125, %cst_35 {dimension_numbers = #tpu.dot_dimension_numbers<[1], [0], [0], [1], [0, 0, 1, 1], [], []>} : vector<8x8xbf16>, vector<8x8xbf16>, vector<8x8xf32> -> vector<8x8xf32>
    %127 = vector.extract_strided_slice %103 {offsets = [0, 8], sizes = [8, 8], strides = [1, 1]} : vector<8x32xbf16> to vector<8x8xbf16>
    %128 = vector.extract_strided_slice %105 {offsets = [0, 8], sizes = [8, 8], strides = [1, 1]} : vector<8x32xbf16> to vector<8x8xbf16>
    %cst_36 = arith.constant dense<0.000000e+00> : vector<8x8xf32>
    %129 = tpu.matmul %127, %128, %cst_36 {dimension_numbers = #tpu.dot_dimension_numbers<[1], [1], [0], [0], [0, 0, 1, 0], [], []>} : vector<8x8xbf16>, vector<8x8xbf16>, vector<8x8xf32> -> vector<8x8xf32>
    %cst_37 = arith.constant 0.353553385 : f32
    %130 = vector.broadcast %cst_37 : f32 to vector<8x8xf32>
    %131 = arith.mulf %129, %130 : vector<8x8xf32>
    %132 = arith.addf %131, %9 : vector<8x8xf32>
    %cst_38 = arith.constant dense<0xFF800000> : vector<8xf32>
    %133 = vector.multi_reduction <maximumf>, %132, %cst_38 [1] : vector<8x8xf32> to vector<8xf32>
    %134 = vector.shape_cast %133 : vector<8xf32> to vector<8x1xf32>
    %135 = vector.broadcast %134 : vector<8x1xf32> to vector<8x8xf32>
    %136 = arith.subf %132, %135 : vector<8x8xf32>
    %137 = math.exp %136 : vector<8x8xf32>
    %cst_39 = arith.constant dense<0.000000e+00> : vector<8xf32>
    %138 = vector.multi_reduction <add>, %137, %cst_39 [1] : vector<8x8xf32> to vector<8xf32>
    %139 = vector.shape_cast %138 : vector<8xf32> to vector<8x1xf32>
    %140 = tpu.reciprocal %139 {approx = true} : vector<8x1xf32> -> vector<8x1xf32>
    %141 = vector.broadcast %140 : vector<8x1xf32> to vector<8x8xf32>
    %142 = arith.mulf %137, %141 : vector<8x8xf32>
    %143 = arith.truncf %142 : vector<8x8xf32> to vector<8x8xbf16>
    %144 = vector.extract_strided_slice %107 {offsets = [0, 8], sizes = [8, 8], strides = [1, 1]} : vector<8x32xbf16> to vector<8x8xbf16>
    %cst_40 = arith.constant dense<0.000000e+00> : vector<8x8xf32>
    %145 = tpu.matmul %143, %144, %cst_40 {dimension_numbers = #tpu.dot_dimension_numbers<[1], [0], [0], [1], [0, 0, 1, 1], [], []>} : vector<8x8xbf16>, vector<8x8xbf16>, vector<8x8xf32> -> vector<8x8xf32>
    %146 = vector.extract_strided_slice %103 {offsets = [0, 16], sizes = [8, 8], strides = [1, 1]} : vector<8x32xbf16> to vector<8x8xbf16>
    %147 = vector.extract_strided_slice %105 {offsets = [0, 16], sizes = [8, 8], strides = [1, 1]} : vector<8x32xbf16> to vector<8x8xbf16>
    %cst_41 = arith.constant dense<0.000000e+00> : vector<8x8xf32>
    %148 = tpu.matmul %146, %147, %cst_41 {dimension_numbers = #tpu.dot_dimension_numbers<[1], [1], [0], [0], [0, 0, 1, 0], [], []>} : vector<8x8xbf16>, vector<8x8xbf16>, vector<8x8xf32> -> vector<8x8xf32>
    %cst_42 = arith.constant 0.353553385 : f32
    %149 = vector.broadcast %cst_42 : f32 to vector<8x8xf32>
    %150 = arith.mulf %148, %149 : vector<8x8xf32>
    %151 = arith.addf %150, %9 : vector<8x8xf32>
    %cst_43 = arith.constant dense<0xFF800000> : vector<8xf32>
    %152 = vector.multi_reduction <maximumf>, %151, %cst_43 [1] : vector<8x8xf32> to vector<8xf32>
    %153 = vector.shape_cast %152 : vector<8xf32> to vector<8x1xf32>
    %154 = vector.broadcast %153 : vector<8x1xf32> to vector<8x8xf32>
    %155 = arith.subf %151, %154 : vector<8x8xf32>
    %156 = math.exp %155 : vector<8x8xf32>
    %cst_44 = arith.constant dense<0.000000e+00> : vector<8xf32>
    %157 = vector.multi_reduction <add>, %156, %cst_44 [1] : vector<8x8xf32> to vector<8xf32>
    %158 = vector.shape_cast %157 : vector<8xf32> to vector<8x1xf32>
    %159 = tpu.reciprocal %158 {approx = true} : vector<8x1xf32> -> vector<8x1xf32>
    %160 = vector.broadcast %159 : vector<8x1xf32> to vector<8x8xf32>
    %161 = arith.mulf %156, %160 : vector<8x8xf32>
    %162 = arith.truncf %161 : vector<8x8xf32> to vector<8x8xbf16>
    %163 = vector.extract_strided_slice %107 {offsets = [0, 16], sizes = [8, 8], strides = [1, 1]} : vector<8x32xbf16> to vector<8x8xbf16>
    %cst_45 = arith.constant dense<0.000000e+00> : vector<8x8xf32>
    %164 = tpu.matmul %162, %163, %cst_45 {dimension_numbers = #tpu.dot_dimension_numbers<[1], [0], [0], [1], [0, 0, 1, 1], [], []>} : vector<8x8xbf16>, vector<8x8xbf16>, vector<8x8xf32> -> vector<8x8xf32>
    %165 = vector.extract_strided_slice %103 {offsets = [0, 24], sizes = [8, 8], strides = [1, 1]} : vector<8x32xbf16> to vector<8x8xbf16>
    %166 = vector.extract_strided_slice %105 {offsets = [0, 24], sizes = [8, 8], strides = [1, 1]} : vector<8x32xbf16> to vector<8x8xbf16>
    %cst_46 = arith.constant dense<0.000000e+00> : vector<8x8xf32>
    %167 = tpu.matmul %165, %166, %cst_46 {dimension_numbers = #tpu.dot_dimension_numbers<[1], [1], [0], [0], [0, 0, 1, 0], [], []>} : vector<8x8xbf16>, vector<8x8xbf16>, vector<8x8xf32> -> vector<8x8xf32>
    %cst_47 = arith.constant 0.353553385 : f32
    %168 = vector.broadcast %cst_47 : f32 to vector<8x8xf32>
    %169 = arith.mulf %167, %168 : vector<8x8xf32>
    %170 = arith.addf %169, %9 : vector<8x8xf32>
    %cst_48 = arith.constant dense<0xFF800000> : vector<8xf32>
    %171 = vector.multi_reduction <maximumf>, %170, %cst_48 [1] : vector<8x8xf32> to vector<8xf32>
    %172 = vector.shape_cast %171 : vector<8xf32> to vector<8x1xf32>
    %173 = vector.broadcast %172 : vector<8x1xf32> to vector<8x8xf32>
    %174 = arith.subf %170, %173 : vector<8x8xf32>
    %175 = math.exp %174 : vector<8x8xf32>
    %cst_49 = arith.constant dense<0.000000e+00> : vector<8xf32>
    %176 = vector.multi_reduction <add>, %175, %cst_49 [1] : vector<8x8xf32> to vector<8xf32>
    %177 = vector.shape_cast %176 : vector<8xf32> to vector<8x1xf32>
    %178 = tpu.reciprocal %177 {approx = true} : vector<8x1xf32> -> vector<8x1xf32>
    %179 = vector.broadcast %178 : vector<8x1xf32> to vector<8x8xf32>
    %180 = arith.mulf %175, %179 : vector<8x8xf32>
    %181 = arith.truncf %180 : vector<8x8xf32> to vector<8x8xbf16>
    %182 = vector.extract_strided_slice %107 {offsets = [0, 24], sizes = [8, 8], strides = [1, 1]} : vector<8x32xbf16> to vector<8x8xbf16>
    %cst_50 = arith.constant dense<0.000000e+00> : vector<8x8xf32>
    %183 = tpu.matmul %181, %182, %cst_50 {dimension_numbers = #tpu.dot_dimension_numbers<[1], [0], [0], [1], [0, 0, 1, 1], [], []>} : vector<8x8xbf16>, vector<8x8xbf16>, vector<8x8xf32> -> vector<8x8xf32>
    %184 = tpu.concatenate %126, %145, %164, %183 in 1 : vector<8x8xf32>, vector<8x8xf32>, vector<8x8xf32>, vector<8x8xf32> -> vector<8x32xf32>
    %185 = tpu.concatenate %101, %184 in 0 : vector<8x32xf32>, vector<8x32xf32> -> vector<16x32xf32>
    %186 = arith.truncf %185 : vector<16x32xf32> to vector<16x32xbf16>
    %c0_51 = arith.constant 0 : index
    %c0_52 = arith.constant 0 : index
    %187 = vector.load %arg5[%c0_51, %c0_52] : memref<32x32xbf16, #tpu.memory_space<vmem>>, vector<32x32xbf16>
    %cst_53 = arith.constant dense<0.000000e+00> : vector<16x32xf32>
    %188 = tpu.matmul %186, %187, %cst_53 {dimension_numbers = #tpu.dot_dimension_numbers<[1], [0], [0], [1], [0, 0, 1, 1], [], []>} : vector<16x32xbf16>, vector<32x32xbf16>, vector<16x32xf32> -> vector<16x32xf32>
    %c0_54 = arith.constant 0 : index
    %c0_55 = arith.constant 0 : index
    %189 = vector.load %arg6[%c0_54, %c0_55] : memref<1x32xf32, #tpu.memory_space<vmem>>, vector<1x32xf32>
    %190 = vector.broadcast %189 : vector<1x32xf32> to vector<16x32xf32>
    %191 = arith.addf %188, %190 : vector<16x32xf32>
    %192 = arith.addf %1, %191 : vector<16x32xf32>
    %cst_56 = arith.constant dense<0.000000e+00> : vector<16xf32>
    %193 = vector.multi_reduction <add>, %192, %cst_56 [1] : vector<16x32xf32> to vector<16xf32>
    %194 = vector.shape_cast %193 : vector<16xf32> to vector<16x1xf32>
    %cst_57 = arith.constant 3.200000e+01 : f32
    %195 = vector.broadcast %cst_57 : f32 to vector<16x1xf32>
    %196 = arith.divf %194, %195 : vector<16x1xf32>
    %197 = arith.mulf %192, %192 : vector<16x32xf32>
    %cst_58 = arith.constant dense<0.000000e+00> : vector<16xf32>
    %198 = vector.multi_reduction <add>, %197, %cst_58 [1] : vector<16x32xf32> to vector<16xf32>
    %199 = vector.shape_cast %198 : vector<16xf32> to vector<16x1xf32>
    %cst_59 = arith.constant 3.200000e+01 : f32
    %200 = vector.broadcast %cst_59 : f32 to vector<16x1xf32>
    %201 = arith.divf %199, %200 : vector<16x1xf32>
    %202 = arith.mulf %196, %196 : vector<16x1xf32>
    %203 = arith.subf %201, %202 : vector<16x1xf32>
    %cst_60 = arith.constant 9.99999974E-6 : f32
    %204 = vector.broadcast %cst_60 : f32 to vector<16x1xf32>
    %205 = arith.addf %203, %204 : vector<16x1xf32>
    %206 = math.rsqrt %205 : vector<16x1xf32>
    %207 = vector.broadcast %196 : vector<16x1xf32> to vector<16x32xf32>
    %208 = arith.subf %192, %207 : vector<16x32xf32>
    %c0_61 = arith.constant 0 : index
    %c0_62 = arith.constant 0 : index
    %209 = vector.load %arg7[%c0_61, %c0_62] : memref<1x32xf32, #tpu.memory_space<vmem>>, vector<1x32xf32>
    %210 = vector.broadcast %206 : vector<16x1xf32> to vector<16x32xf32>
    %211 = vector.broadcast %209 : vector<1x32xf32> to vector<16x32xf32>
    %212 = arith.mulf %210, %211 : vector<16x32xf32>
    %213 = arith.mulf %208, %212 : vector<16x32xf32>
    %c0_63 = arith.constant 0 : index
    %c0_64 = arith.constant 0 : index
    %214 = vector.load %arg8[%c0_63, %c0_64] : memref<1x32xf32, #tpu.memory_space<vmem>>, vector<1x32xf32>
    %215 = vector.broadcast %214 : vector<1x32xf32> to vector<16x32xf32>
    %216 = arith.addf %213, %215 : vector<16x32xf32>
    %217 = arith.truncf %216 : vector<16x32xf32> to vector<16x32xbf16>
    %c0_65 = arith.constant 0 : index
    %c0_66 = arith.constant 0 : index
    %218 = vector.load %arg9[%c0_65, %c0_66] : memref<32x32xbf16, #tpu.memory_space<vmem>>, vector<32x32xbf16>
    %cst_67 = arith.constant dense<0.000000e+00> : vector<16x32xf32>
    %219 = tpu.matmul %217, %218, %cst_67 {dimension_numbers = #tpu.dot_dimension_numbers<[1], [0], [0], [1], [0, 0, 1, 1], [], []>} : vector<16x32xbf16>, vector<32x32xbf16>, vector<16x32xf32> -> vector<16x32xf32>
    %c0_68 = arith.constant 0 : index
    %c0_69 = arith.constant 0 : index
    %220 = vector.load %arg10[%c0_68, %c0_69] : memref<1x32xf32, #tpu.memory_space<vmem>>, vector<1x32xf32>
    %221 = vector.broadcast %220 : vector<1x32xf32> to vector<16x32xf32>
    %222 = arith.addf %219, %221 : vector<16x32xf32>
    %223 = arith.truncf %3 : vector<16x32xf32> to vector<16x32xbf16>
    %c0_70 = arith.constant 0 : index
    %c0_71 = arith.constant 0 : index
    %224 = vector.load %arg11[%c0_70, %c0_71] : memref<32x64xbf16, #tpu.memory_space<vmem>>, vector<32x64xbf16>
    %cst_72 = arith.constant dense<0.000000e+00> : vector<16x64xf32>
    %225 = tpu.matmul %223, %224, %cst_72 {dimension_numbers = #tpu.dot_dimension_numbers<[1], [0], [0], [1], [0, 0, 1, 1], [], []>} : vector<16x32xbf16>, vector<32x64xbf16>, vector<16x64xf32> -> vector<16x64xf32>
    %c0_73 = arith.constant 0 : index
    %c0_74 = arith.constant 0 : index
    %226 = vector.load %arg12[%c0_73, %c0_74] : memref<1x64xf32, #tpu.memory_space<vmem>>, vector<1x64xf32>
    %227 = vector.broadcast %226 : vector<1x64xf32> to vector<16x64xf32>
    %228 = arith.addf %225, %227 : vector<16x64xf32>
    %229 = vector.extract_strided_slice %228 {offsets = [0, 0], sizes = [16, 32], strides = [1, 1]} : vector<16x64xf32> to vector<16x32xf32>
    %230 = vector.extract_strided_slice %228 {offsets = [0, 32], sizes = [16, 32], strides = [1, 1]} : vector<16x64xf32> to vector<16x32xf32>
    %231 = vector.extract_strided_slice %222 {offsets = [0, 0], sizes = [8, 32], strides = [1, 1]} : vector<16x32xf32> to vector<8x32xf32>
    %232 = arith.truncf %231 : vector<8x32xf32> to vector<8x32xbf16>
    %233 = vector.extract_strided_slice %229 {offsets = [0, 0], sizes = [8, 32], strides = [1, 1]} : vector<16x32xf32> to vector<8x32xf32>
    %234 = arith.truncf %233 : vector<8x32xf32> to vector<8x32xbf16>
    %235 = vector.extract_strided_slice %230 {offsets = [0, 0], sizes = [8, 32], strides = [1, 1]} : vector<16x32xf32> to vector<8x32xf32>
    %236 = arith.truncf %235 : vector<8x32xf32> to vector<8x32xbf16>
    %237 = vector.extract_strided_slice %232 {offsets = [0, 0], sizes = [8, 8], strides = [1, 1]} : vector<8x32xbf16> to vector<8x8xbf16>
    %238 = vector.extract_strided_slice %234 {offsets = [0, 0], sizes = [8, 8], strides = [1, 1]} : vector<8x32xbf16> to vector<8x8xbf16>
    %cst_75 = arith.constant dense<0.000000e+00> : vector<8x8xf32>
    %239 = tpu.matmul %237, %238, %cst_75 {dimension_numbers = #tpu.dot_dimension_numbers<[1], [1], [0], [0], [0, 0, 1, 0], [], []>} : vector<8x8xbf16>, vector<8x8xbf16>, vector<8x8xf32> -> vector<8x8xf32>
    %cst_76 = arith.constant 0.353553385 : f32
    %240 = vector.broadcast %cst_76 : f32 to vector<8x8xf32>
    %241 = arith.mulf %239, %240 : vector<8x8xf32>
    %cst_77 = arith.constant dense<0xFF800000> : vector<8xf32>
    %242 = vector.multi_reduction <maximumf>, %241, %cst_77 [1] : vector<8x8xf32> to vector<8xf32>
    %243 = vector.shape_cast %242 : vector<8xf32> to vector<8x1xf32>
    %244 = vector.broadcast %243 : vector<8x1xf32> to vector<8x8xf32>
    %245 = arith.subf %241, %244 : vector<8x8xf32>
    %246 = math.exp %245 : vector<8x8xf32>
    %cst_78 = arith.constant dense<0.000000e+00> : vector<8xf32>
    %247 = vector.multi_reduction <add>, %246, %cst_78 [1] : vector<8x8xf32> to vector<8xf32>
    %248 = vector.shape_cast %247 : vector<8xf32> to vector<8x1xf32>
    %249 = tpu.reciprocal %248 {approx = true} : vector<8x1xf32> -> vector<8x1xf32>
    %250 = vector.broadcast %249 : vector<8x1xf32> to vector<8x8xf32>
    %251 = arith.mulf %246, %250 : vector<8x8xf32>
    %252 = arith.truncf %251 : vector<8x8xf32> to vector<8x8xbf16>
    %253 = vector.extract_strided_slice %236 {offsets = [0, 0], sizes = [8, 8], strides = [1, 1]} : vector<8x32xbf16> to vector<8x8xbf16>
    %cst_79 = arith.constant dense<0.000000e+00> : vector<8x8xf32>
    %254 = tpu.matmul %252, %253, %cst_79 {dimension_numbers = #tpu.dot_dimension_numbers<[1], [0], [0], [1], [0, 0, 1, 1], [], []>} : vector<8x8xbf16>, vector<8x8xbf16>, vector<8x8xf32> -> vector<8x8xf32>
    %255 = vector.extract_strided_slice %232 {offsets = [0, 8], sizes = [8, 8], strides = [1, 1]} : vector<8x32xbf16> to vector<8x8xbf16>
    %256 = vector.extract_strided_slice %234 {offsets = [0, 8], sizes = [8, 8], strides = [1, 1]} : vector<8x32xbf16> to vector<8x8xbf16>
    %cst_80 = arith.constant dense<0.000000e+00> : vector<8x8xf32>
    %257 = tpu.matmul %255, %256, %cst_80 {dimension_numbers = #tpu.dot_dimension_numbers<[1], [1], [0], [0], [0, 0, 1, 0], [], []>} : vector<8x8xbf16>, vector<8x8xbf16>, vector<8x8xf32> -> vector<8x8xf32>
    %cst_81 = arith.constant 0.353553385 : f32
    %258 = vector.broadcast %cst_81 : f32 to vector<8x8xf32>
    %259 = arith.mulf %257, %258 : vector<8x8xf32>
    %cst_82 = arith.constant dense<0xFF800000> : vector<8xf32>
    %260 = vector.multi_reduction <maximumf>, %259, %cst_82 [1] : vector<8x8xf32> to vector<8xf32>
    %261 = vector.shape_cast %260 : vector<8xf32> to vector<8x1xf32>
    %262 = vector.broadcast %261 : vector<8x1xf32> to vector<8x8xf32>
    %263 = arith.subf %259, %262 : vector<8x8xf32>
    %264 = math.exp %263 : vector<8x8xf32>
    %cst_83 = arith.constant dense<0.000000e+00> : vector<8xf32>
    %265 = vector.multi_reduction <add>, %264, %cst_83 [1] : vector<8x8xf32> to vector<8xf32>
    %266 = vector.shape_cast %265 : vector<8xf32> to vector<8x1xf32>
    %267 = tpu.reciprocal %266 {approx = true} : vector<8x1xf32> -> vector<8x1xf32>
    %268 = vector.broadcast %267 : vector<8x1xf32> to vector<8x8xf32>
    %269 = arith.mulf %264, %268 : vector<8x8xf32>
    %270 = arith.truncf %269 : vector<8x8xf32> to vector<8x8xbf16>
    %271 = vector.extract_strided_slice %236 {offsets = [0, 8], sizes = [8, 8], strides = [1, 1]} : vector<8x32xbf16> to vector<8x8xbf16>
    %cst_84 = arith.constant dense<0.000000e+00> : vector<8x8xf32>
    %272 = tpu.matmul %270, %271, %cst_84 {dimension_numbers = #tpu.dot_dimension_numbers<[1], [0], [0], [1], [0, 0, 1, 1], [], []>} : vector<8x8xbf16>, vector<8x8xbf16>, vector<8x8xf32> -> vector<8x8xf32>
    %273 = vector.extract_strided_slice %232 {offsets = [0, 16], sizes = [8, 8], strides = [1, 1]} : vector<8x32xbf16> to vector<8x8xbf16>
    %274 = vector.extract_strided_slice %234 {offsets = [0, 16], sizes = [8, 8], strides = [1, 1]} : vector<8x32xbf16> to vector<8x8xbf16>
    %cst_85 = arith.constant dense<0.000000e+00> : vector<8x8xf32>
    %275 = tpu.matmul %273, %274, %cst_85 {dimension_numbers = #tpu.dot_dimension_numbers<[1], [1], [0], [0], [0, 0, 1, 0], [], []>} : vector<8x8xbf16>, vector<8x8xbf16>, vector<8x8xf32> -> vector<8x8xf32>
    %cst_86 = arith.constant 0.353553385 : f32
    %276 = vector.broadcast %cst_86 : f32 to vector<8x8xf32>
    %277 = arith.mulf %275, %276 : vector<8x8xf32>
    %cst_87 = arith.constant dense<0xFF800000> : vector<8xf32>
    %278 = vector.multi_reduction <maximumf>, %277, %cst_87 [1] : vector<8x8xf32> to vector<8xf32>
    %279 = vector.shape_cast %278 : vector<8xf32> to vector<8x1xf32>
    %280 = vector.broadcast %279 : vector<8x1xf32> to vector<8x8xf32>
    %281 = arith.subf %277, %280 : vector<8x8xf32>
    %282 = math.exp %281 : vector<8x8xf32>
    %cst_88 = arith.constant dense<0.000000e+00> : vector<8xf32>
    %283 = vector.multi_reduction <add>, %282, %cst_88 [1] : vector<8x8xf32> to vector<8xf32>
    %284 = vector.shape_cast %283 : vector<8xf32> to vector<8x1xf32>
    %285 = tpu.reciprocal %284 {approx = true} : vector<8x1xf32> -> vector<8x1xf32>
    %286 = vector.broadcast %285 : vector<8x1xf32> to vector<8x8xf32>
    %287 = arith.mulf %282, %286 : vector<8x8xf32>
    %288 = arith.truncf %287 : vector<8x8xf32> to vector<8x8xbf16>
    %289 = vector.extract_strided_slice %236 {offsets = [0, 16], sizes = [8, 8], strides = [1, 1]} : vector<8x32xbf16> to vector<8x8xbf16>
    %cst_89 = arith.constant dense<0.000000e+00> : vector<8x8xf32>
    %290 = tpu.matmul %288, %289, %cst_89 {dimension_numbers = #tpu.dot_dimension_numbers<[1], [0], [0], [1], [0, 0, 1, 1], [], []>} : vector<8x8xbf16>, vector<8x8xbf16>, vector<8x8xf32> -> vector<8x8xf32>
    %291 = vector.extract_strided_slice %232 {offsets = [0, 24], sizes = [8, 8], strides = [1, 1]} : vector<8x32xbf16> to vector<8x8xbf16>
    %292 = vector.extract_strided_slice %234 {offsets = [0, 24], sizes = [8, 8], strides = [1, 1]} : vector<8x32xbf16> to vector<8x8xbf16>
    %cst_90 = arith.constant dense<0.000000e+00> : vector<8x8xf32>
    %293 = tpu.matmul %291, %292, %cst_90 {dimension_numbers = #tpu.dot_dimension_numbers<[1], [1], [0], [0], [0, 0, 1, 0], [], []>} : vector<8x8xbf16>, vector<8x8xbf16>, vector<8x8xf32> -> vector<8x8xf32>
    %cst_91 = arith.constant 0.353553385 : f32
    %294 = vector.broadcast %cst_91 : f32 to vector<8x8xf32>
    %295 = arith.mulf %293, %294 : vector<8x8xf32>
    %cst_92 = arith.constant dense<0xFF800000> : vector<8xf32>
    %296 = vector.multi_reduction <maximumf>, %295, %cst_92 [1] : vector<8x8xf32> to vector<8xf32>
    %297 = vector.shape_cast %296 : vector<8xf32> to vector<8x1xf32>
    %298 = vector.broadcast %297 : vector<8x1xf32> to vector<8x8xf32>
    %299 = arith.subf %295, %298 : vector<8x8xf32>
    %300 = math.exp %299 : vector<8x8xf32>
    %cst_93 = arith.constant dense<0.000000e+00> : vector<8xf32>
    %301 = vector.multi_reduction <add>, %300, %cst_93 [1] : vector<8x8xf32> to vector<8xf32>
    %302 = vector.shape_cast %301 : vector<8xf32> to vector<8x1xf32>
    %303 = tpu.reciprocal %302 {approx = true} : vector<8x1xf32> -> vector<8x1xf32>
    %304 = vector.broadcast %303 : vector<8x1xf32> to vector<8x8xf32>
    %305 = arith.mulf %300, %304 : vector<8x8xf32>
    %306 = arith.truncf %305 : vector<8x8xf32> to vector<8x8xbf16>
    %307 = vector.extract_strided_slice %236 {offsets = [0, 24], sizes = [8, 8], strides = [1, 1]} : vector<8x32xbf16> to vector<8x8xbf16>
    %cst_94 = arith.constant dense<0.000000e+00> : vector<8x8xf32>
    %308 = tpu.matmul %306, %307, %cst_94 {dimension_numbers = #tpu.dot_dimension_numbers<[1], [0], [0], [1], [0, 0, 1, 1], [], []>} : vector<8x8xbf16>, vector<8x8xbf16>, vector<8x8xf32> -> vector<8x8xf32>
    %309 = tpu.concatenate %254, %272, %290, %308 in 1 : vector<8x8xf32>, vector<8x8xf32>, vector<8x8xf32>, vector<8x8xf32> -> vector<8x32xf32>
    %310 = vector.extract_strided_slice %222 {offsets = [8, 0], sizes = [8, 32], strides = [1, 1]} : vector<16x32xf32> to vector<8x32xf32>
    %311 = arith.truncf %310 : vector<8x32xf32> to vector<8x32xbf16>
    %312 = vector.extract_strided_slice %229 {offsets = [8, 0], sizes = [8, 32], strides = [1, 1]} : vector<16x32xf32> to vector<8x32xf32>
    %313 = arith.truncf %312 : vector<8x32xf32> to vector<8x32xbf16>
    %314 = vector.extract_strided_slice %230 {offsets = [8, 0], sizes = [8, 32], strides = [1, 1]} : vector<16x32xf32> to vector<8x32xf32>
    %315 = arith.truncf %314 : vector<8x32xf32> to vector<8x32xbf16>
    %316 = vector.extract_strided_slice %311 {offsets = [0, 0], sizes = [8, 8], strides = [1, 1]} : vector<8x32xbf16> to vector<8x8xbf16>
    %317 = vector.extract_strided_slice %313 {offsets = [0, 0], sizes = [8, 8], strides = [1, 1]} : vector<8x32xbf16> to vector<8x8xbf16>
    %cst_95 = arith.constant dense<0.000000e+00> : vector<8x8xf32>
    %318 = tpu.matmul %316, %317, %cst_95 {dimension_numbers = #tpu.dot_dimension_numbers<[1], [1], [0], [0], [0, 0, 1, 0], [], []>} : vector<8x8xbf16>, vector<8x8xbf16>, vector<8x8xf32> -> vector<8x8xf32>
    %cst_96 = arith.constant 0.353553385 : f32
    %319 = vector.broadcast %cst_96 : f32 to vector<8x8xf32>
    %320 = arith.mulf %318, %319 : vector<8x8xf32>
    %cst_97 = arith.constant dense<0xFF800000> : vector<8xf32>
    %321 = vector.multi_reduction <maximumf>, %320, %cst_97 [1] : vector<8x8xf32> to vector<8xf32>
    %322 = vector.shape_cast %321 : vector<8xf32> to vector<8x1xf32>
    %323 = vector.broadcast %322 : vector<8x1xf32> to vector<8x8xf32>
    %324 = arith.subf %320, %323 : vector<8x8xf32>
    %325 = math.exp %324 : vector<8x8xf32>
    %cst_98 = arith.constant dense<0.000000e+00> : vector<8xf32>
    %326 = vector.multi_reduction <add>, %325, %cst_98 [1] : vector<8x8xf32> to vector<8xf32>
    %327 = vector.shape_cast %326 : vector<8xf32> to vector<8x1xf32>
    %328 = tpu.reciprocal %327 {approx = true} : vector<8x1xf32> -> vector<8x1xf32>
    %329 = vector.broadcast %328 : vector<8x1xf32> to vector<8x8xf32>
    %330 = arith.mulf %325, %329 : vector<8x8xf32>
    %331 = arith.truncf %330 : vector<8x8xf32> to vector<8x8xbf16>
    %332 = vector.extract_strided_slice %315 {offsets = [0, 0], sizes = [8, 8], strides = [1, 1]} : vector<8x32xbf16> to vector<8x8xbf16>
    %cst_99 = arith.constant dense<0.000000e+00> : vector<8x8xf32>
    %333 = tpu.matmul %331, %332, %cst_99 {dimension_numbers = #tpu.dot_dimension_numbers<[1], [0], [0], [1], [0, 0, 1, 1], [], []>} : vector<8x8xbf16>, vector<8x8xbf16>, vector<8x8xf32> -> vector<8x8xf32>
    %334 = vector.extract_strided_slice %311 {offsets = [0, 8], sizes = [8, 8], strides = [1, 1]} : vector<8x32xbf16> to vector<8x8xbf16>
    %335 = vector.extract_strided_slice %313 {offsets = [0, 8], sizes = [8, 8], strides = [1, 1]} : vector<8x32xbf16> to vector<8x8xbf16>
    %cst_100 = arith.constant dense<0.000000e+00> : vector<8x8xf32>
    %336 = tpu.matmul %334, %335, %cst_100 {dimension_numbers = #tpu.dot_dimension_numbers<[1], [1], [0], [0], [0, 0, 1, 0], [], []>} : vector<8x8xbf16>, vector<8x8xbf16>, vector<8x8xf32> -> vector<8x8xf32>
    %cst_101 = arith.constant 0.353553385 : f32
    %337 = vector.broadcast %cst_101 : f32 to vector<8x8xf32>
    %338 = arith.mulf %336, %337 : vector<8x8xf32>
    %cst_102 = arith.constant dense<0xFF800000> : vector<8xf32>
    %339 = vector.multi_reduction <maximumf>, %338, %cst_102 [1] : vector<8x8xf32> to vector<8xf32>
    %340 = vector.shape_cast %339 : vector<8xf32> to vector<8x1xf32>
    %341 = vector.broadcast %340 : vector<8x1xf32> to vector<8x8xf32>
    %342 = arith.subf %338, %341 : vector<8x8xf32>
    %343 = math.exp %342 : vector<8x8xf32>
    %cst_103 = arith.constant dense<0.000000e+00> : vector<8xf32>
    %344 = vector.multi_reduction <add>, %343, %cst_103 [1] : vector<8x8xf32> to vector<8xf32>
    %345 = vector.shape_cast %344 : vector<8xf32> to vector<8x1xf32>
    %346 = tpu.reciprocal %345 {approx = true} : vector<8x1xf32> -> vector<8x1xf32>
    %347 = vector.broadcast %346 : vector<8x1xf32> to vector<8x8xf32>
    %348 = arith.mulf %343, %347 : vector<8x8xf32>
    %349 = arith.truncf %348 : vector<8x8xf32> to vector<8x8xbf16>
    %350 = vector.extract_strided_slice %315 {offsets = [0, 8], sizes = [8, 8], strides = [1, 1]} : vector<8x32xbf16> to vector<8x8xbf16>
    %cst_104 = arith.constant dense<0.000000e+00> : vector<8x8xf32>
    %351 = tpu.matmul %349, %350, %cst_104 {dimension_numbers = #tpu.dot_dimension_numbers<[1], [0], [0], [1], [0, 0, 1, 1], [], []>} : vector<8x8xbf16>, vector<8x8xbf16>, vector<8x8xf32> -> vector<8x8xf32>
    %352 = vector.extract_strided_slice %311 {offsets = [0, 16], sizes = [8, 8], strides = [1, 1]} : vector<8x32xbf16> to vector<8x8xbf16>
    %353 = vector.extract_strided_slice %313 {offsets = [0, 16], sizes = [8, 8], strides = [1, 1]} : vector<8x32xbf16> to vector<8x8xbf16>
    %cst_105 = arith.constant dense<0.000000e+00> : vector<8x8xf32>
    %354 = tpu.matmul %352, %353, %cst_105 {dimension_numbers = #tpu.dot_dimension_numbers<[1], [1], [0], [0], [0, 0, 1, 0], [], []>} : vector<8x8xbf16>, vector<8x8xbf16>, vector<8x8xf32> -> vector<8x8xf32>
    %cst_106 = arith.constant 0.353553385 : f32
    %355 = vector.broadcast %cst_106 : f32 to vector<8x8xf32>
    %356 = arith.mulf %354, %355 : vector<8x8xf32>
    %cst_107 = arith.constant dense<0xFF800000> : vector<8xf32>
    %357 = vector.multi_reduction <maximumf>, %356, %cst_107 [1] : vector<8x8xf32> to vector<8xf32>
    %358 = vector.shape_cast %357 : vector<8xf32> to vector<8x1xf32>
    %359 = vector.broadcast %358 : vector<8x1xf32> to vector<8x8xf32>
    %360 = arith.subf %356, %359 : vector<8x8xf32>
    %361 = math.exp %360 : vector<8x8xf32>
    %cst_108 = arith.constant dense<0.000000e+00> : vector<8xf32>
    %362 = vector.multi_reduction <add>, %361, %cst_108 [1] : vector<8x8xf32> to vector<8xf32>
    %363 = vector.shape_cast %362 : vector<8xf32> to vector<8x1xf32>
    %364 = tpu.reciprocal %363 {approx = true} : vector<8x1xf32> -> vector<8x1xf32>
    %365 = vector.broadcast %364 : vector<8x1xf32> to vector<8x8xf32>
    %366 = arith.mulf %361, %365 : vector<8x8xf32>
    %367 = arith.truncf %366 : vector<8x8xf32> to vector<8x8xbf16>
    %368 = vector.extract_strided_slice %315 {offsets = [0, 16], sizes = [8, 8], strides = [1, 1]} : vector<8x32xbf16> to vector<8x8xbf16>
    %cst_109 = arith.constant dense<0.000000e+00> : vector<8x8xf32>
    %369 = tpu.matmul %367, %368, %cst_109 {dimension_numbers = #tpu.dot_dimension_numbers<[1], [0], [0], [1], [0, 0, 1, 1], [], []>} : vector<8x8xbf16>, vector<8x8xbf16>, vector<8x8xf32> -> vector<8x8xf32>
    %370 = vector.extract_strided_slice %311 {offsets = [0, 24], sizes = [8, 8], strides = [1, 1]} : vector<8x32xbf16> to vector<8x8xbf16>
    %371 = vector.extract_strided_slice %313 {offsets = [0, 24], sizes = [8, 8], strides = [1, 1]} : vector<8x32xbf16> to vector<8x8xbf16>
    %cst_110 = arith.constant dense<0.000000e+00> : vector<8x8xf32>
    %372 = tpu.matmul %370, %371, %cst_110 {dimension_numbers = #tpu.dot_dimension_numbers<[1], [1], [0], [0], [0, 0, 1, 0], [], []>} : vector<8x8xbf16>, vector<8x8xbf16>, vector<8x8xf32> -> vector<8x8xf32>
    %cst_111 = arith.constant 0.353553385 : f32
    %373 = vector.broadcast %cst_111 : f32 to vector<8x8xf32>
    %374 = arith.mulf %372, %373 : vector<8x8xf32>
    %cst_112 = arith.constant dense<0xFF800000> : vector<8xf32>
    %375 = vector.multi_reduction <maximumf>, %374, %cst_112 [1] : vector<8x8xf32> to vector<8xf32>
    %376 = vector.shape_cast %375 : vector<8xf32> to vector<8x1xf32>
    %377 = vector.broadcast %376 : vector<8x1xf32> to vector<8x8xf32>
    %378 = arith.subf %374, %377 : vector<8x8xf32>
    %379 = math.exp %378 : vector<8x8xf32>
    %cst_113 = arith.constant dense<0.000000e+00> : vector<8xf32>
    %380 = vector.multi_reduction <add>, %379, %cst_113 [1] : vector<8x8xf32> to vector<8xf32>
    %381 = vector.shape_cast %380 : vector<8xf32> to vector<8x1xf32>
    %382 = tpu.reciprocal %381 {approx = true} : vector<8x1xf32> -> vector<8x1xf32>
    %383 = vector.broadcast %382 : vector<8x1xf32> to vector<8x8xf32>
    %384 = arith.mulf %379, %383 : vector<8x8xf32>
    %385 = arith.truncf %384 : vector<8x8xf32> to vector<8x8xbf16>
    %386 = vector.extract_strided_slice %315 {offsets = [0, 24], sizes = [8, 8], strides = [1, 1]} : vector<8x32xbf16> to vector<8x8xbf16>
    %cst_114 = arith.constant dense<0.000000e+00> : vector<8x8xf32>
    %387 = tpu.matmul %385, %386, %cst_114 {dimension_numbers = #tpu.dot_dimension_numbers<[1], [0], [0], [1], [0, 0, 1, 1], [], []>} : vector<8x8xbf16>, vector<8x8xbf16>, vector<8x8xf32> -> vector<8x8xf32>
    %388 = tpu.concatenate %333, %351, %369, %387 in 1 : vector<8x8xf32>, vector<8x8xf32>, vector<8x8xf32>, vector<8x8xf32> -> vector<8x32xf32>
    %389 = tpu.concatenate %309, %388 in 0 : vector<8x32xf32>, vector<8x32xf32> -> vector<16x32xf32>
    %390 = arith.truncf %389 : vector<16x32xf32> to vector<16x32xbf16>
    %c0_115 = arith.constant 0 : index
    %c0_116 = arith.constant 0 : index
    %391 = vector.load %arg13[%c0_115, %c0_116] : memref<32x32xbf16, #tpu.memory_space<vmem>>, vector<32x32xbf16>
    %cst_117 = arith.constant dense<0.000000e+00> : vector<16x32xf32>
    %392 = tpu.matmul %390, %391, %cst_117 {dimension_numbers = #tpu.dot_dimension_numbers<[1], [0], [0], [1], [0, 0, 1, 1], [], []>} : vector<16x32xbf16>, vector<32x32xbf16>, vector<16x32xf32> -> vector<16x32xf32>
    %c0_118 = arith.constant 0 : index
    %c0_119 = arith.constant 0 : index
    %393 = vector.load %arg14[%c0_118, %c0_119] : memref<1x32xf32, #tpu.memory_space<vmem>>, vector<1x32xf32>
    %394 = vector.broadcast %393 : vector<1x32xf32> to vector<16x32xf32>
    %395 = arith.addf %392, %394 : vector<16x32xf32>
    %396 = arith.addf %216, %395 : vector<16x32xf32>
    %cst_120 = arith.constant dense<0.000000e+00> : vector<16xf32>
    %397 = vector.multi_reduction <add>, %396, %cst_120 [1] : vector<16x32xf32> to vector<16xf32>
    %398 = vector.shape_cast %397 : vector<16xf32> to vector<16x1xf32>
    %cst_121 = arith.constant 3.200000e+01 : f32
    %399 = vector.broadcast %cst_121 : f32 to vector<16x1xf32>
    %400 = arith.divf %398, %399 : vector<16x1xf32>
    %401 = arith.mulf %396, %396 : vector<16x32xf32>
    %cst_122 = arith.constant dense<0.000000e+00> : vector<16xf32>
    %402 = vector.multi_reduction <add>, %401, %cst_122 [1] : vector<16x32xf32> to vector<16xf32>
    %403 = vector.shape_cast %402 : vector<16xf32> to vector<16x1xf32>
    %cst_123 = arith.constant 3.200000e+01 : f32
    %404 = vector.broadcast %cst_123 : f32 to vector<16x1xf32>
    %405 = arith.divf %403, %404 : vector<16x1xf32>
    %406 = arith.mulf %400, %400 : vector<16x1xf32>
    %407 = arith.subf %405, %406 : vector<16x1xf32>
    %cst_124 = arith.constant 9.99999974E-6 : f32
    %408 = vector.broadcast %cst_124 : f32 to vector<16x1xf32>
    %409 = arith.addf %407, %408 : vector<16x1xf32>
    %410 = math.rsqrt %409 : vector<16x1xf32>
    %411 = vector.broadcast %400 : vector<16x1xf32> to vector<16x32xf32>
    %412 = arith.subf %396, %411 : vector<16x32xf32>
    %c0_125 = arith.constant 0 : index
    %c0_126 = arith.constant 0 : index
    %413 = vector.load %arg15[%c0_125, %c0_126] : memref<1x32xf32, #tpu.memory_space<vmem>>, vector<1x32xf32>
    %414 = vector.broadcast %410 : vector<16x1xf32> to vector<16x32xf32>
    %415 = vector.broadcast %413 : vector<1x32xf32> to vector<16x32xf32>
    %416 = arith.mulf %414, %415 : vector<16x32xf32>
    %417 = arith.mulf %412, %416 : vector<16x32xf32>
    %c0_127 = arith.constant 0 : index
    %c0_128 = arith.constant 0 : index
    %418 = vector.load %arg16[%c0_127, %c0_128] : memref<1x32xf32, #tpu.memory_space<vmem>>, vector<1x32xf32>
    %419 = vector.broadcast %418 : vector<1x32xf32> to vector<16x32xf32>
    %420 = arith.addf %417, %419 : vector<16x32xf32>
    %421 = arith.truncf %420 : vector<16x32xf32> to vector<16x32xbf16>
    %c0_129 = arith.constant 0 : index
    %c0_130 = arith.constant 0 : index
    %422 = vector.load %arg17[%c0_129, %c0_130] : memref<32x64xbf16, #tpu.memory_space<vmem>>, vector<32x64xbf16>
    %cst_131 = arith.constant dense<0.000000e+00> : vector<16x64xf32>
    %423 = tpu.matmul %421, %422, %cst_131 {dimension_numbers = #tpu.dot_dimension_numbers<[1], [0], [0], [1], [0, 0, 1, 1], [], []>} : vector<16x32xbf16>, vector<32x64xbf16>, vector<16x64xf32> -> vector<16x64xf32>
    %c0_132 = arith.constant 0 : index
    %c0_133 = arith.constant 0 : index
    %424 = vector.load %arg18[%c0_132, %c0_133] : memref<1x64xf32, #tpu.memory_space<vmem>>, vector<1x64xf32>
    %425 = vector.broadcast %424 : vector<1x64xf32> to vector<16x64xf32>
    %426 = arith.addf %423, %425 : vector<16x64xf32>
    %cst_134 = arith.constant 0.000000e+00 : f32
    %427 = vector.broadcast %cst_134 : f32 to vector<16x64xf32>
    %428 = arith.maximumf %426, %427 : vector<16x64xf32>
    %429 = arith.truncf %428 : vector<16x64xf32> to vector<16x64xbf16>
    %c0_135 = arith.constant 0 : index
    %c0_136 = arith.constant 0 : index
    %430 = vector.load %arg19[%c0_135, %c0_136] : memref<64x32xbf16, #tpu.memory_space<vmem>>, vector<64x32xbf16>
    %cst_137 = arith.constant dense<0.000000e+00> : vector<16x32xf32>
    %431 = tpu.matmul %429, %430, %cst_137 {dimension_numbers = #tpu.dot_dimension_numbers<[1], [0], [0], [1], [0, 0, 1, 1], [], []>} : vector<16x64xbf16>, vector<64x32xbf16>, vector<16x32xf32> -> vector<16x32xf32>
    %c0_138 = arith.constant 0 : index
    %c0_139 = arith.constant 0 : index
    %432 = vector.load %arg20[%c0_138, %c0_139] : memref<1x32xf32, #tpu.memory_space<vmem>>, vector<1x32xf32>
    %433 = vector.broadcast %432 : vector<1x32xf32> to vector<16x32xf32>
    %434 = arith.addf %431, %433 : vector<16x32xf32>
    %435 = arith.addf %420, %434 : vector<16x32xf32>
    %cst_140 = arith.constant dense<0.000000e+00> : vector<16xf32>
    %436 = vector.multi_reduction <add>, %435, %cst_140 [1] : vector<16x32xf32> to vector<16xf32>
    %437 = vector.shape_cast %436 : vector<16xf32> to vector<16x1xf32>
    %cst_141 = arith.constant 3.200000e+01 : f32
    %438 = vector.broadcast %cst_141 : f32 to vector<16x1xf32>
    %439 = arith.divf %437, %438 : vector<16x1xf32>
    %440 = arith.mulf %435, %435 : vector<16x32xf32>
    %cst_142 = arith.constant dense<0.000000e+00> : vector<16xf32>
    %441 = vector.multi_reduction <add>, %440, %cst_142 [1] : vector<16x32xf32> to vector<16xf32>
    %442 = vector.shape_cast %441 : vector<16xf32> to vector<16x1xf32>
    %cst_143 = arith.constant 3.200000e+01 : f32
    %443 = vector.broadcast %cst_143 : f32 to vector<16x1xf32>
    %444 = arith.divf %442, %443 : vector<16x1xf32>
    %445 = arith.mulf %439, %439 : vector<16x1xf32>
    %446 = arith.subf %444, %445 : vector<16x1xf32>
    %cst_144 = arith.constant 9.99999974E-6 : f32
    %447 = vector.broadcast %cst_144 : f32 to vector<16x1xf32>
    %448 = arith.addf %446, %447 : vector<16x1xf32>
    %449 = math.rsqrt %448 : vector<16x1xf32>
    %450 = vector.broadcast %439 : vector<16x1xf32> to vector<16x32xf32>
    %451 = arith.subf %435, %450 : vector<16x32xf32>
    %c0_145 = arith.constant 0 : index
    %c0_146 = arith.constant 0 : index
    %452 = vector.load %arg21[%c0_145, %c0_146] : memref<1x32xf32, #tpu.memory_space<vmem>>, vector<1x32xf32>
    %453 = vector.broadcast %449 : vector<16x1xf32> to vector<16x32xf32>
    %454 = vector.broadcast %452 : vector<1x32xf32> to vector<16x32xf32>
    %455 = arith.mulf %453, %454 : vector<16x32xf32>
    %456 = arith.mulf %451, %455 : vector<16x32xf32>
    %c0_147 = arith.constant 0 : index
    %c0_148 = arith.constant 0 : index
    %457 = vector.load %arg22[%c0_147, %c0_148] : memref<1x32xf32, #tpu.memory_space<vmem>>, vector<1x32xf32>
    %458 = vector.broadcast %457 : vector<1x32xf32> to vector<16x32xf32>
    %459 = arith.addf %456, %458 : vector<16x32xf32>
    %460 = vector.shape_cast %459 : vector<16x32xf32> to vector<2x8x32xf32>
    %c0_149 = arith.constant 0 : index
    %c0_150 = arith.constant 0 : index
    %c0_151 = arith.constant 0 : index
    %461 = vector.load %arg23[%c0_149, %c0_150, %c0_151] : memref<2x8x32xf32, #tpu.memory_space<vmem>>, vector<2x8x32xf32>
    tpu.vector_store %arg23[%c0_149, %c0_150, %c0_151], %460 {strides = array<i32>} : memref<2x8x32xf32, #tpu.memory_space<vmem>>, vector<2x8x32xf32>,
    return
  }
  func.func @transform_0(%arg0: i32) -> (i32, i32, i32) {
    %c0_i32 = arith.constant 0 : i32
    %c0_i32_0 = arith.constant 0 : i32
    %c0_i32_1 = arith.constant 0 : i32
    return %arg0, %c0_i32, %c0_i32_0 : i32, i32, i32
  }
  func.func @transform_1(%arg0: i32) -> (i32, i32, i32) {
    %c0_i32 = arith.constant 0 : i32
    %c0_i32_0 = arith.constant 0 : i32
    %c0_i32_1 = arith.constant 0 : i32
    return %arg0, %c0_i32, %c0_i32_0 : i32, i32, i32
  }
  func.func @transform_2(%arg0: i32) -> (i32, i32) {
    %c0_i32 = arith.constant 0 : i32
    %c0_i32_0 = arith.constant 0 : i32
    %c0_i32_1 = arith.constant 0 : i32
    return %c0_i32, %c0_i32_0 : i32, i32
  }
  func.func @transform_3(%arg0: i32) -> (i32, i32) {
    %c0_i32 = arith.constant 0 : i32
    %c0_i32_0 = arith.constant 0 : i32
    %c0_i32_1 = arith.constant 0 : i32
    return %c0_i32, %c0_i32_0 : i32, i32
  }
  func.func @transform_4(%arg0: i32) -> (i32, i32) {
    %c0_i32 = arith.constant 0 : i32
    %c0_i32_0 = arith.constant 0 : i32
    %c0_i32_1 = arith.constant 0 : i32
    return %c0_i32, %c0_i32_0 : i32, i32
  }
  func.func @transform_5(%arg0: i32) -> (i32, i32) {
    %c0_i32 = arith.constant 0 : i32
    %c0_i32_0 = arith.constant 0 : i32
    %c0_i32_1 = arith.constant 0 : i32
    return %c0_i32, %c0_i32_0 : i32, i32
  }
  func.func @transform_6(%arg0: i32) -> (i32, i32) {
    %c0_i32 = arith.constant 0 : i32
    %c0_i32_0 = arith.constant 0 : i32
    %c0_i32_1 = arith.constant 0 : i32
    return %c0_i32, %c0_i32_0 : i32, i32
  }
  func.func @transform_7(%arg0: i32) -> (i32, i32) {
    %c0_i32 = arith.constant 0 : i32
    %c0_i32_0 = arith.constant 0 : i32
    %c0_i32_1 = arith.constant 0 : i32
    return %c0_i32, %c0_i32_0 : i32, i32
  }
  func.func @transform_8(%arg0: i32) -> (i32, i32) {
    %c0_i32 = arith.constant 0 : i32
    %c0_i32_0 = arith.constant 0 : i32
    %c0_i32_1 = arith.constant 0 : i32
    return %c0_i32, %c0_i32_0 : i32, i32
  }
  func.func @transform_9(%arg0: i32) -> (i32, i32) {
    %c0_i32 = arith.constant 0 : i32
    %c0_i32_0 = arith.constant 0 : i32
    %c0_i32_1 = arith.constant 0 : i32
    return %c0_i32, %c0_i32_0 : i32, i32
  }
  func.func @transform_10(%arg0: i32) -> (i32, i32) {
    %c0_i32 = arith.constant 0 : i32
    %c0_i32_0 = arith.constant 0 : i32
    %c0_i32_1 = arith.constant 0 : i32
    return %c0_i32, %c0_i32_0 : i32, i32
  }
  func.func @transform_11(%arg0: i32) -> (i32, i32) {
    %c0_i32 = arith.constant 0 : i32
    %c0_i32_0 = arith.constant 0 : i32
    %c0_i32_1 = arith.constant 0 : i32
    return %c0_i32, %c0_i32_0 : i32, i32
  }
  func.func @transform_12(%arg0: i32) -> (i32, i32) {
    %c0_i32 = arith.constant 0 : i32
    %c0_i32_0 = arith.constant 0 : i32
    %c0_i32_1 = arith.constant 0 : i32
    return %c0_i32, %c0_i32_0 : i32, i32
  }
  func.func @transform_13(%arg0: i32) -> (i32, i32) {
    %c0_i32 = arith.constant 0 : i32
    %c0_i32_0 = arith.constant 0 : i32
    %c0_i32_1 = arith.constant 0 : i32
    return %c0_i32, %c0_i32_0 : i32, i32
  }
  func.func @transform_14(%arg0: i32) -> (i32, i32) {
    %c0_i32 = arith.constant 0 : i32
    %c0_i32_0 = arith.constant 0 : i32
    %c0_i32_1 = arith.constant 0 : i32
    return %c0_i32, %c0_i32_0 : i32, i32
  }
  func.func @transform_15(%arg0: i32) -> (i32, i32) {
    %c0_i32 = arith.constant 0 : i32
    %c0_i32_0 = arith.constant 0 : i32
    %c0_i32_1 = arith.constant 0 : i32
    return %c0_i32, %c0_i32_0 : i32, i32
  }
  func.func @transform_16(%arg0: i32) -> (i32, i32) {
    %c0_i32 = arith.constant 0 : i32
    %c0_i32_0 = arith.constant 0 : i32
    %c0_i32_1 = arith.constant 0 : i32
    return %c0_i32, %c0_i32_0 : i32, i32
  }
  func.func @transform_17(%arg0: i32) -> (i32, i32) {
    %c0_i32 = arith.constant 0 : i32
    %c0_i32_0 = arith.constant 0 : i32
    %c0_i32_1 = arith.constant 0 : i32
    return %c0_i32, %c0_i32_0 : i32, i32
  }
  func.func @transform_18(%arg0: i32) -> (i32, i32) {
    %c0_i32 = arith.constant 0 : i32
    %c0_i32_0 = arith.constant 0 : i32
    %c0_i32_1 = arith.constant 0 : i32
    return %c0_i32, %c0_i32_0 : i32, i32
  }
  func.func @transform_19(%arg0: i32) -> (i32, i32) {
    %c0_i32 = arith.constant 0 : i32
    %c0_i32_0 = arith.constant 0 : i32
    %c0_i32_1 = arith.constant 0 : i32
    return %c0_i32, %c0_i32_0 : i32, i32
  }
  func.func @transform_20(%arg0: i32) -> (i32, i32) {
    %c0_i32 = arith.constant 0 : i32
    %c0_i32_0 = arith.constant 0 : i32
    %c0_i32_1 = arith.constant 0 : i32
    return %c0_i32, %c0_i32_0 : i32, i32
  }
  func.func @transform_21(%arg0: i32) -> (i32, i32) {
    %c0_i32 = arith.constant 0 : i32
    %c0_i32_0 = arith.constant 0 : i32
    %c0_i32_1 = arith.constant 0 : i32
    return %c0_i32, %c0_i32_0 : i32, i32
  }
  func.func @transform_22(%arg0: i32) -> (i32, i32, i32) {
    %c0_i32 = arith.constant 0 : i32
    %c0_i32_0 = arith.constant 0 : i32
    %c0_i32_1 = arith.constant 0 : i32
    return %arg0, %c0_i32, %c0_i32_0 : i32, i32, i32
  }
}

</mosaic_0001>

<llo_original>
// kernel: _lambda_.5
$region0: #{_lambda_.5}
  #allocation0 [shape = 'u32[]', space=smem, size = 0x4, offset = 0x4, fixed_abs, tag = 'smem constant byte address 0x4 - core index']
  #allocation1 [shape = 'u32[144,128]{1,0:T(1,128)}', space=vmem, size = 0x12000, scoped, tag = 'internal scratch']
  %s0 = inlined_call_operand.vmem [shape: f32[16,32], index: 0, kind: input, shape index: {}]
  %s1 = inlined_call_operand.vmem [shape: bf16[32,16], index: 1, kind: input, shape index: {}]
  %s2 = inlined_call_operand.vmem [shape: f32[1,16], index: 2, kind: input, shape index: {}]
  %s3 = inlined_call_operand.hbm [shape: f32[16,16], index: 3, kind: output, shape index: {}]
  %s4 = sld [smem:[#allocation0]]
  $region22: #{_lambda_.5} parent=0
    _
  %s6 = ssub.s32 1, %s4
  %s7 = scalar_select 0, %s6, %s4
  $region1: #{_lambda_.5} parent=0
    #allocation2 [shape = 'u8[8192]{0}', space=vmem, size = 0x2000, scoped, tag = 'output window, operand 0, single buffered']
    #allocation3 [shape = 's32[1]{0}', space=sflag, size = 0x4, scoped, tag = 'scoped memory for _lambda_.5']
    %8 = vsyncpa [#allocation3], 0
    // Predicated region
    $region2: #{_lambda_.5} parent=1 // pred_check
      _
    $region3: #{_lambda_.5} parent=1 // pred_check_branch
      %10 = sbr.rel (0) target = $region5
    $region4: #{_lambda_.5} parent=1 // pred_region
      _
    $region5: #{_lambda_.5} parent=1 // pred_fallthru
      _
    // Predicated region
    $region6: #{_lambda_.5} parent=1 // pred_check
      _
    $region7: #{_lambda_.5} parent=1 // pred_check_branch
      %12 = sbr.rel (0) target = $region9
    $region8: #{_lambda_.5} parent=1 // pred_region
      _
    $region9: #{_lambda_.5} parent=1 // pred_fallthru
      _
    // Predicated region
    $region10: #{_lambda_.5} parent=1 // pred_check
      _
    $region11: #{_lambda_.5} parent=1 // pred_check_branch
      %14 = sbr.rel (0) target = $region13
    $region12: #{_lambda_.5} parent=1 // pred_region
      _
    $region13: #{_lambda_.5} parent=1 // pred_fallthru
      _
    %v16 = vld [vmem:[%s0] sm:$0xff]
    %v17 = vld [vmem:[%s0 + $0x8] sm:$0xff]
    %v18 = vpack.c.bf16 %v17, %v16
    %v19 = vld [vmem:[%s1] sm:$0xf]
    %v20 = vld [vmem:[%s1 + $0x4] sm:$0xf]
    %v21 = vld [vmem:[%s1 + $0x8] sm:$0xf]
    %v22 = vld [vmem:[%s1 + $0xc] sm:$0xf]
    %v23 = vld [vmem:[%s2] sm:$0x1]
    %v25 = vlaneseq
    %v26 = vshrl.u32 %v25, 7
    %v27 = vsub.s32 0, %v26
    %v28 = vrot.slane %v23, %v27
    %v34 = vunpack.c.l.b16 %v19
    %v35 = vunpack.c.l.b16 %v20
    %v36 = vunpack.c.l.b16 %v21
    %v37 = vunpack.c.l.b16 %v22
    %v38 = vpack.c.b16 %v35, %v34
    %v39 = vpack.c.b16 %v37, %v36
    %vm42 = vcmask 261120
    %v44 = vsel %vm42, %v18, 0
    %46 = vmatprep.subr.bf16.mxu0 0
    %47 = vmatpush1.bf16.msra.mxu0 %v38
    %48 = vmatprep.subr.bf16.mxu0 0
    %49 = vmatpush1.bf16.msra.mxu0 %v39
    %50 = vmatprep.subr.bf16.mxu0 0
    %51 = vmatpush1.bf16.msra.mxu0 0
    %52 = vmatprep.subr.bf16.mxu0 0
    %53 = vmatpush1.bf16.msra.mxu0 0
    %54 = vmatprep.subr.bf16.mxu0 0
    %55 = vmatpush1.bf16.msra.mxu0 0
    %56 = vmatprep.subr.bf16.mxu0 0
    %57 = vmatpush1.bf16.msra.mxu0 0
    %58 = vmatprep.subr.bf16.mxu0 0
    %59 = vmatpush1.bf16.msra.mxu0 0
    %60 = vmatprep.subr.bf16.mxu0 0
    %61 = vmatpush1.bf16.msra.mxu0 0
    %62 = vmatprep.subr.bf16.mxu0 0
    %63 = vmatpush1.bf16.msra.mxu0 0
    %64 = vmatprep.subr.bf16.mxu0 0
    %65 = vmatpush1.bf16.msra.mxu0 0
    %66 = vmatprep.subr.bf16.mxu0 0
    %67 = vmatpush1.bf16.msra.mxu0 0
    %68 = vmatprep.subr.bf16.mxu0 0
    %69 = vmatpush1.bf16.msra.mxu0 0
    %70 = vmatprep.subr.bf16.mxu0 0
    %71 = vmatpush1.bf16.msra.mxu0 0
    %72 = vmatprep.subr.bf16.mxu0 0
    %73 = vmatpush1.bf16.msra.mxu0 0
    %74 = vmatprep.subr.bf16.mxu0 0
    %75 = vmatpush1.bf16.msra.mxu0 0
    %76 = vmatprep.subr.bf16.mxu0 0
    %77 = vmatpush1.bf16.msra.mxu0 0
    %78 = vmatprep.mubr.bf16.mxu0 0
    %79 = vmatmul.mubr.bf16.gmra.mrb[0].mxu0 %v44
    %v80 = vpop.f32.mrb[0].mxu0
    %v81 = vadd.f32 %v28, %v80
    %v82 = vpop.f32.mrb[0].mxu0
    %v83 = vpop.f32.mrb[0].mxu0
    %v84 = vadd.f32 %v28, %v83
    %v85 = vpop.f32.mrb[0].mxu0
    %86 = vdwg.mxu0
    %vm87 = vcmask 130048
    %88 = vst.msk [vmem:[#allocation2] sm:$0xff] %vm87, %v81
    %89 = vst.msk [vmem:[#allocation2 + $0x8] sm:$0xff] %vm87, %v84
    // Predicated region
    $region14: #{_lambda_.5} parent=1 // pred_check
      _
    $region15: #{_lambda_.5} parent=1 // pred_check_branch
      %91 = sbr.rel (0) target = $region17
    $region16: #{_lambda_.5} parent=1 // pred_region
      %s93 = ssub.s32 256, 256
      %94 = vsyncadd [#allocation3], %s93
      %s95 = sshll.u32 [#allocation2], 4
      %s96 = int_to_ptr.vmem [resolvable:$true] %s95
      %101 = dma.vmem_to_hbm [thread:$0]  %s96, 256, %s3, [#allocation3], 128, 128, 8
    $region17: #{_lambda_.5} parent=1 // pred_fallthru
      _
    // Predicated region
    $region18: #{_lambda_.5} parent=1 // pred_check
      _
    $region19: #{_lambda_.5} parent=1 // pred_check_branch
      %103 = sbr.rel (0) target = $region21
    $region20: #{_lambda_.5} parent=1 // pred_region
      %104 = dma.done [#allocation3], 256
    $region21: #{_lambda_.5} parent=1 // pred_fallthru
      _
    %105 = vsyncpa [#allocation3], 1

// kernel: _lambda_.4
$region0: #{_lambda_.4}
  #allocation0 [shape = 'u32[]', space=smem, size = 0x4, offset = 0x4, fixed_abs, tag = 'smem constant byte address 0x4 - core index']
  #allocation1 [shape = 'u32[144,128]{1,0:T(1,128)}', space=vmem, size = 0x12000, scoped, tag = 'internal scratch']
  %s0 = inlined_call_operand.vmem [shape: f32[2,8,32], index: 0, kind: input, shape index: {}, may-alias: {0,22}]
  %s1 = inlined_call_operand.vmem [shape: f32[2,8,32], index: 1, kind: input, shape index: {}]
  %s2 = inlined_call_operand.vmem [shape: bf16[32,96], index: 2, kind: input, shape index: {}]
  %s3 = inlined_call_operand.vmem [shape: f32[1,96], index: 3, kind: input, shape index: {}]
  %s4 = inlined_call_operand.vmem [shape: bf16[32,32], index: 4, kind: input, shape index: {}]
  %s5 = inlined_call_operand.vmem [shape: f32[1,32], index: 5, kind: input, shape index: {}]
  %s6 = inlined_call_operand.vmem [shape: f32[1,32], index: 6, kind: input, shape index: {}]
  %s7 = inlined_call_operand.vmem [shape: f32[1,32], index: 7, kind: input, shape index: {}]
  %s8 = inlined_call_operand.vmem [shape: bf16[32,32], index: 8, kind: input, shape index: {}]
  %s9 = inlined_call_operand.vmem [shape: f32[1,32], index: 9, kind: input, shape index: {}]
  %s10 = inlined_call_operand.vmem [shape: bf16[32,64], index: 10, kind: input, shape index: {}]
  %s11 = inlined_call_operand.vmem [shape: f32[1,64], index: 11, kind: input, shape index: {}]
  %s12 = inlined_call_operand.vmem [shape: bf16[32,32], index: 12, kind: input, shape index: {}]
  %s13 = inlined_call_operand.vmem [shape: f32[1,32], index: 13, kind: input, shape index: {}]
  %s14 = inlined_call_operand.vmem [shape: f32[1,32], index: 14, kind: input, shape index: {}]
  %s15 = inlined_call_operand.vmem [shape: f32[1,32], index: 15, kind: input, shape index: {}]
  %s16 = inlined_call_operand.vmem [shape: bf16[32,64], index: 16, kind: input, shape index: {}]
  %s17 = inlined_call_operand.vmem [shape: f32[1,64], index: 17, kind: input, shape index: {}]
  %s18 = inlined_call_operand.vmem [shape: bf16[64,32], index: 18, kind: input, shape index: {}]
  %s19 = inlined_call_operand.vmem [shape: f32[1,32], index: 19, kind: input, shape index: {}]
  %s20 = inlined_call_operand.vmem [shape: f32[1,32], index: 20, kind: input, shape index: {}]
  %s21 = inlined_call_operand.hbm [shape: f32[1,32], index: 21, kind: input, shape index: {}]
  %s22 = inlined_call_operand.vmem [shape: f32[2,8,32], index: 22, kind: output, shape index: {}, may-alias: {0,22}]
  %s23 = sld [smem:[#allocation0]]
  $region102: #{_lambda_.4} parent=0
    _
  %s25 = ssub.s32 1, %s23
  %s26 = scalar_select 0, %s25, %s23
  $region1: #{_lambda_.4} parent=0
    #allocation2 [shape = 'u8[512]{0}', space=vmem, size = 0x400, scoped, tag = 'input window, operand 21, single buffered']
    #allocation3 [shape = 's32[1]{0}', space=sflag, size = 0x4, scoped, tag = 'scoped memory for _lambda_.4']
    %27 = vsyncpa [#allocation3], 0
    // Predicated region
    $region2: #{_lambda_.4} parent=1 // pred_check
      _
    $region3: #{_lambda_.4} parent=1 // pred_check_branch
      %29 = sbr.rel (0) target = $region5
    $region4: #{_lambda_.4} parent=1 // pred_region
      _
    $region5: #{_lambda_.4} parent=1 // pred_fallthru
      _
    // Predicated region
    $region6: #{_lambda_.4} parent=1 // pred_check
      _
    $region7: #{_lambda_.4} parent=1 // pred_check_branch
      %31 = sbr.rel (0) target = $region9
    $region8: #{_lambda_.4} parent=1 // pred_region
      _
    $region9: #{_lambda_.4} parent=1 // pred_fallthru
      _
    // Predicated region
    $region10: #{_lambda_.4} parent=1 // pred_check
      _
    $region11: #{_lambda_.4} parent=1 // pred_check_branch
      %33 = sbr.rel (0) target = $region13
    $region12: #{_lambda_.4} parent=1 // pred_region
      _
    $region13: #{_lambda_.4} parent=1 // pred_fallthru
      _
    // Predicated region
    $region14: #{_lambda_.4} parent=1 // pred_check
      _
    $region15: #{_lambda_.4} parent=1 // pred_check_branch
      %35 = sbr.rel (0) target = $region17
    $region16: #{_lambda_.4} parent=1 // pred_region
      _
    $region17: #{_lambda_.4} parent=1 // pred_fallthru
      _
    // Predicated region
    $region18: #{_lambda_.4} parent=1 // pred_check
      _
    $region19: #{_lambda_.4} parent=1 // pred_check_branch
      %37 = sbr.rel (0) target = $region21
    $region20: #{_lambda_.4} parent=1 // pred_region
      _
    $region21: #{_lambda_.4} parent=1 // pred_fallthru
      _
    // Predicated region
    $region22: #{_lambda_.4} parent=1 // pred_check
      _
    $region23: #{_lambda_.4} parent=1 // pred_check_branch
      %39 = sbr.rel (0) target = $region25
    $region24: #{_lambda_.4} parent=1 // pred_region
      _
    $region25: #{_lambda_.4} parent=1 // pred_fallthru
      _
    // Predicated region
    $region26: #{_lambda_.4} parent=1 // pred_check
      _
    $region27: #{_lambda_.4} parent=1 // pred_check_branch
      %41 = sbr.rel (0) target = $region29
    $region28: #{_lambda_.4} parent=1 // pred_region
      _
    $region29: #{_lambda_.4} parent=1 // pred_fallthru
      _
    // Predicated region
    $region30: #{_lambda_.4} parent=1 // pred_check
      _
    $region31: #{_lambda_.4} parent=1 // pred_check_branch
      %43 = sbr.rel (0) target = $region33
    $region32: #{_lambda_.4} parent=1 // pred_region
      _
    $region33: #{_lambda_.4} parent=1 // pred_fallthru
      _
    // Predicated region
    $region34: #{_lambda_.4} parent=1 // pred_check
      _
    $region35: #{_lambda_.4} parent=1 // pred_check_branch
      %45 = sbr.rel (0) target = $region37
    $region36: #{_lambda_.4} parent=1 // pred_region
      _
    $region37: #{_lambda_.4} parent=1 // pred_fallthru
      _
    // Predicated region
    $region38: #{_lambda_.4} parent=1 // pred_check
      _
    $region39: #{_lambda_.4} parent=1 // pred_check_branch
      %47 = sbr.rel (0) target = $region41
    $region40: #{_lambda_.4} parent=1 // pred_region
      _
    $region41: #{_lambda_.4} parent=1 // pred_fallthru
      _
    // Predicated region
    $region42: #{_lambda_.4} parent=1 // pred_check
      _
    $region43: #{_lambda_.4} parent=1 // pred_check_branch
      %49 = sbr.rel (0) target = $region45
    $region44: #{_lambda_.4} parent=1 // pred_region
      _
    $region45: #{_lambda_.4} parent=1 // pred_fallthru
      _
    // Predicated region
    $region46: #{_lambda_.4} parent=1 // pred_check
      _
    $region47: #{_lambda_.4} parent=1 // pred_check_branch
      %51 = sbr.rel (0) target = $region49
    $region48: #{_lambda_.4} parent=1 // pred_region
      _
    $region49: #{_lambda_.4} parent=1 // pred_fallthru
      _
    // Predicated region
    $region50: #{_lambda_.4} parent=1 // pred_check
      _
    $region51: #{_lambda_.4} parent=1 // pred_check_branch
      %53 = sbr.rel (0) target = $region53
    $region52: #{_lambda_.4} parent=1 // pred_region
      _
    $region53: #{_lambda_.4} parent=1 // pred_fallthru
      _
    // Predicated region
    $region54: #{_lambda_.4} parent=1 // pred_check
      _
    $region55: #{_lambda_.4} parent=1 // pred_check_branch
      %55 = sbr.rel (0) target = $region57
    $region56: #{_lambda_.4} parent=1 // pred_region
      _
    $region57: #{_lambda_.4} parent=1 // pred_fallthru
      _
    // Predicated region
    $region58: #{_lambda_.4} parent=1 // pred_check
      _
    $region59: #{_lambda_.4} parent=1 // pred_check_branch
      %57 = sbr.rel (0) target = $region61
    $region60: #{_lambda_.4} parent=1 // pred_region
      _
    $region61: #{_lambda_.4} parent=1 // pred_fallthru
      _
    // Predicated region
    $region62: #{_lambda_.4} parent=1 // pred_check
      _
    $region63: #{_lambda_.4} parent=1 // pred_check_branch
      %59 = sbr.rel (0) target = $region65
    $region64: #{_lambda_.4} parent=1 // pred_region
      _
    $region65: #{_lambda_.4} parent=1 // pred_fallthru
      _
    // Predicated region
    $region66: #{_lambda_.4} parent=1 // pred_check
      _
    $region67: #{_lambda_.4} parent=1 // pred_check_branch
      %61 = sbr.rel (0) target = $region69
    $region68: #{_lambda_.4} parent=1 // pred_region
      _
    $region69: #{_lambda_.4} parent=1 // pred_fallthru
      _
    // Predicated region
    $region70: #{_lambda_.4} parent=1 // pred_check
      _
    $region71: #{_lambda_.4} parent=1 // pred_check_branch
      %63 = sbr.rel (0) target = $region73
    $region72: #{_lambda_.4} parent=1 // pred_region
      _
    $region73: #{_lambda_.4} parent=1 // pred_fallthru
      _
    // Predicated region
    $region74: #{_lambda_.4} parent=1 // pred_check
      _
    $region75: #{_lambda_.4} parent=1 // pred_check_branch
      %65 = sbr.rel (0) target = $region77
    $region76: #{_lambda_.4} parent=1 // pred_region
      _
    $region77: #{_lambda_.4} parent=1 // pred_fallthru
      _
    // Predicated region
    $region78: #{_lambda_.4} parent=1 // pred_check
      _
    $region79: #{_lambda_.4} parent=1 // pred_check_branch
      %67 = sbr.rel (0) target = $region81
    $region80: #{_lambda_.4} parent=1 // pred_region
      _
    $region81: #{_lambda_.4} parent=1 // pred_fallthru
      _
    // Predicated region
    $region82: #{_lambda_.4} parent=1 // pred_check
      _
    $region83: #{_lambda_.4} parent=1 // pred_check_branch
      %69 = sbr.rel (0) target = $region85
    $region84: #{_lambda_.4} parent=1 // pred_region
      _
    $region85: #{_lambda_.4} parent=1 // pred_fallthru
      _
    // Predicated region
    $region86: #{_lambda_.4} parent=1 // pred_check
      _
    $region87: #{_lambda_.4} parent=1 // pred_check_branch
      %71 = sbr.rel (0) target = $region89
    $region88: #{_lambda_.4} parent=1 // pred_region
      %s73 = ssub.s32 16, 16
      %74 = vsyncadd [#allocation3], %s73
      %s76 = sshll.u32 [#allocation2], 4
      %s77 = int_to_ptr.vmem [resolvable:$true] %s76
      %79 = dma.hbm_to_vmem [thread:$0]  %s21, 16, %s77, [#allocation3]
    $region89: #{_lambda_.4} parent=1 // pred_fallthru
      _
    // Predicated region
    $region90: #{_lambda_.4} parent=1 // pred_check
      _
    $region91: #{_lambda_.4} parent=1 // pred_check_branch
      %81 = sbr.rel (0) target = $region93
    $region92: #{_lambda_.4} parent=1 // pred_region
      %82 = dma.done [#allocation3], 16
    $region93: #{_lambda_.4} parent=1 // pred_fallthru
      _
    %v84 = vld [vmem:[%s0] sm:$0xff]
    %v85 = vld [vmem:[%s0 + $0x8] sm:$0xff]
    %v86 = vld [vmem:[%s1] sm:$0xff]
    %v87 = vld [vmem:[%s1 + $0x8] sm:$0xff]
    %v88 = vlaneseq
    %v89 = vshrl.u32 %v88, 7
    %v90 = vlaneseq
    %v91 = vand.u32 %v90, 127
    %vm92 = vcmp.gt.s32.totalorder %v91, %v89
    %v93 = vsel %vm92, -1e+09, 0.0
    %v94 = vpack.c.bf16 %v85, %v84
    %v95 = vld [vmem:[%s2] sm:$0xf]
    %v96 = vld [vmem:[%s2 + $0x4] sm:$0xf]
    %v97 = vld [vmem:[%s2 + $0x8] sm:$0xf]
    %v98 = vld [vmem:[%s2 + $0xc] sm:$0xf]
    %v99 = vld [vmem:[%s3] sm:$0x1]
    %v101 = vlaneseq
    %v102 = vshrl.u32 %v101, 7
    %v103 = vsub.s32 0, %v102
    %v104 = vrot.slane %v99, %v103
    %v110 = vunpack.c.l.b16 %v95
    %v111 = vunpack.c.l.b16 %v96
    %v112 = vunpack.c.l.b16 %v97
    %v113 = vunpack.c.l.b16 %v98
    %v114 = vpack.c.b16 %v111, %v110
    %v115 = vpack.c.b16 %v113, %v112
    %vm118 = vcmask 261120
    %v120 = vsel %vm118, %v94, 0
    %122 = vmatprep.subr.bf16.mxu0 0
    %123 = vmatpush1.bf16.msra.mxu0 %v114
    %124 = vmatprep.subr.bf16.mxu0 0
    %125 = vmatpush1.bf16.msra.mxu0 %v115
    %126 = vmatprep.subr.bf16.mxu0 0
    %127 = vmatpush1.bf16.msra.mxu0 0
    %128 = vmatprep.subr.bf16.mxu0 0
    %129 = vmatpush1.bf16.msra.mxu0 0
    %130 = vmatprep.subr.bf16.mxu0 0
    %131 = vmatpush1.bf16.msra.mxu0 0
    %132 = vmatprep.subr.bf16.mxu0 0
    %133 = vmatpush1.bf16.msra.mxu0 0
    %134 = vmatprep.subr.bf16.mxu0 0
    %135 = vmatpush1.bf16.msra.mxu0 0
    %136 = vmatprep.subr.bf16.mxu0 0
    %137 = vmatpush1.bf16.msra.mxu0 0
    %138 = vmatprep.subr.bf16.mxu0 0
    %139 = vmatpush1.bf16.msra.mxu0 0
    %140 = vmatprep.subr.bf16.mxu0 0
    %141 = vmatpush1.bf16.msra.mxu0 0
    %142 = vmatprep.subr.bf16.mxu0 0
    %143 = vmatpush1.bf16.msra.mxu0 0
    %144 = vmatprep.subr.bf16.mxu0 0
    %145 = vmatpush1.bf16.msra.mxu0 0
    %146 = vmatprep.subr.bf16.mxu0 0
    %147 = vmatpush1.bf16.msra.mxu0 0
    %148 = vmatprep.subr.bf16.mxu0 0
    %149 = vmatpush1.bf16.msra.mxu0 0
    %150 = vmatprep.subr.bf16.mxu0 0
    %151 = vmatpush1.bf16.msra.mxu0 0
    %152 = vmatprep.subr.bf16.mxu0 0
    %153 = vmatpush1.bf16.msra.mxu0 0
    %154 = vmatprep.mubr.bf16.mxu0 0
    %155 = vmatmul.mubr.bf16.gmra.mrb[0].mxu0 %v120
    %v156 = vpop.f32.mrb[0].mxu0
    %v157 = vadd.f32 %v104, %v156
    %v158 = vpop.f32.mrb[0].mxu0
    %v159 = vpop.f32.mrb[0].mxu0
    %v160 = vadd.f32 %v104, %v159
    %v161 = vpop.f32.mrb[0].mxu0
    %162 = vdwg.mxu0
    %v163 = vpack.c.bf16 %v157, %v157
    %165 = vrot.lane.b32.xlu0 %v163, 96
    %v166 = vpop.permute.xlu0 %165
    %vm167 = vcmask 64512
    %v169 = vsel %vm167, %v163, 0
    %v172 = vsel %vm167, %v166, 0
    %174 = vmatprep.subr.bf16.mxu0 0
    %175 = vmatpush1.bf16.xpose.msra.mxu0 %v172
    %176 = vmatprep.subr.bf16.mxu0 0
    %177 = vmatpush1.bf16.xpose.msra.mxu0 0
    %178 = vmatprep.subr.bf16.mxu0 0
    %179 = vmatpush1.bf16.xpose.msra.mxu0 0
    %180 = vmatprep.subr.bf16.mxu0 0
    %181 = vmatpush1.bf16.xpose.msra.mxu0 0
    %182 = vmatprep.subr.bf16.mxu0 0
    %183 = vmatpush1.bf16.xpose.msra.mxu0 0
    %184 = vmatprep.subr.bf16.mxu0 0
    %185 = vmatpush1.bf16.xpose.msra.mxu0 0
    %186 = vmatprep.subr.bf16.mxu0 0
    %187 = vmatpush1.bf16.xpose.msra.mxu0 0
    %188 = vmatprep.subr.bf16.mxu0 0
    %189 = vmatpush1.bf16.xpose.msra.mxu0 0
    %190 = vmatprep.subr.bf16.mxu0 0
    %191 = vmatpush1.bf16.xpose.msra.mxu0 0
    %192 = vmatprep.subr.bf16.mxu0 0
    %193 = vmatpush1.bf16.xpose.msra.mxu0 0
    %194 = vmatprep.subr.bf16.mxu0 0
    %195 = vmatpush1.bf16.xpose.msra.mxu0 0
    %196 = vmatprep.subr.bf16.mxu0 0
    %197 = vmatpush1.bf16.xpose.msra.mxu0 0
    %198 = vmatprep.subr.bf16.mxu0 0
    %199 = vmatpush1.bf16.xpose.msra.mxu0 0
    %200 = vmatprep.subr.bf16.mxu0 0
    %201 = vmatpush1.bf16.xpose.msra.mxu0 0
    %202 = vmatprep.subr.bf16.mxu0 0
    %203 = vmatpush1.bf16.xpose.msra.mxu0 0
    %204 = vmatprep.subr.bf16.mxu0 0
    %205 = vmatpush1.bf16.xpose.msra.mxu0 0
    %206 = vmatprep.mubr.bf16.mxu0 0
    %207 = vmatmul.mubr.bf16.gmra.mrb[0].mxu0 %v169
    %v208 = vpop.f32.mrb[0].mxu0
    %v209 = vadd.f32 0.0, %v208
    %v210 = vpop.f32.mrb[0].mxu0
    %v211 = vpop.f32.mrb[0].mxu0
    %v212 = vpop.f32.mrb[0].mxu0
    %213 = vdwg.mxu0
    %v214 = vmul.f32 %v209, 0.35355338
    %v215 = vadd.f32 %v214, %v93
    %v216 = vsel %vm167, %v215, -inf
    %217 = vmax.xlane.f32.xlu0 %v216
    %v218 = vpop.xlane.xlu0 %217
    %v219 = vsub.f32 %v215, %v218
    %v220 = vmul.f32 %v219, 1.442695
    %v221 = vpow.pop %v220
    %v222 = vsel %vm167, %v221, 0.0
    %223 = vadd.xlane.f32.xlu0 %v222
    %v224 = vpop.xlane.xlu0 %223
    %v225 = vrcp.pop %v224
    %v226 = vmul.f32 %v221, %v225
    %v227 = vpack.c.bf16 %v226, %v226
    %228 = vrot.lane.b32.xlu0 %v163, 64
    %v229 = vpop.permute.xlu0 %228
    %v231 = vsel %vm167, %v227, 0
    %vm233 = vcmask 1043456
    %v235 = vsel %vm233, %v229, 0
    %237 = vmatprep.subr.bf16.mxu0 0
    %238 = vmatpush1.bf16.msra.mxu0 %v235
    %239 = vmatprep.subr.bf16.mxu0 0
    %240 = vmatpush1.bf16.msra.mxu0 0
    %241 = vmatprep.subr.bf16.mxu0 0
    %242 = vmatpush1.bf16.msra.mxu0 0
    %243 = vmatprep.subr.bf16.mxu0 0
    %244 = vmatpush1.bf16.msra.mxu0 0
    %245 = vmatprep.subr.bf16.mxu0 0
    %246 = vmatpush1.bf16.msra.mxu0 0
    %247 = vmatprep.subr.bf16.mxu0 0
    %248 = vmatpush1.bf16.msra.mxu0 0
    %249 = vmatprep.subr.bf16.mxu0 0
    %250 = vmatpush1.bf16.msra.mxu0 0
    %251 = vmatprep.subr.bf16.mxu0 0
    %252 = vmatpush1.bf16.msra.mxu0 0
    %253 = vmatprep.subr.bf16.mxu0 0
    %254 = vmatpush1.bf16.msra.mxu0 0
    %255 = vmatprep.subr.bf16.mxu0 0
    %256 = vmatpush1.bf16.msra.mxu0 0
    %257 = vmatprep.subr.bf16.mxu0 0
    %258 = vmatpush1.bf16.msra.mxu0 0
    %259 = vmatprep.subr.bf16.mxu0 0
    %260 = vmatpush1.bf16.msra.mxu0 0
    %261 = vmatprep.subr.bf16.mxu0 0
    %262 = vmatpush1.bf16.msra.mxu0 0
    %263 = vmatprep.subr.bf16.mxu0 0
    %264 = vmatpush1.bf16.msra.mxu0 0
    %265 = vmatprep.subr.bf16.mxu0 0
    %266 = vmatpush1.bf16.msra.mxu0 0
    %267 = vmatprep.subr.bf16.mxu0 0
    %268 = vmatpush1.bf16.msra.mxu0 0
    %269 = vmatprep.mubr.bf16.mxu0 0
    %270 = vmatmul.mubr.bf16.gmra.mrb[0].mxu0 %v231
    %v271 = vpop.f32.mrb[0].mxu0
    %v272 = vadd.f32 0.0, %v271
    %v273 = vpop.f32.mrb[0].mxu0
    %v274 = vpop.f32.mrb[0].mxu0
    %v275 = vpop.f32.mrb[0].mxu0
    %276 = vdwg.mxu0
    %277 = vrot.lane.b32.xlu0 %v163, 120
    %v278 = vpop.permute.xlu0 %277
    %279 = vrot.lane.b32.xlu0 %v163, 88
    %v280 = vpop.permute.xlu0 %279
    %v282 = vsel %vm167, %v278, 0
    %v285 = vsel %vm167, %v280, 0
    %287 = vmatprep.subr.bf16.mxu0 0
    %288 = vmatpush1.bf16.xpose.msra.mxu0 %v285
    %289 = vmatprep.subr.bf16.mxu0 0
    %290 = vmatpush1.bf16.xpose.msra.mxu0 0
    %291 = vmatprep.subr.bf16.mxu0 0
    %292 = vmatpush1.bf16.xpose.msra.mxu0 0
    %293 = vmatprep.subr.bf16.mxu0 0
    %294 = vmatpush1.bf16.xpose.msra.mxu0 0
    %295 = vmatprep.subr.bf16.mxu0 0
    %296 = vmatpush1.bf16.xpose.msra.mxu0 0
    %297 = vmatprep.subr.bf16.mxu0 0
    %298 = vmatpush1.bf16.xpose.msra.mxu0 0
    %299 = vmatprep.subr.bf16.mxu0 0
    %300 = vmatpush1.bf16.xpose.msra.mxu0 0
    %301 = vmatprep.subr.bf16.mxu0 0
    %302 = vmatpush1.bf16.xpose.msra.mxu0 0
    %303 = vmatprep.subr.bf16.mxu0 0
    %304 = vmatpush1.bf16.xpose.msra.mxu0 0
    %305 = vmatprep.subr.bf16.mxu0 0
    %306 = vmatpush1.bf16.xpose.msra.mxu0 0
    %307 = vmatprep.subr.bf16.mxu0 0
    %308 = vmatpush1.bf16.xpose.msra.mxu0 0
    %309 = vmatprep.subr.bf16.mxu0 0
    %310 = vmatpush1.bf16.xpose.msra.mxu0 0
    %311 = vmatprep.subr.bf16.mxu0 0
    %312 = vmatpush1.bf16.xpose.msra.mxu0 0
    %313 = vmatprep.subr.bf16.mxu0 0
    %314 = vmatpush1.bf16.xpose.msra.mxu0 0
    %315 = vmatprep.subr.bf16.mxu0 0
    %316 = vmatpush1.bf16.xpose.msra.mxu0 0
    %317 = vmatprep.subr.bf16.mxu0 0
    %318 = vmatpush1.bf16.xpose.msra.mxu0 0
    %319 = vmatprep.mubr.bf16.mxu0 0
    %320 = vmatmul.mubr.bf16.gmra.mrb[0].mxu0 %v282
    %v321 = vpop.f32.mrb[0].mxu0
    %v322 = vadd.f32 0.0, %v321
    %v323 = vpop.f32.mrb[0].mxu0
    %v324 = vpop.f32.mrb[0].mxu0
    %v325 = vpop.f32.mrb[0].mxu0
    %326 = vdwg.mxu0
    %v327 = vmul.f32 %v322, 0.35355338
    %v328 = vadd.f32 %v327, %v93
    %v329 = vsel %vm167, %v328, -inf
    %330 = vmax.xlane.f32.xlu0 %v329
    %v331 = vpop.xlane.xlu0 %330
    %v332 = vsub.f32 %v328, %v331
    %v333 = vmul.f32 %v332, 1.442695
    %v334 = vpow.pop %v333
    %v335 = vsel %vm167, %v334, 0.0
    %336 = vadd.xlane.f32.xlu0 %v335
    %v337 = vpop.xlane.xlu0 %336
    %v338 = vrcp.pop %v337
    %v339 = vmul.f32 %v334, %v338
    %v340 = vpack.c.bf16 %v339, %v339
    %341 = vrot.lane.b32.xlu0 %v163, 56
    %v342 = vpop.permute.xlu0 %341
    %v344 = vsel %vm167, %v340, 0
    %v347 = vsel %vm233, %v342, 0
    %349 = vmatprep.subr.bf16.mxu0 0
    %350 = vmatpush1.bf16.msra.mxu0 %v347
    %351 = vmatprep.subr.bf16.mxu0 0
    %352 = vmatpush1.bf16.msra.mxu0 0
    %353 = vmatprep.subr.bf16.mxu0 0
    %354 = vmatpush1.bf16.msra.mxu0 0
    %355 = vmatprep.subr.bf16.mxu0 0
    %356 = vmatpush1.bf16.msra.mxu0 0
    %357 = vmatprep.subr.bf16.mxu0 0
    %358 = vmatpush1.bf16.msra.mxu0 0
    %359 = vmatprep.subr.bf16.mxu0 0
    %360 = vmatpush1.bf16.msra.mxu0 0
    %361 = vmatprep.subr.bf16.mxu0 0
    %362 = vmatpush1.bf16.msra.mxu0 0
    %363 = vmatprep.subr.bf16.mxu0 0
    %364 = vmatpush1.bf16.msra.mxu0 0
    %365 = vmatprep.subr.bf16.mxu0 0
    %366 = vmatpush1.bf16.msra.mxu0 0
    %367 = vmatprep.subr.bf16.mxu0 0
    %368 = vmatpush1.bf16.msra.mxu0 0
    %369 = vmatprep.subr.bf16.mxu0 0
    %370 = vmatpush1.bf16.msra.mxu0 0
    %371 = vmatprep.subr.bf16.mxu0 0
    %372 = vmatpush1.bf16.msra.mxu0 0
    %373 = vmatprep.subr.bf16.mxu0 0
    %374 = vmatpush1.bf16.msra.mxu0 0
    %375 = vmatprep.subr.bf16.mxu0 0
    %376 = vmatpush1.bf16.msra.mxu0 0
    %377 = vmatprep.subr.bf16.mxu0 0
    %378 = vmatpush1.bf16.msra.mxu0 0
    %379 = vmatprep.subr.bf16.mxu0 0
    %380 = vmatpush1.bf16.msra.mxu0 0
    %381 = vmatprep.mubr.bf16.mxu0 0
    %382 = vmatmul.mubr.bf16.gmra.mrb[0].mxu0 %v344
    %v383 = vpop.f32.mrb[0].mxu0
    %v384 = vadd.f32 0.0, %v383
    %v385 = vpop.f32.mrb[0].mxu0
    %v386 = vpop.f32.mrb[0].mxu0
    %v387 = vpop.f32.mrb[0].mxu0
    %388 = vdwg.mxu0
    %389 = vrot.lane.b32.xlu0 %v163, 112
    %v390 = vpop.permute.xlu0 %389
    %391 = vrot.lane.b32.xlu0 %v163, 80
    %v392 = vpop.permute.xlu0 %391
    %v394 = vsel %vm167, %v390, 0
    %v397 = vsel %vm167, %v392, 0
    %399 = vmatprep.subr.bf16.mxu0 0
    %400 = vmatpush1.bf16.xpose.msra.mxu0 %v397
    %401 = vmatprep.subr.bf16.mxu0 0
    %402 = vmatpush1.bf16.xpose.msra.mxu0 0
    %403 = vmatprep.subr.bf16.mxu0 0
    %404 = vmatpush1.bf16.xpose.msra.mxu0 0
    %405 = vmatprep.subr.bf16.mxu0 0
    %406 = vmatpush1.bf16.xpose.msra.mxu0 0
    %407 = vmatprep.subr.bf16.mxu0 0
    %408 = vmatpush1.bf16.xpose.msra.mxu0 0
    %409 = vmatprep.subr.bf16.mxu0 0
    %410 = vmatpush1.bf16.xpose.msra.mxu0 0
    %411 = vmatprep.subr.bf16.mxu0 0
    %412 = vmatpush1.bf16.xpose.msra.mxu0 0
    %413 = vmatprep.subr.bf16.mxu0 0
    %414 = vmatpush1.bf16.xpose.msra.mxu0 0
    %415 = vmatprep.subr.bf16.mxu0 0
    %416 = vmatpush1.bf16.xpose.msra.mxu0 0
    %417 = vmatprep.subr.bf16.mxu0 0
    %418 = vmatpush1.bf16.xpose.msra.mxu0 0
    %419 = vmatprep.subr.bf16.mxu0 0
    %420 = vmatpush1.bf16.xpose.msra.mxu0 0
    %421 = vmatprep.subr.bf16.mxu0 0
    %422 = vmatpush1.bf16.xpose.msra.mxu0 0
    %423 = vmatprep.subr.bf16.mxu0 0
    %424 = vmatpush1.bf16.xpose.msra.mxu0 0
    %425 = vmatprep.subr.bf16.mxu0 0
    %426 = vmatpush1.bf16.xpose.msra.mxu0 0
    %427 = vmatprep.subr.bf16.mxu0 0
    %428 = vmatpush1.bf16.xpose.msra.mxu0 0
    %429 = vmatprep.subr.bf16.mxu0 0
    %430 = vmatpush1.bf16.xpose.msra.mxu0 0
    %431 = vmatprep.mubr.bf16.mxu0 0
    %432 = vmatmul.mubr.bf16.gmra.mrb[0].mxu0 %v394
    %v433 = vpop.f32.mrb[0].mxu0
    %v434 = vadd.f32 0.0, %v433
    %v435 = vpop.f32.mrb[0].mxu0
    %v436 = vpop.f32.mrb[0].mxu0
    %v437 = vpop.f32.mrb[0].mxu0
    %438 = vdwg.mxu0
    %v439 = vmul.f32 %v434, 0.35355338
    %v440 = vadd.f32 %v439, %v93
    %v441 = vsel %vm167, %v440, -inf
    %442 = vmax.xlane.f32.xlu0 %v441
    %v443 = vpop.xlane.xlu0 %442
    %v444 = vsub.f32 %v440, %v443
    %v445 = vmul.f32 %v444, 1.442695
    %v446 = vpow.pop %v445
    %v447 = vsel %vm167, %v446, 0.0
    %448 = vadd.xlane.f32.xlu0 %v447
    %v449 = vpop.xlane.xlu0 %448
    %v450 = vrcp.pop %v449
    %v451 = vmul.f32 %v446, %v450
    %v452 = vpack.c.bf16 %v451, %v451
    %453 = vrot.lane.b32.xlu0 %v163, 48
    %v454 = vpop.permute.xlu0 %453
    %v456 = vsel %vm167, %v452, 0
    %v459 = vsel %vm233, %v454, 0
    %461 = vmatprep.subr.bf16.mxu0 0
    %462 = vmatpush1.bf16.msra.mxu0 %v459
    %463 = vmatprep.subr.bf16.mxu0 0
    %464 = vmatpush1.bf16.msra.mxu0 0
    %465 = vmatprep.subr.bf16.mxu0 0
    %466 = vmatpush1.bf16.msra.mxu0 0
    %467 = vmatprep.subr.bf16.mxu0 0
    %468 = vmatpush1.bf16.msra.mxu0 0
    %469 = vmatprep.subr.bf16.mxu0 0
    %470 = vmatpush1.bf16.msra.mxu0 0
    %471 = vmatprep.subr.bf16.mxu0 0
    %472 = vmatpush1.bf16.msra.mxu0 0
    %473 = vmatprep.subr.bf16.mxu0 0
    %474 = vmatpush1.bf16.msra.mxu0 0
    %475 = vmatprep.subr.bf16.mxu0 0
    %476 = vmatpush1.bf16.msra.mxu0 0
    %477 = vmatprep.subr.bf16.mxu0 0
    %478 = vmatpush1.bf16.msra.mxu0 0
    %479 = vmatprep.subr.bf16.mxu0 0
    %480 = vmatpush1.bf16.msra.mxu0 0
    %481 = vmatprep.subr.bf16.mxu0 0
    %482 = vmatpush1.bf16.msra.mxu0 0
    %483 = vmatprep.subr.bf16.mxu0 0
    %484 = vmatpush1.bf16.msra.mxu0 0
    %485 = vmatprep.subr.bf16.mxu0 0
    %486 = vmatpush1.bf16.msra.mxu0 0
    %487 = vmatprep.subr.bf16.mxu0 0
    %488 = vmatpush1.bf16.msra.mxu0 0
    %489 = vmatprep.subr.bf16.mxu0 0
    %490 = vmatpush1.bf16.msra.mxu0 0
    %491 = vmatprep.subr.bf16.mxu0 0
    %492 = vmatpush1.bf16.msra.mxu0 0
    %493 = vmatprep.mubr.bf16.mxu0 0
    %494 = vmatmul.mubr.bf16.gmra.mrb[0].mxu0 %v456
    %v495 = vpop.f32.mrb[0].mxu0
    %v496 = vadd.f32 0.0, %v495
    %v497 = vpop.f32.mrb[0].mxu0
    %v498 = vpop.f32.mrb[0].mxu0
    %v499 = vpop.f32.mrb[0].mxu0
    %500 = vdwg.mxu0
    %501 = vrot.lane.b32.xlu0 %v163, 104
    %v502 = vpop.permute.xlu0 %501
    %503 = vrot.lane.b32.xlu0 %v163, 72
    %v504 = vpop.permute.xlu0 %503
    %v506 = vsel %vm167, %v502, 0
    %v509 = vsel %vm167, %v504, 0
    %511 = vmatprep.subr.bf16.mxu0 0
    %512 = vmatpush1.bf16.xpose.msra.mxu0 %v509
    %513 = vmatprep.subr.bf16.mxu0 0
    %514 = vmatpush1.bf16.xpose.msra.mxu0 0
    %515 = vmatprep.subr.bf16.mxu0 0
    %516 = vmatpush1.bf16.xpose.msra.mxu0 0
    %517 = vmatprep.subr.bf16.mxu0 0
    %518 = vmatpush1.bf16.xpose.msra.mxu0 0
    %519 = vmatprep.subr.bf16.mxu0 0
    %520 = vmatpush1.bf16.xpose.msra.mxu0 0
    %521 = vmatprep.subr.bf16.mxu0 0
    %522 = vmatpush1.bf16.xpose.msra.mxu0 0
    %523 = vmatprep.subr.bf16.mxu0 0
    %524 = vmatpush1.bf16.xpose.msra.mxu0 0
    %525 = vmatprep.subr.bf16.mxu0 0
    %526 = vmatpush1.bf16.xpose.msra.mxu0 0
    %527 = vmatprep.subr.bf16.mxu0 0
    %528 = vmatpush1.bf16.xpose.msra.mxu0 0
    %529 = vmatprep.subr.bf16.mxu0 0
    %530 = vmatpush1.bf16.xpose.msra.mxu0 0
    %531 = vmatprep.subr.bf16.mxu0 0
    %532 = vmatpush1.bf16.xpose.msra.mxu0 0
    %533 = vmatprep.subr.bf16.mxu0 0
    %534 = vmatpush1.bf16.xpose.msra.mxu0 0
    %535 = vmatprep.subr.bf16.mxu0 0
    %536 = vmatpush1.bf16.xpose.msra.mxu0 0
    %537 = vmatprep.subr.bf16.mxu0 0
    %538 = vmatpush1.bf16.xpose.msra.mxu0 0
    %539 = vmatprep.subr.bf16.mxu0 0
    %540 = vmatpush1.bf16.xpose.msra.mxu0 0
    %541 = vmatprep.subr.bf16.mxu0 0
    %542 = vmatpush1.bf16.xpose.msra.mxu0 0
    %543 = vmatprep.mubr.bf16.mxu0 0
    %544 = vmatmul.mubr.bf16.gmra.mrb[0].mxu0 %v506
    %v545 = vpop.f32.mrb[0].mxu0
    %v546 = vadd.f32 0.0, %v545
    %v547 = vpop.f32.mrb[0].mxu0
    %v548 = vpop.f32.mrb[0].mxu0
    %v549 = vpop.f32.mrb[0].mxu0
    %550 = vdwg.mxu0
    %v551 = vmul.f32 %v546, 0.35355338
    %v552 = vadd.f32 %v551, %v93
    %v553 = vsel %vm167, %v552, -inf
    %554 = vmax.xlane.f32.xlu0 %v553
    %v555 = vpop.xlane.xlu0 %554
    %v556 = vsub.f32 %v552, %v555
    %v557 = vmul.f32 %v556, 1.442695
    %v558 = vpow.pop %v557
    %v559 = vsel %vm167, %v558, 0.0
    %560 = vadd.xlane.f32.xlu0 %v559
    %v561 = vpop.xlane.xlu0 %560
    %v562 = vrcp.pop %v561
    %v563 = vmul.f32 %v558, %v562
    %v564 = vpack.c.bf16 %v563, %v563
    %565 = vrot.lane.b32.xlu0 %v163, 40
    %v566 = vpop.permute.xlu0 %565
    %v568 = vsel %vm167, %v564, 0
    %v571 = vsel %vm233, %v566, 0
    %573 = vmatprep.subr.bf16.mxu0 0
    %574 = vmatpush1.bf16.msra.mxu0 %v571
    %575 = vmatprep.subr.bf16.mxu0 0
    %576 = vmatpush1.bf16.msra.mxu0 0
    %577 = vmatprep.subr.bf16.mxu0 0
    %578 = vmatpush1.bf16.msra.mxu0 0
    %579 = vmatprep.subr.bf16.mxu0 0
    %580 = vmatpush1.bf16.msra.mxu0 0
    %581 = vmatprep.subr.bf16.mxu0 0
    %582 = vmatpush1.bf16.msra.mxu0 0
    %583 = vmatprep.subr.bf16.mxu0 0
    %584 = vmatpush1.bf16.msra.mxu0 0
    %585 = vmatprep.subr.bf16.mxu0 0
    %586 = vmatpush1.bf16.msra.mxu0 0
    %587 = vmatprep.subr.bf16.mxu0 0
    %588 = vmatpush1.bf16.msra.mxu0 0
    %589 = vmatprep.subr.bf16.mxu0 0
    %590 = vmatpush1.bf16.msra.mxu0 0
    %591 = vmatprep.subr.bf16.mxu0 0
    %592 = vmatpush1.bf16.msra.mxu0 0
    %593 = vmatprep.subr.bf16.mxu0 0
    %594 = vmatpush1.bf16.msra.mxu0 0
    %595 = vmatprep.subr.bf16.mxu0 0
    %596 = vmatpush1.bf16.msra.mxu0 0
    %597 = vmatprep.subr.bf16.mxu0 0
    %598 = vmatpush1.bf16.msra.mxu0 0
    %599 = vmatprep.subr.bf16.mxu0 0
    %600 = vmatpush1.bf16.msra.mxu0 0
    %601 = vmatprep.subr.bf16.mxu0 0
    %602 = vmatpush1.bf16.msra.mxu0 0
    %603 = vmatprep.subr.bf16.mxu0 0
    %604 = vmatpush1.bf16.msra.mxu0 0
    %605 = vmatprep.mubr.bf16.mxu0 0
    %606 = vmatmul.mubr.bf16.gmra.mrb[0].mxu0 %v568
    %v607 = vpop.f32.mrb[0].mxu0
    %v608 = vadd.f32 0.0, %v607
    %v609 = vpop.f32.mrb[0].mxu0
    %v610 = vpop.f32.mrb[0].mxu0
    %v611 = vpop.f32.mrb[0].mxu0
    %612 = vdwg.mxu0
    %614 = vrot.lane.b32.xlu0 %v384, 8
    %v615 = vpop.permute.xlu0 %614
    %618 = vrot.lane.b32.xlu0 %v496, 16
    %v619 = vpop.permute.xlu0 %618
    %622 = vrot.lane.b32.xlu0 %v608, 24
    %v623 = vpop.permute.xlu0 %622
    %v625 = vsel %vm167, %v272, %v615
    %vm626 = vcmask 130048
    %v627 = vsel %vm626, %v625, %v619
    %vm628 = vcmask 195584
    %v629 = vsel %vm628, %v627, %v623
    %v630 = vpack.c.bf16 %v160, %v160
    %632 = vrot.lane.b32.xlu0 %v630, 96
    %v633 = vpop.permute.xlu0 %632
    %v635 = vsel %vm167, %v630, 0
    %v638 = vsel %vm167, %v633, 0
    %640 = vmatprep.subr.bf16.mxu0 0
    %641 = vmatpush1.bf16.xpose.msra.mxu0 %v638
    %642 = vmatprep.subr.bf16.mxu0 0
    %643 = vmatpush1.bf16.xpose.msra.mxu0 0
    %644 = vmatprep.subr.bf16.mxu0 0
    %645 = vmatpush1.bf16.xpose.msra.mxu0 0
    %646 = vmatprep.subr.bf16.mxu0 0
    %647 = vmatpush1.bf16.xpose.msra.mxu0 0
    %648 = vmatprep.subr.bf16.mxu0 0
    %649 = vmatpush1.bf16.xpose.msra.mxu0 0
    %650 = vmatprep.subr.bf16.mxu0 0
    %651 = vmatpush1.bf16.xpose.msra.mxu0 0
    %652 = vmatprep.subr.bf16.mxu0 0
    %653 = vmatpush1.bf16.xpose.msra.mxu0 0
    %654 = vmatprep.subr.bf16.mxu0 0
    %655 = vmatpush1.bf16.xpose.msra.mxu0 0
    %656 = vmatprep.subr.bf16.mxu0 0
    %657 = vmatpush1.bf16.xpose.msra.mxu0 0
    %658 = vmatprep.subr.bf16.mxu0 0
    %659 = vmatpush1.bf16.xpose.msra.mxu0 0
    %660 = vmatprep.subr.bf16.mxu0 0
    %661 = vmatpush1.bf16.xpose.msra.mxu0 0
    %662 = vmatprep.subr.bf16.mxu0 0
    %663 = vmatpush1.bf16.xpose.msra.mxu0 0
    %664 = vmatprep.subr.bf16.mxu0 0
    %665 = vmatpush1.bf16.xpose.msra.mxu0 0
    %666 = vmatprep.subr.bf16.mxu0 0
    %667 = vmatpush1.bf16.xpose.msra.mxu0 0
    %668 = vmatprep.subr.bf16.mxu0 0
    %669 = vmatpush1.bf16.xpose.msra.mxu0 0
    %670 = vmatprep.subr.bf16.mxu0 0
    %671 = vmatpush1.bf16.xpose.msra.mxu0 0
    %672 = vmatprep.mubr.bf16.mxu0 0
    %673 = vmatmul.mubr.bf16.gmra.mrb[0].mxu0 %v635
    %v674 = vpop.f32.mrb[0].mxu0
    %v675 = vadd.f32 0.0, %v674
    %v676 = vpop.f32.mrb[0].mxu0
    %v677 = vpop.f32.mrb[0].mxu0
    %v678 = vpop.f32.mrb[0].mxu0
    %679 = vdwg.mxu0
    %v680 = vmul.f32 %v675, 0.35355338
    %v681 = vadd.f32 %v680, %v93
    %v682 = vsel %vm167, %v681, -inf
    %683 = vmax.xlane.f32.xlu0 %v682
    %v684 = vpop.xlane.xlu0 %683
    %v685 = vsub.f32 %v681, %v684
    %v686 = vmul.f32 %v685, 1.442695
    %v687 = vpow.pop %v686
    %v688 = vsel %vm167, %v687, 0.0
    %689 = vadd.xlane.f32.xlu0 %v688
    %v690 = vpop.xlane.xlu0 %689
    %v691 = vrcp.pop %v690
    %v692 = vmul.f32 %v687, %v691
    %v693 = vpack.c.bf16 %v692, %v692
    %694 = vrot.lane.b32.xlu0 %v630, 64
    %v695 = vpop.permute.xlu0 %694
    %v697 = vsel %vm167, %v693, 0
    %v700 = vsel %vm233, %v695, 0
    %702 = vmatprep.subr.bf16.mxu0 0
    %703 = vmatpush1.bf16.msra.mxu0 %v700
    %704 = vmatprep.subr.bf16.mxu0 0
    %705 = vmatpush1.bf16.msra.mxu0 0
    %706 = vmatprep.subr.bf16.mxu0 0
    %707 = vmatpush1.bf16.msra.mxu0 0
    %708 = vmatprep.subr.bf16.mxu0 0
    %709 = vmatpush1.bf16.msra.mxu0 0
    %710 = vmatprep.subr.bf16.mxu0 0
    %711 = vmatpush1.bf16.msra.mxu0 0
    %712 = vmatprep.subr.bf16.mxu0 0
    %713 = vmatpush1.bf16.msra.mxu0 0
    %714 = vmatprep.subr.bf16.mxu0 0
    %715 = vmatpush1.bf16.msra.mxu0 0
    %716 = vmatprep.subr.bf16.mxu0 0
    %717 = vmatpush1.bf16.msra.mxu0 0
    %718 = vmatprep.subr.bf16.mxu0 0
    %719 = vmatpush1.bf16.msra.mxu0 0
    %720 = vmatprep.subr.bf16.mxu0 0
    %721 = vmatpush1.bf16.msra.mxu0 0
    %722 = vmatprep.subr.bf16.mxu0 0
    %723 = vmatpush1.bf16.msra.mxu0 0
    %724 = vmatprep.subr.bf16.mxu0 0
    %725 = vmatpush1.bf16.msra.mxu0 0
    %726 = vmatprep.subr.bf16.mxu0 0
    %727 = vmatpush1.bf16.msra.mxu0 0
    %728 = vmatprep.subr.bf16.mxu0 0
    %729 = vmatpush1.bf16.msra.mxu0 0
    %730 = vmatprep.subr.bf16.mxu0 0
    %731 = vmatpush1.bf16.msra.mxu0 0
    %732 = vmatprep.subr.bf16.mxu0 0
    %733 = vmatpush1.bf16.msra.mxu0 0
    %734 = vmatprep.mubr.bf16.mxu0 0
    %735 = vmatmul.mubr.bf16.gmra.mrb[0].mxu0 %v697
    %v736 = vpop.f32.mrb[0].mxu0
    %v737 = vadd.f32 0.0, %v736
    %v738 = vpop.f32.mrb[0].mxu0
    %v739 = vpop.f32.mrb[0].mxu0
    %v740 = vpop.f32.mrb[0].mxu0
    %741 = vdwg.mxu0
    %742 = vrot.lane.b32.xlu0 %v630, 120
    %v743 = vpop.permute.xlu0 %742
    %744 = vrot.lane.b32.xlu0 %v630, 88
    %v745 = vpop.permute.xlu0 %744
    %v747 = vsel %vm167, %v743, 0
    %v750 = vsel %vm167, %v745, 0
    %752 = vmatprep.subr.bf16.mxu0 0
    %753 = vmatpush1.bf16.xpose.msra.mxu0 %v750
    %754 = vmatprep.subr.bf16.mxu0 0
    %755 = vmatpush1.bf16.xpose.msra.mxu0 0
    %756 = vmatprep.subr.bf16.mxu0 0
    %757 = vmatpush1.bf16.xpose.msra.mxu0 0
    %758 = vmatprep.subr.bf16.mxu0 0
    %759 = vmatpush1.bf16.xpose.msra.mxu0 0
    %760 = vmatprep.subr.bf16.mxu0 0
    %761 = vmatpush1.bf16.xpose.msra.mxu0 0
    %762 = vmatprep.subr.bf16.mxu0 0
    %763 = vmatpush1.bf16.xpose.msra.mxu0 0
    %764 = vmatprep.subr.bf16.mxu0 0
    %765 = vmatpush1.bf16.xpose.msra.mxu0 0
    %766 = vmatprep.subr.bf16.mxu0 0
    %767 = vmatpush1.bf16.xpose.msra.mxu0 0
    %768 = vmatprep.subr.bf16.mxu0 0
    %769 = vmatpush1.bf16.xpose.msra.mxu0 0
    %770 = vmatprep.subr.bf16.mxu0 0
    %771 = vmatpush1.bf16.xpose.msra.mxu0 0
    %772 = vmatprep.subr.bf16.mxu0 0
    %773 = vmatpush1.bf16.xpose.msra.mxu0 0
    %774 = vmatprep.subr.bf16.mxu0 0
    %775 = vmatpush1.bf16.xpose.msra.mxu0 0
    %776 = vmatprep.subr.bf16.mxu0 0
    %777 = vmatpush1.bf16.xpose.msra.mxu0 0
    %778 = vmatprep.subr.bf16.mxu0 0
    %779 = vmatpush1.bf16.xpose.msra.mxu0 0
    %780 = vmatprep.subr.bf16.mxu0 0
    %781 = vmatpush1.bf16.xpose.msra.mxu0 0
    %782 = vmatprep.subr.bf16.mxu0 0
    %783 = vmatpush1.bf16.xpose.msra.mxu0 0
    %784 = vmatprep.mubr.bf16.mxu0 0
    %785 = vmatmul.mubr.bf16.gmra.mrb[0].mxu0 %v747
    %v786 = vpop.f32.mrb[0].mxu0
    %v787 = vadd.f32 0.0, %v786
    %v788 = vpop.f32.mrb[0].mxu0
    %v789 = vpop.f32.mrb[0].mxu0
    %v790 = vpop.f32.mrb[0].mxu0
    %791 = vdwg.mxu0
    %v792 = vmul.f32 %v787, 0.35355338
    %v793 = vadd.f32 %v792, %v93
    %v794 = vsel %vm167, %v793, -inf
    %795 = vmax.xlane.f32.xlu0 %v794
    %v796 = vpop.xlane.xlu0 %795
    %v797 = vsub.f32 %v793, %v796
    %v798 = vmul.f32 %v797, 1.442695
    %v799 = vpow.pop %v798
    %v800 = vsel %vm167, %v799, 0.0
    %801 = vadd.xlane.f32.xlu0 %v800
    %v802 = vpop.xlane.xlu0 %801
    %v803 = vrcp.pop %v802
    %v804 = vmul.f32 %v799, %v803
    %v805 = vpack.c.bf16 %v804, %v804
    %806 = vrot.lane.b32.xlu0 %v630, 56
    %v807 = vpop.permute.xlu0 %806
    %v809 = vsel %vm167, %v805, 0
    %v812 = vsel %vm233, %v807, 0
    %814 = vmatprep.subr.bf16.mxu0 0
    %815 = vmatpush1.bf16.msra.mxu0 %v812
    %816 = vmatprep.subr.bf16.mxu0 0
    %817 = vmatpush1.bf16.msra.mxu0 0
    %818 = vmatprep.subr.bf16.mxu0 0
    %819 = vmatpush1.bf16.msra.mxu0 0
    %820 = vmatprep.subr.bf16.mxu0 0
    %821 = vmatpush1.bf16.msra.mxu0 0
    %822 = vmatprep.subr.bf16.mxu0 0
    %823 = vmatpush1.bf16.msra.mxu0 0
    %824 = vmatprep.subr.bf16.mxu0 0
    %825 = vmatpush1.bf16.msra.mxu0 0
    %826 = vmatprep.subr.bf16.mxu0 0
    %827 = vmatpush1.bf16.msra.mxu0 0
    %828 = vmatprep.subr.bf16.mxu0 0
    %829 = vmatpush1.bf16.msra.mxu0 0
    %830 = vmatprep.subr.bf16.mxu0 0
    %831 = vmatpush1.bf16.msra.mxu0 0
    %832 = vmatprep.subr.bf16.mxu0 0
    %833 = vmatpush1.bf16.msra.mxu0 0
    %834 = vmatprep.subr.bf16.mxu0 0
    %835 = vmatpush1.bf16.msra.mxu0 0
    %836 = vmatprep.subr.bf16.mxu0 0
    %837 = vmatpush1.bf16.msra.mxu0 0
    %838 = vmatprep.subr.bf16.mxu0 0
    %839 = vmatpush1.bf16.msra.mxu0 0
    %840 = vmatprep.subr.bf16.mxu0 0
    %841 = vmatpush1.bf16.msra.mxu0 0
    %842 = vmatprep.subr.bf16.mxu0 0
    %843 = vmatpush1.bf16.msra.mxu0 0
    %844 = vmatprep.subr.bf16.mxu0 0
    %845 = vmatpush1.bf16.msra.mxu0 0
    %846 = vmatprep.mubr.bf16.mxu0 0
    %847 = vmatmul.mubr.bf16.gmra.mrb[0].mxu0 %v809
    %v848 = vpop.f32.mrb[0].mxu0
    %v849 = vadd.f32 0.0, %v848
    %v850 = vpop.f32.mrb[0].mxu0
    %v851 = vpop.f32.mrb[0].mxu0
    %v852 = vpop.f32.mrb[0].mxu0
    %853 = vdwg.mxu0
    %854 = vrot.lane.b32.xlu0 %v630, 112
    %v855 = vpop.permute.xlu0 %854
    %856 = vrot.lane.b32.xlu0 %v630, 80
    %v857 = vpop.permute.xlu0 %856
    %v859 = vsel %vm167, %v855, 0
    %v862 = vsel %vm167, %v857, 0
    %864 = vmatprep.subr.bf16.mxu0 0
    %865 = vmatpush1.bf16.xpose.msra.mxu0 %v862
    %866 = vmatprep.subr.bf16.mxu0 0
    %867 = vmatpush1.bf16.xpose.msra.mxu0 0
    %868 = vmatprep.subr.bf16.mxu0 0
    %869 = vmatpush1.bf16.xpose.msra.mxu0 0
    %870 = vmatprep.subr.bf16.mxu0 0
    %871 = vmatpush1.bf16.xpose.msra.mxu0 0
    %872 = vmatprep.subr.bf16.mxu0 0
    %873 = vmatpush1.bf16.xpose.msra.mxu0 0
    %874 = vmatprep.subr.bf16.mxu0 0
    %875 = vmatpush1.bf16.xpose.msra.mxu0 0
    %876 = vmatprep.subr.bf16.mxu0 0
    %877 = vmatpush1.bf16.xpose.msra.mxu0 0
    %878 = vmatprep.subr.bf16.mxu0 0
    %879 = vmatpush1.bf16.xpose.msra.mxu0 0
    %880 = vmatprep.subr.bf16.mxu0 0
    %881 = vmatpush1.bf16.xpose.msra.mxu0 0
    %882 = vmatprep.subr.bf16.mxu0 0
    %883 = vmatpush1.bf16.xpose.msra.mxu0 0
    %884 = vmatprep.subr.bf16.mxu0 0
    %885 = vmatpush1.bf16.xpose.msra.mxu0 0
    %886 = vmatprep.subr.bf16.mxu0 0
    %887 = vmatpush1.bf16.xpose.msra.mxu0 0
    %888 = vmatprep.subr.bf16.mxu0 0
    %889 = vmatpush1.bf16.xpose.msra.mxu0 0
    %890 = vmatprep.subr.bf16.mxu0 0
    %891 = vmatpush1.bf16.xpose.msra.mxu0 0
    %892 = vmatprep.subr.bf16.mxu0 0
    %893 = vmatpush1.bf16.xpose.msra.mxu0 0
    %894 = vmatprep.subr.bf16.mxu0 0
    %895 = vmatpush1.bf16.xpose.msra.mxu0 0
    %896 = vmatprep.mubr.bf16.mxu0 0
    %897 = vmatmul.mubr.bf16.gmra.mrb[0].mxu0 %v859
    %v898 = vpop.f32.mrb[0].mxu0
    %v899 = vadd.f32 0.0, %v898
    %v900 = vpop.f32.mrb[0].mxu0
    %v901 = vpop.f32.mrb[0].mxu0
    %v902 = vpop.f32.mrb[0].mxu0
    %903 = vdwg.mxu0
    %v904 = vmul.f32 %v899, 0.35355338
    %v905 = vadd.f32 %v904, %v93
    %v906 = vsel %vm167, %v905, -inf
    %907 = vmax.xlane.f32.xlu0 %v906
    %v908 = vpop.xlane.xlu0 %907
    %v909 = vsub.f32 %v905, %v908
    %v910 = vmul.f32 %v909, 1.442695
    %v911 = vpow.pop %v910
    %v912 = vsel %vm167, %v911, 0.0
    %913 = vadd.xlane.f32.xlu0 %v912
    %v914 = vpop.xlane.xlu0 %913
    %v915 = vrcp.pop %v914
    %v916 = vmul.f32 %v911, %v915
    %v917 = vpack.c.bf16 %v916, %v916
    %918 = vrot.lane.b32.xlu0 %v630, 48
    %v919 = vpop.permute.xlu0 %918
    %v921 = vsel %vm167, %v917, 0
    %v924 = vsel %vm233, %v919, 0
    %926 = vmatprep.subr.bf16.mxu0 0
    %927 = vmatpush1.bf16.msra.mxu0 %v924
    %928 = vmatprep.subr.bf16.mxu0 0
    %929 = vmatpush1.bf16.msra.mxu0 0
    %930 = vmatprep.subr.bf16.mxu0 0
    %931 = vmatpush1.bf16.msra.mxu0 0
    %932 = vmatprep.subr.bf16.mxu0 0
    %933 = vmatpush1.bf16.msra.mxu0 0
    %934 = vmatprep.subr.bf16.mxu0 0
    %935 = vmatpush1.bf16.msra.mxu0 0
    %936 = vmatprep.subr.bf16.mxu0 0
    %937 = vmatpush1.bf16.msra.mxu0 0
    %938 = vmatprep.subr.bf16.mxu0 0
    %939 = vmatpush1.bf16.msra.mxu0 0
    %940 = vmatprep.subr.bf16.mxu0 0
    %941 = vmatpush1.bf16.msra.mxu0 0
    %942 = vmatprep.subr.bf16.mxu0 0
    %943 = vmatpush1.bf16.msra.mxu0 0
    %944 = vmatprep.subr.bf16.mxu0 0
    %945 = vmatpush1.bf16.msra.mxu0 0
    %946 = vmatprep.subr.bf16.mxu0 0
    %947 = vmatpush1.bf16.msra.mxu0 0
    %948 = vmatprep.subr.bf16.mxu0 0
    %949 = vmatpush1.bf16.msra.mxu0 0
    %950 = vmatprep.subr.bf16.mxu0 0
    %951 = vmatpush1.bf16.msra.mxu0 0
    %952 = vmatprep.subr.bf16.mxu0 0
    %953 = vmatpush1.bf16.msra.mxu0 0
    %954 = vmatprep.subr.bf16.mxu0 0
    %955 = vmatpush1.bf16.msra.mxu0 0
    %956 = vmatprep.subr.bf16.mxu0 0
    %957 = vmatpush1.bf16.msra.mxu0 0
    %958 = vmatprep.mubr.bf16.mxu0 0
    %959 = vmatmul.mubr.bf16.gmra.mrb[0].mxu0 %v921
    %v960 = vpop.f32.mrb[0].mxu0
    %v961 = vadd.f32 0.0, %v960
    %v962 = vpop.f32.mrb[0].mxu0
    %v963 = vpop.f32.mrb[0].mxu0
    %v964 = vpop.f32.mrb[0].mxu0
    %965 = vdwg.mxu0
    %966 = vrot.lane.b32.xlu0 %v630, 104
    %v967 = vpop.permute.xlu0 %966
    %968 = vrot.lane.b32.xlu0 %v630, 72
    %v969 = vpop.permute.xlu0 %968
    %v971 = vsel %vm167, %v967, 0
    %v974 = vsel %vm167, %v969, 0
    %976 = vmatprep.subr.bf16.mxu0 0
    %977 = vmatpush1.bf16.xpose.msra.mxu0 %v974
    %978 = vmatprep.subr.bf16.mxu0 0
    %979 = vmatpush1.bf16.xpose.msra.mxu0 0
    %980 = vmatprep.subr.bf16.mxu0 0
    %981 = vmatpush1.bf16.xpose.msra.mxu0 0
    %982 = vmatprep.subr.bf16.mxu0 0
    %983 = vmatpush1.bf16.xpose.msra.mxu0 0
    %984 = vmatprep.subr.bf16.mxu0 0
    %985 = vmatpush1.bf16.xpose.msra.mxu0 0
    %986 = vmatprep.subr.bf16.mxu0 0
    %987 = vmatpush1.bf16.xpose.msra.mxu0 0
    %988 = vmatprep.subr.bf16.mxu0 0
    %989 = vmatpush1.bf16.xpose.msra.mxu0 0
    %990 = vmatprep.subr.bf16.mxu0 0
    %991 = vmatpush1.bf16.xpose.msra.mxu0 0
    %992 = vmatprep.subr.bf16.mxu0 0
    %993 = vmatpush1.bf16.xpose.msra.mxu0 0
    %994 = vmatprep.subr.bf16.mxu0 0
    %995 = vmatpush1.bf16.xpose.msra.mxu0 0
    %996 = vmatprep.subr.bf16.mxu0 0
    %997 = vmatpush1.bf16.xpose.msra.mxu0 0
    %998 = vmatprep.subr.bf16.mxu0 0
    %999 = vmatpush1.bf16.xpose.msra.mxu0 0
    %1000 = vmatprep.subr.bf16.mxu0 0
    %1001 = vmatpush1.bf16.xpose.msra.mxu0 0
    %1002 = vmatprep.subr.bf16.mxu0 0
    %1003 = vmatpush1.bf16.xpose.msra.mxu0 0
    %1004 = vmatprep.subr.bf16.mxu0 0
    %1005 = vmatpush1.bf16.xpose.msra.mxu0 0
    %1006 = vmatprep.subr.bf16.mxu0 0
    %1007 = vmatpush1.bf16.xpose.msra.mxu0 0
    %1008 = vmatprep.mubr.bf16.mxu0 0
    %1009 = vmatmul.mubr.bf16.gmra.mrb[0].mxu0 %v971
    %v1010 = vpop.f32.mrb[0].mxu0
    %v1011 = vadd.f32 0.0, %v1010
    %v1012 = vpop.f32.mrb[0].mxu0
    %v1013 = vpop.f32.mrb[0].mxu0
    %v1014 = vpop.f32.mrb[0].mxu0
    %1015 = vdwg.mxu0
    %v1016 = vmul.f32 %v1011, 0.35355338
    %v1017 = vadd.f32 %v1016, %v93
    %v1018 = vsel %vm167, %v1017, -inf
    %1019 = vmax.xlane.f32.xlu0 %v1018
    %v1020 = vpop.xlane.xlu0 %1019
    %v1021 = vsub.f32 %v1017, %v1020
    %v1022 = vmul.f32 %v1021, 1.442695
    %v1023 = vpow.pop %v1022
    %v1024 = vsel %vm167, %v1023, 0.0
    %1025 = vadd.xlane.f32.xlu0 %v1024
    %v1026 = vpop.xlane.xlu0 %1025
    %v1027 = vrcp.pop %v1026
    %v1028 = vmul.f32 %v1023, %v1027
    %v1029 = vpack.c.bf16 %v1028, %v1028
    %1030 = vrot.lane.b32.xlu0 %v630, 40
    %v1031 = vpop.permute.xlu0 %1030
    %v1033 = vsel %vm167, %v1029, 0
    %v1036 = vsel %vm233, %v1031, 0
    %1038 = vmatprep.subr.bf16.mxu0 0
    %1039 = vmatpush1.bf16.msra.mxu0 %v1036
    %1040 = vmatprep.subr.bf16.mxu0 0
    %1041 = vmatpush1.bf16.msra.mxu0 0
    %1042 = vmatprep.subr.bf16.mxu0 0
    %1043 = vmatpush1.bf16.msra.mxu0 0
    %1044 = vmatprep.subr.bf16.mxu0 0
    %1045 = vmatpush1.bf16.msra.mxu0 0
    %1046 = vmatprep.subr.bf16.mxu0 0
    %1047 = vmatpush1.bf16.msra.mxu0 0
    %1048 = vmatprep.subr.bf16.mxu0 0
    %1049 = vmatpush1.bf16.msra.mxu0 0
    %1050 = vmatprep.subr.bf16.mxu0 0
    %1051 = vmatpush1.bf16.msra.mxu0 0
    %1052 = vmatprep.subr.bf16.mxu0 0
    %1053 = vmatpush1.bf16.msra.mxu0 0
    %1054 = vmatprep.subr.bf16.mxu0 0
    %1055 = vmatpush1.bf16.msra.mxu0 0
    %1056 = vmatprep.subr.bf16.mxu0 0
    %1057 = vmatpush1.bf16.msra.mxu0 0
    %1058 = vmatprep.subr.bf16.mxu0 0
    %1059 = vmatpush1.bf16.msra.mxu0 0
    %1060 = vmatprep.subr.bf16.mxu0 0
    %1061 = vmatpush1.bf16.msra.mxu0 0
    %1062 = vmatprep.subr.bf16.mxu0 0
    %1063 = vmatpush1.bf16.msra.mxu0 0
    %1064 = vmatprep.subr.bf16.mxu0 0
    %1065 = vmatpush1.bf16.msra.mxu0 0
    %1066 = vmatprep.subr.bf16.mxu0 0
    %1067 = vmatpush1.bf16.msra.mxu0 0
    %1068 = vmatprep.subr.bf16.mxu0 0
    %1069 = vmatpush1.bf16.msra.mxu0 0
    %1070 = vmatprep.mubr.bf16.mxu0 0
    %1071 = vmatmul.mubr.bf16.gmra.mrb[0].mxu0 %v1033
    %v1072 = vpop.f32.mrb[0].mxu0
    %v1073 = vadd.f32 0.0, %v1072
    %v1074 = vpop.f32.mrb[0].mxu0
    %v1075 = vpop.f32.mrb[0].mxu0
    %v1076 = vpop.f32.mrb[0].mxu0
    %1077 = vdwg.mxu0
    %1079 = vrot.lane.b32.xlu0 %v849, 8
    %v1080 = vpop.permute.xlu0 %1079
    %1083 = vrot.lane.b32.xlu0 %v961, 16
    %v1084 = vpop.permute.xlu0 %1083
    %1087 = vrot.lane.b32.xlu0 %v1073, 24
    %v1088 = vpop.permute.xlu0 %1087
    %v1090 = vsel %vm167, %v737, %v1080
    %v1091 = vsel %vm626, %v1090, %v1084
    %v1092 = vsel %vm628, %v1091, %v1088
    %v1093 = vpack.c.bf16 %v1092, %v629
    %v1094 = vld [vmem:[%s4] sm:$0xf]
    %v1095 = vld [vmem:[%s4 + $0x4] sm:$0xf]
    %v1096 = vld [vmem:[%s4 + $0x8] sm:$0xf]
    %v1097 = vld [vmem:[%s4 + $0xc] sm:$0xf]
    %v1098 = vld [vmem:[%s5] sm:$0x1]
    %v1100 = vlaneseq
    %v1101 = vshrl.u32 %v1100, 7
    %v1102 = vsub.s32 0, %v1101
    %v1103 = vrot.slane %v1098, %v1102
    %v1109 = vunpack.c.l.b16 %v1094
    %v1110 = vunpack.c.l.b16 %v1095
    %v1111 = vunpack.c.l.b16 %v1096
    %v1112 = vunpack.c.l.b16 %v1097
    %v1113 = vpack.c.b16 %v1110, %v1109
    %v1114 = vpack.c.b16 %v1112, %v1111
    %v1118 = vsel %vm118, %v1093, 0
    %1120 = vmatprep.subr.bf16.mxu0 0
    %1121 = vmatpush1.bf16.msra.mxu0 %v1113
    %1122 = vmatprep.subr.bf16.mxu0 0
    %1123 = vmatpush1.bf16.msra.mxu0 %v1114
    %1124 = vmatprep.subr.bf16.mxu0 0
    %1125 = vmatpush1.bf16.msra.mxu0 0
    %1126 = vmatprep.subr.bf16.mxu0 0
    %1127 = vmatpush1.bf16.msra.mxu0 0
    %1128 = vmatprep.subr.bf16.mxu0 0
    %1129 = vmatpush1.bf16.msra.mxu0 0
    %1130 = vmatprep.subr.bf16.mxu0 0
    %1131 = vmatpush1.bf16.msra.mxu0 0
    %1132 = vmatprep.subr.bf16.mxu0 0
    %1133 = vmatpush1.bf16.msra.mxu0 0
    %1134 = vmatprep.subr.bf16.mxu0 0
    %1135 = vmatpush1.bf16.msra.mxu0 0
    %1136 = vmatprep.subr.bf16.mxu0 0
    %1137 = vmatpush1.bf16.msra.mxu0 0
    %1138 = vmatprep.subr.bf16.mxu0 0
    %1139 = vmatpush1.bf16.msra.mxu0 0
    %1140 = vmatprep.subr.bf16.mxu0 0
    %1141 = vmatpush1.bf16.msra.mxu0 0
    %1142 = vmatprep.subr.bf16.mxu0 0
    %1143 = vmatpush1.bf16.msra.mxu0 0
    %1144 = vmatprep.subr.bf16.mxu0 0
    %1145 = vmatpush1.bf16.msra.mxu0 0
    %1146 = vmatprep.subr.bf16.mxu0 0
    %1147 = vmatpush1.bf16.msra.mxu0 0
    %1148 = vmatprep.subr.bf16.mxu0 0
    %1149 = vmatpush1.bf16.msra.mxu0 0
    %1150 = vmatprep.subr.bf16.mxu0 0
    %1151 = vmatpush1.bf16.msra.mxu0 0
    %1152 = vmatprep.mubr.bf16.mxu0 0
    %1153 = vmatmul.mubr.bf16.gmra.mrb[0].mxu0 %v1118
    %v1154 = vpop.f32.mrb[0].mxu0
    %v1155 = vadd.f32 %v1103, %v1154
    %v1156 = vpop.f32.mrb[0].mxu0
    %v1157 = vpop.f32.mrb[0].mxu0
    %v1158 = vadd.f32 %v1103, %v1157
    %v1159 = vpop.f32.mrb[0].mxu0
    %1160 = vdwg.mxu0
    %v1161 = vadd.f32 %v84, %v1155
    %v1162 = vadd.f32 %v85, %v1158
    %v1163 = vsel %vm118, %v1161, 0.0
    %1164 = vadd.xlane.f32.xlu0 %v1163
    %v1165 = vpop.xlane.xlu0 %1164
    %v1166 = vsel %vm118, %v1162, 0.0
    %1167 = vadd.xlane.f32.xlu0 %v1166
    %v1168 = vpop.xlane.xlu0 %1167
    %v1169 = vrcp.pop 32.0
    %v1170 = vmul.f32 %v1165, %v1169
    %v1171 = vmul.f32 %v1168, %v1169
    %v1172 = vmul.f32 %v1161, %v1161
    %v1173 = vmul.f32 %v1162, %v1162
    %v1174 = vsel %vm118, %v1172, 0.0
    %1175 = vadd.xlane.f32.xlu0 %v1174
    %v1176 = vpop.xlane.xlu0 %1175
    %v1177 = vsel %vm118, %v1173, 0.0
    %1178 = vadd.xlane.f32.xlu0 %v1177
    %v1179 = vpop.xlane.xlu0 %1178
    %v1180 = vmul.f32 %v1176, %v1169
    %v1181 = vmul.f32 %v1179, %v1169
    %v1182 = vmul.f32 %v1170, %v1170
    %v1183 = vmul.f32 %v1171, %v1171
    %v1184 = vsub.f32 %v1180, %v1182
    %v1185 = vsub.f32 %v1181, %v1183
    %v1186 = vadd.f32 %v1184, 1e-05
    %v1187 = vadd.f32 %v1185, 1e-05
    %v1188 = vrsqrt.pop %v1186
    %v1189 = vrsqrt.pop %v1187
    %v1190 = vsub.f32 %v1161, %v1170
    %v1191 = vsub.f32 %v1162, %v1171
    %v1192 = vld [vmem:[%s6] sm:$0x1]
    %v1194 = vlaneseq
    %v1195 = vshrl.u32 %v1194, 7
    %v1196 = vsub.s32 0, %v1195
    %v1197 = vrot.slane %v1192, %v1196
    %v1199 = vmul.f32 %v1188, %v1197
    %v1200 = vmul.f32 %v1189, %v1197
    %v1201 = vmul.f32 %v1190, %v1199
    %v1202 = vmul.f32 %v1191, %v1200
    %v1203 = vld [vmem:[%s7] sm:$0x1]
    %v1205 = vlaneseq
    %v1206 = vshrl.u32 %v1205, 7
    %v1207 = vsub.s32 0, %v1206
    %v1208 = vrot.slane %v1203, %v1207
    %v1210 = vadd.f32 %v1201, %v1208
    %v1211 = vadd.f32 %v1202, %v1208
    %v1212 = vpack.c.bf16 %v1211, %v1210
    %v1213 = vld [vmem:[%s8] sm:$0xf]
    %v1214 = vld [vmem:[%s8 + $0x4] sm:$0xf]
    %v1215 = vld [vmem:[%s8 + $0x8] sm:$0xf]
    %v1216 = vld [vmem:[%s8 + $0xc] sm:$0xf]
    %v1217 = vld [vmem:[%s9] sm:$0x1]
    %v1219 = vlaneseq
    %v1220 = vshrl.u32 %v1219, 7
    %v1221 = vsub.s32 0, %v1220
    %v1222 = vrot.slane %v1217, %v1221
    %v1228 = vunpack.c.l.b16 %v1213
    %v1229 = vunpack.c.l.b16 %v1214
    %v1230 = vunpack.c.l.b16 %v1215
    %v1231 = vunpack.c.l.b16 %v1216
    %v1232 = vpack.c.b16 %v1229, %v1228
    %v1233 = vpack.c.b16 %v1231, %v1230
    %v1237 = vsel %vm118, %v1212, 0
    %1239 = vmatprep.subr.bf16.mxu0 0
    %1240 = vmatpush1.bf16.msra.mxu0 %v1232
    %1241 = vmatprep.subr.bf16.mxu0 0
    %1242 = vmatpush1.bf16.msra.mxu0 %v1233
    %1243 = vmatprep.subr.bf16.mxu0 0
    %1244 = vmatpush1.bf16.msra.mxu0 0
    %1245 = vmatprep.subr.bf16.mxu0 0
    %1246 = vmatpush1.bf16.msra.mxu0 0
    %1247 = vmatprep.subr.bf16.mxu0 0
    %1248 = vmatpush1.bf16.msra.mxu0 0
    %1249 = vmatprep.subr.bf16.mxu0 0
    %1250 = vmatpush1.bf16.msra.mxu0 0
    %1251 = vmatprep.subr.bf16.mxu0 0
    %1252 = vmatpush1.bf16.msra.mxu0 0
    %1253 = vmatprep.subr.bf16.mxu0 0
    %1254 = vmatpush1.bf16.msra.mxu0 0
    %1255 = vmatprep.subr.bf16.mxu0 0
    %1256 = vmatpush1.bf16.msra.mxu0 0
    %1257 = vmatprep.subr.bf16.mxu0 0
    %1258 = vmatpush1.bf16.msra.mxu0 0
    %1259 = vmatprep.subr.bf16.mxu0 0
    %1260 = vmatpush1.bf16.msra.mxu0 0
    %1261 = vmatprep.subr.bf16.mxu0 0
    %1262 = vmatpush1.bf16.msra.mxu0 0
    %1263 = vmatprep.subr.bf16.mxu0 0
    %1264 = vmatpush1.bf16.msra.mxu0 0
    %1265 = vmatprep.subr.bf16.mxu0 0
    %1266 = vmatpush1.bf16.msra.mxu0 0
    %1267 = vmatprep.subr.bf16.mxu0 0
    %1268 = vmatpush1.bf16.msra.mxu0 0
    %1269 = vmatprep.subr.bf16.mxu0 0
    %1270 = vmatpush1.bf16.msra.mxu0 0
    %1271 = vmatprep.mubr.bf16.mxu0 0
    %1272 = vmatmul.mubr.bf16.gmra.mrb[0].mxu0 %v1237
    %v1273 = vpop.f32.mrb[0].mxu0
    %v1274 = vadd.f32 %v1222, %v1273
    %v1275 = vpop.f32.mrb[0].mxu0
    %v1276 = vpop.f32.mrb[0].mxu0
    %v1277 = vadd.f32 %v1222, %v1276
    %v1278 = vpop.f32.mrb[0].mxu0
    %1279 = vdwg.mxu0
    %v1280 = vpack.c.bf16 %v87, %v86
    %v1281 = vld [vmem:[%s10] sm:$0xf]
    %v1282 = vld [vmem:[%s10 + $0x4] sm:$0xf]
    %v1283 = vld [vmem:[%s10 + $0x8] sm:$0xf]
    %v1284 = vld [vmem:[%s10 + $0xc] sm:$0xf]
    %v1285 = vld [vmem:[%s11] sm:$0x1]
    %v1287 = vlaneseq
    %v1288 = vshrl.u32 %v1287, 7
    %v1289 = vsub.s32 0, %v1288
    %v1290 = vrot.slane %v1285, %v1289
    %v1296 = vunpack.c.l.b16 %v1281
    %v1297 = vunpack.c.l.b16 %v1282
    %v1298 = vunpack.c.l.b16 %v1283
    %v1299 = vunpack.c.l.b16 %v1284
    %v1300 = vpack.c.b16 %v1297, %v1296
    %v1301 = vpack.c.b16 %v1299, %v1298
    %v1305 = vsel %vm118, %v1280, 0
    %1307 = vmatprep.subr.bf16.mxu0 0
    %1308 = vmatpush1.bf16.msra.mxu0 %v1300
    %1309 = vmatprep.subr.bf16.mxu0 0
    %1310 = vmatpush1.bf16.msra.mxu0 %v1301
    %1311 = vmatprep.subr.bf16.mxu0 0
    %1312 = vmatpush1.bf16.msra.mxu0 0
    %1313 = vmatprep.subr.bf16.mxu0 0
    %1314 = vmatpush1.bf16.msra.mxu0 0
    %1315 = vmatprep.subr.bf16.mxu0 0
    %1316 = vmatpush1.bf16.msra.mxu0 0
    %1317 = vmatprep.subr.bf16.mxu0 0
    %1318 = vmatpush1.bf16.msra.mxu0 0
    %1319 = vmatprep.subr.bf16.mxu0 0
    %1320 = vmatpush1.bf16.msra.mxu0 0
    %1321 = vmatprep.subr.bf16.mxu0 0
    %1322 = vmatpush1.bf16.msra.mxu0 0
    %1323 = vmatprep.subr.bf16.mxu0 0
    %1324 = vmatpush1.bf16.msra.mxu0 0
    %1325 = vmatprep.subr.bf16.mxu0 0
    %1326 = vmatpush1.bf16.msra.mxu0 0
    %1327 = vmatprep.subr.bf16.mxu0 0
    %1328 = vmatpush1.bf16.msra.mxu0 0
    %1329 = vmatprep.subr.bf16.mxu0 0
    %1330 = vmatpush1.bf16.msra.mxu0 0
    %1331 = vmatprep.subr.bf16.mxu0 0
    %1332 = vmatpush1.bf16.msra.mxu0 0
    %1333 = vmatprep.subr.bf16.mxu0 0
    %1334 = vmatpush1.bf16.msra.mxu0 0
    %1335 = vmatprep.subr.bf16.mxu0 0
    %1336 = vmatpush1.bf16.msra.mxu0 0
    %1337 = vmatprep.subr.bf16.mxu0 0
    %1338 = vmatpush1.bf16.msra.mxu0 0
    %1339 = vmatprep.mubr.bf16.mxu0 0
    %1340 = vmatmul.mubr.bf16.gmra.mrb[0].mxu0 %v1305
    %v1341 = vpop.f32.mrb[0].mxu0
    %v1342 = vadd.f32 %v1290, %v1341
    %v1343 = vpop.f32.mrb[0].mxu0
    %v1344 = vpop.f32.mrb[0].mxu0
    %v1345 = vadd.f32 %v1290, %v1344
    %v1346 = vpop.f32.mrb[0].mxu0
    %1347 = vdwg.mxu0
    %v1348 = vpack.c.bf16 %v1274, %v1274
    %v1349 = vpack.c.bf16 %v1342, %v1342
    %v1351 = vsel %vm167, %v1348, 0
    %v1354 = vsel %vm167, %v1349, 0
    %1356 = vmatprep.subr.bf16.mxu0 0
    %1357 = vmatpush1.bf16.xpose.msra.mxu0 %v1354
    %1358 = vmatprep.subr.bf16.mxu0 0
    %1359 = vmatpush1.bf16.xpose.msra.mxu0 0
    %1360 = vmatprep.subr.bf16.mxu0 0
    %1361 = vmatpush1.bf16.xpose.msra.mxu0 0
    %1362 = vmatprep.subr.bf16.mxu0 0
    %1363 = vmatpush1.bf16.xpose.msra.mxu0 0
    %1364 = vmatprep.subr.bf16.mxu0 0
    %1365 = vmatpush1.bf16.xpose.msra.mxu0 0
    %1366 = vmatprep.subr.bf16.mxu0 0
    %1367 = vmatpush1.bf16.xpose.msra.mxu0 0
    %1368 = vmatprep.subr.bf16.mxu0 0
    %1369 = vmatpush1.bf16.xpose.msra.mxu0 0
    %1370 = vmatprep.subr.bf16.mxu0 0
    %1371 = vmatpush1.bf16.xpose.msra.mxu0 0
    %1372 = vmatprep.subr.bf16.mxu0 0
    %1373 = vmatpush1.bf16.xpose.msra.mxu0 0
    %1374 = vmatprep.subr.bf16.mxu0 0
    %1375 = vmatpush1.bf16.xpose.msra.mxu0 0
    %1376 = vmatprep.subr.bf16.mxu0 0
    %1377 = vmatpush1.bf16.xpose.msra.mxu0 0
    %1378 = vmatprep.subr.bf16.mxu0 0
    %1379 = vmatpush1.bf16.xpose.msra.mxu0 0
    %1380 = vmatprep.subr.bf16.mxu0 0
    %1381 = vmatpush1.bf16.xpose.msra.mxu0 0
    %1382 = vmatprep.subr.bf16.mxu0 0
    %1383 = vmatpush1.bf16.xpose.msra.mxu0 0
    %1384 = vmatprep.subr.bf16.mxu0 0
    %1385 = vmatpush1.bf16.xpose.msra.mxu0 0
    %1386 = vmatprep.subr.bf16.mxu0 0
    %1387 = vmatpush1.bf16.xpose.msra.mxu0 0
    %1388 = vmatprep.mubr.bf16.mxu0 0
    %1389 = vmatmul.mubr.bf16.gmra.mrb[0].mxu0 %v1351
    %v1390 = vpop.f32.mrb[0].mxu0
    %v1391 = vadd.f32 0.0, %v1390
    %v1392 = vpop.f32.mrb[0].mxu0
    %v1393 = vpop.f32.mrb[0].mxu0
    %v1394 = vpop.f32.mrb[0].mxu0
    %1395 = vdwg.mxu0
    %v1396 = vmul.f32 %v1391, 0.35355338
    %v1397 = vsel %vm167, %v1396, -inf
    %1398 = vmax.xlane.f32.xlu0 %v1397
    %v1399 = vpop.xlane.xlu0 %1398
    %v1400 = vsub.f32 %v1396, %v1399
    %v1401 = vmul.f32 %v1400, 1.442695
    %v1402 = vpow.pop %v1401
    %v1403 = vsel %vm167, %v1402, 0.0
    %1404 = vadd.xlane.f32.xlu0 %v1403
    %v1405 = vpop.xlane.xlu0 %1404
    %v1406 = vrcp.pop %v1405
    %v1407 = vmul.f32 %v1402, %v1406
    %v1408 = vpack.c.bf16 %v1407, %v1407
    %1410 = vrot.lane.b32.xlu0 %v1349, 96
    %v1411 = vpop.permute.xlu0 %1410
    %v1413 = vsel %vm167, %v1408, 0
    %v1416 = vsel %vm233, %v1411, 0
    %1418 = vmatprep.subr.bf16.mxu0 0
    %1419 = vmatpush1.bf16.msra.mxu0 %v1416
    %1420 = vmatprep.subr.bf16.mxu0 0
    %1421 = vmatpush1.bf16.msra.mxu0 0
    %1422 = vmatprep.subr.bf16.mxu0 0
    %1423 = vmatpush1.bf16.msra.mxu0 0
    %1424 = vmatprep.subr.bf16.mxu0 0
    %1425 = vmatpush1.bf16.msra.mxu0 0
    %1426 = vmatprep.subr.bf16.mxu0 0
    %1427 = vmatpush1.bf16.msra.mxu0 0
    %1428 = vmatprep.subr.bf16.mxu0 0
    %1429 = vmatpush1.bf16.msra.mxu0 0
    %1430 = vmatprep.subr.bf16.mxu0 0
    %1431 = vmatpush1.bf16.msra.mxu0 0
    %1432 = vmatprep.subr.bf16.mxu0 0
    %1433 = vmatpush1.bf16.msra.mxu0 0
    %1434 = vmatprep.subr.bf16.mxu0 0
    %1435 = vmatpush1.bf16.msra.mxu0 0
    %1436 = vmatprep.subr.bf16.mxu0 0
    %1437 = vmatpush1.bf16.msra.mxu0 0
    %1438 = vmatprep.subr.bf16.mxu0 0
    %1439 = vmatpush1.bf16.msra.mxu0 0
    %1440 = vmatprep.subr.bf16.mxu0 0
    %1441 = vmatpush1.bf16.msra.mxu0 0
    %1442 = vmatprep.subr.bf16.mxu0 0
    %1443 = vmatpush1.bf16.msra.mxu0 0
    %1444 = vmatprep.subr.bf16.mxu0 0
    %1445 = vmatpush1.bf16.msra.mxu0 0
    %1446 = vmatprep.subr.bf16.mxu0 0
    %1447 = vmatpush1.bf16.msra.mxu0 0
    %1448 = vmatprep.subr.bf16.mxu0 0
    %1449 = vmatpush1.bf16.msra.mxu0 0
    %1450 = vmatprep.mubr.bf16.mxu0 0
    %1451 = vmatmul.mubr.bf16.gmra.mrb[0].mxu0 %v1413
    %v1452 = vpop.f32.mrb[0].mxu0
    %v1453 = vadd.f32 0.0, %v1452
    %v1454 = vpop.f32.mrb[0].mxu0
    %v1455 = vpop.f32.mrb[0].mxu0
    %v1456 = vpop.f32.mrb[0].mxu0
    %1457 = vdwg.mxu0
    %1459 = vrot.lane.b32.xlu0 %v1348, 120
    %v1460 = vpop.permute.xlu0 %1459
    %1461 = vrot.lane.b32.xlu0 %v1349, 120
    %v1462 = vpop.permute.xlu0 %1461
    %v1464 = vsel %vm167, %v1460, 0
    %v1467 = vsel %vm167, %v1462, 0
    %1469 = vmatprep.subr.bf16.mxu0 0
    %1470 = vmatpush1.bf16.xpose.msra.mxu0 %v1467
    %1471 = vmatprep.subr.bf16.mxu0 0
    %1472 = vmatpush1.bf16.xpose.msra.mxu0 0
    %1473 = vmatprep.subr.bf16.mxu0 0
    %1474 = vmatpush1.bf16.xpose.msra.mxu0 0
    %1475 = vmatprep.subr.bf16.mxu0 0
    %1476 = vmatpush1.bf16.xpose.msra.mxu0 0
    %1477 = vmatprep.subr.bf16.mxu0 0
    %1478 = vmatpush1.bf16.xpose.msra.mxu0 0
    %1479 = vmatprep.subr.bf16.mxu0 0
    %1480 = vmatpush1.bf16.xpose.msra.mxu0 0
    %1481 = vmatprep.subr.bf16.mxu0 0
    %1482 = vmatpush1.bf16.xpose.msra.mxu0 0
    %1483 = vmatprep.subr.bf16.mxu0 0
    %1484 = vmatpush1.bf16.xpose.msra.mxu0 0
    %1485 = vmatprep.subr.bf16.mxu0 0
    %1486 = vmatpush1.bf16.xpose.msra.mxu0 0
    %1487 = vmatprep.subr.bf16.mxu0 0
    %1488 = vmatpush1.bf16.xpose.msra.mxu0 0
    %1489 = vmatprep.subr.bf16.mxu0 0
    %1490 = vmatpush1.bf16.xpose.msra.mxu0 0
    %1491 = vmatprep.subr.bf16.mxu0 0
    %1492 = vmatpush1.bf16.xpose.msra.mxu0 0
    %1493 = vmatprep.subr.bf16.mxu0 0
    %1494 = vmatpush1.bf16.xpose.msra.mxu0 0
    %1495 = vmatprep.subr.bf16.mxu0 0
    %1496 = vmatpush1.bf16.xpose.msra.mxu0 0
    %1497 = vmatprep.subr.bf16.mxu0 0
    %1498 = vmatpush1.bf16.xpose.msra.mxu0 0
    %1499 = vmatprep.subr.bf16.mxu0 0
    %1500 = vmatpush1.bf16.xpose.msra.mxu0 0
    %1501 = vmatprep.mubr.bf16.mxu0 0
    %1502 = vmatmul.mubr.bf16.gmra.mrb[0].mxu0 %v1464
    %v1503 = vpop.f32.mrb[0].mxu0
    %v1504 = vadd.f32 0.0, %v1503
    %v1505 = vpop.f32.mrb[0].mxu0
    %v1506 = vpop.f32.mrb[0].mxu0
    %v1507 = vpop.f32.mrb[0].mxu0
    %1508 = vdwg.mxu0
    %v1509 = vmul.f32 %v1504, 0.35355338
    %v1510 = vsel %vm167, %v1509, -inf
    %1511 = vmax.xlane.f32.xlu0 %v1510
    %v1512 = vpop.xlane.xlu0 %1511
    %v1513 = vsub.f32 %v1509, %v1512
    %v1514 = vmul.f32 %v1513, 1.442695
    %v1515 = vpow.pop %v1514
    %v1516 = vsel %vm167, %v1515, 0.0
    %1517 = vadd.xlane.f32.xlu0 %v1516
    %v1518 = vpop.xlane.xlu0 %1517
    %v1519 = vrcp.pop %v1518
    %v1520 = vmul.f32 %v1515, %v1519
    %v1521 = vpack.c.bf16 %v1520, %v1520
    %1522 = vrot.lane.b32.xlu0 %v1349, 88
    %v1523 = vpop.permute.xlu0 %1522
    %v1525 = vsel %vm167, %v1521, 0
    %v1528 = vsel %vm233, %v1523, 0
    %1530 = vmatprep.subr.bf16.mxu0 0
    %1531 = vmatpush1.bf16.msra.mxu0 %v1528
    %1532 = vmatprep.subr.bf16.mxu0 0
    %1533 = vmatpush1.bf16.msra.mxu0 0
    %1534 = vmatprep.subr.bf16.mxu0 0
    %1535 = vmatpush1.bf16.msra.mxu0 0
    %1536 = vmatprep.subr.bf16.mxu0 0
    %1537 = vmatpush1.bf16.msra.mxu0 0
    %1538 = vmatprep.subr.bf16.mxu0 0
    %1539 = vmatpush1.bf16.msra.mxu0 0
    %1540 = vmatprep.subr.bf16.mxu0 0
    %1541 = vmatpush1.bf16.msra.mxu0 0
    %1542 = vmatprep.subr.bf16.mxu0 0
    %1543 = vmatpush1.bf16.msra.mxu0 0
    %1544 = vmatprep.subr.bf16.mxu0 0
    %1545 = vmatpush1.bf16.msra.mxu0 0
    %1546 = vmatprep.subr.bf16.mxu0 0
    %1547 = vmatpush1.bf16.msra.mxu0 0
    %1548 = vmatprep.subr.bf16.mxu0 0
    %1549 = vmatpush1.bf16.msra.mxu0 0
    %1550 = vmatprep.subr.bf16.mxu0 0
    %1551 = vmatpush1.bf16.msra.mxu0 0
    %1552 = vmatprep.subr.bf16.mxu0 0
    %1553 = vmatpush1.bf16.msra.mxu0 0
    %1554 = vmatprep.subr.bf16.mxu0 0
    %1555 = vmatpush1.bf16.msra.mxu0 0
    %1556 = vmatprep.subr.bf16.mxu0 0
    %1557 = vmatpush1.bf16.msra.mxu0 0
    %1558 = vmatprep.subr.bf16.mxu0 0
    %1559 = vmatpush1.bf16.msra.mxu0 0
    %1560 = vmatprep.subr.bf16.mxu0 0
    %1561 = vmatpush1.bf16.msra.mxu0 0
    %1562 = vmatprep.mubr.bf16.mxu0 0
    %1563 = vmatmul.mubr.bf16.gmra.mrb[0].mxu0 %v1525
    %v1564 = vpop.f32.mrb[0].mxu0
    %v1565 = vadd.f32 0.0, %v1564
    %v1566 = vpop.f32.mrb[0].mxu0
    %v1567 = vpop.f32.mrb[0].mxu0
    %v1568 = vpop.f32.mrb[0].mxu0
    %1569 = vdwg.mxu0
    %1570 = vrot.lane.b32.xlu0 %v1348, 112
    %v1571 = vpop.permute.xlu0 %1570
    %1572 = vrot.lane.b32.xlu0 %v1349, 112
    %v1573 = vpop.permute.xlu0 %1572
    %v1575 = vsel %vm167, %v1571, 0
    %v1578 = vsel %vm167, %v1573, 0
    %1580 = vmatprep.subr.bf16.mxu0 0
    %1581 = vmatpush1.bf16.xpose.msra.mxu0 %v1578
    %1582 = vmatprep.subr.bf16.mxu0 0
    %1583 = vmatpush1.bf16.xpose.msra.mxu0 0
    %1584 = vmatprep.subr.bf16.mxu0 0
    %1585 = vmatpush1.bf16.xpose.msra.mxu0 0
    %1586 = vmatprep.subr.bf16.mxu0 0
    %1587 = vmatpush1.bf16.xpose.msra.mxu0 0
    %1588 = vmatprep.subr.bf16.mxu0 0
    %1589 = vmatpush1.bf16.xpose.msra.mxu0 0
    %1590 = vmatprep.subr.bf16.mxu0 0
    %1591 = vmatpush1.bf16.xpose.msra.mxu0 0
    %1592 = vmatprep.subr.bf16.mxu0 0
    %1593 = vmatpush1.bf16.xpose.msra.mxu0 0
    %1594 = vmatprep.subr.bf16.mxu0 0
    %1595 = vmatpush1.bf16.xpose.msra.mxu0 0
    %1596 = vmatprep.subr.bf16.mxu0 0
    %1597 = vmatpush1.bf16.xpose.msra.mxu0 0
    %1598 = vmatprep.subr.bf16.mxu0 0
    %1599 = vmatpush1.bf16.xpose.msra.mxu0 0
    %1600 = vmatprep.subr.bf16.mxu0 0
    %1601 = vmatpush1.bf16.xpose.msra.mxu0 0
    %1602 = vmatprep.subr.bf16.mxu0 0
    %1603 = vmatpush1.bf16.xpose.msra.mxu0 0
    %1604 = vmatprep.subr.bf16.mxu0 0
    %1605 = vmatpush1.bf16.xpose.msra.mxu0 0
    %1606 = vmatprep.subr.bf16.mxu0 0
    %1607 = vmatpush1.bf16.xpose.msra.mxu0 0
    %1608 = vmatprep.subr.bf16.mxu0 0
    %1609 = vmatpush1.bf16.xpose.msra.mxu0 0
    %1610 = vmatprep.subr.bf16.mxu0 0
    %1611 = vmatpush1.bf16.xpose.msra.mxu0 0
    %1612 = vmatprep.mubr.bf16.mxu0 0
    %1613 = vmatmul.mubr.bf16.gmra.mrb[0].mxu0 %v1575
    %v1614 = vpop.f32.mrb[0].mxu0
    %v1615 = vadd.f32 0.0, %v1614
    %v1616 = vpop.f32.mrb[0].mxu0
    %v1617 = vpop.f32.mrb[0].mxu0
    %v1618 = vpop.f32.mrb[0].mxu0
    %1619 = vdwg.mxu0
    %v1620 = vmul.f32 %v1615, 0.35355338
    %v1621 = vsel %vm167, %v1620, -inf
    %1622 = vmax.xlane.f32.xlu0 %v1621
    %v1623 = vpop.xlane.xlu0 %1622
    %v1624 = vsub.f32 %v1620, %v1623
    %v1625 = vmul.f32 %v1624, 1.442695
    %v1626 = vpow.pop %v1625
    %v1627 = vsel %vm167, %v1626, 0.0
    %1628 = vadd.xlane.f32.xlu0 %v1627
    %v1629 = vpop.xlane.xlu0 %1628
    %v1630 = vrcp.pop %v1629
    %v1631 = vmul.f32 %v1626, %v1630
    %v1632 = vpack.c.bf16 %v1631, %v1631
    %1633 = vrot.lane.b32.xlu0 %v1349, 80
    %v1634 = vpop.permute.xlu0 %1633
    %v1636 = vsel %vm167, %v1632, 0
    %v1639 = vsel %vm233, %v1634, 0
    %1641 = vmatprep.subr.bf16.mxu0 0
    %1642 = vmatpush1.bf16.msra.mxu0 %v1639
    %1643 = vmatprep.subr.bf16.mxu0 0
    %1644 = vmatpush1.bf16.msra.mxu0 0
    %1645 = vmatprep.subr.bf16.mxu0 0
    %1646 = vmatpush1.bf16.msra.mxu0 0
    %1647 = vmatprep.subr.bf16.mxu0 0
    %1648 = vmatpush1.bf16.msra.mxu0 0
    %1649 = vmatprep.subr.bf16.mxu0 0
    %1650 = vmatpush1.bf16.msra.mxu0 0
    %1651 = vmatprep.subr.bf16.mxu0 0
    %1652 = vmatpush1.bf16.msra.mxu0 0
    %1653 = vmatprep.subr.bf16.mxu0 0
    %1654 = vmatpush1.bf16.msra.mxu0 0
    %1655 = vmatprep.subr.bf16.mxu0 0
    %1656 = vmatpush1.bf16.msra.mxu0 0
    %1657 = vmatprep.subr.bf16.mxu0 0
    %1658 = vmatpush1.bf16.msra.mxu0 0
    %1659 = vmatprep.subr.bf16.mxu0 0
    %1660 = vmatpush1.bf16.msra.mxu0 0
    %1661 = vmatprep.subr.bf16.mxu0 0
    %1662 = vmatpush1.bf16.msra.mxu0 0
    %1663 = vmatprep.subr.bf16.mxu0 0
    %1664 = vmatpush1.bf16.msra.mxu0 0
    %1665 = vmatprep.subr.bf16.mxu0 0
    %1666 = vmatpush1.bf16.msra.mxu0 0
    %1667 = vmatprep.subr.bf16.mxu0 0
    %1668 = vmatpush1.bf16.msra.mxu0 0
    %1669 = vmatprep.subr.bf16.mxu0 0
    %1670 = vmatpush1.bf16.msra.mxu0 0
    %1671 = vmatprep.subr.bf16.mxu0 0
    %1672 = vmatpush1.bf16.msra.mxu0 0
    %1673 = vmatprep.mubr.bf16.mxu0 0
    %1674 = vmatmul.mubr.bf16.gmra.mrb[0].mxu0 %v1636
    %v1675 = vpop.f32.mrb[0].mxu0
    %v1676 = vadd.f32 0.0, %v1675
    %v1677 = vpop.f32.mrb[0].mxu0
    %v1678 = vpop.f32.mrb[0].mxu0
    %v1679 = vpop.f32.mrb[0].mxu0
    %1680 = vdwg.mxu0
    %1681 = vrot.lane.b32.xlu0 %v1348, 104
    %v1682 = vpop.permute.xlu0 %1681
    %1683 = vrot.lane.b32.xlu0 %v1349, 104
    %v1684 = vpop.permute.xlu0 %1683
    %v1686 = vsel %vm167, %v1682, 0
    %v1689 = vsel %vm167, %v1684, 0
    %1691 = vmatprep.subr.bf16.mxu0 0
    %1692 = vmatpush1.bf16.xpose.msra.mxu0 %v1689
    %1693 = vmatprep.subr.bf16.mxu0 0
    %1694 = vmatpush1.bf16.xpose.msra.mxu0 0
    %1695 = vmatprep.subr.bf16.mxu0 0
    %1696 = vmatpush1.bf16.xpose.msra.mxu0 0
    %1697 = vmatprep.subr.bf16.mxu0 0
    %1698 = vmatpush1.bf16.xpose.msra.mxu0 0
    %1699 = vmatprep.subr.bf16.mxu0 0
    %1700 = vmatpush1.bf16.xpose.msra.mxu0 0
    %1701 = vmatprep.subr.bf16.mxu0 0
    %1702 = vmatpush1.bf16.xpose.msra.mxu0 0
    %1703 = vmatprep.subr.bf16.mxu0 0
    %1704 = vmatpush1.bf16.xpose.msra.mxu0 0
    %1705 = vmatprep.subr.bf16.mxu0 0
    %1706 = vmatpush1.bf16.xpose.msra.mxu0 0
    %1707 = vmatprep.subr.bf16.mxu0 0
    %1708 = vmatpush1.bf16.xpose.msra.mxu0 0
    %1709 = vmatprep.subr.bf16.mxu0 0
    %1710 = vmatpush1.bf16.xpose.msra.mxu0 0
    %1711 = vmatprep.subr.bf16.mxu0 0
    %1712 = vmatpush1.bf16.xpose.msra.mxu0 0
    %1713 = vmatprep.subr.bf16.mxu0 0
    %1714 = vmatpush1.bf16.xpose.msra.mxu0 0
    %1715 = vmatprep.subr.bf16.mxu0 0
    %1716 = vmatpush1.bf16.xpose.msra.mxu0 0
    %1717 = vmatprep.subr.bf16.mxu0 0
    %1718 = vmatpush1.bf16.xpose.msra.mxu0 0
    %1719 = vmatprep.subr.bf16.mxu0 0
    %1720 = vmatpush1.bf16.xpose.msra.mxu0 0
    %1721 = vmatprep.subr.bf16.mxu0 0
    %1722 = vmatpush1.bf16.xpose.msra.mxu0 0
    %1723 = vmatprep.mubr.bf16.mxu0 0
    %1724 = vmatmul.mubr.bf16.gmra.mrb[0].mxu0 %v1686
    %v1725 = vpop.f32.mrb[0].mxu0
    %v1726 = vadd.f32 0.0, %v1725
    %v1727 = vpop.f32.mrb[0].mxu0
    %v1728 = vpop.f32.mrb[0].mxu0
    %v1729 = vpop.f32.mrb[0].mxu0
    %1730 = vdwg.mxu0
    %v1731 = vmul.f32 %v1726, 0.35355338
    %v1732 = vsel %vm167, %v1731, -inf
    %1733 = vmax.xlane.f32.xlu0 %v1732
    %v1734 = vpop.xlane.xlu0 %1733
    %v1735 = vsub.f32 %v1731, %v1734
    %v1736 = vmul.f32 %v1735, 1.442695
    %v1737 = vpow.pop %v1736
    %v1738 = vsel %vm167, %v1737, 0.0
    %1739 = vadd.xlane.f32.xlu0 %v1738
    %v1740 = vpop.xlane.xlu0 %1739
    %v1741 = vrcp.pop %v1740
    %v1742 = vmul.f32 %v1737, %v1741
    %v1743 = vpack.c.bf16 %v1742, %v1742
    %1744 = vrot.lane.b32.xlu0 %v1349, 72
    %v1745 = vpop.permute.xlu0 %1744
    %v1747 = vsel %vm167, %v1743, 0
    %v1750 = vsel %vm233, %v1745, 0
    %1752 = vmatprep.subr.bf16.mxu0 0
    %1753 = vmatpush1.bf16.msra.mxu0 %v1750
    %1754 = vmatprep.subr.bf16.mxu0 0
    %1755 = vmatpush1.bf16.msra.mxu0 0
    %1756 = vmatprep.subr.bf16.mxu0 0
    %1757 = vmatpush1.bf16.msra.mxu0 0
    %1758 = vmatprep.subr.bf16.mxu0 0
    %1759 = vmatpush1.bf16.msra.mxu0 0
    %1760 = vmatprep.subr.bf16.mxu0 0
    %1761 = vmatpush1.bf16.msra.mxu0 0
    %1762 = vmatprep.subr.bf16.mxu0 0
    %1763 = vmatpush1.bf16.msra.mxu0 0
    %1764 = vmatprep.subr.bf16.mxu0 0
    %1765 = vmatpush1.bf16.msra.mxu0 0
    %1766 = vmatprep.subr.bf16.mxu0 0
    %1767 = vmatpush1.bf16.msra.mxu0 0
    %1768 = vmatprep.subr.bf16.mxu0 0
    %1769 = vmatpush1.bf16.msra.mxu0 0
    %1770 = vmatprep.subr.bf16.mxu0 0
    %1771 = vmatpush1.bf16.msra.mxu0 0
    %1772 = vmatprep.subr.bf16.mxu0 0
    %1773 = vmatpush1.bf16.msra.mxu0 0
    %1774 = vmatprep.subr.bf16.mxu0 0
    %1775 = vmatpush1.bf16.msra.mxu0 0
    %1776 = vmatprep.subr.bf16.mxu0 0
    %1777 = vmatpush1.bf16.msra.mxu0 0
    %1778 = vmatprep.subr.bf16.mxu0 0
    %1779 = vmatpush1.bf16.msra.mxu0 0
    %1780 = vmatprep.subr.bf16.mxu0 0
    %1781 = vmatpush1.bf16.msra.mxu0 0
    %1782 = vmatprep.subr.bf16.mxu0 0
    %1783 = vmatpush1.bf16.msra.mxu0 0
    %1784 = vmatprep.mubr.bf16.mxu0 0
    %1785 = vmatmul.mubr.bf16.gmra.mrb[0].mxu0 %v1747
    %v1786 = vpop.f32.mrb[0].mxu0
    %v1787 = vadd.f32 0.0, %v1786
    %v1788 = vpop.f32.mrb[0].mxu0
    %v1789 = vpop.f32.mrb[0].mxu0
    %v1790 = vpop.f32.mrb[0].mxu0
    %1791 = vdwg.mxu0
    %1793 = vrot.lane.b32.xlu0 %v1565, 8
    %v1794 = vpop.permute.xlu0 %1793
    %1797 = vrot.lane.b32.xlu0 %v1676, 16
    %v1798 = vpop.permute.xlu0 %1797
    %1801 = vrot.lane.b32.xlu0 %v1787, 24
    %v1802 = vpop.permute.xlu0 %1801
    %v1804 = vsel %vm167, %v1453, %v1794
    %v1805 = vsel %vm626, %v1804, %v1798
    %v1806 = vsel %vm628, %v1805, %v1802
    %v1807 = vpack.c.bf16 %v1277, %v1277
    %v1808 = vpack.c.bf16 %v1345, %v1345
    %v1810 = vsel %vm167, %v1807, 0
    %v1813 = vsel %vm167, %v1808, 0
    %1815 = vmatprep.subr.bf16.mxu0 0
    %1816 = vmatpush1.bf16.xpose.msra.mxu0 %v1813
    %1817 = vmatprep.subr.bf16.mxu0 0
    %1818 = vmatpush1.bf16.xpose.msra.mxu0 0
    %1819 = vmatprep.subr.bf16.mxu0 0
    %1820 = vmatpush1.bf16.xpose.msra.mxu0 0
    %1821 = vmatprep.subr.bf16.mxu0 0
    %1822 = vmatpush1.bf16.xpose.msra.mxu0 0
    %1823 = vmatprep.subr.bf16.mxu0 0
    %1824 = vmatpush1.bf16.xpose.msra.mxu0 0
    %1825 = vmatprep.subr.bf16.mxu0 0
    %1826 = vmatpush1.bf16.xpose.msra.mxu0 0
    %1827 = vmatprep.subr.bf16.mxu0 0
    %1828 = vmatpush1.bf16.xpose.msra.mxu0 0
    %1829 = vmatprep.subr.bf16.mxu0 0
    %1830 = vmatpush1.bf16.xpose.msra.mxu0 0
    %1831 = vmatprep.subr.bf16.mxu0 0
    %1832 = vmatpush1.bf16.xpose.msra.mxu0 0
    %1833 = vmatprep.subr.bf16.mxu0 0
    %1834 = vmatpush1.bf16.xpose.msra.mxu0 0
    %1835 = vmatprep.subr.bf16.mxu0 0
    %1836 = vmatpush1.bf16.xpose.msra.mxu0 0
    %1837 = vmatprep.subr.bf16.mxu0 0
    %1838 = vmatpush1.bf16.xpose.msra.mxu0 0
    %1839 = vmatprep.subr.bf16.mxu0 0
    %1840 = vmatpush1.bf16.xpose.msra.mxu0 0
    %1841 = vmatprep.subr.bf16.mxu0 0
    %1842 = vmatpush1.bf16.xpose.msra.mxu0 0
    %1843 = vmatprep.subr.bf16.mxu0 0
    %1844 = vmatpush1.bf16.xpose.msra.mxu0 0
    %1845 = vmatprep.subr.bf16.mxu0 0
    %1846 = vmatpush1.bf16.xpose.msra.mxu0 0
    %1847 = vmatprep.mubr.bf16.mxu0 0
    %1848 = vmatmul.mubr.bf16.gmra.mrb[0].mxu0 %v1810
    %v1849 = vpop.f32.mrb[0].mxu0
    %v1850 = vadd.f32 0.0, %v1849
    %v1851 = vpop.f32.mrb[0].mxu0
    %v1852 = vpop.f32.mrb[0].mxu0
    %v1853 = vpop.f32.mrb[0].mxu0
    %1854 = vdwg.mxu0
    %v1855 = vmul.f32 %v1850, 0.35355338
    %v1856 = vsel %vm167, %v1855, -inf
    %1857 = vmax.xlane.f32.xlu0 %v1856
    %v1858 = vpop.xlane.xlu0 %1857
    %v1859 = vsub.f32 %v1855, %v1858
    %v1860 = vmul.f32 %v1859, 1.442695
    %v1861 = vpow.pop %v1860
    %v1862 = vsel %vm167, %v1861, 0.0
    %1863 = vadd.xlane.f32.xlu0 %v1862
    %v1864 = vpop.xlane.xlu0 %1863
    %v1865 = vrcp.pop %v1864
    %v1866 = vmul.f32 %v1861, %v1865
    %v1867 = vpack.c.bf16 %v1866, %v1866
    %1869 = vrot.lane.b32.xlu0 %v1808, 96
    %v1870 = vpop.permute.xlu0 %1869
    %v1872 = vsel %vm167, %v1867, 0
    %v1875 = vsel %vm233, %v1870, 0
    %1877 = vmatprep.subr.bf16.mxu0 0
    %1878 = vmatpush1.bf16.msra.mxu0 %v1875
    %1879 = vmatprep.subr.bf16.mxu0 0
    %1880 = vmatpush1.bf16.msra.mxu0 0
    %1881 = vmatprep.subr.bf16.mxu0 0
    %1882 = vmatpush1.bf16.msra.mxu0 0
    %1883 = vmatprep.subr.bf16.mxu0 0
    %1884 = vmatpush1.bf16.msra.mxu0 0
    %1885 = vmatprep.subr.bf16.mxu0 0
    %1886 = vmatpush1.bf16.msra.mxu0 0
    %1887 = vmatprep.subr.bf16.mxu0 0
    %1888 = vmatpush1.bf16.msra.mxu0 0
    %1889 = vmatprep.subr.bf16.mxu0 0
    %1890 = vmatpush1.bf16.msra.mxu0 0
    %1891 = vmatprep.subr.bf16.mxu0 0
    %1892 = vmatpush1.bf16.msra.mxu0 0
    %1893 = vmatprep.subr.bf16.mxu0 0
    %1894 = vmatpush1.bf16.msra.mxu0 0
    %1895 = vmatprep.subr.bf16.mxu0 0
    %1896 = vmatpush1.bf16.msra.mxu0 0
    %1897 = vmatprep.subr.bf16.mxu0 0
    %1898 = vmatpush1.bf16.msra.mxu0 0
    %1899 = vmatprep.subr.bf16.mxu0 0
    %1900 = vmatpush1.bf16.msra.mxu0 0
    %1901 = vmatprep.subr.bf16.mxu0 0
    %1902 = vmatpush1.bf16.msra.mxu0 0
    %1903 = vmatprep.subr.bf16.mxu0 0
    %1904 = vmatpush1.bf16.msra.mxu0 0
    %1905 = vmatprep.subr.bf16.mxu0 0
    %1906 = vmatpush1.bf16.msra.mxu0 0
    %1907 = vmatprep.subr.bf16.mxu0 0
    %1908 = vmatpush1.bf16.msra.mxu0 0
    %1909 = vmatprep.mubr.bf16.mxu0 0
    %1910 = vmatmul.mubr.bf16.gmra.mrb[0].mxu0 %v1872
    %v1911 = vpop.f32.mrb[0].mxu0
    %v1912 = vadd.f32 0.0, %v1911
    %v1913 = vpop.f32.mrb[0].mxu0
    %v1914 = vpop.f32.mrb[0].mxu0
    %v1915 = vpop.f32.mrb[0].mxu0
    %1916 = vdwg.mxu0
    %1918 = vrot.lane.b32.xlu0 %v1807, 120
    %v1919 = vpop.permute.xlu0 %1918
    %1920 = vrot.lane.b32.xlu0 %v1808, 120
    %v1921 = vpop.permute.xlu0 %1920
    %v1923 = vsel %vm167, %v1919, 0
    %v1926 = vsel %vm167, %v1921, 0
    %1928 = vmatprep.subr.bf16.mxu0 0
    %1929 = vmatpush1.bf16.xpose.msra.mxu0 %v1926
    %1930 = vmatprep.subr.bf16.mxu0 0
    %1931 = vmatpush1.bf16.xpose.msra.mxu0 0
    %1932 = vmatprep.subr.bf16.mxu0 0
    %1933 = vmatpush1.bf16.xpose.msra.mxu0 0
    %1934 = vmatprep.subr.bf16.mxu0 0
    %1935 = vmatpush1.bf16.xpose.msra.mxu0 0
    %1936 = vmatprep.subr.bf16.mxu0 0
    %1937 = vmatpush1.bf16.xpose.msra.mxu0 0
    %1938 = vmatprep.subr.bf16.mxu0 0
    %1939 = vmatpush1.bf16.xpose.msra.mxu0 0
    %1940 = vmatprep.subr.bf16.mxu0 0
    %1941 = vmatpush1.bf16.xpose.msra.mxu0 0
    %1942 = vmatprep.subr.bf16.mxu0 0
    %1943 = vmatpush1.bf16.xpose.msra.mxu0 0
    %1944 = vmatprep.subr.bf16.mxu0 0
    %1945 = vmatpush1.bf16.xpose.msra.mxu0 0
    %1946 = vmatprep.subr.bf16.mxu0 0
    %1947 = vmatpush1.bf16.xpose.msra.mxu0 0
    %1948 = vmatprep.subr.bf16.mxu0 0
    %1949 = vmatpush1.bf16.xpose.msra.mxu0 0
    %1950 = vmatprep.subr.bf16.mxu0 0
    %1951 = vmatpush1.bf16.xpose.msra.mxu0 0
    %1952 = vmatprep.subr.bf16.mxu0 0
    %1953 = vmatpush1.bf16.xpose.msra.mxu0 0
    %1954 = vmatprep.subr.bf16.mxu0 0
    %1955 = vmatpush1.bf16.xpose.msra.mxu0 0
    %1956 = vmatprep.subr.bf16.mxu0 0
    %1957 = vmatpush1.bf16.xpose.msra.mxu0 0
    %1958 = vmatprep.subr.bf16.mxu0 0
    %1959 = vmatpush1.bf16.xpose.msra.mxu0 0
    %1960 = vmatprep.mubr.bf16.mxu0 0
    %1961 = vmatmul.mubr.bf16.gmra.mrb[0].mxu0 %v1923
    %v1962 = vpop.f32.mrb[0].mxu0
    %v1963 = vadd.f32 0.0, %v1962
    %v1964 = vpop.f32.mrb[0].mxu0
    %v1965 = vpop.f32.mrb[0].mxu0
    %v1966 = vpop.f32.mrb[0].mxu0
    %1967 = vdwg.mxu0
    %v1968 = vmul.f32 %v1963, 0.35355338
    %v1969 = vsel %vm167, %v1968, -inf
    %1970 = vmax.xlane.f32.xlu0 %v1969
    %v1971 = vpop.xlane.xlu0 %1970
    %v1972 = vsub.f32 %v1968, %v1971
    %v1973 = vmul.f32 %v1972, 1.442695
    %v1974 = vpow.pop %v1973
    %v1975 = vsel %vm167, %v1974, 0.0
    %1976 = vadd.xlane.f32.xlu0 %v1975
    %v1977 = vpop.xlane.xlu0 %1976
    %v1978 = vrcp.pop %v1977
    %v1979 = vmul.f32 %v1974, %v1978
    %v1980 = vpack.c.bf16 %v1979, %v1979
    %1981 = vrot.lane.b32.xlu0 %v1808, 88
    %v1982 = vpop.permute.xlu0 %1981
    %v1984 = vsel %vm167, %v1980, 0
    %v1987 = vsel %vm233, %v1982, 0
    %1989 = vmatprep.subr.bf16.mxu0 0
    %1990 = vmatpush1.bf16.msra.mxu0 %v1987
    %1991 = vmatprep.subr.bf16.mxu0 0
    %1992 = vmatpush1.bf16.msra.mxu0 0
    %1993 = vmatprep.subr.bf16.mxu0 0
    %1994 = vmatpush1.bf16.msra.mxu0 0
    %1995 = vmatprep.subr.bf16.mxu0 0
    %1996 = vmatpush1.bf16.msra.mxu0 0
    %1997 = vmatprep.subr.bf16.mxu0 0
    %1998 = vmatpush1.bf16.msra.mxu0 0
    %1999 = vmatprep.subr.bf16.mxu0 0
    %2000 = vmatpush1.bf16.msra.mxu0 0
    %2001 = vmatprep.subr.bf16.mxu0 0
    %2002 = vmatpush1.bf16.msra.mxu0 0
    %2003 = vmatprep.subr.bf16.mxu0 0
    %2004 = vmatpush1.bf16.msra.mxu0 0
    %2005 = vmatprep.subr.bf16.mxu0 0
    %2006 = vmatpush1.bf16.msra.mxu0 0
    %2007 = vmatprep.subr.bf16.mxu0 0
    %2008 = vmatpush1.bf16.msra.mxu0 0
    %2009 = vmatprep.subr.bf16.mxu0 0
    %2010 = vmatpush1.bf16.msra.mxu0 0
    %2011 = vmatprep.subr.bf16.mxu0 0
    %2012 = vmatpush1.bf16.msra.mxu0 0
    %2013 = vmatprep.subr.bf16.mxu0 0
    %2014 = vmatpush1.bf16.msra.mxu0 0
    %2015 = vmatprep.subr.bf16.mxu0 0
    %2016 = vmatpush1.bf16.msra.mxu0 0
    %2017 = vmatprep.subr.bf16.mxu0 0
    %2018 = vmatpush1.bf16.msra.mxu0 0
    %2019 = vmatprep.subr.bf16.mxu0 0
    %2020 = vmatpush1.bf16.msra.mxu0 0
    %2021 = vmatprep.mubr.bf16.mxu0 0
    %2022 = vmatmul.mubr.bf16.gmra.mrb[0].mxu0 %v1984
    %v2023 = vpop.f32.mrb[0].mxu0
    %v2024 = vadd.f32 0.0, %v2023
    %v2025 = vpop.f32.mrb[0].mxu0
    %v2026 = vpop.f32.mrb[0].mxu0
    %v2027 = vpop.f32.mrb[0].mxu0
    %2028 = vdwg.mxu0
    %2029 = vrot.lane.b32.xlu0 %v1807, 112
    %v2030 = vpop.permute.xlu0 %2029
    %2031 = vrot.lane.b32.xlu0 %v1808, 112
    %v2032 = vpop.permute.xlu0 %2031
    %v2034 = vsel %vm167, %v2030, 0
    %v2037 = vsel %vm167, %v2032, 0
    %2039 = vmatprep.subr.bf16.mxu0 0
    %2040 = vmatpush1.bf16.xpose.msra.mxu0 %v2037
    %2041 = vmatprep.subr.bf16.mxu0 0
    %2042 = vmatpush1.bf16.xpose.msra.mxu0 0
    %2043 = vmatprep.subr.bf16.mxu0 0
    %2044 = vmatpush1.bf16.xpose.msra.mxu0 0
    %2045 = vmatprep.subr.bf16.mxu0 0
    %2046 = vmatpush1.bf16.xpose.msra.mxu0 0
    %2047 = vmatprep.subr.bf16.mxu0 0
    %2048 = vmatpush1.bf16.xpose.msra.mxu0 0
    %2049 = vmatprep.subr.bf16.mxu0 0
    %2050 = vmatpush1.bf16.xpose.msra.mxu0 0
    %2051 = vmatprep.subr.bf16.mxu0 0
    %2052 = vmatpush1.bf16.xpose.msra.mxu0 0
    %2053 = vmatprep.subr.bf16.mxu0 0
    %2054 = vmatpush1.bf16.xpose.msra.mxu0 0
    %2055 = vmatprep.subr.bf16.mxu0 0
    %2056 = vmatpush1.bf16.xpose.msra.mxu0 0
    %2057 = vmatprep.subr.bf16.mxu0 0
    %2058 = vmatpush1.bf16.xpose.msra.mxu0 0
    %2059 = vmatprep.subr.bf16.mxu0 0
    %2060 = vmatpush1.bf16.xpose.msra.mxu0 0
    %2061 = vmatprep.subr.bf16.mxu0 0
    %2062 = vmatpush1.bf16.xpose.msra.mxu0 0
    %2063 = vmatprep.subr.bf16.mxu0 0
    %2064 = vmatpush1.bf16.xpose.msra.mxu0 0
    %2065 = vmatprep.subr.bf16.mxu0 0
    %2066 = vmatpush1.bf16.xpose.msra.mxu0 0
    %2067 = vmatprep.subr.bf16.mxu0 0
    %2068 = vmatpush1.bf16.xpose.msra.mxu0 0
    %2069 = vmatprep.subr.bf16.mxu0 0
    %2070 = vmatpush1.bf16.xpose.msra.mxu0 0
    %2071 = vmatprep.mubr.bf16.mxu0 0
    %2072 = vmatmul.mubr.bf16.gmra.mrb[0].mxu0 %v2034
    %v2073 = vpop.f32.mrb[0].mxu0
    %v2074 = vadd.f32 0.0, %v2073
    %v2075 = vpop.f32.mrb[0].mxu0
    %v2076 = vpop.f32.mrb[0].mxu0
    %v2077 = vpop.f32.mrb[0].mxu0
    %2078 = vdwg.mxu0
    %v2079 = vmul.f32 %v2074, 0.35355338
    %v2080 = vsel %vm167, %v2079, -inf
    %2081 = vmax.xlane.f32.xlu0 %v2080
    %v2082 = vpop.xlane.xlu0 %2081
    %v2083 = vsub.f32 %v2079, %v2082
    %v2084 = vmul.f32 %v2083, 1.442695
    %v2085 = vpow.pop %v2084
    %v2086 = vsel %vm167, %v2085, 0.0
    %2087 = vadd.xlane.f32.xlu0 %v2086
    %v2088 = vpop.xlane.xlu0 %2087
    %v2089 = vrcp.pop %v2088
    %v2090 = vmul.f32 %v2085, %v2089
    %v2091 = vpack.c.bf16 %v2090, %v2090
    %2092 = vrot.lane.b32.xlu0 %v1808, 80
    %v2093 = vpop.permute.xlu0 %2092
    %v2095 = vsel %vm167, %v2091, 0
    %v2098 = vsel %vm233, %v2093, 0
    %2100 = vmatprep.subr.bf16.mxu0 0
    %2101 = vmatpush1.bf16.msra.mxu0 %v2098
    %2102 = vmatprep.subr.bf16.mxu0 0
    %2103 = vmatpush1.bf16.msra.mxu0 0
    %2104 = vmatprep.subr.bf16.mxu0 0
    %2105 = vmatpush1.bf16.msra.mxu0 0
    %2106 = vmatprep.subr.bf16.mxu0 0
    %2107 = vmatpush1.bf16.msra.mxu0 0
    %2108 = vmatprep.subr.bf16.mxu0 0
    %2109 = vmatpush1.bf16.msra.mxu0 0
    %2110 = vmatprep.subr.bf16.mxu0 0
    %2111 = vmatpush1.bf16.msra.mxu0 0
    %2112 = vmatprep.subr.bf16.mxu0 0
    %2113 = vmatpush1.bf16.msra.mxu0 0
    %2114 = vmatprep.subr.bf16.mxu0 0
    %2115 = vmatpush1.bf16.msra.mxu0 0
    %2116 = vmatprep.subr.bf16.mxu0 0
    %2117 = vmatpush1.bf16.msra.mxu0 0
    %2118 = vmatprep.subr.bf16.mxu0 0
    %2119 = vmatpush1.bf16.msra.mxu0 0
    %2120 = vmatprep.subr.bf16.mxu0 0
    %2121 = vmatpush1.bf16.msra.mxu0 0
    %2122 = vmatprep.subr.bf16.mxu0 0
    %2123 = vmatpush1.bf16.msra.mxu0 0
    %2124 = vmatprep.subr.bf16.mxu0 0
    %2125 = vmatpush1.bf16.msra.mxu0 0
    %2126 = vmatprep.subr.bf16.mxu0 0
    %2127 = vmatpush1.bf16.msra.mxu0 0
    %2128 = vmatprep.subr.bf16.mxu0 0
    %2129 = vmatpush1.bf16.msra.mxu0 0
    %2130 = vmatprep.subr.bf16.mxu0 0
    %2131 = vmatpush1.bf16.msra.mxu0 0
    %2132 = vmatprep.mubr.bf16.mxu0 0
    %2133 = vmatmul.mubr.bf16.gmra.mrb[0].mxu0 %v2095
    %v2134 = vpop.f32.mrb[0].mxu0
    %v2135 = vadd.f32 0.0, %v2134
    %v2136 = vpop.f32.mrb[0].mxu0
    %v2137 = vpop.f32.mrb[0].mxu0
    %v2138 = vpop.f32.mrb[0].mxu0
    %2139 = vdwg.mxu0
    %2140 = vrot.lane.b32.xlu0 %v1807, 104
    %v2141 = vpop.permute.xlu0 %2140
    %2142 = vrot.lane.b32.xlu0 %v1808, 104
    %v2143 = vpop.permute.xlu0 %2142
    %v2145 = vsel %vm167, %v2141, 0
    %v2148 = vsel %vm167, %v2143, 0
    %2150 = vmatprep.subr.bf16.mxu0 0
    %2151 = vmatpush1.bf16.xpose.msra.mxu0 %v2148
    %2152 = vmatprep.subr.bf16.mxu0 0
    %2153 = vmatpush1.bf16.xpose.msra.mxu0 0
    %2154 = vmatprep.subr.bf16.mxu0 0
    %2155 = vmatpush1.bf16.xpose.msra.mxu0 0
    %2156 = vmatprep.subr.bf16.mxu0 0
    %2157 = vmatpush1.bf16.xpose.msra.mxu0 0
    %2158 = vmatprep.subr.bf16.mxu0 0
    %2159 = vmatpush1.bf16.xpose.msra.mxu0 0
    %2160 = vmatprep.subr.bf16.mxu0 0
    %2161 = vmatpush1.bf16.xpose.msra.mxu0 0
    %2162 = vmatprep.subr.bf16.mxu0 0
    %2163 = vmatpush1.bf16.xpose.msra.mxu0 0
    %2164 = vmatprep.subr.bf16.mxu0 0
    %2165 = vmatpush1.bf16.xpose.msra.mxu0 0
    %2166 = vmatprep.subr.bf16.mxu0 0
    %2167 = vmatpush1.bf16.xpose.msra.mxu0 0
    %2168 = vmatprep.subr.bf16.mxu0 0
    %2169 = vmatpush1.bf16.xpose.msra.mxu0 0
    %2170 = vmatprep.subr.bf16.mxu0 0
    %2171 = vmatpush1.bf16.xpose.msra.mxu0 0
    %2172 = vmatprep.subr.bf16.mxu0 0
    %2173 = vmatpush1.bf16.xpose.msra.mxu0 0
    %2174 = vmatprep.subr.bf16.mxu0 0
    %2175 = vmatpush1.bf16.xpose.msra.mxu0 0
    %2176 = vmatprep.subr.bf16.mxu0 0
    %2177 = vmatpush1.bf16.xpose.msra.mxu0 0
    %2178 = vmatprep.subr.bf16.mxu0 0
    %2179 = vmatpush1.bf16.xpose.msra.mxu0 0
    %2180 = vmatprep.subr.bf16.mxu0 0
    %2181 = vmatpush1.bf16.xpose.msra.mxu0 0
    %2182 = vmatprep.mubr.bf16.mxu0 0
    %2183 = vmatmul.mubr.bf16.gmra.mrb[0].mxu0 %v2145
    %v2184 = vpop.f32.mrb[0].mxu0
    %v2185 = vadd.f32 0.0, %v2184
    %v2186 = vpop.f32.mrb[0].mxu0
    %v2187 = vpop.f32.mrb[0].mxu0
    %v2188 = vpop.f32.mrb[0].mxu0
    %2189 = vdwg.mxu0
    %v2190 = vmul.f32 %v2185, 0.35355338
    %v2191 = vsel %vm167, %v2190, -inf
    %2192 = vmax.xlane.f32.xlu0 %v2191
    %v2193 = vpop.xlane.xlu0 %2192
    %v2194 = vsub.f32 %v2190, %v2193
    %v2195 = vmul.f32 %v2194, 1.442695
    %v2196 = vpow.pop %v2195
    %v2197 = vsel %vm167, %v2196, 0.0
    %2198 = vadd.xlane.f32.xlu0 %v2197
    %v2199 = vpop.xlane.xlu0 %2198
    %v2200 = vrcp.pop %v2199
    %v2201 = vmul.f32 %v2196, %v2200
    %v2202 = vpack.c.bf16 %v2201, %v2201
    %2203 = vrot.lane.b32.xlu0 %v1808, 72
    %v2204 = vpop.permute.xlu0 %2203
    %v2206 = vsel %vm167, %v2202, 0
    %v2209 = vsel %vm233, %v2204, 0
    %2211 = vmatprep.subr.bf16.mxu0 0
    %2212 = vmatpush1.bf16.msra.mxu0 %v2209
    %2213 = vmatprep.subr.bf16.mxu0 0
    %2214 = vmatpush1.bf16.msra.mxu0 0
    %2215 = vmatprep.subr.bf16.mxu0 0
    %2216 = vmatpush1.bf16.msra.mxu0 0
    %2217 = vmatprep.subr.bf16.mxu0 0
    %2218 = vmatpush1.bf16.msra.mxu0 0
    %2219 = vmatprep.subr.bf16.mxu0 0
    %2220 = vmatpush1.bf16.msra.mxu0 0
    %2221 = vmatprep.subr.bf16.mxu0 0
    %2222 = vmatpush1.bf16.msra.mxu0 0
    %2223 = vmatprep.subr.bf16.mxu0 0
    %2224 = vmatpush1.bf16.msra.mxu0 0
    %2225 = vmatprep.subr.bf16.mxu0 0
    %2226 = vmatpush1.bf16.msra.mxu0 0
    %2227 = vmatprep.subr.bf16.mxu0 0
    %2228 = vmatpush1.bf16.msra.mxu0 0
    %2229 = vmatprep.subr.bf16.mxu0 0
    %2230 = vmatpush1.bf16.msra.mxu0 0
    %2231 = vmatprep.subr.bf16.mxu0 0
    %2232 = vmatpush1.bf16.msra.mxu0 0
    %2233 = vmatprep.subr.bf16.mxu0 0
    %2234 = vmatpush1.bf16.msra.mxu0 0
    %2235 = vmatprep.subr.bf16.mxu0 0
    %2236 = vmatpush1.bf16.msra.mxu0 0
    %2237 = vmatprep.subr.bf16.mxu0 0
    %2238 = vmatpush1.bf16.msra.mxu0 0
    %2239 = vmatprep.subr.bf16.mxu0 0
    %2240 = vmatpush1.bf16.msra.mxu0 0
    %2241 = vmatprep.subr.bf16.mxu0 0
    %2242 = vmatpush1.bf16.msra.mxu0 0
    %2243 = vmatprep.mubr.bf16.mxu0 0
    %2244 = vmatmul.mubr.bf16.gmra.mrb[0].mxu0 %v2206
    %v2245 = vpop.f32.mrb[0].mxu0
    %v2246 = vadd.f32 0.0, %v2245
    %v2247 = vpop.f32.mrb[0].mxu0
    %v2248 = vpop.f32.mrb[0].mxu0
    %v2249 = vpop.f32.mrb[0].mxu0
    %2250 = vdwg.mxu0
    %2252 = vrot.lane.b32.xlu0 %v2024, 8
    %v2253 = vpop.permute.xlu0 %2252
    %2256 = vrot.lane.b32.xlu0 %v2135, 16
    %v2257 = vpop.permute.xlu0 %2256
    %2260 = vrot.lane.b32.xlu0 %v2246, 24
    %v2261 = vpop.permute.xlu0 %2260
    %v2263 = vsel %vm167, %v1912, %v2253
    %v2264 = vsel %vm626, %v2263, %v2257
    %v2265 = vsel %vm628, %v2264, %v2261
    %v2266 = vpack.c.bf16 %v2265, %v1806
    %v2267 = vld [vmem:[%s12] sm:$0xf]
    %v2268 = vld [vmem:[%s12 + $0x4] sm:$0xf]
    %v2269 = vld [vmem:[%s12 + $0x8] sm:$0xf]
    %v2270 = vld [vmem:[%s12 + $0xc] sm:$0xf]
    %v2271 = vld [vmem:[%s13] sm:$0x1]
    %v2273 = vlaneseq
    %v2274 = vshrl.u32 %v2273, 7
    %v2275 = vsub.s32 0, %v2274
    %v2276 = vrot.slane %v2271, %v2275
    %v2282 = vunpack.c.l.b16 %v2267
    %v2283 = vunpack.c.l.b16 %v2268
    %v2284 = vunpack.c.l.b16 %v2269
    %v2285 = vunpack.c.l.b16 %v2270
    %v2286 = vpack.c.b16 %v2283, %v2282
    %v2287 = vpack.c.b16 %v2285, %v2284
    %v2291 = vsel %vm118, %v2266, 0
    %2293 = vmatprep.subr.bf16.mxu0 0
    %2294 = vmatpush1.bf16.msra.mxu0 %v2286
    %2295 = vmatprep.subr.bf16.mxu0 0
    %2296 = vmatpush1.bf16.msra.mxu0 %v2287
    %2297 = vmatprep.subr.bf16.mxu0 0
    %2298 = vmatpush1.bf16.msra.mxu0 0
    %2299 = vmatprep.subr.bf16.mxu0 0
    %2300 = vmatpush1.bf16.msra.mxu0 0
    %2301 = vmatprep.subr.bf16.mxu0 0
    %2302 = vmatpush1.bf16.msra.mxu0 0
    %2303 = vmatprep.subr.bf16.mxu0 0
    %2304 = vmatpush1.bf16.msra.mxu0 0
    %2305 = vmatprep.subr.bf16.mxu0 0
    %2306 = vmatpush1.bf16.msra.mxu0 0
    %2307 = vmatprep.subr.bf16.mxu0 0
    %2308 = vmatpush1.bf16.msra.mxu0 0
    %2309 = vmatprep.subr.bf16.mxu0 0
    %2310 = vmatpush1.bf16.msra.mxu0 0
    %2311 = vmatprep.subr.bf16.mxu0 0
    %2312 = vmatpush1.bf16.msra.mxu0 0
    %2313 = vmatprep.subr.bf16.mxu0 0
    %2314 = vmatpush1.bf16.msra.mxu0 0
    %2315 = vmatprep.subr.bf16.mxu0 0
    %2316 = vmatpush1.bf16.msra.mxu0 0
    %2317 = vmatprep.subr.bf16.mxu0 0
    %2318 = vmatpush1.bf16.msra.mxu0 0
    %2319 = vmatprep.subr.bf16.mxu0 0
    %2320 = vmatpush1.bf16.msra.mxu0 0
    %2321 = vmatprep.subr.bf16.mxu0 0
    %2322 = vmatpush1.bf16.msra.mxu0 0
    %2323 = vmatprep.subr.bf16.mxu0 0
    %2324 = vmatpush1.bf16.msra.mxu0 0
    %2325 = vmatprep.mubr.bf16.mxu0 0
    %2326 = vmatmul.mubr.bf16.gmra.mrb[0].mxu0 %v2291
    %v2327 = vpop.f32.mrb[0].mxu0
    %v2328 = vadd.f32 %v2276, %v2327
    %v2329 = vpop.f32.mrb[0].mxu0
    %v2330 = vpop.f32.mrb[0].mxu0
    %v2331 = vadd.f32 %v2276, %v2330
    %v2332 = vpop.f32.mrb[0].mxu0
    %2333 = vdwg.mxu0
    %v2334 = vadd.f32 %v1210, %v2328
    %v2335 = vadd.f32 %v1211, %v2331
    %v2336 = vsel %vm118, %v2334, 0.0
    %2337 = vadd.xlane.f32.xlu0 %v2336
    %v2338 = vpop.xlane.xlu0 %2337
    %v2339 = vsel %vm118, %v2335, 0.0
    %2340 = vadd.xlane.f32.xlu0 %v2339
    %v2341 = vpop.xlane.xlu0 %2340
    %v2342 = vmul.f32 %v2338, %v1169
    %v2343 = vmul.f32 %v2341, %v1169
    %v2344 = vmul.f32 %v2334, %v2334
    %v2345 = vmul.f32 %v2335, %v2335
    %v2346 = vsel %vm118, %v2344, 0.0
    %2347 = vadd.xlane.f32.xlu0 %v2346
    %v2348 = vpop.xlane.xlu0 %2347
    %v2349 = vsel %vm118, %v2345, 0.0
    %2350 = vadd.xlane.f32.xlu0 %v2349
    %v2351 = vpop.xlane.xlu0 %2350
    %v2352 = vmul.f32 %v2348, %v1169
    %v2353 = vmul.f32 %v2351, %v1169
    %v2354 = vmul.f32 %v2342, %v2342
    %v2355 = vmul.f32 %v2343, %v2343
    %v2356 = vsub.f32 %v2352, %v2354
    %v2357 = vsub.f32 %v2353, %v2355
    %v2358 = vadd.f32 %v2356, 1e-05
    %v2359 = vadd.f32 %v2357, 1e-05
    %v2360 = vrsqrt.pop %v2358
    %v2361 = vrsqrt.pop %v2359
    %v2362 = vsub.f32 %v2334, %v2342
    %v2363 = vsub.f32 %v2335, %v2343
    %v2364 = vld [vmem:[%s14] sm:$0x1]
    %v2366 = vlaneseq
    %v2367 = vshrl.u32 %v2366, 7
    %v2368 = vsub.s32 0, %v2367
    %v2369 = vrot.slane %v2364, %v2368
    %v2371 = vmul.f32 %v2360, %v2369
    %v2372 = vmul.f32 %v2361, %v2369
    %v2373 = vmul.f32 %v2362, %v2371
    %v2374 = vmul.f32 %v2363, %v2372
    %v2375 = vld [vmem:[%s15] sm:$0x1]
    %v2377 = vlaneseq
    %v2378 = vshrl.u32 %v2377, 7
    %v2379 = vsub.s32 0, %v2378
    %v2380 = vrot.slane %v2375, %v2379
    %v2382 = vadd.f32 %v2373, %v2380
    %v2383 = vadd.f32 %v2374, %v2380
    %v2384 = vpack.c.bf16 %v2383, %v2382
    %v2385 = vld [vmem:[%s16] sm:$0xf]
    %v2386 = vld [vmem:[%s16 + $0x4] sm:$0xf]
    %v2387 = vld [vmem:[%s16 + $0x8] sm:$0xf]
    %v2388 = vld [vmem:[%s16 + $0xc] sm:$0xf]
    %v2389 = vld [vmem:[%s17] sm:$0x1]
    %v2391 = vlaneseq
    %v2392 = vshrl.u32 %v2391, 7
    %v2393 = vsub.s32 0, %v2392
    %v2394 = vrot.slane %v2389, %v2393
    %v2400 = vunpack.c.l.b16 %v2385
    %v2401 = vunpack.c.l.b16 %v2386
    %v2402 = vunpack.c.l.b16 %v2387
    %v2403 = vunpack.c.l.b16 %v2388
    %v2404 = vpack.c.b16 %v2401, %v2400
    %v2405 = vpack.c.b16 %v2403, %v2402
    %v2409 = vsel %vm118, %v2384, 0
    %2411 = vmatprep.subr.bf16.mxu0 0
    %2412 = vmatpush1.bf16.msra.mxu0 %v2404
    %2413 = vmatprep.subr.bf16.mxu0 0
    %2414 = vmatpush1.bf16.msra.mxu0 %v2405
    %2415 = vmatprep.subr.bf16.mxu0 0
    %2416 = vmatpush1.bf16.msra.mxu0 0
    %2417 = vmatprep.subr.bf16.mxu0 0
    %2418 = vmatpush1.bf16.msra.mxu0 0
    %2419 = vmatprep.subr.bf16.mxu0 0
    %2420 = vmatpush1.bf16.msra.mxu0 0
    %2421 = vmatprep.subr.bf16.mxu0 0
    %2422 = vmatpush1.bf16.msra.mxu0 0
    %2423 = vmatprep.subr.bf16.mxu0 0
    %2424 = vmatpush1.bf16.msra.mxu0 0
    %2425 = vmatprep.subr.bf16.mxu0 0
    %2426 = vmatpush1.bf16.msra.mxu0 0
    %2427 = vmatprep.subr.bf16.mxu0 0
    %2428 = vmatpush1.bf16.msra.mxu0 0
    %2429 = vmatprep.subr.bf16.mxu0 0
    %2430 = vmatpush1.bf16.msra.mxu0 0
    %2431 = vmatprep.subr.bf16.mxu0 0
    %2432 = vmatpush1.bf16.msra.mxu0 0
    %2433 = vmatprep.subr.bf16.mxu0 0
    %2434 = vmatpush1.bf16.msra.mxu0 0
    %2435 = vmatprep.subr.bf16.mxu0 0
    %2436 = vmatpush1.bf16.msra.mxu0 0
    %2437 = vmatprep.subr.bf16.mxu0 0
    %2438 = vmatpush1.bf16.msra.mxu0 0
    %2439 = vmatprep.subr.bf16.mxu0 0
    %2440 = vmatpush1.bf16.msra.mxu0 0
    %2441 = vmatprep.subr.bf16.mxu0 0
    %2442 = vmatpush1.bf16.msra.mxu0 0
    %2443 = vmatprep.mubr.bf16.mxu0 0
    %2444 = vmatmul.mubr.bf16.gmra.mrb[0].mxu0 %v2409
    %v2445 = vpop.f32.mrb[0].mxu0
    %v2446 = vadd.f32 %v2394, %v2445
    %v2447 = vpop.f32.mrb[0].mxu0
    %v2448 = vpop.f32.mrb[0].mxu0
    %v2449 = vadd.f32 %v2394, %v2448
    %v2450 = vpop.f32.mrb[0].mxu0
    %2451 = vdwg.mxu0
    %v2452 = vmax.f32 %v2446, 0.0
    %v2453 = vmax.f32 %v2449, 0.0
    %v2454 = vpack.c.bf16 %v2453, %v2452
    %v2455 = vld [vmem:[%s18] sm:$0xf]
    %v2456 = vld [vmem:[%s18 + $0x4] sm:$0xf]
    %v2457 = vld [vmem:[%s18 + $0x8] sm:$0xf]
    %v2458 = vld [vmem:[%s18 + $0xc] sm:$0xf]
    %v2459 = vld [vmem:[%s18 + $0x10] sm:$0xf]
    %v2460 = vld [vmem:[%s18 + $0x14] sm:$0xf]
    %v2461 = vld [vmem:[%s18 + $0x18] sm:$0xf]
    %v2462 = vld [vmem:[%s18 + $0x1c] sm:$0xf]
    %v2463 = vld [vmem:[%s19] sm:$0x1]
    %v2465 = vlaneseq
    %v2466 = vshrl.u32 %v2465, 7
    %v2467 = vsub.s32 0, %v2466
    %v2468 = vrot.slane %v2463, %v2467
    %v2478 = vunpack.c.l.b16 %v2455
    %v2479 = vunpack.c.l.b16 %v2456
    %v2480 = vunpack.c.l.b16 %v2457
    %v2481 = vunpack.c.l.b16 %v2458
    %v2482 = vunpack.c.l.b16 %v2459
    %v2483 = vunpack.c.l.b16 %v2460
    %v2484 = vunpack.c.l.b16 %v2461
    %v2485 = vunpack.c.l.b16 %v2462
    %v2486 = vpack.c.b16 %v2479, %v2478
    %v2487 = vpack.c.b16 %v2481, %v2480
    %v2488 = vpack.c.b16 %v2483, %v2482
    %v2489 = vpack.c.b16 %v2485, %v2484
    %vm2494 = vcmask 523264
    %v2496 = vsel %vm2494, %v2454, 0
    %2498 = vmatprep.subr.bf16.mxu0 0
    %2499 = vmatpush1.bf16.msra.mxu0 %v2486
    %2500 = vmatprep.subr.bf16.mxu0 0
    %2501 = vmatpush1.bf16.msra.mxu0 %v2487
    %2502 = vmatprep.subr.bf16.mxu0 0
    %2503 = vmatpush1.bf16.msra.mxu0 %v2488
    %2504 = vmatprep.subr.bf16.mxu0 0
    %2505 = vmatpush1.bf16.msra.mxu0 %v2489
    %2506 = vmatprep.subr.bf16.mxu0 0
    %2507 = vmatpush1.bf16.msra.mxu0 0
    %2508 = vmatprep.subr.bf16.mxu0 0
    %2509 = vmatpush1.bf16.msra.mxu0 0
    %2510 = vmatprep.subr.bf16.mxu0 0
    %2511 = vmatpush1.bf16.msra.mxu0 0
    %2512 = vmatprep.subr.bf16.mxu0 0
    %2513 = vmatpush1.bf16.msra.mxu0 0
    %2514 = vmatprep.subr.bf16.mxu0 0
    %2515 = vmatpush1.bf16.msra.mxu0 0
    %2516 = vmatprep.subr.bf16.mxu0 0
    %2517 = vmatpush1.bf16.msra.mxu0 0
    %2518 = vmatprep.subr.bf16.mxu0 0
    %2519 = vmatpush1.bf16.msra.mxu0 0
    %2520 = vmatprep.subr.bf16.mxu0 0
    %2521 = vmatpush1.bf16.msra.mxu0 0
    %2522 = vmatprep.subr.bf16.mxu0 0
    %2523 = vmatpush1.bf16.msra.mxu0 0
    %2524 = vmatprep.subr.bf16.mxu0 0
    %2525 = vmatpush1.bf16.msra.mxu0 0
    %2526 = vmatprep.subr.bf16.mxu0 0
    %2527 = vmatpush1.bf16.msra.mxu0 0
    %2528 = vmatprep.subr.bf16.mxu0 0
    %2529 = vmatpush1.bf16.msra.mxu0 0
    %2530 = vmatprep.mubr.bf16.mxu0 0
    %2531 = vmatmul.mubr.bf16.gmra.mrb[0].mxu0 %v2496
    %v2532 = vpop.f32.mrb[0].mxu0
    %v2533 = vadd.f32 %v2468, %v2532
    %v2534 = vpop.f32.mrb[0].mxu0
    %v2535 = vpop.f32.mrb[0].mxu0
    %v2536 = vadd.f32 %v2468, %v2535
    %v2537 = vpop.f32.mrb[0].mxu0
    %2538 = vdwg.mxu0
    %v2539 = vadd.f32 %v2382, %v2533
    %v2540 = vadd.f32 %v2383, %v2536
    %v2541 = vsel %vm118, %v2539, 0.0
    %2542 = vadd.xlane.f32.xlu0 %v2541
    %v2543 = vpop.xlane.xlu0 %2542
    %v2544 = vsel %vm118, %v2540, 0.0
    %2545 = vadd.xlane.f32.xlu0 %v2544
    %v2546 = vpop.xlane.xlu0 %2545
    %v2547 = vmul.f32 %v2543, %v1169
    %v2548 = vmul.f32 %v2546, %v1169
    %v2549 = vmul.f32 %v2539, %v2539
    %v2550 = vmul.f32 %v2540, %v2540
    %v2551 = vsel %vm118, %v2549, 0.0
    %2552 = vadd.xlane.f32.xlu0 %v2551
    %v2553 = vpop.xlane.xlu0 %2552
    %v2554 = vsel %vm118, %v2550, 0.0
    %2555 = vadd.xlane.f32.xlu0 %v2554
    %v2556 = vpop.xlane.xlu0 %2555
    %v2557 = vmul.f32 %v2553, %v1169
    %v2558 = vmul.f32 %v2556, %v1169
    %v2559 = vmul.f32 %v2547, %v2547
    %v2560 = vmul.f32 %v2548, %v2548
    %v2561 = vsub.f32 %v2557, %v2559
    %v2562 = vsub.f32 %v2558, %v2560
    %v2563 = vadd.f32 %v2561, 1e-05
    %v2564 = vadd.f32 %v2562, 1e-05
    %v2565 = vrsqrt.pop %v2563
    %v2566 = vrsqrt.pop %v2564
    %v2567 = vsub.f32 %v2539, %v2547
    %v2568 = vsub.f32 %v2540, %v2548
    %v2569 = vld [vmem:[%s20] sm:$0x1]
    %v2571 = vlaneseq
    %v2572 = vshrl.u32 %v2571, 7
    %v2573 = vsub.s32 0, %v2572
    %v2574 = vrot.slane %v2569, %v2573
    %v2576 = vmul.f32 %v2565, %v2574
    %v2577 = vmul.f32 %v2566, %v2574
    %v2578 = vmul.f32 %v2567, %v2576
    %v2579 = vmul.f32 %v2568, %v2577
    %v2580 = vld [vmem:[#allocation2] sm:$0x1]
    %v2582 = vlaneseq
    %v2583 = vshrl.u32 %v2582, 7
    %v2584 = vsub.s32 0, %v2583
    %v2585 = vrot.slane %v2580, %v2584
    %v2587 = vadd.f32 %v2578, %v2585
    %v2588 = vadd.f32 %v2579, %v2585
    %2589 = vst.msk [vmem:[%s22] sm:$0xff] %vm118, %v2587
    %2590 = vst.msk [vmem:[%s22 + $0x8] sm:$0xff] %vm118, %v2588
    // Predicated region
    $region94: #{_lambda_.4} parent=1 // pred_check
      _
    $region95: #{_lambda_.4} parent=1 // pred_check_branch
      %2592 = sbr.rel (0) target = $region97
    $region96: #{_lambda_.4} parent=1 // pred_region
      _
    $region97: #{_lambda_.4} parent=1 // pred_fallthru
      _
    // Predicated region
    $region98: #{_lambda_.4} parent=1 // pred_check
      _
    $region99: #{_lambda_.4} parent=1 // pred_check_branch
      %2594 = sbr.rel (0) target = $region101
    $region100: #{_lambda_.4} parent=1 // pred_region
      _
    $region101: #{_lambda_.4} parent=1 // pred_fallthru
      _
    %2595 = vsyncpa [#allocation3], 1

// kernel: _lambda_.3
$region0: #{_lambda_.3}
  #allocation0 [shape = 'u32[]', space=smem, size = 0x4, offset = 0x4, fixed_abs, tag = 'smem constant byte address 0x4 - core index']
  #allocation1 [shape = 'u32[144,128]{1,0:T(1,128)}', space=vmem, size = 0x12000, scoped, tag = 'internal scratch']
  %s0 = inlined_call_operand.vmem [shape: f32[2,8,32], index: 0, kind: input, shape index: {}, may-alias: {0,22}]
  %s1 = inlined_call_operand.vmem [shape: f32[2,8,32], index: 1, kind: input, shape index: {}]
  %s2 = inlined_call_operand.vmem [shape: bf16[32,96], index: 2, kind: input, shape index: {}]
  %s3 = inlined_call_operand.vmem [shape: f32[1,96], index: 3, kind: input, shape index: {}]
  %s4 = inlined_call_operand.vmem [shape: bf16[32,32], index: 4, kind: input, shape index: {}]
  %s5 = inlined_call_operand.vmem [shape: f32[1,32], index: 5, kind: input, shape index: {}]
  %s6 = inlined_call_operand.vmem [shape: f32[1,32], index: 6, kind: input, shape index: {}]
  %s7 = inlined_call_operand.vmem [shape: f32[1,32], index: 7, kind: input, shape index: {}]
  %s8 = inlined_call_operand.vmem [shape: bf16[32,32], index: 8, kind: input, shape index: {}]
  %s9 = inlined_call_operand.vmem [shape: f32[1,32], index: 9, kind: input, shape index: {}]
  %s10 = inlined_call_operand.vmem [shape: bf16[32,64], index: 10, kind: input, shape index: {}]
  %s11 = inlined_call_operand.vmem [shape: f32[1,64], index: 11, kind: input, shape index: {}]
  %s12 = inlined_call_operand.vmem [shape: bf16[32,32], index: 12, kind: input, shape index: {}]
  %s13 = inlined_call_operand.vmem [shape: f32[1,32], index: 13, kind: input, shape index: {}]
  %s14 = inlined_call_operand.vmem [shape: f32[1,32], index: 14, kind: input, shape index: {}]
  %s15 = inlined_call_operand.vmem [shape: f32[1,32], index: 15, kind: input, shape index: {}]
  %s16 = inlined_call_operand.vmem [shape: bf16[32,64], index: 16, kind: input, shape index: {}]
  %s17 = inlined_call_operand.vmem [shape: f32[1,64], index: 17, kind: input, shape index: {}]
  %s18 = inlined_call_operand.vmem [shape: bf16[64,32], index: 18, kind: input, shape index: {}]
  %s19 = inlined_call_operand.vmem [shape: f32[1,32], index: 19, kind: input, shape index: {}]
  %s20 = inlined_call_operand.vmem [shape: f32[1,32], index: 20, kind: input, shape index: {}]
  %s21 = inlined_call_operand.vmem [shape: f32[1,32], index: 21, kind: input, shape index: {}]
  %s22 = inlined_call_operand.vmem [shape: f32[2,8,32], index: 22, kind: output, shape index: {}, may-alias: {0,22}]
  %s23 = sld [smem:[#allocation0]]
  $region98: #{_lambda_.3} parent=0
    _
  %s25 = ssub.s32 1, %s23
  %s26 = scalar_select 0, %s25, %s23
  // Predicated region
  $region2: #{_lambda_.3} parent=0 // pred_check
    _
  $region3: #{_lambda_.3} parent=0 // pred_check_branch
    %28 = sbr.rel (0) target = $region5
  $region4: #{_lambda_.3} parent=0 // pred_region
    _
  $region5: #{_lambda_.3} parent=0 // pred_fallthru
    _
  // Predicated region
  $region6: #{_lambda_.3} parent=0 // pred_check
    _
  $region7: #{_lambda_.3} parent=0 // pred_check_branch
    %30 = sbr.rel (0) target = $region9
  $region8: #{_lambda_.3} parent=0 // pred_region
    _
  $region9: #{_lambda_.3} parent=0 // pred_fallthru
    _
  // Predicated region
  $region10: #{_lambda_.3} parent=0 // pred_check
    _
  $region11: #{_lambda_.3} parent=0 // pred_check_branch
    %32 = sbr.rel (0) target = $region13
  $region12: #{_lambda_.3} parent=0 // pred_region
    _
  $region13: #{_lambda_.3} parent=0 // pred_fallthru
    _
  // Predicated region
  $region14: #{_lambda_.3} parent=0 // pred_check
    _
  $region15: #{_lambda_.3} parent=0 // pred_check_branch
    %34 = sbr.rel (0) target = $region17
  $region16: #{_lambda_.3} parent=0 // pred_region
    _
  $region17: #{_lambda_.3} parent=0 // pred_fallthru
    _
  // Predicated region
  $region18: #{_lambda_.3} parent=0 // pred_check
    _
  $region19: #{_lambda_.3} parent=0 // pred_check_branch
    %36 = sbr.rel (0) target = $region21
  $region20: #{_lambda_.3} parent=0 // pred_region
    _
  $region21: #{_lambda_.3} parent=0 // pred_fallthru
    _
  // Predicated region
  $region22: #{_lambda_.3} parent=0 // pred_check
    _
  $region23: #{_lambda_.3} parent=0 // pred_check_branch
    %38 = sbr.rel (0) target = $region25
  $region24: #{_lambda_.3} parent=0 // pred_region
    _
  $region25: #{_lambda_.3} parent=0 // pred_fallthru
    _
  // Predicated region
  $region26: #{_lambda_.3} parent=0 // pred_check
    _
  $region27: #{_lambda_.3} parent=0 // pred_check_branch
    %40 = sbr.rel (0) target = $region29
  $region28: #{_lambda_.3} parent=0 // pred_region
    _
  $region29: #{_lambda_.3} parent=0 // pred_fallthru
    _
  // Predicated region
  $region30: #{_lambda_.3} parent=0 // pred_check
    _
  $region31: #{_lambda_.3} parent=0 // pred_check_branch
    %42 = sbr.rel (0) target = $region33
  $region32: #{_lambda_.3} parent=0 // pred_region
    _
  $region33: #{_lambda_.3} parent=0 // pred_fallthru
    _
  // Predicated region
  $region34: #{_lambda_.3} parent=0 // pred_check
    _
  $region35: #{_lambda_.3} parent=0 // pred_check_branch
    %44 = sbr.rel (0) target = $region37
  $region36: #{_lambda_.3} parent=0 // pred_region
    _
  $region37: #{_lambda_.3} parent=0 // pred_fallthru
    _
  // Predicated region
  $region38: #{_lambda_.3} parent=0 // pred_check
    _
  $region39: #{_lambda_.3} parent=0 // pred_check_branch
    %46 = sbr.rel (0) target = $region41
  $region40: #{_lambda_.3} parent=0 // pred_region
    _
  $region41: #{_lambda_.3} parent=0 // pred_fallthru
    _
  // Predicated region
  $region42: #{_lambda_.3} parent=0 // pred_check
    _
  $region43: #{_lambda_.3} parent=0 // pred_check_branch
    %48 = sbr.rel (0) target = $region45
  $region44: #{_lambda_.3} parent=0 // pred_region
    _
  $region45: #{_lambda_.3} parent=0 // pred_fallthru
    _
  // Predicated region
  $region46: #{_lambda_.3} parent=0 // pred_check
    _
  $region47: #{_lambda_.3} parent=0 // pred_check_branch
    %50 = sbr.rel (0) target = $region49
  $region48: #{_lambda_.3} parent=0 // pred_region
    _
  $region49: #{_lambda_.3} parent=0 // pred_fallthru
    _
  // Predicated region
  $region50: #{_lambda_.3} parent=0 // pred_check
    _
  $region51: #{_lambda_.3} parent=0 // pred_check_branch
    %52 = sbr.rel (0) target = $region53
  $region52: #{_lambda_.3} parent=0 // pred_region
    _
  $region53: #{_lambda_.3} parent=0 // pred_fallthru
    _
  // Predicated region
  $region54: #{_lambda_.3} parent=0 // pred_check
    _
  $region55: #{_lambda_.3} parent=0 // pred_check_branch
    %54 = sbr.rel (0) target = $region57
  $region56: #{_lambda_.3} parent=0 // pred_region
    _
  $region57: #{_lambda_.3} parent=0 // pred_fallthru
    _
  // Predicated region
  $region58: #{_lambda_.3} parent=0 // pred_check
    _
  $region59: #{_lambda_.3} parent=0 // pred_check_branch
    %56 = sbr.rel (0) target = $region61
  $region60: #{_lambda_.3} parent=0 // pred_region
    _
  $region61: #{_lambda_.3} parent=0 // pred_fallthru
    _
  // Predicated region
  $region62: #{_lambda_.3} parent=0 // pred_check
    _
  $region63: #{_lambda_.3} parent=0 // pred_check_branch
    %58 = sbr.rel (0) target = $region65
  $region64: #{_lambda_.3} parent=0 // pred_region
    _
  $region65: #{_lambda_.3} parent=0 // pred_fallthru
    _
  // Predicated region
  $region66: #{_lambda_.3} parent=0 // pred_check
    _
  $region67: #{_lambda_.3} parent=0 // pred_check_branch
    %60 = sbr.rel (0) target = $region69
  $region68: #{_lambda_.3} parent=0 // pred_region
    _
  $region69: #{_lambda_.3} parent=0 // pred_fallthru
    _
  // Predicated region
  $region70: #{_lambda_.3} parent=0 // pred_check
    _
  $region71: #{_lambda_.3} parent=0 // pred_check_branch
    %62 = sbr.rel (0) target = $region73
  $region72: #{_lambda_.3} parent=0 // pred_region
    _
  $region73: #{_lambda_.3} parent=0 // pred_fallthru
    _
  // Predicated region
  $region74: #{_lambda_.3} parent=0 // pred_check
    _
  $region75: #{_lambda_.3} parent=0 // pred_check_branch
    %64 = sbr.rel (0) target = $region77
  $region76: #{_lambda_.3} parent=0 // pred_region
    _
  $region77: #{_lambda_.3} parent=0 // pred_fallthru
    _
  // Predicated region
  $region78: #{_lambda_.3} parent=0 // pred_check
    _
  $region79: #{_lambda_.3} parent=0 // pred_check_branch
    %66 = sbr.rel (0) target = $region81
  $region80: #{_lambda_.3} parent=0 // pred_region
    _
  $region81: #{_lambda_.3} parent=0 // pred_fallthru
    _
  // Predicated region
  $region82: #{_lambda_.3} parent=0 // pred_check
    _
  $region83: #{_lambda_.3} parent=0 // pred_check_branch
    %68 = sbr.rel (0) target = $region85
  $region84: #{_lambda_.3} parent=0 // pred_region
    _
  $region85: #{_lambda_.3} parent=0 // pred_fallthru
    _
  // Predicated region
  $region86: #{_lambda_.3} parent=0 // pred_check
    _
  $region87: #{_lambda_.3} parent=0 // pred_check_branch
    %70 = sbr.rel (0) target = $region89
  $region88: #{_lambda_.3} parent=0 // pred_region
    _
  $region89: #{_lambda_.3} parent=0 // pred_fallthru
    _
  %v72 = vld [vmem:[%s0] sm:$0xff]
  %v73 = vld [vmem:[%s0 + $0x8] sm:$0xff]
  %v74 = vld [vmem:[%s1] sm:$0xff]
  %v75 = vld [vmem:[%s1 + $0x8] sm:$0xff]
  %v76 = vlaneseq
  %v77 = vshrl.u32 %v76, 7
  %v78 = vlaneseq
  %v79 = vand.u32 %v78, 127
  %vm80 = vcmp.gt.s32.totalorder %v79, %v77
  %v81 = vsel %vm80, -1e+09, 0.0
  %v82 = vpack.c.bf16 %v73, %v72
  %v83 = vld [vmem:[%s2] sm:$0xf]
  %v84 = vld [vmem:[%s2 + $0x4] sm:$0xf]
  %v85 = vld [vmem:[%s2 + $0x8] sm:$0xf]
  %v86 = vld [vmem:[%s2 + $0xc] sm:$0xf]
  %v87 = vld [vmem:[%s3] sm:$0x1]
  %v89 = vlaneseq
  %v90 = vshrl.u32 %v89, 7
  %v91 = vsub.s32 0, %v90
  %v92 = vrot.slane %v87, %v91
  %v98 = vunpack.c.l.b16 %v83
  %v99 = vunpack.c.l.b16 %v84
  %v100 = vunpack.c.l.b16 %v85
  %v101 = vunpack.c.l.b16 %v86
  %v102 = vpack.c.b16 %v99, %v98
  %v103 = vpack.c.b16 %v101, %v100
  %vm106 = vcmask 261120
  %v108 = vsel %vm106, %v82, 0
  %110 = vmatprep.subr.bf16.mxu0 0
  %111 = vmatpush1.bf16.msra.mxu0 %v102
  %112 = vmatprep.subr.bf16.mxu0 0
  %113 = vmatpush1.bf16.msra.mxu0 %v103
  %114 = vmatprep.subr.bf16.mxu0 0
  %115 = vmatpush1.bf16.msra.mxu0 0
  %116 = vmatprep.subr.bf16.mxu0 0
  %117 = vmatpush1.bf16.msra.mxu0 0
  %118 = vmatprep.subr.bf16.mxu0 0
  %119 = vmatpush1.bf16.msra.mxu0 0
  %120 = vmatprep.subr.bf16.mxu0 0
  %121 = vmatpush1.bf16.msra.mxu0 0
  %122 = vmatprep.subr.bf16.mxu0 0
  %123 = vmatpush1.bf16.msra.mxu0 0
  %124 = vmatprep.subr.bf16.mxu0 0
  %125 = vmatpush1.bf16.msra.mxu0 0
  %126 = vmatprep.subr.bf16.mxu0 0
  %127 = vmatpush1.bf16.msra.mxu0 0
  %128 = vmatprep.subr.bf16.mxu0 0
  %129 = vmatpush1.bf16.msra.mxu0 0
  %130 = vmatprep.subr.bf16.mxu0 0
  %131 = vmatpush1.bf16.msra.mxu0 0
  %132 = vmatprep.subr.bf16.mxu0 0
  %133 = vmatpush1.bf16.msra.mxu0 0
  %134 = vmatprep.subr.bf16.mxu0 0
  %135 = vmatpush1.bf16.msra.mxu0 0
  %136 = vmatprep.subr.bf16.mxu0 0
  %137 = vmatpush1.bf16.msra.mxu0 0
  %138 = vmatprep.subr.bf16.mxu0 0
  %139 = vmatpush1.bf16.msra.mxu0 0
  %140 = vmatprep.subr.bf16.mxu0 0
  %141 = vmatpush1.bf16.msra.mxu0 0
  %142 = vmatprep.mubr.bf16.mxu0 0
  %143 = vmatmul.mubr.bf16.gmra.mrb[0].mxu0 %v108
  %v144 = vpop.f32.mrb[0].mxu0
  %v145 = vadd.f32 %v92, %v144
  %v146 = vpop.f32.mrb[0].mxu0
  %v147 = vpop.f32.mrb[0].mxu0
  %v148 = vadd.f32 %v92, %v147
  %v149 = vpop.f32.mrb[0].mxu0
  %150 = vdwg.mxu0
  %v151 = vpack.c.bf16 %v145, %v145
  %153 = vrot.lane.b32.xlu0 %v151, 96
  %v154 = vpop.permute.xlu0 %153
  %vm155 = vcmask 64512
  %v157 = vsel %vm155, %v151, 0
  %v160 = vsel %vm155, %v154, 0
  %162 = vmatprep.subr.bf16.mxu0 0
  %163 = vmatpush1.bf16.xpose.msra.mxu0 %v160
  %164 = vmatprep.subr.bf16.mxu0 0
  %165 = vmatpush1.bf16.xpose.msra.mxu0 0
  %166 = vmatprep.subr.bf16.mxu0 0
  %167 = vmatpush1.bf16.xpose.msra.mxu0 0
  %168 = vmatprep.subr.bf16.mxu0 0
  %169 = vmatpush1.bf16.xpose.msra.mxu0 0
  %170 = vmatprep.subr.bf16.mxu0 0
  %171 = vmatpush1.bf16.xpose.msra.mxu0 0
  %172 = vmatprep.subr.bf16.mxu0 0
  %173 = vmatpush1.bf16.xpose.msra.mxu0 0
  %174 = vmatprep.subr.bf16.mxu0 0
  %175 = vmatpush1.bf16.xpose.msra.mxu0 0
  %176 = vmatprep.subr.bf16.mxu0 0
  %177 = vmatpush1.bf16.xpose.msra.mxu0 0
  %178 = vmatprep.subr.bf16.mxu0 0
  %179 = vmatpush1.bf16.xpose.msra.mxu0 0
  %180 = vmatprep.subr.bf16.mxu0 0
  %181 = vmatpush1.bf16.xpose.msra.mxu0 0
  %182 = vmatprep.subr.bf16.mxu0 0
  %183 = vmatpush1.bf16.xpose.msra.mxu0 0
  %184 = vmatprep.subr.bf16.mxu0 0
  %185 = vmatpush1.bf16.xpose.msra.mxu0 0
  %186 = vmatprep.subr.bf16.mxu0 0
  %187 = vmatpush1.bf16.xpose.msra.mxu0 0
  %188 = vmatprep.subr.bf16.mxu0 0
  %189 = vmatpush1.bf16.xpose.msra.mxu0 0
  %190 = vmatprep.subr.bf16.mxu0 0
  %191 = vmatpush1.bf16.xpose.msra.mxu0 0
  %192 = vmatprep.subr.bf16.mxu0 0
  %193 = vmatpush1.bf16.xpose.msra.mxu0 0
  %194 = vmatprep.mubr.bf16.mxu0 0
  %195 = vmatmul.mubr.bf16.gmra.mrb[0].mxu0 %v157
  %v196 = vpop.f32.mrb[0].mxu0
  %v197 = vadd.f32 0.0, %v196
  %v198 = vpop.f32.mrb[0].mxu0
  %v199 = vpop.f32.mrb[0].mxu0
  %v200 = vpop.f32.mrb[0].mxu0
  %201 = vdwg.mxu0
  %v202 = vmul.f32 %v197, 0.35355338
  %v203 = vadd.f32 %v202, %v81
  %v204 = vsel %vm155, %v203, -inf
  %205 = vmax.xlane.f32.xlu0 %v204
  %v206 = vpop.xlane.xlu0 %205
  %v207 = vsub.f32 %v203, %v206
  %v208 = vmul.f32 %v207, 1.442695
  %v209 = vpow.pop %v208
  %v210 = vsel %vm155, %v209, 0.0
  %211 = vadd.xlane.f32.xlu0 %v210
  %v212 = vpop.xlane.xlu0 %211
  %v213 = vrcp.pop %v212
  %v214 = vmul.f32 %v209, %v213
  %v215 = vpack.c.bf16 %v214, %v214
  %216 = vrot.lane.b32.xlu0 %v151, 64
  %v217 = vpop.permute.xlu0 %216
  %v219 = vsel %vm155, %v215, 0
  %vm221 = vcmask 1043456
  %v223 = vsel %vm221, %v217, 0
  %225 = vmatprep.subr.bf16.mxu0 0
  %226 = vmatpush1.bf16.msra.mxu0 %v223
  %227 = vmatprep.subr.bf16.mxu0 0
  %228 = vmatpush1.bf16.msra.mxu0 0
  %229 = vmatprep.subr.bf16.mxu0 0
  %230 = vmatpush1.bf16.msra.mxu0 0
  %231 = vmatprep.subr.bf16.mxu0 0
  %232 = vmatpush1.bf16.msra.mxu0 0
  %233 = vmatprep.subr.bf16.mxu0 0
  %234 = vmatpush1.bf16.msra.mxu0 0
  %235 = vmatprep.subr.bf16.mxu0 0
  %236 = vmatpush1.bf16.msra.mxu0 0
  %237 = vmatprep.subr.bf16.mxu0 0
  %238 = vmatpush1.bf16.msra.mxu0 0
  %239 = vmatprep.subr.bf16.mxu0 0
  %240 = vmatpush1.bf16.msra.mxu0 0
  %241 = vmatprep.subr.bf16.mxu0 0
  %242 = vmatpush1.bf16.msra.mxu0 0
  %243 = vmatprep.subr.bf16.mxu0 0
  %244 = vmatpush1.bf16.msra.mxu0 0
  %245 = vmatprep.subr.bf16.mxu0 0
  %246 = vmatpush1.bf16.msra.mxu0 0
  %247 = vmatprep.subr.bf16.mxu0 0
  %248 = vmatpush1.bf16.msra.mxu0 0
  %249 = vmatprep.subr.bf16.mxu0 0
  %250 = vmatpush1.bf16.msra.mxu0 0
  %251 = vmatprep.subr.bf16.mxu0 0
  %252 = vmatpush1.bf16.msra.mxu0 0
  %253 = vmatprep.subr.bf16.mxu0 0
  %254 = vmatpush1.bf16.msra.mxu0 0
  %255 = vmatprep.subr.bf16.mxu0 0
  %256 = vmatpush1.bf16.msra.mxu0 0
  %257 = vmatprep.mubr.bf16.mxu0 0
  %258 = vmatmul.mubr.bf16.gmra.mrb[0].mxu0 %v219
  %v259 = vpop.f32.mrb[0].mxu0
  %v260 = vadd.f32 0.0, %v259
  %v261 = vpop.f32.mrb[0].mxu0
  %v262 = vpop.f32.mrb[0].mxu0
  %v263 = vpop.f32.mrb[0].mxu0
  %264 = vdwg.mxu0
  %265 = vrot.lane.b32.xlu0 %v151, 120
  %v266 = vpop.permute.xlu0 %265
  %267 = vrot.lane.b32.xlu0 %v151, 88
  %v268 = vpop.permute.xlu0 %267
  %v270 = vsel %vm155, %v266, 0
  %v273 = vsel %vm155, %v268, 0
  %275 = vmatprep.subr.bf16.mxu0 0
  %276 = vmatpush1.bf16.xpose.msra.mxu0 %v273
  %277 = vmatprep.subr.bf16.mxu0 0
  %278 = vmatpush1.bf16.xpose.msra.mxu0 0
  %279 = vmatprep.subr.bf16.mxu0 0
  %280 = vmatpush1.bf16.xpose.msra.mxu0 0
  %281 = vmatprep.subr.bf16.mxu0 0
  %282 = vmatpush1.bf16.xpose.msra.mxu0 0
  %283 = vmatprep.subr.bf16.mxu0 0
  %284 = vmatpush1.bf16.xpose.msra.mxu0 0
  %285 = vmatprep.subr.bf16.mxu0 0
  %286 = vmatpush1.bf16.xpose.msra.mxu0 0
  %287 = vmatprep.subr.bf16.mxu0 0
  %288 = vmatpush1.bf16.xpose.msra.mxu0 0
  %289 = vmatprep.subr.bf16.mxu0 0
  %290 = vmatpush1.bf16.xpose.msra.mxu0 0
  %291 = vmatprep.subr.bf16.mxu0 0
  %292 = vmatpush1.bf16.xpose.msra.mxu0 0
  %293 = vmatprep.subr.bf16.mxu0 0
  %294 = vmatpush1.bf16.xpose.msra.mxu0 0
  %295 = vmatprep.subr.bf16.mxu0 0
  %296 = vmatpush1.bf16.xpose.msra.mxu0 0
  %297 = vmatprep.subr.bf16.mxu0 0
  %298 = vmatpush1.bf16.xpose.msra.mxu0 0
  %299 = vmatprep.subr.bf16.mxu0 0
  %300 = vmatpush1.bf16.xpose.msra.mxu0 0
  %301 = vmatprep.subr.bf16.mxu0 0
  %302 = vmatpush1.bf16.xpose.msra.mxu0 0
  %303 = vmatprep.subr.bf16.mxu0 0
  %304 = vmatpush1.bf16.xpose.msra.mxu0 0
  %305 = vmatprep.subr.bf16.mxu0 0
  %306 = vmatpush1.bf16.xpose.msra.mxu0 0
  %307 = vmatprep.mubr.bf16.mxu0 0
  %308 = vmatmul.mubr.bf16.gmra.mrb[0].mxu0 %v270
  %v309 = vpop.f32.mrb[0].mxu0
  %v310 = vadd.f32 0.0, %v309
  %v311 = vpop.f32.mrb[0].mxu0
  %v312 = vpop.f32.mrb[0].mxu0
  %v313 = vpop.f32.mrb[0].mxu0
  %314 = vdwg.mxu0
  %v315 = vmul.f32 %v310, 0.35355338
  %v316 = vadd.f32 %v315, %v81
  %v317 = vsel %vm155, %v316, -inf
  %318 = vmax.xlane.f32.xlu0 %v317
  %v319 = vpop.xlane.xlu0 %318
  %v320 = vsub.f32 %v316, %v319
  %v321 = vmul.f32 %v320, 1.442695
  %v322 = vpow.pop %v321
  %v323 = vsel %vm155, %v322, 0.0
  %324 = vadd.xlane.f32.xlu0 %v323
  %v325 = vpop.xlane.xlu0 %324
  %v326 = vrcp.pop %v325
  %v327 = vmul.f32 %v322, %v326
  %v328 = vpack.c.bf16 %v327, %v327
  %329 = vrot.lane.b32.xlu0 %v151, 56
  %v330 = vpop.permute.xlu0 %329
  %v332 = vsel %vm155, %v328, 0
  %v335 = vsel %vm221, %v330, 0
  %337 = vmatprep.subr.bf16.mxu0 0
  %338 = vmatpush1.bf16.msra.mxu0 %v335
  %339 = vmatprep.subr.bf16.mxu0 0
  %340 = vmatpush1.bf16.msra.mxu0 0
  %341 = vmatprep.subr.bf16.mxu0 0
  %342 = vmatpush1.bf16.msra.mxu0 0
  %343 = vmatprep.subr.bf16.mxu0 0
  %344 = vmatpush1.bf16.msra.mxu0 0
  %345 = vmatprep.subr.bf16.mxu0 0
  %346 = vmatpush1.bf16.msra.mxu0 0
  %347 = vmatprep.subr.bf16.mxu0 0
  %348 = vmatpush1.bf16.msra.mxu0 0
  %349 = vmatprep.subr.bf16.mxu0 0
  %350 = vmatpush1.bf16.msra.mxu0 0
  %351 = vmatprep.subr.bf16.mxu0 0
  %352 = vmatpush1.bf16.msra.mxu0 0
  %353 = vmatprep.subr.bf16.mxu0 0
  %354 = vmatpush1.bf16.msra.mxu0 0
  %355 = vmatprep.subr.bf16.mxu0 0
  %356 = vmatpush1.bf16.msra.mxu0 0
  %357 = vmatprep.subr.bf16.mxu0 0
  %358 = vmatpush1.bf16.msra.mxu0 0
  %359 = vmatprep.subr.bf16.mxu0 0
  %360 = vmatpush1.bf16.msra.mxu0 0
  %361 = vmatprep.subr.bf16.mxu0 0
  %362 = vmatpush1.bf16.msra.mxu0 0
  %363 = vmatprep.subr.bf16.mxu0 0
  %364 = vmatpush1.bf16.msra.mxu0 0
  %365 = vmatprep.subr.bf16.mxu0 0
  %366 = vmatpush1.bf16.msra.mxu0 0
  %367 = vmatprep.subr.bf16.mxu0 0
  %368 = vmatpush1.bf16.msra.mxu0 0
  %369 = vmatprep.mubr.bf16.mxu0 0
  %370 = vmatmul.mubr.bf16.gmra.mrb[0].mxu0 %v332
  %v371 = vpop.f32.mrb[0].mxu0
  %v372 = vadd.f32 0.0, %v371
  %v373 = vpop.f32.mrb[0].mxu0
  %v374 = vpop.f32.mrb[0].mxu0
  %v375 = vpop.f32.mrb[0].mxu0
  %376 = vdwg.mxu0
  %377 = vrot.lane.b32.xlu0 %v151, 112
  %v378 = vpop.permute.xlu0 %377
  %379 = vrot.lane.b32.xlu0 %v151, 80
  %v380 = vpop.permute.xlu0 %379
  %v382 = vsel %vm155, %v378, 0
  %v385 = vsel %vm155, %v380, 0
  %387 = vmatprep.subr.bf16.mxu0 0
  %388 = vmatpush1.bf16.xpose.msra.mxu0 %v385
  %389 = vmatprep.subr.bf16.mxu0 0
  %390 = vmatpush1.bf16.xpose.msra.mxu0 0
  %391 = vmatprep.subr.bf16.mxu0 0
  %392 = vmatpush1.bf16.xpose.msra.mxu0 0
  %393 = vmatprep.subr.bf16.mxu0 0
  %394 = vmatpush1.bf16.xpose.msra.mxu0 0
  %395 = vmatprep.subr.bf16.mxu0 0
  %396 = vmatpush1.bf16.xpose.msra.mxu0 0
  %397 = vmatprep.subr.bf16.mxu0 0
  %398 = vmatpush1.bf16.xpose.msra.mxu0 0
  %399 = vmatprep.subr.bf16.mxu0 0
  %400 = vmatpush1.bf16.xpose.msra.mxu0 0
  %401 = vmatprep.subr.bf16.mxu0 0
  %402 = vmatpush1.bf16.xpose.msra.mxu0 0
  %403 = vmatprep.subr.bf16.mxu0 0
  %404 = vmatpush1.bf16.xpose.msra.mxu0 0
  %405 = vmatprep.subr.bf16.mxu0 0
  %406 = vmatpush1.bf16.xpose.msra.mxu0 0
  %407 = vmatprep.subr.bf16.mxu0 0
  %408 = vmatpush1.bf16.xpose.msra.mxu0 0
  %409 = vmatprep.subr.bf16.mxu0 0
  %410 = vmatpush1.bf16.xpose.msra.mxu0 0
  %411 = vmatprep.subr.bf16.mxu0 0
  %412 = vmatpush1.bf16.xpose.msra.mxu0 0
  %413 = vmatprep.subr.bf16.mxu0 0
  %414 = vmatpush1.bf16.xpose.msra.mxu0 0
  %415 = vmatprep.subr.bf16.mxu0 0
  %416 = vmatpush1.bf16.xpose.msra.mxu0 0
  %417 = vmatprep.subr.bf16.mxu0 0
  %418 = vmatpush1.bf16.xpose.msra.mxu0 0
  %419 = vmatprep.mubr.bf16.mxu0 0
  %420 = vmatmul.mubr.bf16.gmra.mrb[0].mxu0 %v382
  %v421 = vpop.f32.mrb[0].mxu0
  %v422 = vadd.f32 0.0, %v421
  %v423 = vpop.f32.mrb[0].mxu0
  %v424 = vpop.f32.mrb[0].mxu0
  %v425 = vpop.f32.mrb[0].mxu0
  %426 = vdwg.mxu0
  %v427 = vmul.f32 %v422, 0.35355338
  %v428 = vadd.f32 %v427, %v81
  %v429 = vsel %vm155, %v428, -inf
  %430 = vmax.xlane.f32.xlu0 %v429
  %v431 = vpop.xlane.xlu0 %430
  %v432 = vsub.f32 %v428, %v431
  %v433 = vmul.f32 %v432, 1.442695
  %v434 = vpow.pop %v433
  %v435 = vsel %vm155, %v434, 0.0
  %436 = vadd.xlane.f32.xlu0 %v435
  %v437 = vpop.xlane.xlu0 %436
  %v438 = vrcp.pop %v437
  %v439 = vmul.f32 %v434, %v438
  %v440 = vpack.c.bf16 %v439, %v439
  %441 = vrot.lane.b32.xlu0 %v151, 48
  %v442 = vpop.permute.xlu0 %441
  %v444 = vsel %vm155, %v440, 0
  %v447 = vsel %vm221, %v442, 0
  %449 = vmatprep.subr.bf16.mxu0 0
  %450 = vmatpush1.bf16.msra.mxu0 %v447
  %451 = vmatprep.subr.bf16.mxu0 0
  %452 = vmatpush1.bf16.msra.mxu0 0
  %453 = vmatprep.subr.bf16.mxu0 0
  %454 = vmatpush1.bf16.msra.mxu0 0
  %455 = vmatprep.subr.bf16.mxu0 0
  %456 = vmatpush1.bf16.msra.mxu0 0
  %457 = vmatprep.subr.bf16.mxu0 0
  %458 = vmatpush1.bf16.msra.mxu0 0
  %459 = vmatprep.subr.bf16.mxu0 0
  %460 = vmatpush1.bf16.msra.mxu0 0
  %461 = vmatprep.subr.bf16.mxu0 0
  %462 = vmatpush1.bf16.msra.mxu0 0
  %463 = vmatprep.subr.bf16.mxu0 0
  %464 = vmatpush1.bf16.msra.mxu0 0
  %465 = vmatprep.subr.bf16.mxu0 0
  %466 = vmatpush1.bf16.msra.mxu0 0
  %467 = vmatprep.subr.bf16.mxu0 0
  %468 = vmatpush1.bf16.msra.mxu0 0
  %469 = vmatprep.subr.bf16.mxu0 0
  %470 = vmatpush1.bf16.msra.mxu0 0
  %471 = vmatprep.subr.bf16.mxu0 0
  %472 = vmatpush1.bf16.msra.mxu0 0
  %473 = vmatprep.subr.bf16.mxu0 0
  %474 = vmatpush1.bf16.msra.mxu0 0
  %475 = vmatprep.subr.bf16.mxu0 0
  %476 = vmatpush1.bf16.msra.mxu0 0
  %477 = vmatprep.subr.bf16.mxu0 0
  %478 = vmatpush1.bf16.msra.mxu0 0
  %479 = vmatprep.subr.bf16.mxu0 0
  %480 = vmatpush1.bf16.msra.mxu0 0
  %481 = vmatprep.mubr.bf16.mxu0 0
  %482 = vmatmul.mubr.bf16.gmra.mrb[0].mxu0 %v444
  %v483 = vpop.f32.mrb[0].mxu0
  %v484 = vadd.f32 0.0, %v483
  %v485 = vpop.f32.mrb[0].mxu0
  %v486 = vpop.f32.mrb[0].mxu0
  %v487 = vpop.f32.mrb[0].mxu0
  %488 = vdwg.mxu0
  %489 = vrot.lane.b32.xlu0 %v151, 104
  %v490 = vpop.permute.xlu0 %489
  %491 = vrot.lane.b32.xlu0 %v151, 72
  %v492 = vpop.permute.xlu0 %491
  %v494 = vsel %vm155, %v490, 0
  %v497 = vsel %vm155, %v492, 0
  %499 = vmatprep.subr.bf16.mxu0 0
  %500 = vmatpush1.bf16.xpose.msra.mxu0 %v497
  %501 = vmatprep.subr.bf16.mxu0 0
  %502 = vmatpush1.bf16.xpose.msra.mxu0 0
  %503 = vmatprep.subr.bf16.mxu0 0
  %504 = vmatpush1.bf16.xpose.msra.mxu0 0
  %505 = vmatprep.subr.bf16.mxu0 0
  %506 = vmatpush1.bf16.xpose.msra.mxu0 0
  %507 = vmatprep.subr.bf16.mxu0 0
  %508 = vmatpush1.bf16.xpose.msra.mxu0 0
  %509 = vmatprep.subr.bf16.mxu0 0
  %510 = vmatpush1.bf16.xpose.msra.mxu0 0
  %511 = vmatprep.subr.bf16.mxu0 0
  %512 = vmatpush1.bf16.xpose.msra.mxu0 0
  %513 = vmatprep.subr.bf16.mxu0 0
  %514 = vmatpush1.bf16.xpose.msra.mxu0 0
  %515 = vmatprep.subr.bf16.mxu0 0
  %516 = vmatpush1.bf16.xpose.msra.mxu0 0
  %517 = vmatprep.subr.bf16.mxu0 0
  %518 = vmatpush1.bf16.xpose.msra.mxu0 0
  %519 = vmatprep.subr.bf16.mxu0 0
  %520 = vmatpush1.bf16.xpose.msra.mxu0 0
  %521 = vmatprep.subr.bf16.mxu0 0
  %522 = vmatpush1.bf16.xpose.msra.mxu0 0
  %523 = vmatprep.subr.bf16.mxu0 0
  %524 = vmatpush1.bf16.xpose.msra.mxu0 0
  %525 = vmatprep.subr.bf16.mxu0 0
  %526 = vmatpush1.bf16.xpose.msra.mxu0 0
  %527 = vmatprep.subr.bf16.mxu0 0
  %528 = vmatpush1.bf16.xpose.msra.mxu0 0
  %529 = vmatprep.subr.bf16.mxu0 0
  %530 = vmatpush1.bf16.xpose.msra.mxu0 0
  %531 = vmatprep.mubr.bf16.mxu0 0
  %532 = vmatmul.mubr.bf16.gmra.mrb[0].mxu0 %v494
  %v533 = vpop.f32.mrb[0].mxu0
  %v534 = vadd.f32 0.0, %v533
  %v535 = vpop.f32.mrb[0].mxu0
  %v536 = vpop.f32.mrb[0].mxu0
  %v537 = vpop.f32.mrb[0].mxu0
  %538 = vdwg.mxu0
  %v539 = vmul.f32 %v534, 0.35355338
  %v540 = vadd.f32 %v539, %v81
  %v541 = vsel %vm155, %v540, -inf
  %542 = vmax.xlane.f32.xlu0 %v541
  %v543 = vpop.xlane.xlu0 %542
  %v544 = vsub.f32 %v540, %v543
  %v545 = vmul.f32 %v544, 1.442695
  %v546 = vpow.pop %v545
  %v547 = vsel %vm155, %v546, 0.0
  %548 = vadd.xlane.f32.xlu0 %v547
  %v549 = vpop.xlane.xlu0 %548
  %v550 = vrcp.pop %v549
  %v551 = vmul.f32 %v546, %v550
  %v552 = vpack.c.bf16 %v551, %v551
  %553 = vrot.lane.b32.xlu0 %v151, 40
  %v554 = vpop.permute.xlu0 %553
  %v556 = vsel %vm155, %v552, 0
  %v559 = vsel %vm221, %v554, 0
  %561 = vmatprep.subr.bf16.mxu0 0
  %562 = vmatpush1.bf16.msra.mxu0 %v559
  %563 = vmatprep.subr.bf16.mxu0 0
  %564 = vmatpush1.bf16.msra.mxu0 0
  %565 = vmatprep.subr.bf16.mxu0 0
  %566 = vmatpush1.bf16.msra.mxu0 0
  %567 = vmatprep.subr.bf16.mxu0 0
  %568 = vmatpush1.bf16.msra.mxu0 0
  %569 = vmatprep.subr.bf16.mxu0 0
  %570 = vmatpush1.bf16.msra.mxu0 0
  %571 = vmatprep.subr.bf16.mxu0 0
  %572 = vmatpush1.bf16.msra.mxu0 0
  %573 = vmatprep.subr.bf16.mxu0 0
  %574 = vmatpush1.bf16.msra.mxu0 0
  %575 = vmatprep.subr.bf16.mxu0 0
  %576 = vmatpush1.bf16.msra.mxu0 0
  %577 = vmatprep.subr.bf16.mxu0 0
  %578 = vmatpush1.bf16.msra.mxu0 0
  %579 = vmatprep.subr.bf16.mxu0 0
  %580 = vmatpush1.bf16.msra.mxu0 0
  %581 = vmatprep.subr.bf16.mxu0 0
  %582 = vmatpush1.bf16.msra.mxu0 0
  %583 = vmatprep.subr.bf16.mxu0 0
  %584 = vmatpush1.bf16.msra.mxu0 0
  %585 = vmatprep.subr.bf16.mxu0 0
  %586 = vmatpush1.bf16.msra.mxu0 0
  %587 = vmatprep.subr.bf16.mxu0 0
  %588 = vmatpush1.bf16.msra.mxu0 0
  %589 = vmatprep.subr.bf16.mxu0 0
  %590 = vmatpush1.bf16.msra.mxu0 0
  %591 = vmatprep.subr.bf16.mxu0 0
  %592 = vmatpush1.bf16.msra.mxu0 0
  %593 = vmatprep.mubr.bf16.mxu0 0
  %594 = vmatmul.mubr.bf16.gmra.mrb[0].mxu0 %v556
  %v595 = vpop.f32.mrb[0].mxu0
  %v596 = vadd.f32 0.0, %v595
  %v597 = vpop.f32.mrb[0].mxu0
  %v598 = vpop.f32.mrb[0].mxu0
  %v599 = vpop.f32.mrb[0].mxu0
  %600 = vdwg.mxu0
  %602 = vrot.lane.b32.xlu0 %v372, 8
  %v603 = vpop.permute.xlu0 %602
  %606 = vrot.lane.b32.xlu0 %v484, 16
  %v607 = vpop.permute.xlu0 %606
  %610 = vrot.lane.b32.xlu0 %v596, 24
  %v611 = vpop.permute.xlu0 %610
  %v613 = vsel %vm155, %v260, %v603
  %vm614 = vcmask 130048
  %v615 = vsel %vm614, %v613, %v607
  %vm616 = vcmask 195584
  %v617 = vsel %vm616, %v615, %v611
  %v618 = vpack.c.bf16 %v148, %v148
  %620 = vrot.lane.b32.xlu0 %v618, 96
  %v621 = vpop.permute.xlu0 %620
  %v623 = vsel %vm155, %v618, 0
  %v626 = vsel %vm155, %v621, 0
  %628 = vmatprep.subr.bf16.mxu0 0
  %629 = vmatpush1.bf16.xpose.msra.mxu0 %v626
  %630 = vmatprep.subr.bf16.mxu0 0
  %631 = vmatpush1.bf16.xpose.msra.mxu0 0
  %632 = vmatprep.subr.bf16.mxu0 0
  %633 = vmatpush1.bf16.xpose.msra.mxu0 0
  %634 = vmatprep.subr.bf16.mxu0 0
  %635 = vmatpush1.bf16.xpose.msra.mxu0 0
  %636 = vmatprep.subr.bf16.mxu0 0
  %637 = vmatpush1.bf16.xpose.msra.mxu0 0
  %638 = vmatprep.subr.bf16.mxu0 0
  %639 = vmatpush1.bf16.xpose.msra.mxu0 0
  %640 = vmatprep.subr.bf16.mxu0 0
  %641 = vmatpush1.bf16.xpose.msra.mxu0 0
  %642 = vmatprep.subr.bf16.mxu0 0
  %643 = vmatpush1.bf16.xpose.msra.mxu0 0
  %644 = vmatprep.subr.bf16.mxu0 0
  %645 = vmatpush1.bf16.xpose.msra.mxu0 0
  %646 = vmatprep.subr.bf16.mxu0 0
  %647 = vmatpush1.bf16.xpose.msra.mxu0 0
  %648 = vmatprep.subr.bf16.mxu0 0
  %649 = vmatpush1.bf16.xpose.msra.mxu0 0
  %650 = vmatprep.subr.bf16.mxu0 0
  %651 = vmatpush1.bf16.xpose.msra.mxu0 0
  %652 = vmatprep.subr.bf16.mxu0 0
  %653 = vmatpush1.bf16.xpose.msra.mxu0 0
  %654 = vmatprep.subr.bf16.mxu0 0
  %655 = vmatpush1.bf16.xpose.msra.mxu0 0
  %656 = vmatprep.subr.bf16.mxu0 0
  %657 = vmatpush1.bf16.xpose.msra.mxu0 0
  %658 = vmatprep.subr.bf16.mxu0 0
  %659 = vmatpush1.bf16.xpose.msra.mxu0 0
  %660 = vmatprep.mubr.bf16.mxu0 0
  %661 = vmatmul.mubr.bf16.gmra.mrb[0].mxu0 %v623
  %v662 = vpop.f32.mrb[0].mxu0
  %v663 = vadd.f32 0.0, %v662
  %v664 = vpop.f32.mrb[0].mxu0
  %v665 = vpop.f32.mrb[0].mxu0
  %v666 = vpop.f32.mrb[0].mxu0
  %667 = vdwg.mxu0
  %v668 = vmul.f32 %v663, 0.35355338
  %v669 = vadd.f32 %v668, %v81
  %v670 = vsel %vm155, %v669, -inf
  %671 = vmax.xlane.f32.xlu0 %v670
  %v672 = vpop.xlane.xlu0 %671
  %v673 = vsub.f32 %v669, %v672
  %v674 = vmul.f32 %v673, 1.442695
  %v675 = vpow.pop %v674
  %v676 = vsel %vm155, %v675, 0.0
  %677 = vadd.xlane.f32.xlu0 %v676
  %v678 = vpop.xlane.xlu0 %677
  %v679 = vrcp.pop %v678
  %v680 = vmul.f32 %v675, %v679
  %v681 = vpack.c.bf16 %v680, %v680
  %682 = vrot.lane.b32.xlu0 %v618, 64
  %v683 = vpop.permute.xlu0 %682
  %v685 = vsel %vm155, %v681, 0
  %v688 = vsel %vm221, %v683, 0
  %690 = vmatprep.subr.bf16.mxu0 0
  %691 = vmatpush1.bf16.msra.mxu0 %v688
  %692 = vmatprep.subr.bf16.mxu0 0
  %693 = vmatpush1.bf16.msra.mxu0 0
  %694 = vmatprep.subr.bf16.mxu0 0
  %695 = vmatpush1.bf16.msra.mxu0 0
  %696 = vmatprep.subr.bf16.mxu0 0
  %697 = vmatpush1.bf16.msra.mxu0 0
  %698 = vmatprep.subr.bf16.mxu0 0
  %699 = vmatpush1.bf16.msra.mxu0 0
  %700 = vmatprep.subr.bf16.mxu0 0
  %701 = vmatpush1.bf16.msra.mxu0 0
  %702 = vmatprep.subr.bf16.mxu0 0
  %703 = vmatpush1.bf16.msra.mxu0 0
  %704 = vmatprep.subr.bf16.mxu0 0
  %705 = vmatpush1.bf16.msra.mxu0 0
  %706 = vmatprep.subr.bf16.mxu0 0
  %707 = vmatpush1.bf16.msra.mxu0 0
  %708 = vmatprep.subr.bf16.mxu0 0
  %709 = vmatpush1.bf16.msra.mxu0 0
  %710 = vmatprep.subr.bf16.mxu0 0
  %711 = vmatpush1.bf16.msra.mxu0 0
  %712 = vmatprep.subr.bf16.mxu0 0
  %713 = vmatpush1.bf16.msra.mxu0 0
  %714 = vmatprep.subr.bf16.mxu0 0
  %715 = vmatpush1.bf16.msra.mxu0 0
  %716 = vmatprep.subr.bf16.mxu0 0
  %717 = vmatpush1.bf16.msra.mxu0 0
  %718 = vmatprep.subr.bf16.mxu0 0
  %719 = vmatpush1.bf16.msra.mxu0 0
  %720 = vmatprep.subr.bf16.mxu0 0
  %721 = vmatpush1.bf16.msra.mxu0 0
  %722 = vmatprep.mubr.bf16.mxu0 0
  %723 = vmatmul.mubr.bf16.gmra.mrb[0].mxu0 %v685
  %v724 = vpop.f32.mrb[0].mxu0
  %v725 = vadd.f32 0.0, %v724
  %v726 = vpop.f32.mrb[0].mxu0
  %v727 = vpop.f32.mrb[0].mxu0
  %v728 = vpop.f32.mrb[0].mxu0
  %729 = vdwg.mxu0
  %730 = vrot.lane.b32.xlu0 %v618, 120
  %v731 = vpop.permute.xlu0 %730
  %732 = vrot.lane.b32.xlu0 %v618, 88
  %v733 = vpop.permute.xlu0 %732
  %v735 = vsel %vm155, %v731, 0
  %v738 = vsel %vm155, %v733, 0
  %740 = vmatprep.subr.bf16.mxu0 0
  %741 = vmatpush1.bf16.xpose.msra.mxu0 %v738
  %742 = vmatprep.subr.bf16.mxu0 0
  %743 = vmatpush1.bf16.xpose.msra.mxu0 0
  %744 = vmatprep.subr.bf16.mxu0 0
  %745 = vmatpush1.bf16.xpose.msra.mxu0 0
  %746 = vmatprep.subr.bf16.mxu0 0
  %747 = vmatpush1.bf16.xpose.msra.mxu0 0
  %748 = vmatprep.subr.bf16.mxu0 0
  %749 = vmatpush1.bf16.xpose.msra.mxu0 0
  %750 = vmatprep.subr.bf16.mxu0 0
  %751 = vmatpush1.bf16.xpose.msra.mxu0 0
  %752 = vmatprep.subr.bf16.mxu0 0
  %753 = vmatpush1.bf16.xpose.msra.mxu0 0
  %754 = vmatprep.subr.bf16.mxu0 0
  %755 = vmatpush1.bf16.xpose.msra.mxu0 0
  %756 = vmatprep.subr.bf16.mxu0 0
  %757 = vmatpush1.bf16.xpose.msra.mxu0 0
  %758 = vmatprep.subr.bf16.mxu0 0
  %759 = vmatpush1.bf16.xpose.msra.mxu0 0
  %760 = vmatprep.subr.bf16.mxu0 0
  %761 = vmatpush1.bf16.xpose.msra.mxu0 0
  %762 = vmatprep.subr.bf16.mxu0 0
  %763 = vmatpush1.bf16.xpose.msra.mxu0 0
  %764 = vmatprep.subr.bf16.mxu0 0
  %765 = vmatpush1.bf16.xpose.msra.mxu0 0
  %766 = vmatprep.subr.bf16.mxu0 0
  %767 = vmatpush1.bf16.xpose.msra.mxu0 0
  %768 = vmatprep.subr.bf16.mxu0 0
  %769 = vmatpush1.bf16.xpose.msra.mxu0 0
  %770 = vmatprep.subr.bf16.mxu0 0
  %771 = vmatpush1.bf16.xpose.msra.mxu0 0
  %772 = vmatprep.mubr.bf16.mxu0 0
  %773 = vmatmul.mubr.bf16.gmra.mrb[0].mxu0 %v735
  %v774 = vpop.f32.mrb[0].mxu0
  %v775 = vadd.f32 0.0, %v774
  %v776 = vpop.f32.mrb[0].mxu0
  %v777 = vpop.f32.mrb[0].mxu0
  %v778 = vpop.f32.mrb[0].mxu0
  %779 = vdwg.mxu0
  %v780 = vmul.f32 %v775, 0.35355338
  %v781 = vadd.f32 %v780, %v81
  %v782 = vsel %vm155, %v781, -inf
  %783 = vmax.xlane.f32.xlu0 %v782
  %v784 = vpop.xlane.xlu0 %783
  %v785 = vsub.f32 %v781, %v784
  %v786 = vmul.f32 %v785, 1.442695
  %v787 = vpow.pop %v786
  %v788 = vsel %vm155, %v787, 0.0
  %789 = vadd.xlane.f32.xlu0 %v788
  %v790 = vpop.xlane.xlu0 %789
  %v791 = vrcp.pop %v790
  %v792 = vmul.f32 %v787, %v791
  %v793 = vpack.c.bf16 %v792, %v792
  %794 = vrot.lane.b32.xlu0 %v618, 56
  %v795 = vpop.permute.xlu0 %794
  %v797 = vsel %vm155, %v793, 0
  %v800 = vsel %vm221, %v795, 0
  %802 = vmatprep.subr.bf16.mxu0 0
  %803 = vmatpush1.bf16.msra.mxu0 %v800
  %804 = vmatprep.subr.bf16.mxu0 0
  %805 = vmatpush1.bf16.msra.mxu0 0
  %806 = vmatprep.subr.bf16.mxu0 0
  %807 = vmatpush1.bf16.msra.mxu0 0
  %808 = vmatprep.subr.bf16.mxu0 0
  %809 = vmatpush1.bf16.msra.mxu0 0
  %810 = vmatprep.subr.bf16.mxu0 0
  %811 = vmatpush1.bf16.msra.mxu0 0
  %812 = vmatprep.subr.bf16.mxu0 0
  %813 = vmatpush1.bf16.msra.mxu0 0
  %814 = vmatprep.subr.bf16.mxu0 0
  %815 = vmatpush1.bf16.msra.mxu0 0
  %816 = vmatprep.subr.bf16.mxu0 0
  %817 = vmatpush1.bf16.msra.mxu0 0
  %818 = vmatprep.subr.bf16.mxu0 0
  %819 = vmatpush1.bf16.msra.mxu0 0
  %820 = vmatprep.subr.bf16.mxu0 0
  %821 = vmatpush1.bf16.msra.mxu0 0
  %822 = vmatprep.subr.bf16.mxu0 0
  %823 = vmatpush1.bf16.msra.mxu0 0
  %824 = vmatprep.subr.bf16.mxu0 0
  %825 = vmatpush1.bf16.msra.mxu0 0
  %826 = vmatprep.subr.bf16.mxu0 0
  %827 = vmatpush1.bf16.msra.mxu0 0
  %828 = vmatprep.subr.bf16.mxu0 0
  %829 = vmatpush1.bf16.msra.mxu0 0
  %830 = vmatprep.subr.bf16.mxu0 0
  %831 = vmatpush1.bf16.msra.mxu0 0
  %832 = vmatprep.subr.bf16.mxu0 0
  %833 = vmatpush1.bf16.msra.mxu0 0
  %834 = vmatprep.mubr.bf16.mxu0 0
  %835 = vmatmul.mubr.bf16.gmra.mrb[0].mxu0 %v797
  %v836 = vpop.f32.mrb[0].mxu0
  %v837 = vadd.f32 0.0, %v836
  %v838 = vpop.f32.mrb[0].mxu0
  %v839 = vpop.f32.mrb[0].mxu0
  %v840 = vpop.f32.mrb[0].mxu0
  %841 = vdwg.mxu0
  %842 = vrot.lane.b32.xlu0 %v618, 112
  %v843 = vpop.permute.xlu0 %842
  %844 = vrot.lane.b32.xlu0 %v618, 80
  %v845 = vpop.permute.xlu0 %844
  %v847 = vsel %vm155, %v843, 0
  %v850 = vsel %vm155, %v845, 0
  %852 = vmatprep.subr.bf16.mxu0 0
  %853 = vmatpush1.bf16.xpose.msra.mxu0 %v850
  %854 = vmatprep.subr.bf16.mxu0 0
  %855 = vmatpush1.bf16.xpose.msra.mxu0 0
  %856 = vmatprep.subr.bf16.mxu0 0
  %857 = vmatpush1.bf16.xpose.msra.mxu0 0
  %858 = vmatprep.subr.bf16.mxu0 0
  %859 = vmatpush1.bf16.xpose.msra.mxu0 0
  %860 = vmatprep.subr.bf16.mxu0 0
  %861 = vmatpush1.bf16.xpose.msra.mxu0 0
  %862 = vmatprep.subr.bf16.mxu0 0
  %863 = vmatpush1.bf16.xpose.msra.mxu0 0
  %864 = vmatprep.subr.bf16.mxu0 0
  %865 = vmatpush1.bf16.xpose.msra.mxu0 0
  %866 = vmatprep.subr.bf16.mxu0 0
  %867 = vmatpush1.bf16.xpose.msra.mxu0 0
  %868 = vmatprep.subr.bf16.mxu0 0
  %869 = vmatpush1.bf16.xpose.msra.mxu0 0
  %870 = vmatprep.subr.bf16.mxu0 0
  %871 = vmatpush1.bf16.xpose.msra.mxu0 0
  %872 = vmatprep.subr.bf16.mxu0 0
  %873 = vmatpush1.bf16.xpose.msra.mxu0 0
  %874 = vmatprep.subr.bf16.mxu0 0
  %875 = vmatpush1.bf16.xpose.msra.mxu0 0
  %876 = vmatprep.subr.bf16.mxu0 0
  %877 = vmatpush1.bf16.xpose.msra.mxu0 0
  %878 = vmatprep.subr.bf16.mxu0 0
  %879 = vmatpush1.bf16.xpose.msra.mxu0 0
  %880 = vmatprep.subr.bf16.mxu0 0
  %881 = vmatpush1.bf16.xpose.msra.mxu0 0
  %882 = vmatprep.subr.bf16.mxu0 0
  %883 = vmatpush1.bf16.xpose.msra.mxu0 0
  %884 = vmatprep.mubr.bf16.mxu0 0
  %885 = vmatmul.mubr.bf16.gmra.mrb[0].mxu0 %v847
  %v886 = vpop.f32.mrb[0].mxu0
  %v887 = vadd.f32 0.0, %v886
  %v888 = vpop.f32.mrb[0].mxu0
  %v889 = vpop.f32.mrb[0].mxu0
  %v890 = vpop.f32.mrb[0].mxu0
  %891 = vdwg.mxu0
  %v892 = vmul.f32 %v887, 0.35355338
  %v893 = vadd.f32 %v892, %v81
  %v894 = vsel %vm155, %v893, -inf
  %895 = vmax.xlane.f32.xlu0 %v894
  %v896 = vpop.xlane.xlu0 %895
  %v897 = vsub.f32 %v893, %v896
  %v898 = vmul.f32 %v897, 1.442695
  %v899 = vpow.pop %v898
  %v900 = vsel %vm155, %v899, 0.0
  %901 = vadd.xlane.f32.xlu0 %v900
  %v902 = vpop.xlane.xlu0 %901
  %v903 = vrcp.pop %v902
  %v904 = vmul.f32 %v899, %v903
  %v905 = vpack.c.bf16 %v904, %v904
  %906 = vrot.lane.b32.xlu0 %v618, 48
  %v907 = vpop.permute.xlu0 %906
  %v909 = vsel %vm155, %v905, 0
  %v912 = vsel %vm221, %v907, 0
  %914 = vmatprep.subr.bf16.mxu0 0
  %915 = vmatpush1.bf16.msra.mxu0 %v912
  %916 = vmatprep.subr.bf16.mxu0 0
  %917 = vmatpush1.bf16.msra.mxu0 0
  %918 = vmatprep.subr.bf16.mxu0 0
  %919 = vmatpush1.bf16.msra.mxu0 0
  %920 = vmatprep.subr.bf16.mxu0 0
  %921 = vmatpush1.bf16.msra.mxu0 0
  %922 = vmatprep.subr.bf16.mxu0 0
  %923 = vmatpush1.bf16.msra.mxu0 0
  %924 = vmatprep.subr.bf16.mxu0 0
  %925 = vmatpush1.bf16.msra.mxu0 0
  %926 = vmatprep.subr.bf16.mxu0 0
  %927 = vmatpush1.bf16.msra.mxu0 0
  %928 = vmatprep.subr.bf16.mxu0 0
  %929 = vmatpush1.bf16.msra.mxu0 0
  %930 = vmatprep.subr.bf16.mxu0 0
  %931 = vmatpush1.bf16.msra.mxu0 0
  %932 = vmatprep.subr.bf16.mxu0 0
  %933 = vmatpush1.bf16.msra.mxu0 0
  %934 = vmatprep.subr.bf16.mxu0 0
  %935 = vmatpush1.bf16.msra.mxu0 0
  %936 = vmatprep.subr.bf16.mxu0 0
  %937 = vmatpush1.bf16.msra.mxu0 0
  %938 = vmatprep.subr.bf16.mxu0 0
  %939 = vmatpush1.bf16.msra.mxu0 0
  %940 = vmatprep.subr.bf16.mxu0 0
  %941 = vmatpush1.bf16.msra.mxu0 0
  %942 = vmatprep.subr.bf16.mxu0 0
  %943 = vmatpush1.bf16.msra.mxu0 0
  %944 = vmatprep.subr.bf16.mxu0 0
  %945 = vmatpush1.bf16.msra.mxu0 0
  %946 = vmatprep.mubr.bf16.mxu0 0
  %947 = vmatmul.mubr.bf16.gmra.mrb[0].mxu0 %v909
  %v948 = vpop.f32.mrb[0].mxu0
  %v949 = vadd.f32 0.0, %v948
  %v950 = vpop.f32.mrb[0].mxu0
  %v951 = vpop.f32.mrb[0].mxu0
  %v952 = vpop.f32.mrb[0].mxu0
  %953 = vdwg.mxu0
  %954 = vrot.lane.b32.xlu0 %v618, 104
  %v955 = vpop.permute.xlu0 %954
  %956 = vrot.lane.b32.xlu0 %v618, 72
  %v957 = vpop.permute.xlu0 %956
  %v959 = vsel %vm155, %v955, 0
  %v962 = vsel %vm155, %v957, 0
  %964 = vmatprep.subr.bf16.mxu0 0
  %965 = vmatpush1.bf16.xpose.msra.mxu0 %v962
  %966 = vmatprep.subr.bf16.mxu0 0
  %967 = vmatpush1.bf16.xpose.msra.mxu0 0
  %968 = vmatprep.subr.bf16.mxu0 0
  %969 = vmatpush1.bf16.xpose.msra.mxu0 0
  %970 = vmatprep.subr.bf16.mxu0 0
  %971 = vmatpush1.bf16.xpose.msra.mxu0 0
  %972 = vmatprep.subr.bf16.mxu0 0
  %973 = vmatpush1.bf16.xpose.msra.mxu0 0
  %974 = vmatprep.subr.bf16.mxu0 0
  %975 = vmatpush1.bf16.xpose.msra.mxu0 0
  %976 = vmatprep.subr.bf16.mxu0 0
  %977 = vmatpush1.bf16.xpose.msra.mxu0 0
  %978 = vmatprep.subr.bf16.mxu0 0
  %979 = vmatpush1.bf16.xpose.msra.mxu0 0
  %980 = vmatprep.subr.bf16.mxu0 0
  %981 = vmatpush1.bf16.xpose.msra.mxu0 0
  %982 = vmatprep.subr.bf16.mxu0 0
  %983 = vmatpush1.bf16.xpose.msra.mxu0 0
  %984 = vmatprep.subr.bf16.mxu0 0
  %985 = vmatpush1.bf16.xpose.msra.mxu0 0
  %986 = vmatprep.subr.bf16.mxu0 0
  %987 = vmatpush1.bf16.xpose.msra.mxu0 0
  %988 = vmatprep.subr.bf16.mxu0 0
  %989 = vmatpush1.bf16.xpose.msra.mxu0 0
  %990 = vmatprep.subr.bf16.mxu0 0
  %991 = vmatpush1.bf16.xpose.msra.mxu0 0
  %992 = vmatprep.subr.bf16.mxu0 0
  %993 = vmatpush1.bf16.xpose.msra.mxu0 0
  %994 = vmatprep.subr.bf16.mxu0 0
  %995 = vmatpush1.bf16.xpose.msra.mxu0 0
  %996 = vmatprep.mubr.bf16.mxu0 0
  %997 = vmatmul.mubr.bf16.gmra.mrb[0].mxu0 %v959
  %v998 = vpop.f32.mrb[0].mxu0
  %v999 = vadd.f32 0.0, %v998
  %v1000 = vpop.f32.mrb[0].mxu0
  %v1001 = vpop.f32.mrb[0].mxu0
  %v1002 = vpop.f32.mrb[0].mxu0
  %1003 = vdwg.mxu0
  %v1004 = vmul.f32 %v999, 0.35355338
  %v1005 = vadd.f32 %v1004, %v81
  %v1006 = vsel %vm155, %v1005, -inf
  %1007 = vmax.xlane.f32.xlu0 %v1006
  %v1008 = vpop.xlane.xlu0 %1007
  %v1009 = vsub.f32 %v1005, %v1008
  %v1010 = vmul.f32 %v1009, 1.442695
  %v1011 = vpow.pop %v1010
  %v1012 = vsel %vm155, %v1011, 0.0
  %1013 = vadd.xlane.f32.xlu0 %v1012
  %v1014 = vpop.xlane.xlu0 %1013
  %v1015 = vrcp.pop %v1014
  %v1016 = vmul.f32 %v1011, %v1015
  %v1017 = vpack.c.bf16 %v1016, %v1016
  %1018 = vrot.lane.b32.xlu0 %v618, 40
  %v1019 = vpop.permute.xlu0 %1018
  %v1021 = vsel %vm155, %v1017, 0
  %v1024 = vsel %vm221, %v1019, 0
  %1026 = vmatprep.subr.bf16.mxu0 0
  %1027 = vmatpush1.bf16.msra.mxu0 %v1024
  %1028 = vmatprep.subr.bf16.mxu0 0
  %1029 = vmatpush1.bf16.msra.mxu0 0
  %1030 = vmatprep.subr.bf16.mxu0 0
  %1031 = vmatpush1.bf16.msra.mxu0 0
  %1032 = vmatprep.subr.bf16.mxu0 0
  %1033 = vmatpush1.bf16.msra.mxu0 0
  %1034 = vmatprep.subr.bf16.mxu0 0
  %1035 = vmatpush1.bf16.msra.mxu0 0
  %1036 = vmatprep.subr.bf16.mxu0 0
  %1037 = vmatpush1.bf16.msra.mxu0 0
  %1038 = vmatprep.subr.bf16.mxu0 0
  %1039 = vmatpush1.bf16.msra.mxu0 0
  %1040 = vmatprep.subr.bf16.mxu0 0
  %1041 = vmatpush1.bf16.msra.mxu0 0
  %1042 = vmatprep.subr.bf16.mxu0 0
  %1043 = vmatpush1.bf16.msra.mxu0 0
  %1044 = vmatprep.subr.bf16.mxu0 0
  %1045 = vmatpush1.bf16.msra.mxu0 0
  %1046 = vmatprep.subr.bf16.mxu0 0
  %1047 = vmatpush1.bf16.msra.mxu0 0
  %1048 = vmatprep.subr.bf16.mxu0 0
  %1049 = vmatpush1.bf16.msra.mxu0 0
  %1050 = vmatprep.subr.bf16.mxu0 0
  %1051 = vmatpush1.bf16.msra.mxu0 0
  %1052 = vmatprep.subr.bf16.mxu0 0
  %1053 = vmatpush1.bf16.msra.mxu0 0
  %1054 = vmatprep.subr.bf16.mxu0 0
  %1055 = vmatpush1.bf16.msra.mxu0 0
  %1056 = vmatprep.subr.bf16.mxu0 0
  %1057 = vmatpush1.bf16.msra.mxu0 0
  %1058 = vmatprep.mubr.bf16.mxu0 0
  %1059 = vmatmul.mubr.bf16.gmra.mrb[0].mxu0 %v1021
  %v1060 = vpop.f32.mrb[0].mxu0
  %v1061 = vadd.f32 0.0, %v1060
  %v1062 = vpop.f32.mrb[0].mxu0
  %v1063 = vpop.f32.mrb[0].mxu0
  %v1064 = vpop.f32.mrb[0].mxu0
  %1065 = vdwg.mxu0
  %1067 = vrot.lane.b32.xlu0 %v837, 8
  %v1068 = vpop.permute.xlu0 %1067
  %1071 = vrot.lane.b32.xlu0 %v949, 16
  %v1072 = vpop.permute.xlu0 %1071
  %1075 = vrot.lane.b32.xlu0 %v1061, 24
  %v1076 = vpop.permute.xlu0 %1075
  %v1078 = vsel %vm155, %v725, %v1068
  %v1079 = vsel %vm614, %v1078, %v1072
  %v1080 = vsel %vm616, %v1079, %v1076
  %v1081 = vpack.c.bf16 %v1080, %v617
  %v1082 = vld [vmem:[%s4] sm:$0xf]
  %v1083 = vld [vmem:[%s4 + $0x4] sm:$0xf]
  %v1084 = vld [vmem:[%s4 + $0x8] sm:$0xf]
  %v1085 = vld [vmem:[%s4 + $0xc] sm:$0xf]
  %v1086 = vld [vmem:[%s5] sm:$0x1]
  %v1088 = vlaneseq
  %v1089 = vshrl.u32 %v1088, 7
  %v1090 = vsub.s32 0, %v1089
  %v1091 = vrot.slane %v1086, %v1090
  %v1097 = vunpack.c.l.b16 %v1082
  %v1098 = vunpack.c.l.b16 %v1083
  %v1099 = vunpack.c.l.b16 %v1084
  %v1100 = vunpack.c.l.b16 %v1085
  %v1101 = vpack.c.b16 %v1098, %v1097
  %v1102 = vpack.c.b16 %v1100, %v1099
  %v1106 = vsel %vm106, %v1081, 0
  %1108 = vmatprep.subr.bf16.mxu0 0
  %1109 = vmatpush1.bf16.msra.mxu0 %v1101
  %1110 = vmatprep.subr.bf16.mxu0 0
  %1111 = vmatpush1.bf16.msra.mxu0 %v1102
  %1112 = vmatprep.subr.bf16.mxu0 0
  %1113 = vmatpush1.bf16.msra.mxu0 0
  %1114 = vmatprep.subr.bf16.mxu0 0
  %1115 = vmatpush1.bf16.msra.mxu0 0
  %1116 = vmatprep.subr.bf16.mxu0 0
  %1117 = vmatpush1.bf16.msra.mxu0 0
  %1118 = vmatprep.subr.bf16.mxu0 0
  %1119 = vmatpush1.bf16.msra.mxu0 0
  %1120 = vmatprep.subr.bf16.mxu0 0
  %1121 = vmatpush1.bf16.msra.mxu0 0
  %1122 = vmatprep.subr.bf16.mxu0 0
  %1123 = vmatpush1.bf16.msra.mxu0 0
  %1124 = vmatprep.subr.bf16.mxu0 0
  %1125 = vmatpush1.bf16.msra.mxu0 0
  %1126 = vmatprep.subr.bf16.mxu0 0
  %1127 = vmatpush1.bf16.msra.mxu0 0
  %1128 = vmatprep.subr.bf16.mxu0 0
  %1129 = vmatpush1.bf16.msra.mxu0 0
  %1130 = vmatprep.subr.bf16.mxu0 0
  %1131 = vmatpush1.bf16.msra.mxu0 0
  %1132 = vmatprep.subr.bf16.mxu0 0
  %1133 = vmatpush1.bf16.msra.mxu0 0
  %1134 = vmatprep.subr.bf16.mxu0 0
  %1135 = vmatpush1.bf16.msra.mxu0 0
  %1136 = vmatprep.subr.bf16.mxu0 0
  %1137 = vmatpush1.bf16.msra.mxu0 0
  %1138 = vmatprep.subr.bf16.mxu0 0
  %1139 = vmatpush1.bf16.msra.mxu0 0
  %1140 = vmatprep.mubr.bf16.mxu0 0
  %1141 = vmatmul.mubr.bf16.gmra.mrb[0].mxu0 %v1106
  %v1142 = vpop.f32.mrb[0].mxu0
  %v1143 = vadd.f32 %v1091, %v1142
  %v1144 = vpop.f32.mrb[0].mxu0
  %v1145 = vpop.f32.mrb[0].mxu0
  %v1146 = vadd.f32 %v1091, %v1145
  %v1147 = vpop.f32.mrb[0].mxu0
  %1148 = vdwg.mxu0
  %v1149 = vadd.f32 %v72, %v1143
  %v1150 = vadd.f32 %v73, %v1146
  %v1151 = vsel %vm106, %v1149, 0.0
  %1152 = vadd.xlane.f32.xlu0 %v1151
  %v1153 = vpop.xlane.xlu0 %1152
  %v1154 = vsel %vm106, %v1150, 0.0
  %1155 = vadd.xlane.f32.xlu0 %v1154
  %v1156 = vpop.xlane.xlu0 %1155
  %v1157 = vrcp.pop 32.0
  %v1158 = vmul.f32 %v1153, %v1157
  %v1159 = vmul.f32 %v1156, %v1157
  %v1160 = vmul.f32 %v1149, %v1149
  %v1161 = vmul.f32 %v1150, %v1150
  %v1162 = vsel %vm106, %v1160, 0.0
  %1163 = vadd.xlane.f32.xlu0 %v1162
  %v1164 = vpop.xlane.xlu0 %1163
  %v1165 = vsel %vm106, %v1161, 0.0
  %1166 = vadd.xlane.f32.xlu0 %v1165
  %v1167 = vpop.xlane.xlu0 %1166
  %v1168 = vmul.f32 %v1164, %v1157
  %v1169 = vmul.f32 %v1167, %v1157
  %v1170 = vmul.f32 %v1158, %v1158
  %v1171 = vmul.f32 %v1159, %v1159
  %v1172 = vsub.f32 %v1168, %v1170
  %v1173 = vsub.f32 %v1169, %v1171
  %v1174 = vadd.f32 %v1172, 1e-05
  %v1175 = vadd.f32 %v1173, 1e-05
  %v1176 = vrsqrt.pop %v1174
  %v1177 = vrsqrt.pop %v1175
  %v1178 = vsub.f32 %v1149, %v1158
  %v1179 = vsub.f32 %v1150, %v1159
  %v1180 = vld [vmem:[%s6] sm:$0x1]
  %v1182 = vlaneseq
  %v1183 = vshrl.u32 %v1182, 7
  %v1184 = vsub.s32 0, %v1183
  %v1185 = vrot.slane %v1180, %v1184
  %v1187 = vmul.f32 %v1176, %v1185
  %v1188 = vmul.f32 %v1177, %v1185
  %v1189 = vmul.f32 %v1178, %v1187
  %v1190 = vmul.f32 %v1179, %v1188
  %v1191 = vld [vmem:[%s7] sm:$0x1]
  %v1193 = vlaneseq
  %v1194 = vshrl.u32 %v1193, 7
  %v1195 = vsub.s32 0, %v1194
  %v1196 = vrot.slane %v1191, %v1195
  %v1198 = vadd.f32 %v1189, %v1196
  %v1199 = vadd.f32 %v1190, %v1196
  %v1200 = vpack.c.bf16 %v1199, %v1198
  %v1201 = vld [vmem:[%s8] sm:$0xf]
  %v1202 = vld [vmem:[%s8 + $0x4] sm:$0xf]
  %v1203 = vld [vmem:[%s8 + $0x8] sm:$0xf]
  %v1204 = vld [vmem:[%s8 + $0xc] sm:$0xf]
  %v1205 = vld [vmem:[%s9] sm:$0x1]
  %v1207 = vlaneseq
  %v1208 = vshrl.u32 %v1207, 7
  %v1209 = vsub.s32 0, %v1208
  %v1210 = vrot.slane %v1205, %v1209
  %v1216 = vunpack.c.l.b16 %v1201
  %v1217 = vunpack.c.l.b16 %v1202
  %v1218 = vunpack.c.l.b16 %v1203
  %v1219 = vunpack.c.l.b16 %v1204
  %v1220 = vpack.c.b16 %v1217, %v1216
  %v1221 = vpack.c.b16 %v1219, %v1218
  %v1225 = vsel %vm106, %v1200, 0
  %1227 = vmatprep.subr.bf16.mxu0 0
  %1228 = vmatpush1.bf16.msra.mxu0 %v1220
  %1229 = vmatprep.subr.bf16.mxu0 0
  %1230 = vmatpush1.bf16.msra.mxu0 %v1221
  %1231 = vmatprep.subr.bf16.mxu0 0
  %1232 = vmatpush1.bf16.msra.mxu0 0
  %1233 = vmatprep.subr.bf16.mxu0 0
  %1234 = vmatpush1.bf16.msra.mxu0 0
  %1235 = vmatprep.subr.bf16.mxu0 0
  %1236 = vmatpush1.bf16.msra.mxu0 0
  %1237 = vmatprep.subr.bf16.mxu0 0
  %1238 = vmatpush1.bf16.msra.mxu0 0
  %1239 = vmatprep.subr.bf16.mxu0 0
  %1240 = vmatpush1.bf16.msra.mxu0 0
  %1241 = vmatprep.subr.bf16.mxu0 0
  %1242 = vmatpush1.bf16.msra.mxu0 0
  %1243 = vmatprep.subr.bf16.mxu0 0
  %1244 = vmatpush1.bf16.msra.mxu0 0
  %1245 = vmatprep.subr.bf16.mxu0 0
  %1246 = vmatpush1.bf16.msra.mxu0 0
  %1247 = vmatprep.subr.bf16.mxu0 0
  %1248 = vmatpush1.bf16.msra.mxu0 0
  %1249 = vmatprep.subr.bf16.mxu0 0
  %1250 = vmatpush1.bf16.msra.mxu0 0
  %1251 = vmatprep.subr.bf16.mxu0 0
  %1252 = vmatpush1.bf16.msra.mxu0 0
  %1253 = vmatprep.subr.bf16.mxu0 0
  %1254 = vmatpush1.bf16.msra.mxu0 0
  %1255 = vmatprep.subr.bf16.mxu0 0
  %1256 = vmatpush1.bf16.msra.mxu0 0
  %1257 = vmatprep.subr.bf16.mxu0 0
  %1258 = vmatpush1.bf16.msra.mxu0 0
  %1259 = vmatprep.mubr.bf16.mxu0 0
  %1260 = vmatmul.mubr.bf16.gmra.mrb[0].mxu0 %v1225
  %v1261 = vpop.f32.mrb[0].mxu0
  %v1262 = vadd.f32 %v1210, %v1261
  %v1263 = vpop.f32.mrb[0].mxu0
  %v1264 = vpop.f32.mrb[0].mxu0
  %v1265 = vadd.f32 %v1210, %v1264
  %v1266 = vpop.f32.mrb[0].mxu0
  %1267 = vdwg.mxu0
  %v1268 = vpack.c.bf16 %v75, %v74
  %v1269 = vld [vmem:[%s10] sm:$0xf]
  %v1270 = vld [vmem:[%s10 + $0x4] sm:$0xf]
  %v1271 = vld [vmem:[%s10 + $0x8] sm:$0xf]
  %v1272 = vld [vmem:[%s10 + $0xc] sm:$0xf]
  %v1273 = vld [vmem:[%s11] sm:$0x1]
  %v1275 = vlaneseq
  %v1276 = vshrl.u32 %v1275, 7
  %v1277 = vsub.s32 0, %v1276
  %v1278 = vrot.slane %v1273, %v1277
  %v1284 = vunpack.c.l.b16 %v1269
  %v1285 = vunpack.c.l.b16 %v1270
  %v1286 = vunpack.c.l.b16 %v1271
  %v1287 = vunpack.c.l.b16 %v1272
  %v1288 = vpack.c.b16 %v1285, %v1284
  %v1289 = vpack.c.b16 %v1287, %v1286
  %v1293 = vsel %vm106, %v1268, 0
  %1295 = vmatprep.subr.bf16.mxu0 0
  %1296 = vmatpush1.bf16.msra.mxu0 %v1288
  %1297 = vmatprep.subr.bf16.mxu0 0
  %1298 = vmatpush1.bf16.msra.mxu0 %v1289
  %1299 = vmatprep.subr.bf16.mxu0 0
  %1300 = vmatpush1.bf16.msra.mxu0 0
  %1301 = vmatprep.subr.bf16.mxu0 0
  %1302 = vmatpush1.bf16.msra.mxu0 0
  %1303 = vmatprep.subr.bf16.mxu0 0
  %1304 = vmatpush1.bf16.msra.mxu0 0
  %1305 = vmatprep.subr.bf16.mxu0 0
  %1306 = vmatpush1.bf16.msra.mxu0 0
  %1307 = vmatprep.subr.bf16.mxu0 0
  %1308 = vmatpush1.bf16.msra.mxu0 0
  %1309 = vmatprep.subr.bf16.mxu0 0
  %1310 = vmatpush1.bf16.msra.mxu0 0
  %1311 = vmatprep.subr.bf16.mxu0 0
  %1312 = vmatpush1.bf16.msra.mxu0 0
  %1313 = vmatprep.subr.bf16.mxu0 0
  %1314 = vmatpush1.bf16.msra.mxu0 0
  %1315 = vmatprep.subr.bf16.mxu0 0
  %1316 = vmatpush1.bf16.msra.mxu0 0
  %1317 = vmatprep.subr.bf16.mxu0 0
  %1318 = vmatpush1.bf16.msra.mxu0 0
  %1319 = vmatprep.subr.bf16.mxu0 0
  %1320 = vmatpush1.bf16.msra.mxu0 0
  %1321 = vmatprep.subr.bf16.mxu0 0
  %1322 = vmatpush1.bf16.msra.mxu0 0
  %1323 = vmatprep.subr.bf16.mxu0 0
  %1324 = vmatpush1.bf16.msra.mxu0 0
  %1325 = vmatprep.subr.bf16.mxu0 0
  %1326 = vmatpush1.bf16.msra.mxu0 0
  %1327 = vmatprep.mubr.bf16.mxu0 0
  %1328 = vmatmul.mubr.bf16.gmra.mrb[0].mxu0 %v1293
  %v1329 = vpop.f32.mrb[0].mxu0
  %v1330 = vadd.f32 %v1278, %v1329
  %v1331 = vpop.f32.mrb[0].mxu0
  %v1332 = vpop.f32.mrb[0].mxu0
  %v1333 = vadd.f32 %v1278, %v1332
  %v1334 = vpop.f32.mrb[0].mxu0
  %1335 = vdwg.mxu0
  %v1336 = vpack.c.bf16 %v1262, %v1262
  %v1337 = vpack.c.bf16 %v1330, %v1330
  %v1339 = vsel %vm155, %v1336, 0
  %v1342 = vsel %vm155, %v1337, 0
  %1344 = vmatprep.subr.bf16.mxu0 0
  %1345 = vmatpush1.bf16.xpose.msra.mxu0 %v1342
  %1346 = vmatprep.subr.bf16.mxu0 0
  %1347 = vmatpush1.bf16.xpose.msra.mxu0 0
  %1348 = vmatprep.subr.bf16.mxu0 0
  %1349 = vmatpush1.bf16.xpose.msra.mxu0 0
  %1350 = vmatprep.subr.bf16.mxu0 0
  %1351 = vmatpush1.bf16.xpose.msra.mxu0 0
  %1352 = vmatprep.subr.bf16.mxu0 0
  %1353 = vmatpush1.bf16.xpose.msra.mxu0 0
  %1354 = vmatprep.subr.bf16.mxu0 0
  %1355 = vmatpush1.bf16.xpose.msra.mxu0 0
  %1356 = vmatprep.subr.bf16.mxu0 0
  %1357 = vmatpush1.bf16.xpose.msra.mxu0 0
  %1358 = vmatprep.subr.bf16.mxu0 0
  %1359 = vmatpush1.bf16.xpose.msra.mxu0 0
  %1360 = vmatprep.subr.bf16.mxu0 0
  %1361 = vmatpush1.bf16.xpose.msra.mxu0 0
  %1362 = vmatprep.subr.bf16.mxu0 0
  %1363 = vmatpush1.bf16.xpose.msra.mxu0 0
  %1364 = vmatprep.subr.bf16.mxu0 0
  %1365 = vmatpush1.bf16.xpose.msra.mxu0 0
  %1366 = vmatprep.subr.bf16.mxu0 0
  %1367 = vmatpush1.bf16.xpose.msra.mxu0 0
  %1368 = vmatprep.subr.bf16.mxu0 0
  %1369 = vmatpush1.bf16.xpose.msra.mxu0 0
  %1370 = vmatprep.subr.bf16.mxu0 0
  %1371 = vmatpush1.bf16.xpose.msra.mxu0 0
  %1372 = vmatprep.subr.bf16.mxu0 0
  %1373 = vmatpush1.bf16.xpose.msra.mxu0 0
  %1374 = vmatprep.subr.bf16.mxu0 0
  %1375 = vmatpush1.bf16.xpose.msra.mxu0 0
  %1376 = vmatprep.mubr.bf16.mxu0 0
  %1377 = vmatmul.mubr.bf16.gmra.mrb[0].mxu0 %v1339
  %v1378 = vpop.f32.mrb[0].mxu0
  %v1379 = vadd.f32 0.0, %v1378
  %v1380 = vpop.f32.mrb[0].mxu0
  %v1381 = vpop.f32.mrb[0].mxu0
  %v1382 = vpop.f32.mrb[0].mxu0
  %1383 = vdwg.mxu0
  %v1384 = vmul.f32 %v1379, 0.35355338
  %v1385 = vsel %vm155, %v1384, -inf
  %1386 = vmax.xlane.f32.xlu0 %v1385
  %v1387 = vpop.xlane.xlu0 %1386
  %v1388 = vsub.f32 %v1384, %v1387
  %v1389 = vmul.f32 %v1388, 1.442695
  %v1390 = vpow.pop %v1389
  %v1391 = vsel %vm155, %v1390, 0.0
  %1392 = vadd.xlane.f32.xlu0 %v1391
  %v1393 = vpop.xlane.xlu0 %1392
  %v1394 = vrcp.pop %v1393
  %v1395 = vmul.f32 %v1390, %v1394
  %v1396 = vpack.c.bf16 %v1395, %v1395
  %1398 = vrot.lane.b32.xlu0 %v1337, 96
  %v1399 = vpop.permute.xlu0 %1398
  %v1401 = vsel %vm155, %v1396, 0
  %v1404 = vsel %vm221, %v1399, 0
  %1406 = vmatprep.subr.bf16.mxu0 0
  %1407 = vmatpush1.bf16.msra.mxu0 %v1404
  %1408 = vmatprep.subr.bf16.mxu0 0
  %1409 = vmatpush1.bf16.msra.mxu0 0
  %1410 = vmatprep.subr.bf16.mxu0 0
  %1411 = vmatpush1.bf16.msra.mxu0 0
  %1412 = vmatprep.subr.bf16.mxu0 0
  %1413 = vmatpush1.bf16.msra.mxu0 0
  %1414 = vmatprep.subr.bf16.mxu0 0
  %1415 = vmatpush1.bf16.msra.mxu0 0
  %1416 = vmatprep.subr.bf16.mxu0 0
  %1417 = vmatpush1.bf16.msra.mxu0 0
  %1418 = vmatprep.subr.bf16.mxu0 0
  %1419 = vmatpush1.bf16.msra.mxu0 0
  %1420 = vmatprep.subr.bf16.mxu0 0
  %1421 = vmatpush1.bf16.msra.mxu0 0
  %1422 = vmatprep.subr.bf16.mxu0 0
  %1423 = vmatpush1.bf16.msra.mxu0 0
  %1424 = vmatprep.subr.bf16.mxu0 0
  %1425 = vmatpush1.bf16.msra.mxu0 0
  %1426 = vmatprep.subr.bf16.mxu0 0
  %1427 = vmatpush1.bf16.msra.mxu0 0
  %1428 = vmatprep.subr.bf16.mxu0 0
  %1429 = vmatpush1.bf16.msra.mxu0 0
  %1430 = vmatprep.subr.bf16.mxu0 0
  %1431 = vmatpush1.bf16.msra.mxu0 0
  %1432 = vmatprep.subr.bf16.mxu0 0
  %1433 = vmatpush1.bf16.msra.mxu0 0
  %1434 = vmatprep.subr.bf16.mxu0 0
  %1435 = vmatpush1.bf16.msra.mxu0 0
  %1436 = vmatprep.subr.bf16.mxu0 0
  %1437 = vmatpush1.bf16.msra.mxu0 0
  %1438 = vmatprep.mubr.bf16.mxu0 0
  %1439 = vmatmul.mubr.bf16.gmra.mrb[0].mxu0 %v1401
  %v1440 = vpop.f32.mrb[0].mxu0
  %v1441 = vadd.f32 0.0, %v1440
  %v1442 = vpop.f32.mrb[0].mxu0
  %v1443 = vpop.f32.mrb[0].mxu0
  %v1444 = vpop.f32.mrb[0].mxu0
  %1445 = vdwg.mxu0
  %1447 = vrot.lane.b32.xlu0 %v1336, 120
  %v1448 = vpop.permute.xlu0 %1447
  %1449 = vrot.lane.b32.xlu0 %v1337, 120
  %v1450 = vpop.permute.xlu0 %1449
  %v1452 = vsel %vm155, %v1448, 0
  %v1455 = vsel %vm155, %v1450, 0
  %1457 = vmatprep.subr.bf16.mxu0 0
  %1458 = vmatpush1.bf16.xpose.msra.mxu0 %v1455
  %1459 = vmatprep.subr.bf16.mxu0 0
  %1460 = vmatpush1.bf16.xpose.msra.mxu0 0
  %1461 = vmatprep.subr.bf16.mxu0 0
  %1462 = vmatpush1.bf16.xpose.msra.mxu0 0
  %1463 = vmatprep.subr.bf16.mxu0 0
  %1464 = vmatpush1.bf16.xpose.msra.mxu0 0
  %1465 = vmatprep.subr.bf16.mxu0 0
  %1466 = vmatpush1.bf16.xpose.msra.mxu0 0
  %1467 = vmatprep.subr.bf16.mxu0 0
  %1468 = vmatpush1.bf16.xpose.msra.mxu0 0
  %1469 = vmatprep.subr.bf16.mxu0 0
  %1470 = vmatpush1.bf16.xpose.msra.mxu0 0
  %1471 = vmatprep.subr.bf16.mxu0 0
  %1472 = vmatpush1.bf16.xpose.msra.mxu0 0
  %1473 = vmatprep.subr.bf16.mxu0 0
  %1474 = vmatpush1.bf16.xpose.msra.mxu0 0
  %1475 = vmatprep.subr.bf16.mxu0 0
  %1476 = vmatpush1.bf16.xpose.msra.mxu0 0
  %1477 = vmatprep.subr.bf16.mxu0 0
  %1478 = vmatpush1.bf16.xpose.msra.mxu0 0
  %1479 = vmatprep.subr.bf16.mxu0 0
  %1480 = vmatpush1.bf16.xpose.msra.mxu0 0
  %1481 = vmatprep.subr.bf16.mxu0 0
  %1482 = vmatpush1.bf16.xpose.msra.mxu0 0
  %1483 = vmatprep.subr.bf16.mxu0 0
  %1484 = vmatpush1.bf16.xpose.msra.mxu0 0
  %1485 = vmatprep.subr.bf16.mxu0 0
  %1486 = vmatpush1.bf16.xpose.msra.mxu0 0
  %1487 = vmatprep.subr.bf16.mxu0 0
  %1488 = vmatpush1.bf16.xpose.msra.mxu0 0
  %1489 = vmatprep.mubr.bf16.mxu0 0
  %1490 = vmatmul.mubr.bf16.gmra.mrb[0].mxu0 %v1452
  %v1491 = vpop.f32.mrb[0].mxu0
  %v1492 = vadd.f32 0.0, %v1491
  %v1493 = vpop.f32.mrb[0].mxu0
  %v1494 = vpop.f32.mrb[0].mxu0
  %v1495 = vpop.f32.mrb[0].mxu0
  %1496 = vdwg.mxu0
  %v1497 = vmul.f32 %v1492, 0.35355338
  %v1498 = vsel %vm155, %v1497, -inf
  %1499 = vmax.xlane.f32.xlu0 %v1498
  %v1500 = vpop.xlane.xlu0 %1499
  %v1501 = vsub.f32 %v1497, %v1500
  %v1502 = vmul.f32 %v1501, 1.442695
  %v1503 = vpow.pop %v1502
  %v1504 = vsel %vm155, %v1503, 0.0
  %1505 = vadd.xlane.f32.xlu0 %v1504
  %v1506 = vpop.xlane.xlu0 %1505
  %v1507 = vrcp.pop %v1506
  %v1508 = vmul.f32 %v1503, %v1507
  %v1509 = vpack.c.bf16 %v1508, %v1508
  %1510 = vrot.lane.b32.xlu0 %v1337, 88
  %v1511 = vpop.permute.xlu0 %1510
  %v1513 = vsel %vm155, %v1509, 0
  %v1516 = vsel %vm221, %v1511, 0
  %1518 = vmatprep.subr.bf16.mxu0 0
  %1519 = vmatpush1.bf16.msra.mxu0 %v1516
  %1520 = vmatprep.subr.bf16.mxu0 0
  %1521 = vmatpush1.bf16.msra.mxu0 0
  %1522 = vmatprep.subr.bf16.mxu0 0
  %1523 = vmatpush1.bf16.msra.mxu0 0
  %1524 = vmatprep.subr.bf16.mxu0 0
  %1525 = vmatpush1.bf16.msra.mxu0 0
  %1526 = vmatprep.subr.bf16.mxu0 0
  %1527 = vmatpush1.bf16.msra.mxu0 0
  %1528 = vmatprep.subr.bf16.mxu0 0
  %1529 = vmatpush1.bf16.msra.mxu0 0
  %1530 = vmatprep.subr.bf16.mxu0 0
  %1531 = vmatpush1.bf16.msra.mxu0 0
  %1532 = vmatprep.subr.bf16.mxu0 0
  %1533 = vmatpush1.bf16.msra.mxu0 0
  %1534 = vmatprep.subr.bf16.mxu0 0
  %1535 = vmatpush1.bf16.msra.mxu0 0
  %1536 = vmatprep.subr.bf16.mxu0 0
  %1537 = vmatpush1.bf16.msra.mxu0 0
  %1538 = vmatprep.subr.bf16.mxu0 0
  %1539 = vmatpush1.bf16.msra.mxu0 0
  %1540 = vmatprep.subr.bf16.mxu0 0
  %1541 = vmatpush1.bf16.msra.mxu0 0
  %1542 = vmatprep.subr.bf16.mxu0 0
  %1543 = vmatpush1.bf16.msra.mxu0 0
  %1544 = vmatprep.subr.bf16.mxu0 0
  %1545 = vmatpush1.bf16.msra.mxu0 0
  %1546 = vmatprep.subr.bf16.mxu0 0
  %1547 = vmatpush1.bf16.msra.mxu0 0
  %1548 = vmatprep.subr.bf16.mxu0 0
  %1549 = vmatpush1.bf16.msra.mxu0 0
  %1550 = vmatprep.mubr.bf16.mxu0 0
  %1551 = vmatmul.mubr.bf16.gmra.mrb[0].mxu0 %v1513
  %v1552 = vpop.f32.mrb[0].mxu0
  %v1553 = vadd.f32 0.0, %v1552
  %v1554 = vpop.f32.mrb[0].mxu0
  %v1555 = vpop.f32.mrb[0].mxu0
  %v1556 = vpop.f32.mrb[0].mxu0
  %1557 = vdwg.mxu0
  %1558 = vrot.lane.b32.xlu0 %v1336, 112
  %v1559 = vpop.permute.xlu0 %1558
  %1560 = vrot.lane.b32.xlu0 %v1337, 112
  %v1561 = vpop.permute.xlu0 %1560
  %v1563 = vsel %vm155, %v1559, 0
  %v1566 = vsel %vm155, %v1561, 0
  %1568 = vmatprep.subr.bf16.mxu0 0
  %1569 = vmatpush1.bf16.xpose.msra.mxu0 %v1566
  %1570 = vmatprep.subr.bf16.mxu0 0
  %1571 = vmatpush1.bf16.xpose.msra.mxu0 0
  %1572 = vmatprep.subr.bf16.mxu0 0
  %1573 = vmatpush1.bf16.xpose.msra.mxu0 0
  %1574 = vmatprep.subr.bf16.mxu0 0
  %1575 = vmatpush1.bf16.xpose.msra.mxu0 0
  %1576 = vmatprep.subr.bf16.mxu0 0
  %1577 = vmatpush1.bf16.xpose.msra.mxu0 0
  %1578 = vmatprep.subr.bf16.mxu0 0
  %1579 = vmatpush1.bf16.xpose.msra.mxu0 0
  %1580 = vmatprep.subr.bf16.mxu0 0
  %1581 = vmatpush1.bf16.xpose.msra.mxu0 0
  %1582 = vmatprep.subr.bf16.mxu0 0
  %1583 = vmatpush1.bf16.xpose.msra.mxu0 0
  %1584 = vmatprep.subr.bf16.mxu0 0
  %1585 = vmatpush1.bf16.xpose.msra.mxu0 0
  %1586 = vmatprep.subr.bf16.mxu0 0
  %1587 = vmatpush1.bf16.xpose.msra.mxu0 0
  %1588 = vmatprep.subr.bf16.mxu0 0
  %1589 = vmatpush1.bf16.xpose.msra.mxu0 0
  %1590 = vmatprep.subr.bf16.mxu0 0
  %1591 = vmatpush1.bf16.xpose.msra.mxu0 0
  %1592 = vmatprep.subr.bf16.mxu0 0
  %1593 = vmatpush1.bf16.xpose.msra.mxu0 0
  %1594 = vmatprep.subr.bf16.mxu0 0
  %1595 = vmatpush1.bf16.xpose.msra.mxu0 0
  %1596 = vmatprep.subr.bf16.mxu0 0
  %1597 = vmatpush1.bf16.xpose.msra.mxu0 0
  %1598 = vmatprep.subr.bf16.mxu0 0
  %1599 = vmatpush1.bf16.xpose.msra.mxu0 0
  %1600 = vmatprep.mubr.bf16.mxu0 0
  %1601 = vmatmul.mubr.bf16.gmra.mrb[0].mxu0 %v1563
  %v1602 = vpop.f32.mrb[0].mxu0
  %v1603 = vadd.f32 0.0, %v1602
  %v1604 = vpop.f32.mrb[0].mxu0
  %v1605 = vpop.f32.mrb[0].mxu0
  %v1606 = vpop.f32.mrb[0].mxu0
  %1607 = vdwg.mxu0
  %v1608 = vmul.f32 %v1603, 0.35355338
  %v1609 = vsel %vm155, %v1608, -inf
  %1610 = vmax.xlane.f32.xlu0 %v1609
  %v1611 = vpop.xlane.xlu0 %1610
  %v1612 = vsub.f32 %v1608, %v1611
  %v1613 = vmul.f32 %v1612, 1.442695
  %v1614 = vpow.pop %v1613
  %v1615 = vsel %vm155, %v1614, 0.0
  %1616 = vadd.xlane.f32.xlu0 %v1615
  %v1617 = vpop.xlane.xlu0 %1616
  %v1618 = vrcp.pop %v1617
  %v1619 = vmul.f32 %v1614, %v1618
  %v1620 = vpack.c.bf16 %v1619, %v1619
  %1621 = vrot.lane.b32.xlu0 %v1337, 80
  %v1622 = vpop.permute.xlu0 %1621
  %v1624 = vsel %vm155, %v1620, 0
  %v1627 = vsel %vm221, %v1622, 0
  %1629 = vmatprep.subr.bf16.mxu0 0
  %1630 = vmatpush1.bf16.msra.mxu0 %v1627
  %1631 = vmatprep.subr.bf16.mxu0 0
  %1632 = vmatpush1.bf16.msra.mxu0 0
  %1633 = vmatprep.subr.bf16.mxu0 0
  %1634 = vmatpush1.bf16.msra.mxu0 0
  %1635 = vmatprep.subr.bf16.mxu0 0
  %1636 = vmatpush1.bf16.msra.mxu0 0
  %1637 = vmatprep.subr.bf16.mxu0 0
  %1638 = vmatpush1.bf16.msra.mxu0 0
  %1639 = vmatprep.subr.bf16.mxu0 0
  %1640 = vmatpush1.bf16.msra.mxu0 0
  %1641 = vmatprep.subr.bf16.mxu0 0
  %1642 = vmatpush1.bf16.msra.mxu0 0
  %1643 = vmatprep.subr.bf16.mxu0 0
  %1644 = vmatpush1.bf16.msra.mxu0 0
  %1645 = vmatprep.subr.bf16.mxu0 0
  %1646 = vmatpush1.bf16.msra.mxu0 0
  %1647 = vmatprep.subr.bf16.mxu0 0
  %1648 = vmatpush1.bf16.msra.mxu0 0
  %1649 = vmatprep.subr.bf16.mxu0 0
  %1650 = vmatpush1.bf16.msra.mxu0 0
  %1651 = vmatprep.subr.bf16.mxu0 0
  %1652 = vmatpush1.bf16.msra.mxu0 0
  %1653 = vmatprep.subr.bf16.mxu0 0
  %1654 = vmatpush1.bf16.msra.mxu0 0
  %1655 = vmatprep.subr.bf16.mxu0 0
  %1656 = vmatpush1.bf16.msra.mxu0 0
  %1657 = vmatprep.subr.bf16.mxu0 0
  %1658 = vmatpush1.bf16.msra.mxu0 0
  %1659 = vmatprep.subr.bf16.mxu0 0
  %1660 = vmatpush1.bf16.msra.mxu0 0
  %1661 = vmatprep.mubr.bf16.mxu0 0
  %1662 = vmatmul.mubr.bf16.gmra.mrb[0].mxu0 %v1624
  %v1663 = vpop.f32.mrb[0].mxu0
  %v1664 = vadd.f32 0.0, %v1663
  %v1665 = vpop.f32.mrb[0].mxu0
  %v1666 = vpop.f32.mrb[0].mxu0
  %v1667 = vpop.f32.mrb[0].mxu0
  %1668 = vdwg.mxu0
  %1669 = vrot.lane.b32.xlu0 %v1336, 104
  %v1670 = vpop.permute.xlu0 %1669
  %1671 = vrot.lane.b32.xlu0 %v1337, 104
  %v1672 = vpop.permute.xlu0 %1671
  %v1674 = vsel %vm155, %v1670, 0
  %v1677 = vsel %vm155, %v1672, 0
  %1679 = vmatprep.subr.bf16.mxu0 0
  %1680 = vmatpush1.bf16.xpose.msra.mxu0 %v1677
  %1681 = vmatprep.subr.bf16.mxu0 0
  %1682 = vmatpush1.bf16.xpose.msra.mxu0 0
  %1683 = vmatprep.subr.bf16.mxu0 0
  %1684 = vmatpush1.bf16.xpose.msra.mxu0 0
  %1685 = vmatprep.subr.bf16.mxu0 0
  %1686 = vmatpush1.bf16.xpose.msra.mxu0 0
  %1687 = vmatprep.subr.bf16.mxu0 0
  %1688 = vmatpush1.bf16.xpose.msra.mxu0 0
  %1689 = vmatprep.subr.bf16.mxu0 0
  %1690 = vmatpush1.bf16.xpose.msra.mxu0 0
  %1691 = vmatprep.subr.bf16.mxu0 0
  %1692 = vmatpush1.bf16.xpose.msra.mxu0 0
  %1693 = vmatprep.subr.bf16.mxu0 0
  %1694 = vmatpush1.bf16.xpose.msra.mxu0 0
  %1695 = vmatprep.subr.bf16.mxu0 0
  %1696 = vmatpush1.bf16.xpose.msra.mxu0 0
  %1697 = vmatprep.subr.bf16.mxu0 0
  %1698 = vmatpush1.bf16.xpose.msra.mxu0 0
  %1699 = vmatprep.subr.bf16.mxu0 0
  %1700 = vmatpush1.bf16.xpose.msra.mxu0 0
  %1701 = vmatprep.subr.bf16.mxu0 0
  %1702 = vmatpush1.bf16.xpose.msra.mxu0 0
  %1703 = vmatprep.subr.bf16.mxu0 0
  %1704 = vmatpush1.bf16.xpose.msra.mxu0 0
  %1705 = vmatprep.subr.bf16.mxu0 0
  %1706 = vmatpush1.bf16.xpose.msra.mxu0 0
  %1707 = vmatprep.subr.bf16.mxu0 0
  %1708 = vmatpush1.bf16.xpose.msra.mxu0 0
  %1709 = vmatprep.subr.bf16.mxu0 0
  %1710 = vmatpush1.bf16.xpose.msra.mxu0 0
  %1711 = vmatprep.mubr.bf16.mxu0 0
  %1712 = vmatmul.mubr.bf16.gmra.mrb[0].mxu0 %v1674
  %v1713 = vpop.f32.mrb[0].mxu0
  %v1714 = vadd.f32 0.0, %v1713
  %v1715 = vpop.f32.mrb[0].mxu0
  %v1716 = vpop.f32.mrb[0].mxu0
  %v1717 = vpop.f32.mrb[0].mxu0
  %1718 = vdwg.mxu0
  %v1719 = vmul.f32 %v1714, 0.35355338
  %v1720 = vsel %vm155, %v1719, -inf
  %1721 = vmax.xlane.f32.xlu0 %v1720
  %v1722 = vpop.xlane.xlu0 %1721
  %v1723 = vsub.f32 %v1719, %v1722
  %v1724 = vmul.f32 %v1723, 1.442695
  %v1725 = vpow.pop %v1724
  %v1726 = vsel %vm155, %v1725, 0.0
  %1727 = vadd.xlane.f32.xlu0 %v1726
  %v1728 = vpop.xlane.xlu0 %1727
  %v1729 = vrcp.pop %v1728
  %v1730 = vmul.f32 %v1725, %v1729
  %v1731 = vpack.c.bf16 %v1730, %v1730
  %1732 = vrot.lane.b32.xlu0 %v1337, 72
  %v1733 = vpop.permute.xlu0 %1732
  %v1735 = vsel %vm155, %v1731, 0
  %v1738 = vsel %vm221, %v1733, 0
  %1740 = vmatprep.subr.bf16.mxu0 0
  %1741 = vmatpush1.bf16.msra.mxu0 %v1738
  %1742 = vmatprep.subr.bf16.mxu0 0
  %1743 = vmatpush1.bf16.msra.mxu0 0
  %1744 = vmatprep.subr.bf16.mxu0 0
  %1745 = vmatpush1.bf16.msra.mxu0 0
  %1746 = vmatprep.subr.bf16.mxu0 0
  %1747 = vmatpush1.bf16.msra.mxu0 0
  %1748 = vmatprep.subr.bf16.mxu0 0
  %1749 = vmatpush1.bf16.msra.mxu0 0
  %1750 = vmatprep.subr.bf16.mxu0 0
  %1751 = vmatpush1.bf16.msra.mxu0 0
  %1752 = vmatprep.subr.bf16.mxu0 0
  %1753 = vmatpush1.bf16.msra.mxu0 0
  %1754 = vmatprep.subr.bf16.mxu0 0
  %1755 = vmatpush1.bf16.msra.mxu0 0
  %1756 = vmatprep.subr.bf16.mxu0 0
  %1757 = vmatpush1.bf16.msra.mxu0 0
  %1758 = vmatprep.subr.bf16.mxu0 0
  %1759 = vmatpush1.bf16.msra.mxu0 0
  %1760 = vmatprep.subr.bf16.mxu0 0
  %1761 = vmatpush1.bf16.msra.mxu0 0
  %1762 = vmatprep.subr.bf16.mxu0 0
  %1763 = vmatpush1.bf16.msra.mxu0 0
  %1764 = vmatprep.subr.bf16.mxu0 0
  %1765 = vmatpush1.bf16.msra.mxu0 0
  %1766 = vmatprep.subr.bf16.mxu0 0
  %1767 = vmatpush1.bf16.msra.mxu0 0
  %1768 = vmatprep.subr.bf16.mxu0 0
  %1769 = vmatpush1.bf16.msra.mxu0 0
  %1770 = vmatprep.subr.bf16.mxu0 0
  %1771 = vmatpush1.bf16.msra.mxu0 0
  %1772 = vmatprep.mubr.bf16.mxu0 0
  %1773 = vmatmul.mubr.bf16.gmra.mrb[0].mxu0 %v1735
  %v1774 = vpop.f32.mrb[0].mxu0
  %v1775 = vadd.f32 0.0, %v1774
  %v1776 = vpop.f32.mrb[0].mxu0
  %v1777 = vpop.f32.mrb[0].mxu0
  %v1778 = vpop.f32.mrb[0].mxu0
  %1779 = vdwg.mxu0
  %1781 = vrot.lane.b32.xlu0 %v1553, 8
  %v1782 = vpop.permute.xlu0 %1781
  %1785 = vrot.lane.b32.xlu0 %v1664, 16
  %v1786 = vpop.permute.xlu0 %1785
  %1789 = vrot.lane.b32.xlu0 %v1775, 24
  %v1790 = vpop.permute.xlu0 %1789
  %v1792 = vsel %vm155, %v1441, %v1782
  %v1793 = vsel %vm614, %v1792, %v1786
  %v1794 = vsel %vm616, %v1793, %v1790
  %v1795 = vpack.c.bf16 %v1265, %v1265
  %v1796 = vpack.c.bf16 %v1333, %v1333
  %v1798 = vsel %vm155, %v1795, 0
  %v1801 = vsel %vm155, %v1796, 0
  %1803 = vmatprep.subr.bf16.mxu0 0
  %1804 = vmatpush1.bf16.xpose.msra.mxu0 %v1801
  %1805 = vmatprep.subr.bf16.mxu0 0
  %1806 = vmatpush1.bf16.xpose.msra.mxu0 0
  %1807 = vmatprep.subr.bf16.mxu0 0
  %1808 = vmatpush1.bf16.xpose.msra.mxu0 0
  %1809 = vmatprep.subr.bf16.mxu0 0
  %1810 = vmatpush1.bf16.xpose.msra.mxu0 0
  %1811 = vmatprep.subr.bf16.mxu0 0
  %1812 = vmatpush1.bf16.xpose.msra.mxu0 0
  %1813 = vmatprep.subr.bf16.mxu0 0
  %1814 = vmatpush1.bf16.xpose.msra.mxu0 0
  %1815 = vmatprep.subr.bf16.mxu0 0
  %1816 = vmatpush1.bf16.xpose.msra.mxu0 0
  %1817 = vmatprep.subr.bf16.mxu0 0
  %1818 = vmatpush1.bf16.xpose.msra.mxu0 0
  %1819 = vmatprep.subr.bf16.mxu0 0
  %1820 = vmatpush1.bf16.xpose.msra.mxu0 0
  %1821 = vmatprep.subr.bf16.mxu0 0
  %1822 = vmatpush1.bf16.xpose.msra.mxu0 0
  %1823 = vmatprep.subr.bf16.mxu0 0
  %1824 = vmatpush1.bf16.xpose.msra.mxu0 0
  %1825 = vmatprep.subr.bf16.mxu0 0
  %1826 = vmatpush1.bf16.xpose.msra.mxu0 0
  %1827 = vmatprep.subr.bf16.mxu0 0
  %1828 = vmatpush1.bf16.xpose.msra.mxu0 0
  %1829 = vmatprep.subr.bf16.mxu0 0
  %1830 = vmatpush1.bf16.xpose.msra.mxu0 0
  %1831 = vmatprep.subr.bf16.mxu0 0
  %1832 = vmatpush1.bf16.xpose.msra.mxu0 0
  %1833 = vmatprep.subr.bf16.mxu0 0
  %1834 = vmatpush1.bf16.xpose.msra.mxu0 0
  %1835 = vmatprep.mubr.bf16.mxu0 0
  %1836 = vmatmul.mubr.bf16.gmra.mrb[0].mxu0 %v1798
  %v1837 = vpop.f32.mrb[0].mxu0
  %v1838 = vadd.f32 0.0, %v1837
  %v1839 = vpop.f32.mrb[0].mxu0
  %v1840 = vpop.f32.mrb[0].mxu0
  %v1841 = vpop.f32.mrb[0].mxu0
  %1842 = vdwg.mxu0
  %v1843 = vmul.f32 %v1838, 0.35355338
  %v1844 = vsel %vm155, %v1843, -inf
  %1845 = vmax.xlane.f32.xlu0 %v1844
  %v1846 = vpop.xlane.xlu0 %1845
  %v1847 = vsub.f32 %v1843, %v1846
  %v1848 = vmul.f32 %v1847, 1.442695
  %v1849 = vpow.pop %v1848
  %v1850 = vsel %vm155, %v1849, 0.0
  %1851 = vadd.xlane.f32.xlu0 %v1850
  %v1852 = vpop.xlane.xlu0 %1851
  %v1853 = vrcp.pop %v1852
  %v1854 = vmul.f32 %v1849, %v1853
  %v1855 = vpack.c.bf16 %v1854, %v1854
  %1857 = vrot.lane.b32.xlu0 %v1796, 96
  %v1858 = vpop.permute.xlu0 %1857
  %v1860 = vsel %vm155, %v1855, 0
  %v1863 = vsel %vm221, %v1858, 0
  %1865 = vmatprep.subr.bf16.mxu0 0
  %1866 = vmatpush1.bf16.msra.mxu0 %v1863
  %1867 = vmatprep.subr.bf16.mxu0 0
  %1868 = vmatpush1.bf16.msra.mxu0 0
  %1869 = vmatprep.subr.bf16.mxu0 0
  %1870 = vmatpush1.bf16.msra.mxu0 0
  %1871 = vmatprep.subr.bf16.mxu0 0
  %1872 = vmatpush1.bf16.msra.mxu0 0
  %1873 = vmatprep.subr.bf16.mxu0 0
  %1874 = vmatpush1.bf16.msra.mxu0 0
  %1875 = vmatprep.subr.bf16.mxu0 0
  %1876 = vmatpush1.bf16.msra.mxu0 0
  %1877 = vmatprep.subr.bf16.mxu0 0
  %1878 = vmatpush1.bf16.msra.mxu0 0
  %1879 = vmatprep.subr.bf16.mxu0 0
  %1880 = vmatpush1.bf16.msra.mxu0 0
  %1881 = vmatprep.subr.bf16.mxu0 0
  %1882 = vmatpush1.bf16.msra.mxu0 0
  %1883 = vmatprep.subr.bf16.mxu0 0
  %1884 = vmatpush1.bf16.msra.mxu0 0
  %1885 = vmatprep.subr.bf16.mxu0 0
  %1886 = vmatpush1.bf16.msra.mxu0 0
  %1887 = vmatprep.subr.bf16.mxu0 0
  %1888 = vmatpush1.bf16.msra.mxu0 0
  %1889 = vmatprep.subr.bf16.mxu0 0
  %1890 = vmatpush1.bf16.msra.mxu0 0
  %1891 = vmatprep.subr.bf16.mxu0 0
  %1892 = vmatpush1.bf16.msra.mxu0 0
  %1893 = vmatprep.subr.bf16.mxu0 0
  %1894 = vmatpush1.bf16.msra.mxu0 0
  %1895 = vmatprep.subr.bf16.mxu0 0
  %1896 = vmatpush1.bf16.msra.mxu0 0
  %1897 = vmatprep.mubr.bf16.mxu0 0
  %1898 = vmatmul.mubr.bf16.gmra.mrb[0].mxu0 %v1860
  %v1899 = vpop.f32.mrb[0].mxu0
  %v1900 = vadd.f32 0.0, %v1899
  %v1901 = vpop.f32.mrb[0].mxu0
  %v1902 = vpop.f32.mrb[0].mxu0
  %v1903 = vpop.f32.mrb[0].mxu0
  %1904 = vdwg.mxu0
  %1906 = vrot.lane.b32.xlu0 %v1795, 120
  %v1907 = vpop.permute.xlu0 %1906
  %1908 = vrot.lane.b32.xlu0 %v1796, 120
  %v1909 = vpop.permute.xlu0 %1908
  %v1911 = vsel %vm155, %v1907, 0
  %v1914 = vsel %vm155, %v1909, 0
  %1916 = vmatprep.subr.bf16.mxu0 0
  %1917 = vmatpush1.bf16.xpose.msra.mxu0 %v1914
  %1918 = vmatprep.subr.bf16.mxu0 0
  %1919 = vmatpush1.bf16.xpose.msra.mxu0 0
  %1920 = vmatprep.subr.bf16.mxu0 0
  %1921 = vmatpush1.bf16.xpose.msra.mxu0 0
  %1922 = vmatprep.subr.bf16.mxu0 0
  %1923 = vmatpush1.bf16.xpose.msra.mxu0 0
  %1924 = vmatprep.subr.bf16.mxu0 0
  %1925 = vmatpush1.bf16.xpose.msra.mxu0 0
  %1926 = vmatprep.subr.bf16.mxu0 0
  %1927 = vmatpush1.bf16.xpose.msra.mxu0 0
  %1928 = vmatprep.subr.bf16.mxu0 0
  %1929 = vmatpush1.bf16.xpose.msra.mxu0 0
  %1930 = vmatprep.subr.bf16.mxu0 0
  %1931 = vmatpush1.bf16.xpose.msra.mxu0 0
  %1932 = vmatprep.subr.bf16.mxu0 0
  %1933 = vmatpush1.bf16.xpose.msra.mxu0 0
  %1934 = vmatprep.subr.bf16.mxu0 0
  %1935 = vmatpush1.bf16.xpose.msra.mxu0 0
  %1936 = vmatprep.subr.bf16.mxu0 0
  %1937 = vmatpush1.bf16.xpose.msra.mxu0 0
  %1938 = vmatprep.subr.bf16.mxu0 0
  %1939 = vmatpush1.bf16.xpose.msra.mxu0 0
  %1940 = vmatprep.subr.bf16.mxu0 0
  %1941 = vmatpush1.bf16.xpose.msra.mxu0 0
  %1942 = vmatprep.subr.bf16.mxu0 0
  %1943 = vmatpush1.bf16.xpose.msra.mxu0 0
  %1944 = vmatprep.subr.bf16.mxu0 0
  %1945 = vmatpush1.bf16.xpose.msra.mxu0 0
  %1946 = vmatprep.subr.bf16.mxu0 0
  %1947 = vmatpush1.bf16.xpose.msra.mxu0 0
  %1948 = vmatprep.mubr.bf16.mxu0 0
  %1949 = vmatmul.mubr.bf16.gmra.mrb[0].mxu0 %v1911
  %v1950 = vpop.f32.mrb[0].mxu0
  %v1951 = vadd.f32 0.0, %v1950
  %v1952 = vpop.f32.mrb[0].mxu0
  %v1953 = vpop.f32.mrb[0].mxu0
  %v1954 = vpop.f32.mrb[0].mxu0
  %1955 = vdwg.mxu0
  %v1956 = vmul.f32 %v1951, 0.35355338
  %v1957 = vsel %vm155, %v1956, -inf
  %1958 = vmax.xlane.f32.xlu0 %v1957
  %v1959 = vpop.xlane.xlu0 %1958
  %v1960 = vsub.f32 %v1956, %v1959
  %v1961 = vmul.f32 %v1960, 1.442695
  %v1962 = vpow.pop %v1961
  %v1963 = vsel %vm155, %v1962, 0.0
  %1964 = vadd.xlane.f32.xlu0 %v1963
  %v1965 = vpop.xlane.xlu0 %1964
  %v1966 = vrcp.pop %v1965
  %v1967 = vmul.f32 %v1962, %v1966
  %v1968 = vpack.c.bf16 %v1967, %v1967
  %1969 = vrot.lane.b32.xlu0 %v1796, 88
  %v1970 = vpop.permute.xlu0 %1969
  %v1972 = vsel %vm155, %v1968, 0
  %v1975 = vsel %vm221, %v1970, 0
  %1977 = vmatprep.subr.bf16.mxu0 0
  %1978 = vmatpush1.bf16.msra.mxu0 %v1975
  %1979 = vmatprep.subr.bf16.mxu0 0
  %1980 = vmatpush1.bf16.msra.mxu0 0
  %1981 = vmatprep.subr.bf16.mxu0 0
  %1982 = vmatpush1.bf16.msra.mxu0 0
  %1983 = vmatprep.subr.bf16.mxu0 0
  %1984 = vmatpush1.bf16.msra.mxu0 0
  %1985 = vmatprep.subr.bf16.mxu0 0
  %1986 = vmatpush1.bf16.msra.mxu0 0
  %1987 = vmatprep.subr.bf16.mxu0 0
  %1988 = vmatpush1.bf16.msra.mxu0 0
  %1989 = vmatprep.subr.bf16.mxu0 0
  %1990 = vmatpush1.bf16.msra.mxu0 0
  %1991 = vmatprep.subr.bf16.mxu0 0
  %1992 = vmatpush1.bf16.msra.mxu0 0
  %1993 = vmatprep.subr.bf16.mxu0 0
  %1994 = vmatpush1.bf16.msra.mxu0 0
  %1995 = vmatprep.subr.bf16.mxu0 0
  %1996 = vmatpush1.bf16.msra.mxu0 0
  %1997 = vmatprep.subr.bf16.mxu0 0
  %1998 = vmatpush1.bf16.msra.mxu0 0
  %1999 = vmatprep.subr.bf16.mxu0 0
  %2000 = vmatpush1.bf16.msra.mxu0 0
  %2001 = vmatprep.subr.bf16.mxu0 0
  %2002 = vmatpush1.bf16.msra.mxu0 0
  %2003 = vmatprep.subr.bf16.mxu0 0
  %2004 = vmatpush1.bf16.msra.mxu0 0
  %2005 = vmatprep.subr.bf16.mxu0 0
  %2006 = vmatpush1.bf16.msra.mxu0 0
  %2007 = vmatprep.subr.bf16.mxu0 0
  %2008 = vmatpush1.bf16.msra.mxu0 0
  %2009 = vmatprep.mubr.bf16.mxu0 0
  %2010 = vmatmul.mubr.bf16.gmra.mrb[0].mxu0 %v1972
  %v2011 = vpop.f32.mrb[0].mxu0
  %v2012 = vadd.f32 0.0, %v2011
  %v2013 = vpop.f32.mrb[0].mxu0
  %v2014 = vpop.f32.mrb[0].mxu0
  %v2015 = vpop.f32.mrb[0].mxu0
  %2016 = vdwg.mxu0
  %2017 = vrot.lane.b32.xlu0 %v1795, 112
  %v2018 = vpop.permute.xlu0 %2017
  %2019 = vrot.lane.b32.xlu0 %v1796, 112
  %v2020 = vpop.permute.xlu0 %2019
  %v2022 = vsel %vm155, %v2018, 0
  %v2025 = vsel %vm155, %v2020, 0
  %2027 = vmatprep.subr.bf16.mxu0 0
  %2028 = vmatpush1.bf16.xpose.msra.mxu0 %v2025
  %2029 = vmatprep.subr.bf16.mxu0 0
  %2030 = vmatpush1.bf16.xpose.msra.mxu0 0
  %2031 = vmatprep.subr.bf16.mxu0 0
  %2032 = vmatpush1.bf16.xpose.msra.mxu0 0
  %2033 = vmatprep.subr.bf16.mxu0 0
  %2034 = vmatpush1.bf16.xpose.msra.mxu0 0
  %2035 = vmatprep.subr.bf16.mxu0 0
  %2036 = vmatpush1.bf16.xpose.msra.mxu0 0
  %2037 = vmatprep.subr.bf16.mxu0 0
  %2038 = vmatpush1.bf16.xpose.msra.mxu0 0
  %2039 = vmatprep.subr.bf16.mxu0 0
  %2040 = vmatpush1.bf16.xpose.msra.mxu0 0
  %2041 = vmatprep.subr.bf16.mxu0 0
  %2042 = vmatpush1.bf16.xpose.msra.mxu0 0
  %2043 = vmatprep.subr.bf16.mxu0 0
  %2044 = vmatpush1.bf16.xpose.msra.mxu0 0
  %2045 = vmatprep.subr.bf16.mxu0 0
  %2046 = vmatpush1.bf16.xpose.msra.mxu0 0
  %2047 = vmatprep.subr.bf16.mxu0 0
  %2048 = vmatpush1.bf16.xpose.msra.mxu0 0
  %2049 = vmatprep.subr.bf16.mxu0 0
  %2050 = vmatpush1.bf16.xpose.msra.mxu0 0
  %2051 = vmatprep.subr.bf16.mxu0 0
  %2052 = vmatpush1.bf16.xpose.msra.mxu0 0
  %2053 = vmatprep.subr.bf16.mxu0 0
  %2054 = vmatpush1.bf16.xpose.msra.mxu0 0
  %2055 = vmatprep.subr.bf16.mxu0 0
  %2056 = vmatpush1.bf16.xpose.msra.mxu0 0
  %2057 = vmatprep.subr.bf16.mxu0 0
  %2058 = vmatpush1.bf16.xpose.msra.mxu0 0
  %2059 = vmatprep.mubr.bf16.mxu0 0
  %2060 = vmatmul.mubr.bf16.gmra.mrb[0].mxu0 %v2022
  %v2061 = vpop.f32.mrb[0].mxu0
  %v2062 = vadd.f32 0.0, %v2061
  %v2063 = vpop.f32.mrb[0].mxu0
  %v2064 = vpop.f32.mrb[0].mxu0
  %v2065 = vpop.f32.mrb[0].mxu0
  %2066 = vdwg.mxu0
  %v2067 = vmul.f32 %v2062, 0.35355338
  %v2068 = vsel %vm155, %v2067, -inf
  %2069 = vmax.xlane.f32.xlu0 %v2068
  %v2070 = vpop.xlane.xlu0 %2069
  %v2071 = vsub.f32 %v2067, %v2070
  %v2072 = vmul.f32 %v2071, 1.442695
  %v2073 = vpow.pop %v2072
  %v2074 = vsel %vm155, %v2073, 0.0
  %2075 = vadd.xlane.f32.xlu0 %v2074
  %v2076 = vpop.xlane.xlu0 %2075
  %v2077 = vrcp.pop %v2076
  %v2078 = vmul.f32 %v2073, %v2077
  %v2079 = vpack.c.bf16 %v2078, %v2078
  %2080 = vrot.lane.b32.xlu0 %v1796, 80
  %v2081 = vpop.permute.xlu0 %2080
  %v2083 = vsel %vm155, %v2079, 0
  %v2086 = vsel %vm221, %v2081, 0
  %2088 = vmatprep.subr.bf16.mxu0 0
  %2089 = vmatpush1.bf16.msra.mxu0 %v2086
  %2090 = vmatprep.subr.bf16.mxu0 0
  %2091 = vmatpush1.bf16.msra.mxu0 0
  %2092 = vmatprep.subr.bf16.mxu0 0
  %2093 = vmatpush1.bf16.msra.mxu0 0
  %2094 = vmatprep.subr.bf16.mxu0 0
  %2095 = vmatpush1.bf16.msra.mxu0 0
  %2096 = vmatprep.subr.bf16.mxu0 0
  %2097 = vmatpush1.bf16.msra.mxu0 0
  %2098 = vmatprep.subr.bf16.mxu0 0
  %2099 = vmatpush1.bf16.msra.mxu0 0
  %2100 = vmatprep.subr.bf16.mxu0 0
  %2101 = vmatpush1.bf16.msra.mxu0 0
  %2102 = vmatprep.subr.bf16.mxu0 0
  %2103 = vmatpush1.bf16.msra.mxu0 0
  %2104 = vmatprep.subr.bf16.mxu0 0
  %2105 = vmatpush1.bf16.msra.mxu0 0
  %2106 = vmatprep.subr.bf16.mxu0 0
  %2107 = vmatpush1.bf16.msra.mxu0 0
  %2108 = vmatprep.subr.bf16.mxu0 0
  %2109 = vmatpush1.bf16.msra.mxu0 0
  %2110 = vmatprep.subr.bf16.mxu0 0
  %2111 = vmatpush1.bf16.msra.mxu0 0
  %2112 = vmatprep.subr.bf16.mxu0 0
  %2113 = vmatpush1.bf16.msra.mxu0 0
  %2114 = vmatprep.subr.bf16.mxu0 0
  %2115 = vmatpush1.bf16.msra.mxu0 0
  %2116 = vmatprep.subr.bf16.mxu0 0
  %2117 = vmatpush1.bf16.msra.mxu0 0
  %2118 = vmatprep.subr.bf16.mxu0 0
  %2119 = vmatpush1.bf16.msra.mxu0 0
  %2120 = vmatprep.mubr.bf16.mxu0 0
  %2121 = vmatmul.mubr.bf16.gmra.mrb[0].mxu0 %v2083
  %v2122 = vpop.f32.mrb[0].mxu0
  %v2123 = vadd.f32 0.0, %v2122
  %v2124 = vpop.f32.mrb[0].mxu0
  %v2125 = vpop.f32.mrb[0].mxu0
  %v2126 = vpop.f32.mrb[0].mxu0
  %2127 = vdwg.mxu0
  %2128 = vrot.lane.b32.xlu0 %v1795, 104
  %v2129 = vpop.permute.xlu0 %2128
  %2130 = vrot.lane.b32.xlu0 %v1796, 104
  %v2131 = vpop.permute.xlu0 %2130
  %v2133 = vsel %vm155, %v2129, 0
  %v2136 = vsel %vm155, %v2131, 0
  %2138 = vmatprep.subr.bf16.mxu0 0
  %2139 = vmatpush1.bf16.xpose.msra.mxu0 %v2136
  %2140 = vmatprep.subr.bf16.mxu0 0
  %2141 = vmatpush1.bf16.xpose.msra.mxu0 0
  %2142 = vmatprep.subr.bf16.mxu0 0
  %2143 = vmatpush1.bf16.xpose.msra.mxu0 0
  %2144 = vmatprep.subr.bf16.mxu0 0
  %2145 = vmatpush1.bf16.xpose.msra.mxu0 0
  %2146 = vmatprep.subr.bf16.mxu0 0
  %2147 = vmatpush1.bf16.xpose.msra.mxu0 0
  %2148 = vmatprep.subr.bf16.mxu0 0
  %2149 = vmatpush1.bf16.xpose.msra.mxu0 0
  %2150 = vmatprep.subr.bf16.mxu0 0
  %2151 = vmatpush1.bf16.xpose.msra.mxu0 0
  %2152 = vmatprep.subr.bf16.mxu0 0
  %2153 = vmatpush1.bf16.xpose.msra.mxu0 0
  %2154 = vmatprep.subr.bf16.mxu0 0
  %2155 = vmatpush1.bf16.xpose.msra.mxu0 0
  %2156 = vmatprep.subr.bf16.mxu0 0
  %2157 = vmatpush1.bf16.xpose.msra.mxu0 0
  %2158 = vmatprep.subr.bf16.mxu0 0
  %2159 = vmatpush1.bf16.xpose.msra.mxu0 0
  %2160 = vmatprep.subr.bf16.mxu0 0
  %2161 = vmatpush1.bf16.xpose.msra.mxu0 0
  %2162 = vmatprep.subr.bf16.mxu0 0
  %2163 = vmatpush1.bf16.xpose.msra.mxu0 0
  %2164 = vmatprep.subr.bf16.mxu0 0
  %2165 = vmatpush1.bf16.xpose.msra.mxu0 0
  %2166 = vmatprep.subr.bf16.mxu0 0
  %2167 = vmatpush1.bf16.xpose.msra.mxu0 0
  %2168 = vmatprep.subr.bf16.mxu0 0
  %2169 = vmatpush1.bf16.xpose.msra.mxu0 0
  %2170 = vmatprep.mubr.bf16.mxu0 0
  %2171 = vmatmul.mubr.bf16.gmra.mrb[0].mxu0 %v2133
  %v2172 = vpop.f32.mrb[0].mxu0
  %v2173 = vadd.f32 0.0, %v2172
  %v2174 = vpop.f32.mrb[0].mxu0
  %v2175 = vpop.f32.mrb[0].mxu0
  %v2176 = vpop.f32.mrb[0].mxu0
  %2177 = vdwg.mxu0
  %v2178 = vmul.f32 %v2173, 0.35355338
  %v2179 = vsel %vm155, %v2178, -inf
  %2180 = vmax.xlane.f32.xlu0 %v2179
  %v2181 = vpop.xlane.xlu0 %2180
  %v2182 = vsub.f32 %v2178, %v2181
  %v2183 = vmul.f32 %v2182, 1.442695
  %v2184 = vpow.pop %v2183
  %v2185 = vsel %vm155, %v2184, 0.0
  %2186 = vadd.xlane.f32.xlu0 %v2185
  %v2187 = vpop.xlane.xlu0 %2186
  %v2188 = vrcp.pop %v2187
  %v2189 = vmul.f32 %v2184, %v2188
  %v2190 = vpack.c.bf16 %v2189, %v2189
  %2191 = vrot.lane.b32.xlu0 %v1796, 72
  %v2192 = vpop.permute.xlu0 %2191
  %v2194 = vsel %vm155, %v2190, 0
  %v2197 = vsel %vm221, %v2192, 0
  %2199 = vmatprep.subr.bf16.mxu0 0
  %2200 = vmatpush1.bf16.msra.mxu0 %v2197
  %2201 = vmatprep.subr.bf16.mxu0 0
  %2202 = vmatpush1.bf16.msra.mxu0 0
  %2203 = vmatprep.subr.bf16.mxu0 0
  %2204 = vmatpush1.bf16.msra.mxu0 0
  %2205 = vmatprep.subr.bf16.mxu0 0
  %2206 = vmatpush1.bf16.msra.mxu0 0
  %2207 = vmatprep.subr.bf16.mxu0 0
  %2208 = vmatpush1.bf16.msra.mxu0 0
  %2209 = vmatprep.subr.bf16.mxu0 0
  %2210 = vmatpush1.bf16.msra.mxu0 0
  %2211 = vmatprep.subr.bf16.mxu0 0
  %2212 = vmatpush1.bf16.msra.mxu0 0
  %2213 = vmatprep.subr.bf16.mxu0 0
  %2214 = vmatpush1.bf16.msra.mxu0 0
  %2215 = vmatprep.subr.bf16.mxu0 0
  %2216 = vmatpush1.bf16.msra.mxu0 0
  %2217 = vmatprep.subr.bf16.mxu0 0
  %2218 = vmatpush1.bf16.msra.mxu0 0
  %2219 = vmatprep.subr.bf16.mxu0 0
  %2220 = vmatpush1.bf16.msra.mxu0 0
  %2221 = vmatprep.subr.bf16.mxu0 0
  %2222 = vmatpush1.bf16.msra.mxu0 0
  %2223 = vmatprep.subr.bf16.mxu0 0
  %2224 = vmatpush1.bf16.msra.mxu0 0
  %2225 = vmatprep.subr.bf16.mxu0 0
  %2226 = vmatpush1.bf16.msra.mxu0 0
  %2227 = vmatprep.subr.bf16.mxu0 0
  %2228 = vmatpush1.bf16.msra.mxu0 0
  %2229 = vmatprep.subr.bf16.mxu0 0
  %2230 = vmatpush1.bf16.msra.mxu0 0
  %2231 = vmatprep.mubr.bf16.mxu0 0
  %2232 = vmatmul.mubr.bf16.gmra.mrb[0].mxu0 %v2194
  %v2233 = vpop.f32.mrb[0].mxu0
  %v2234 = vadd.f32 0.0, %v2233
  %v2235 = vpop.f32.mrb[0].mxu0
  %v2236 = vpop.f32.mrb[0].mxu0
  %v2237 = vpop.f32.mrb[0].mxu0
  %2238 = vdwg.mxu0
  %2240 = vrot.lane.b32.xlu0 %v2012, 8
  %v2241 = vpop.permute.xlu0 %2240
  %2244 = vrot.lane.b32.xlu0 %v2123, 16
  %v2245 = vpop.permute.xlu0 %2244
  %2248 = vrot.lane.b32.xlu0 %v2234, 24
  %v2249 = vpop.permute.xlu0 %2248
  %v2251 = vsel %vm155, %v1900, %v2241
  %v2252 = vsel %vm614, %v2251, %v2245
  %v2253 = vsel %vm616, %v2252, %v2249
  %v2254 = vpack.c.bf16 %v2253, %v1794
  %v2255 = vld [vmem:[%s12] sm:$0xf]
  %v2256 = vld [vmem:[%s12 + $0x4] sm:$0xf]
  %v2257 = vld [vmem:[%s12 + $0x8] sm:$0xf]
  %v2258 = vld [vmem:[%s12 + $0xc] sm:$0xf]
  %v2259 = vld [vmem:[%s13] sm:$0x1]
  %v2261 = vlaneseq
  %v2262 = vshrl.u32 %v2261, 7
  %v2263 = vsub.s32 0, %v2262
  %v2264 = vrot.slane %v2259, %v2263
  %v2270 = vunpack.c.l.b16 %v2255
  %v2271 = vunpack.c.l.b16 %v2256
  %v2272 = vunpack.c.l.b16 %v2257
  %v2273 = vunpack.c.l.b16 %v2258
  %v2274 = vpack.c.b16 %v2271, %v2270
  %v2275 = vpack.c.b16 %v2273, %v2272
  %v2279 = vsel %vm106, %v2254, 0
  %2281 = vmatprep.subr.bf16.mxu0 0
  %2282 = vmatpush1.bf16.msra.mxu0 %v2274
  %2283 = vmatprep.subr.bf16.mxu0 0
  %2284 = vmatpush1.bf16.msra.mxu0 %v2275
  %2285 = vmatprep.subr.bf16.mxu0 0
  %2286 = vmatpush1.bf16.msra.mxu0 0
  %2287 = vmatprep.subr.bf16.mxu0 0
  %2288 = vmatpush1.bf16.msra.mxu0 0
  %2289 = vmatprep.subr.bf16.mxu0 0
  %2290 = vmatpush1.bf16.msra.mxu0 0
  %2291 = vmatprep.subr.bf16.mxu0 0
  %2292 = vmatpush1.bf16.msra.mxu0 0
  %2293 = vmatprep.subr.bf16.mxu0 0
  %2294 = vmatpush1.bf16.msra.mxu0 0
  %2295 = vmatprep.subr.bf16.mxu0 0
  %2296 = vmatpush1.bf16.msra.mxu0 0
  %2297 = vmatprep.subr.bf16.mxu0 0
  %2298 = vmatpush1.bf16.msra.mxu0 0
  %2299 = vmatprep.subr.bf16.mxu0 0
  %2300 = vmatpush1.bf16.msra.mxu0 0
  %2301 = vmatprep.subr.bf16.mxu0 0
  %2302 = vmatpush1.bf16.msra.mxu0 0
  %2303 = vmatprep.subr.bf16.mxu0 0
  %2304 = vmatpush1.bf16.msra.mxu0 0
  %2305 = vmatprep.subr.bf16.mxu0 0
  %2306 = vmatpush1.bf16.msra.mxu0 0
  %2307 = vmatprep.subr.bf16.mxu0 0
  %2308 = vmatpush1.bf16.msra.mxu0 0
  %2309 = vmatprep.subr.bf16.mxu0 0
  %2310 = vmatpush1.bf16.msra.mxu0 0
  %2311 = vmatprep.subr.bf16.mxu0 0
  %2312 = vmatpush1.bf16.msra.mxu0 0
  %2313 = vmatprep.mubr.bf16.mxu0 0
  %2314 = vmatmul.mubr.bf16.gmra.mrb[0].mxu0 %v2279
  %v2315 = vpop.f32.mrb[0].mxu0
  %v2316 = vadd.f32 %v2264, %v2315
  %v2317 = vpop.f32.mrb[0].mxu0
  %v2318 = vpop.f32.mrb[0].mxu0
  %v2319 = vadd.f32 %v2264, %v2318
  %v2320 = vpop.f32.mrb[0].mxu0
  %2321 = vdwg.mxu0
  %v2322 = vadd.f32 %v1198, %v2316
  %v2323 = vadd.f32 %v1199, %v2319
  %v2324 = vsel %vm106, %v2322, 0.0
  %2325 = vadd.xlane.f32.xlu0 %v2324
  %v2326 = vpop.xlane.xlu0 %2325
  %v2327 = vsel %vm106, %v2323, 0.0
  %2328 = vadd.xlane.f32.xlu0 %v2327
  %v2329 = vpop.xlane.xlu0 %2328
  %v2330 = vmul.f32 %v2326, %v1157
  %v2331 = vmul.f32 %v2329, %v1157
  %v2332 = vmul.f32 %v2322, %v2322
  %v2333 = vmul.f32 %v2323, %v2323
  %v2334 = vsel %vm106, %v2332, 0.0
  %2335 = vadd.xlane.f32.xlu0 %v2334
  %v2336 = vpop.xlane.xlu0 %2335
  %v2337 = vsel %vm106, %v2333, 0.0
  %2338 = vadd.xlane.f32.xlu0 %v2337
  %v2339 = vpop.xlane.xlu0 %2338
  %v2340 = vmul.f32 %v2336, %v1157
  %v2341 = vmul.f32 %v2339, %v1157
  %v2342 = vmul.f32 %v2330, %v2330
  %v2343 = vmul.f32 %v2331, %v2331
  %v2344 = vsub.f32 %v2340, %v2342
  %v2345 = vsub.f32 %v2341, %v2343
  %v2346 = vadd.f32 %v2344, 1e-05
  %v2347 = vadd.f32 %v2345, 1e-05
  %v2348 = vrsqrt.pop %v2346
  %v2349 = vrsqrt.pop %v2347
  %v2350 = vsub.f32 %v2322, %v2330
  %v2351 = vsub.f32 %v2323, %v2331
  %v2352 = vld [vmem:[%s14] sm:$0x1]
  %v2354 = vlaneseq
  %v2355 = vshrl.u32 %v2354, 7
  %v2356 = vsub.s32 0, %v2355
  %v2357 = vrot.slane %v2352, %v2356
  %v2359 = vmul.f32 %v2348, %v2357
  %v2360 = vmul.f32 %v2349, %v2357
  %v2361 = vmul.f32 %v2350, %v2359
  %v2362 = vmul.f32 %v2351, %v2360
  %v2363 = vld [vmem:[%s15] sm:$0x1]
  %v2365 = vlaneseq
  %v2366 = vshrl.u32 %v2365, 7
  %v2367 = vsub.s32 0, %v2366
  %v2368 = vrot.slane %v2363, %v2367
  %v2370 = vadd.f32 %v2361, %v2368
  %v2371 = vadd.f32 %v2362, %v2368
  %v2372 = vpack.c.bf16 %v2371, %v2370
  %v2373 = vld [vmem:[%s16] sm:$0xf]
  %v2374 = vld [vmem:[%s16 + $0x4] sm:$0xf]
  %v2375 = vld [vmem:[%s16 + $0x8] sm:$0xf]
  %v2376 = vld [vmem:[%s16 + $0xc] sm:$0xf]
  %v2377 = vld [vmem:[%s17] sm:$0x1]
  %v2379 = vlaneseq
  %v2380 = vshrl.u32 %v2379, 7
  %v2381 = vsub.s32 0, %v2380
  %v2382 = vrot.slane %v2377, %v2381
  %v2388 = vunpack.c.l.b16 %v2373
  %v2389 = vunpack.c.l.b16 %v2374
  %v2390 = vunpack.c.l.b16 %v2375
  %v2391 = vunpack.c.l.b16 %v2376
  %v2392 = vpack.c.b16 %v2389, %v2388
  %v2393 = vpack.c.b16 %v2391, %v2390
  %v2397 = vsel %vm106, %v2372, 0
  %2399 = vmatprep.subr.bf16.mxu0 0
  %2400 = vmatpush1.bf16.msra.mxu0 %v2392
  %2401 = vmatprep.subr.bf16.mxu0 0
  %2402 = vmatpush1.bf16.msra.mxu0 %v2393
  %2403 = vmatprep.subr.bf16.mxu0 0
  %2404 = vmatpush1.bf16.msra.mxu0 0
  %2405 = vmatprep.subr.bf16.mxu0 0
  %2406 = vmatpush1.bf16.msra.mxu0 0
  %2407 = vmatprep.subr.bf16.mxu0 0
  %2408 = vmatpush1.bf16.msra.mxu0 0
  %2409 = vmatprep.subr.bf16.mxu0 0
  %2410 = vmatpush1.bf16.msra.mxu0 0
  %2411 = vmatprep.subr.bf16.mxu0 0
  %2412 = vmatpush1.bf16.msra.mxu0 0
  %2413 = vmatprep.subr.bf16.mxu0 0
  %2414 = vmatpush1.bf16.msra.mxu0 0
  %2415 = vmatprep.subr.bf16.mxu0 0
  %2416 = vmatpush1.bf16.msra.mxu0 0
  %2417 = vmatprep.subr.bf16.mxu0 0
  %2418 = vmatpush1.bf16.msra.mxu0 0
  %2419 = vmatprep.subr.bf16.mxu0 0
  %2420 = vmatpush1.bf16.msra.mxu0 0
  %2421 = vmatprep.subr.bf16.mxu0 0
  %2422 = vmatpush1.bf16.msra.mxu0 0
  %2423 = vmatprep.subr.bf16.mxu0 0
  %2424 = vmatpush1.bf16.msra.mxu0 0
  %2425 = vmatprep.subr.bf16.mxu0 0
  %2426 = vmatpush1.bf16.msra.mxu0 0
  %2427 = vmatprep.subr.bf16.mxu0 0
  %2428 = vmatpush1.bf16.msra.mxu0 0
  %2429 = vmatprep.subr.bf16.mxu0 0
  %2430 = vmatpush1.bf16.msra.mxu0 0
  %2431 = vmatprep.mubr.bf16.mxu0 0
  %2432 = vmatmul.mubr.bf16.gmra.mrb[0].mxu0 %v2397
  %v2433 = vpop.f32.mrb[0].mxu0
  %v2434 = vadd.f32 %v2382, %v2433
  %v2435 = vpop.f32.mrb[0].mxu0
  %v2436 = vpop.f32.mrb[0].mxu0
  %v2437 = vadd.f32 %v2382, %v2436
  %v2438 = vpop.f32.mrb[0].mxu0
  %2439 = vdwg.mxu0
  %v2440 = vmax.f32 %v2434, 0.0
  %v2441 = vmax.f32 %v2437, 0.0
  %v2442 = vpack.c.bf16 %v2441, %v2440
  %v2443 = vld [vmem:[%s18] sm:$0xf]
  %v2444 = vld [vmem:[%s18 + $0x4] sm:$0xf]
  %v2445 = vld [vmem:[%s18 + $0x8] sm:$0xf]
  %v2446 = vld [vmem:[%s18 + $0xc] sm:$0xf]
  %v2447 = vld [vmem:[%s18 + $0x10] sm:$0xf]
  %v2448 = vld [vmem:[%s18 + $0x14] sm:$0xf]
  %v2449 = vld [vmem:[%s18 + $0x18] sm:$0xf]
  %v2450 = vld [vmem:[%s18 + $0x1c] sm:$0xf]
  %v2451 = vld [vmem:[%s19] sm:$0x1]
  %v2453 = vlaneseq
  %v2454 = vshrl.u32 %v2453, 7
  %v2455 = vsub.s32 0, %v2454
  %v2456 = vrot.slane %v2451, %v2455
  %v2466 = vunpack.c.l.b16 %v2443
  %v2467 = vunpack.c.l.b16 %v2444
  %v2468 = vunpack.c.l.b16 %v2445
  %v2469 = vunpack.c.l.b16 %v2446
  %v2470 = vunpack.c.l.b16 %v2447
  %v2471 = vunpack.c.l.b16 %v2448
  %v2472 = vunpack.c.l.b16 %v2449
  %v2473 = vunpack.c.l.b16 %v2450
  %v2474 = vpack.c.b16 %v2467, %v2466
  %v2475 = vpack.c.b16 %v2469, %v2468
  %v2476 = vpack.c.b16 %v2471, %v2470
  %v2477 = vpack.c.b16 %v2473, %v2472
  %vm2482 = vcmask 523264
  %v2484 = vsel %vm2482, %v2442, 0
  %2486 = vmatprep.subr.bf16.mxu0 0
  %2487 = vmatpush1.bf16.msra.mxu0 %v2474
  %2488 = vmatprep.subr.bf16.mxu0 0
  %2489 = vmatpush1.bf16.msra.mxu0 %v2475
  %2490 = vmatprep.subr.bf16.mxu0 0
  %2491 = vmatpush1.bf16.msra.mxu0 %v2476
  %2492 = vmatprep.subr.bf16.mxu0 0
  %2493 = vmatpush1.bf16.msra.mxu0 %v2477
  %2494 = vmatprep.subr.bf16.mxu0 0
  %2495 = vmatpush1.bf16.msra.mxu0 0
  %2496 = vmatprep.subr.bf16.mxu0 0
  %2497 = vmatpush1.bf16.msra.mxu0 0
  %2498 = vmatprep.subr.bf16.mxu0 0
  %2499 = vmatpush1.bf16.msra.mxu0 0
  %2500 = vmatprep.subr.bf16.mxu0 0
  %2501 = vmatpush1.bf16.msra.mxu0 0
  %2502 = vmatprep.subr.bf16.mxu0 0
  %2503 = vmatpush1.bf16.msra.mxu0 0
  %2504 = vmatprep.subr.bf16.mxu0 0
  %2505 = vmatpush1.bf16.msra.mxu0 0
  %2506 = vmatprep.subr.bf16.mxu0 0
  %2507 = vmatpush1.bf16.msra.mxu0 0
  %2508 = vmatprep.subr.bf16.mxu0 0
  %2509 = vmatpush1.bf16.msra.mxu0 0
  %2510 = vmatprep.subr.bf16.mxu0 0
  %2511 = vmatpush1.bf16.msra.mxu0 0
  %2512 = vmatprep.subr.bf16.mxu0 0
  %2513 = vmatpush1.bf16.msra.mxu0 0
  %2514 = vmatprep.subr.bf16.mxu0 0
  %2515 = vmatpush1.bf16.msra.mxu0 0
  %2516 = vmatprep.subr.bf16.mxu0 0
  %2517 = vmatpush1.bf16.msra.mxu0 0
  %2518 = vmatprep.mubr.bf16.mxu0 0
  %2519 = vmatmul.mubr.bf16.gmra.mrb[0].mxu0 %v2484
  %v2520 = vpop.f32.mrb[0].mxu0
  %v2521 = vadd.f32 %v2456, %v2520
  %v2522 = vpop.f32.mrb[0].mxu0
  %v2523 = vpop.f32.mrb[0].mxu0
  %v2524 = vadd.f32 %v2456, %v2523
  %v2525 = vpop.f32.mrb[0].mxu0
  %2526 = vdwg.mxu0
  %v2527 = vadd.f32 %v2370, %v2521
  %v2528 = vadd.f32 %v2371, %v2524
  %v2529 = vsel %vm106, %v2527, 0.0
  %2530 = vadd.xlane.f32.xlu0 %v2529
  %v2531 = vpop.xlane.xlu0 %2530
  %v2532 = vsel %vm106, %v2528, 0.0
  %2533 = vadd.xlane.f32.xlu0 %v2532
  %v2534 = vpop.xlane.xlu0 %2533
  %v2535 = vmul.f32 %v2531, %v1157
  %v2536 = vmul.f32 %v2534, %v1157
  %v2537 = vmul.f32 %v2527, %v2527
  %v2538 = vmul.f32 %v2528, %v2528
  %v2539 = vsel %vm106, %v2537, 0.0
  %2540 = vadd.xlane.f32.xlu0 %v2539
  %v2541 = vpop.xlane.xlu0 %2540
  %v2542 = vsel %vm106, %v2538, 0.0
  %2543 = vadd.xlane.f32.xlu0 %v2542
  %v2544 = vpop.xlane.xlu0 %2543
  %v2545 = vmul.f32 %v2541, %v1157
  %v2546 = vmul.f32 %v2544, %v1157
  %v2547 = vmul.f32 %v2535, %v2535
  %v2548 = vmul.f32 %v2536, %v2536
  %v2549 = vsub.f32 %v2545, %v2547
  %v2550 = vsub.f32 %v2546, %v2548
  %v2551 = vadd.f32 %v2549, 1e-05
  %v2552 = vadd.f32 %v2550, 1e-05
  %v2553 = vrsqrt.pop %v2551
  %v2554 = vrsqrt.pop %v2552
  %v2555 = vsub.f32 %v2527, %v2535
  %v2556 = vsub.f32 %v2528, %v2536
  %v2557 = vld [vmem:[%s20] sm:$0x1]
  %v2559 = vlaneseq
  %v2560 = vshrl.u32 %v2559, 7
  %v2561 = vsub.s32 0, %v2560
  %v2562 = vrot.slane %v2557, %v2561
  %v2564 = vmul.f32 %v2553, %v2562
  %v2565 = vmul.f32 %v2554, %v2562
  %v2566 = vmul.f32 %v2555, %v2564
  %v2567 = vmul.f32 %v2556, %v2565
  %v2568 = vld [vmem:[%s21] sm:$0x1]
  %v2570 = vlaneseq
  %v2571 = vshrl.u32 %v2570, 7
  %v2572 = vsub.s32 0, %v2571
  %v2573 = vrot.slane %v2568, %v2572
  %v2575 = vadd.f32 %v2566, %v2573
  %v2576 = vadd.f32 %v2567, %v2573
  %2577 = vst.msk [vmem:[%s22] sm:$0xff] %vm106, %v2575
  %2578 = vst.msk [vmem:[%s22 + $0x8] sm:$0xff] %vm106, %v2576
  // Predicated region
  $region90: #{_lambda_.3} parent=0 // pred_check
    _
  $region91: #{_lambda_.3} parent=0 // pred_check_branch
    %2580 = sbr.rel (0) target = $region93
  $region92: #{_lambda_.3} parent=0 // pred_region
    _
  $region93: #{_lambda_.3} parent=0 // pred_fallthru
    _
  // Predicated region
  $region94: #{_lambda_.3} parent=0 // pred_check
    _
  $region95: #{_lambda_.3} parent=0 // pred_check_branch
    %2582 = sbr.rel (0) target = $region97
  $region96: #{_lambda_.3} parent=0 // pred_region
    _
  $region97: #{_lambda_.3} parent=0 // pred_fallthru
    _

</llo_original>
